<compile_context>
chip_gen: v6e
topology: v6e:2x2x1
jax: 0.10.0
libtpu: 0.0.40
codegen_flags: <defaults>
</compile_context>

<pallas_src>
import functools
import math

import jax
import jax.numpy as jnp
from jax.experimental import pallas as pl
from jax.experimental.pallas import tpu as pltpu

# ------------- small config consistent with MertEncoderL2P -------------
B = 2                  # batch
T_AUDIO = 160          # raw audio samples
D = 32                 # hidden size ("output_size"; 768 in real MERT)
H = 4                  # attention heads
DH = D // H
FF = 64                # FFN inner dim
N_LAYERS = 2           # transformer layers (12 in real MERT)
CONV_LAYERS = ((1, 16, 10, 5), (16, 24, 3, 2))   # (c_in, c_out, kernel, stride)
C_CONV = CONV_LAYERS[-1][1]
POOL_SIZE = 10         # prompt_pool_size
PROMPT_LEN = 5         # prompt_length
TOP_K = 5              # selection_size
NUM_PROMPTS = TOP_K * PROMPT_LEN
LN_EPS = 1e-5


# ============================ in-kernel helpers ============================

def _ln(x, g, b, eps):
    mu = jnp.mean(x, axis=-1, keepdims=True)
    var = jnp.mean((x - mu) ** 2, axis=-1, keepdims=True)
    return (x - mu) * jax.lax.rsqrt(var + eps) * g + b


# ============================ Pallas kernels ============================

def _linear_kernel(x_ref, w_ref, b_ref, o_ref, *, activation):
    acc = jnp.dot(x_ref[...], w_ref[...], preferred_element_type=jnp.float32)
    acc = acc + b_ref[...]
    if activation == "gelu":
        # TODO(synk): HF MERT uses exact erf-GELU; tanh approximation kept for
        # robust Mosaic lowering.
        acc = jax.nn.gelu(acc, approximate=True)
    o_ref[...] = acc


def _frontend_proj_kernel(x_ref, fpg_ref, fpb_ref, w_ref, b_ref,
                          eg_ref, eb_ref, o_ref, *, eps):
    # Fused: feature-projection LayerNorm + Linear + encoder LayerNorm.
    x = _ln(x_ref[...], fpg_ref[...], fpb_ref[...], eps)
    h = jnp.dot(x, w_ref[...], preferred_element_type=jnp.float32) + b_ref[...]
    o_ref[...] = _ln(h, eg_ref[...], eb_ref[...], eps)


def _layernorm_kernel(x_ref, g_ref, b_ref, o_ref, *, eps):
    o_ref[...] = _ln(x_ref[...], g_ref[...], b_ref[...], eps)


def _fused_layer_kernel(h_ref, wqkv_ref, bqkv_ref, wo_ref, bo_ref,
                        ln1_g_ref, ln1_b_ref,
                        wff1_ref, bff1_ref, wff2_ref, bff2_ref,
                        ln2_g_ref, ln2_b_ref, o_ref, *, num_heads, eps):
    """One HuBERT post-LN transformer layer for one batch element, entirely in VMEM.

    packed QKV matmul -> per-head softmax attention -> output projection
    accumulated per head (concat(out_h) @ Wo == sum_h out_h @ Wo[rows_h], which
    avoids a lane-dim concat) -> residual+LN (fused) -> FFN(gelu) -> residual+LN.
    """
    h = h_ref[0]                                  # (S, D)
    S, Dm = h.shape
    dh = Dm // num_heads
    scale = 1.0 / math.sqrt(dh)

    qkv = jnp.dot(h, wqkv_ref[...], preferred_element_type=jnp.float32) + bqkv_ref[...]

    attn = jnp.zeros((S, Dm), jnp.float32)
    for hh in range(num_heads):                   # static unrolled loop over heads
        lo = hh * dh
        q = qkv[:, lo:lo + dh]
        k = qkv[:, Dm + lo:Dm + lo + dh]
        v = qkv[:, 2 * Dm + lo:2 * Dm + lo + dh]
        s = jax.lax.dot_general(q, k, (((1,), (1,)), ((), ())),
                                preferred_element_type=jnp.float32) * scale
        m = jnp.max(s, axis=-1, keepdims=True)
        p = jnp.exp(s - m)
        p = p * pl.reciprocal(jnp.sum(p, axis=-1, keepdims=True), approx=True)
        out_h = jnp.dot(p, v, preferred_element_type=jnp.float32)       # (S, dh)
        attn = attn + jnp.dot(out_h, wo_ref[lo:lo + dh, :],
                              preferred_element_type=jnp.float32)
    attn = attn + bo_ref[...]

    h1 = _ln(h + attn, ln1_g_ref[...], ln1_b_ref[...], eps)             # fused residual
    ff = jnp.dot(h1, wff1_ref[...], preferred_element_type=jnp.float32) + bff1_ref[...]
    # TODO(synk): exact erf-GELU in HF MERT; tanh approximation used here.
    ff = jax.nn.gelu(ff, approximate=True)
    ff = jnp.dot(ff, wff2_ref[...], preferred_element_type=jnp.float32) + bff2_ref[...]
    o_ref[0] = _ln(h1 + ff, ln2_g_ref[...], ln2_b_ref[...], eps)        # fused residual


def _cdist_kernel(q_ref, k_ref, ksq_ref, o_ref):
    q = q_ref[...]                                   # (B, D)
    k = k_ref[...]                                   # (P, D)
    q2 = jnp.sum(q * q, axis=-1, keepdims=True)      # (B, 1)
    qk = jax.lax.dot_general(q, k, (((1,), (1,)), ((), ())),
                             preferred_element_type=jnp.float32)  # (B, P)
    d2 = q2 + ksq_ref[...] - 2.0 * qk
    o_ref[...] = jnp.sqrt(jnp.maximum(d2, 0.0))


def _mean_axis1_kernel(x_ref, o_ref):
    o_ref[...] = jnp.mean(x_ref[...], axis=1)        # (R, M, D) -> (R, D)


# ============================ Pallas wrappers ============================

def _full_spec(shape):
    nd = len(shape)
    return pl.BlockSpec(shape, lambda i, _nd=nd: (0,) * _nd)


def pallas_linear(x, w, b, activation=None):
    M, K = x.shape
    N = w.shape[1]
    return pl.pallas_call(
        functools.partial(_linear_kernel, activation=activation),
        grid=(1,),
        in_specs=[_full_spec((M, K)), _full_spec((K, N)), _full_spec((1, N))],
        out_specs=_full_spec((M, N)),
        out_shape=jax.ShapeDtypeStruct((M, N), jnp.float32),
    )(x, w, b)


def pallas_frontend_proj(x2d, params):
    M, C = x2d.shape
    return pl.pallas_call(
        functools.partial(_frontend_proj_kernel, eps=LN_EPS),
        grid=(1,),
        in_specs=[_full_spec((M, C)), _full_spec((1, C)), _full_spec((1, C)),
                  _full_spec((C, D)), _full_spec((1, D)),
                  _full_spec((1, D)), _full_spec((1, D))],
        out_specs=_full_spec((M, D)),
        out_shape=jax.ShapeDtypeStruct((M, D), jnp.float32),
    )(x2d, params["fp_ln_g"], params["fp_ln_b"], params["fp_w"], params["fp_b"],
      params["enc_ln_g"], params["enc_ln_b"])


def pallas_layernorm2d(x2d, g, b, eps=LN_EPS):
    M, C = x2d.shape
    return pl.pallas_call(
        functools.partial(_layernorm_kernel, eps=eps),
        grid=(1,),
        in_specs=[_full_spec((M, C)), _full_spec((1, C)), _full_spec((1, C))],
        out_specs=_full_spec((M, C)),
        out_shape=jax.ShapeDtypeStruct((M, C), jnp.float32),
    )(x2d, g, b)


def pallas_transformer_layer(h, lp):
    Bh, S, Dm = h.shape
    h_spec = pl.BlockSpec((1, S, Dm), lambda bidx: (bidx, 0, 0))

    def wspec(arr):
        nd = arr.ndim
        return pl.BlockSpec(arr.shape, lambda bidx, _nd=nd: (0,) * _nd)

    weights = [lp["wqkv"], lp["bqkv"], lp["wo"], lp["bo"],
               lp["ln1_g"], lp["ln1_b"],
               lp["w_ff1"], lp["b_ff1"], lp["w_ff2"], lp["b_ff2"],
               lp["ln2_g"], lp["ln2_b"]]
    return pl.pallas_call(
        functools.partial(_fused_layer_kernel, num_heads=H, eps=LN_EPS),
        grid=(Bh,),
        in_specs=[h_spec] + [wspec(w) for w in weights],
        out_specs=h_spec,
        out_shape=jax.ShapeDtypeStruct((Bh, S, Dm), jnp.float32),
        compiler_params=pltpu.CompilerParams(dimension_semantics=("parallel",)),
    )(h, *weights)


def pallas_cdist(query, keys):
    Bq, Dq = query.shape
    P = keys.shape[0]
    k_sq = jnp.sum(keys * keys, axis=-1).reshape(1, P)
    return pl.pallas_call(
        _cdist_kernel,
        grid=(1,),
        in_specs=[_full_spec((Bq, Dq)), _full_spec((P, Dq)), _full_spec((1, P))],
        out_specs=_full_spec((Bq, P)),
        out_shape=jax.ShapeDtypeStruct((Bq, P), jnp.float32),
    )(query, keys, k_sq)


def pallas_mean_axis1(x):
    R, M, Dd = x.shape
    return pl.pallas_call(
        _mean_axis1_kernel,
        grid=(1,),
        in_specs=[_full_spec((R, M, Dd))],
        out_specs=_full_spec((R, Dd)),
        out_shape=jax.ShapeDtypeStruct((R, Dd), jnp.float32),
    )(x)


# ============================ model (glue + kernels) ============================

def _im2col_1d(x, kernel, stride):
    # x: (B, T, C) channels-last
    Bx, T, C = x.shape
    t_out = (T - kernel) // stride + 1
    idx = jnp.arange(t_out)[:, None] * stride + jnp.arange(kernel)[None, :]
    patches = x[:, idx, :]                                 # (B, T_out, K, C)
    return patches.reshape(Bx, t_out, kernel * C), t_out


def conv1d_gelu(x, w_flat, b, kernel, stride):
    patches, t_out = _im2col_1d(x, kernel, stride)
    Bx = patches.shape[0]
    y = pallas_linear(patches.reshape(Bx * t_out, -1), w_flat, b, activation="gelu")
    return y.reshape(Bx, t_out, -1)


def frontend(params, input_values):
    """Conv feature extractor + feature projection + encoder LayerNorm.
    Computed ONCE and shared by both the query pass and the prompted pass."""
    x = input_values[:, :, None]                             # (B, T, 1)
    for li, (cin, cout, kern, stride) in enumerate(CONV_LAYERS):
        # TODO(synk): group-norm in the first HuBERT conv layer omitted.
        x = conv1d_gelu(x, params["conv_w"][li], params["conv_b"][li], kern, stride)
    Bx, S, C = x.shape
    h0 = pallas_frontend_proj(x.reshape(Bx * S, C), params)
    # TODO(synk): grouped positional conv embedding of the HuBERT encoder omitted.
    return h0.reshape(Bx, S, D)


def run_encoder(params, h0):
    """Transformer stack; returns stacked hidden states (B, L+1, S, D)."""
    hidden_states = [h0]
    h = h0
    for lp in params["layers"]:
        h = pallas_transformer_layer(h, lp)
        hidden_states.append(h)
    return jnp.stack(hidden_states, axis=1)


def mert_l2p_forward(params, input_values):
    h0_base = frontend(params, input_values)                 # (B, S, D), reused twice
    Bq, S, _ = h0_base.shape

    # ---- query(): unprompted encoder, mean over seq then layers ----
    hs_q = run_encoder(params, h0_base)                      # (B, L+1, S, D)
    Lq = hs_q.shape[1]
    query = pallas_mean_axis1(hs_q.reshape(Bq, Lq * S, D))   # (B, D)

    # ---- PromptPool (euclidean) ----
    dist = pallas_cdist(query, params["prompt_keys"])        # (B, P)
    neg_vals, topk_idx = jax.lax.top_k(-dist, TOP_K)         # smallest distances
    topk_dist = -neg_vals
    key_loss = jnp.sum(topk_dist) / Bq
    # gather (replaces one-hot @ prompt_values matmul): einsum 'bns,sld->bnld'
    prompt = jnp.take(params["prompt_values"], topk_idx, axis=0)   # (B, K, L, D)
    prompt = prompt.reshape(Bq, NUM_PROMPTS, D)                    # view(b, -1, D)
    # TODO(synk): PromptPool usage statistics (h_sum, h, num_searches) are stateful
    # bookkeeping buffers, not computed here.

    # ---- prompted encoder pass (frontend reused; encoder LN is per-token, so
    #      LN(concat(prompt, x)) == concat(LN(prompt), LN(x)) ) ----
    prompt_ln = pallas_layernorm2d(prompt.reshape(Bq * NUM_PROMPTS, D),
                                   params["enc_ln_g"], params["enc_ln_b"])
    h0_p = jnp.concatenate([prompt_ln.reshape(Bq, NUM_PROMPTS, D), h0_base], axis=1)
    hs_p = run_encoder(params, h0_p)                         # (B, L+1, 25+S, D)
    prompt_hs = hs_p[:, :, :NUM_PROMPTS, :]                  # (B, L+1, 25, D)
    Bp, Lp, Np, _ = prompt_hs.shape
    outputs = pallas_mean_axis1(prompt_hs.reshape(Bp * Lp, Np, D)).reshape(Bp, Lp, D)
    return outputs, key_loss


# ============================ deterministic init ============================

def init_params(key):
    ks = iter(jax.random.split(key, 128))

    def nrm(shape, scale=0.02):
        return scale * jax.random.normal(next(ks), shape, dtype=jnp.float32)

    def kaiming(shape):
        fan_in = int(math.prod(shape[1:]))
        bound = math.sqrt(6.0 / fan_in)
        return jax.random.uniform(next(ks), shape, minval=-bound, maxval=bound,
                                  dtype=jnp.float32)

    p = {"conv_w": [], "conv_b": []}
    for (cin, cout, kern, _stride) in CONV_LAYERS:
        p["conv_w"].append(nrm((kern * cin, cout), scale=1.0 / math.sqrt(kern * cin)))
        p["conv_b"].append(jnp.zeros((1, cout), jnp.float32))   # HuBERT convs: no bias
    p["fp_ln_g"] = jnp.ones((1, C_CONV), jnp.float32)
    p["fp_ln_b"] = jnp.zeros((1, C_CONV), jnp.float32)
    p["fp_w"] = nrm((C_CONV, D))
    p["fp_b"] = jnp.zeros((1, D), jnp.float32)
    p["enc_ln_g"] = jnp.ones((1, D), jnp.float32)
    p["enc_ln_b"] = jnp.zeros((1, D), jnp.float32)
    layers = []
    for _ in range(N_LAYERS):
        layers.append({
            # packed QKV projection (D, 3D) per perf review
            "wqkv": nrm((D, 3 * D)), "bqkv": jnp.zeros((1, 3 * D), jnp.float32),
            "wo": nrm((D, D)), "bo": jnp.zeros((1, D), jnp.float32),
            "ln1_g": jnp.ones((1, D), jnp.float32), "ln1_b": jnp.zeros((1, D), jnp.float32),
            "w_ff1": nrm((D, FF)), "b_ff1": jnp.zeros((1, FF), jnp.float32),
            "w_ff2": nrm((FF, D)), "b_ff2": jnp.zeros((1, D), jnp.float32),
            "ln2_g": jnp.ones((1, D), jnp.float32), "ln2_b": jnp.zeros((1, D), jnp.float32),
        })
    p["layers"] = layers
    p["prompt_keys"] = kaiming((POOL_SIZE, D))
    p["prompt_values"] = kaiming((POOL_SIZE, PROMPT_LEN, D))
    return p


# ============================ main ============================

if __name__ == "__main__":
    key = jax.random.PRNGKey(0)
    pkey, xkey = jax.random.split(key)
    params = init_params(pkey)
    input_values = jax.random.normal(xkey, (B, T_AUDIO), dtype=jnp.float32)

    fwd = jax.jit(mert_l2p_forward)
    outputs, key_loss = fwd(params, input_values)
    jax.block_until_ready((outputs, key_loss))

    assert outputs.shape == (B, N_LAYERS + 1, D), outputs.shape
    assert key_loss.shape == (), key_loss.shape
    assert jnp.isfinite(outputs).all() and jnp.isfinite(key_loss)
    print("KERNEL_OK")
</pallas_src>

<mosaic_0001>
module attributes {stable_mosaic.version = 11 : i64} {
  func.func @_linear_kernel(%arg0: i32, %arg1: memref<62x10xf32, #tpu.memory_space<vmem>>, %arg2: memref<10x16xf32, #tpu.memory_space<vmem>>, %arg3: memref<1x16xf32, #tpu.memory_space<vmem>>, %arg4: memref<62x16xf32, #tpu.memory_space<vmem>>) attributes {dimension_semantics = [#tpu.dimension_semantics<arbitrary>], iteration_bounds = array<i64: 1>, scalar_prefetch = 0 : i64, scratch_operands = 0 : i64, tpu.core_type = #tpu.core_type<tc>, window_params = [{pipeline_mode = #tpu.pipeline_mode<synchronous>, transform_indices = @transform_0, window_bounds = array<i64: 62, 10>}, {pipeline_mode = #tpu.pipeline_mode<synchronous>, transform_indices = @transform_1, window_bounds = array<i64: 10, 16>}, {pipeline_mode = #tpu.pipeline_mode<synchronous>, transform_indices = @transform_2, window_bounds = array<i64: 1, 16>}, {pipeline_mode = #tpu.pipeline_mode<synchronous>, transform_indices = @transform_3, window_bounds = array<i64: 62, 16>}]} {
    %c0 = arith.constant 0 : index
    %c0_0 = arith.constant 0 : index
    %0 = vector.load %arg1[%c0, %c0_0] : memref<62x10xf32, #tpu.memory_space<vmem>>, vector<62x10xf32>
    %c0_1 = arith.constant 0 : index
    %c0_2 = arith.constant 0 : index
    %1 = vector.load %arg2[%c0_1, %c0_2] : memref<10x16xf32, #tpu.memory_space<vmem>>, vector<10x16xf32>
    %cst = arith.constant dense<0.000000e+00> : vector<62x16xf32>
    %2 = tpu.matmul %0, %1, %cst {dimension_numbers = #tpu.dot_dimension_numbers<[1], [0], [0], [1], [0, 0, 1, 1], [], []>} : vector<62x10xf32>, vector<10x16xf32>, vector<62x16xf32> -> vector<62x16xf32>
    %c0_3 = arith.constant 0 : index
    %c0_4 = arith.constant 0 : index
    %3 = vector.load %arg3[%c0_3, %c0_4] : memref<1x16xf32, #tpu.memory_space<vmem>>, vector<1x16xf32>
    %4 = vector.broadcast %3 : vector<1x16xf32> to vector<62x16xf32>
    %5 = arith.addf %2, %4 : vector<62x16xf32>
    %6 = arith.mulf %5, %5 : vector<62x16xf32>
    %7 = arith.mulf %5, %6 : vector<62x16xf32>
    %cst_5 = arith.constant 4.471500e-02 : f32
    %8 = vector.broadcast %cst_5 : f32 to vector<62x16xf32>
    %9 = arith.mulf %8, %7 : vector<62x16xf32>
    %10 = arith.addf %5, %9 : vector<62x16xf32>
    %cst_6 = arith.constant 0.797884583 : f32
    %11 = vector.broadcast %cst_6 : f32 to vector<62x16xf32>
    %12 = arith.mulf %11, %10 : vector<62x16xf32>
    %13 = math.tanh %12 : vector<62x16xf32>
    %cst_7 = arith.constant 1.000000e+00 : f32
    %14 = vector.broadcast %cst_7 : f32 to vector<62x16xf32>
    %15 = arith.addf %14, %13 : vector<62x16xf32>
    %cst_8 = arith.constant 5.000000e-01 : f32
    %16 = vector.broadcast %cst_8 : f32 to vector<62x16xf32>
    %17 = arith.mulf %16, %15 : vector<62x16xf32>
    %18 = arith.mulf %5, %17 : vector<62x16xf32>
    %c0_9 = arith.constant 0 : index
    %c0_10 = arith.constant 0 : index
    %19 = vector.load %arg4[%c0_9, %c0_10] : memref<62x16xf32, #tpu.memory_space<vmem>>, vector<62x16xf32>
    tpu.vector_store %arg4[%c0_9, %c0_10], %18 {strides = array<i32>} : memref<62x16xf32, #tpu.memory_space<vmem>>, vector<62x16xf32>,
    return
  }
  func.func @transform_0(%arg0: i32) -> (i32, i32) {
    %c0_i32 = arith.constant 0 : i32
    %c0_i32_0 = arith.constant 0 : i32
    %c0_i32_1 = arith.constant 0 : i32
    return %c0_i32, %c0_i32_0 : i32, i32
  }
  func.func @transform_1(%arg0: i32) -> (i32, i32) {
    %c0_i32 = arith.constant 0 : i32
    %c0_i32_0 = arith.constant 0 : i32
    %c0_i32_1 = arith.constant 0 : i32
    return %c0_i32, %c0_i32_0 : i32, i32
  }
  func.func @transform_2(%arg0: i32) -> (i32, i32) {
    %c0_i32 = arith.constant 0 : i32
    %c0_i32_0 = arith.constant 0 : i32
    %c0_i32_1 = arith.constant 0 : i32
    return %c0_i32, %c0_i32_0 : i32, i32
  }
  func.func @transform_3(%arg0: i32) -> (i32, i32) {
    %c0_i32 = arith.constant 0 : i32
    %c0_i32_0 = arith.constant 0 : i32
    %c0_i32_1 = arith.constant 0 : i32
    return %c0_i32, %c0_i32_0 : i32, i32
  }
}

module attributes {stable_mosaic.version = 11 : i64} {
  func.func @_linear_kernel(%arg0: i32, %arg1: memref<30x48xf32, #tpu.memory_space<vmem>>, %arg2: memref<48x24xf32, #tpu.memory_space<vmem>>, %arg3: memref<1x24xf32, #tpu.memory_space<vmem>>, %arg4: memref<30x24xf32, #tpu.memory_space<vmem>>) attributes {dimension_semantics = [#tpu.dimension_semantics<arbitrary>], iteration_bounds = array<i64: 1>, scalar_prefetch = 0 : i64, scratch_operands = 0 : i64, tpu.core_type = #tpu.core_type<tc>, window_params = [{pipeline_mode = #tpu.pipeline_mode<synchronous>, transform_indices = @transform_0, window_bounds = array<i64: 30, 48>}, {pipeline_mode = #tpu.pipeline_mode<synchronous>, transform_indices = @transform_1, window_bounds = array<i64: 48, 24>}, {pipeline_mode = #tpu.pipeline_mode<synchronous>, transform_indices = @transform_2, window_bounds = array<i64: 1, 24>}, {pipeline_mode = #tpu.pipeline_mode<synchronous>, transform_indices = @transform_3, window_bounds = array<i64: 30, 24>}]} {
    %c0 = arith.constant 0 : index
    %c0_0 = arith.constant 0 : index
    %0 = vector.load %arg1[%c0, %c0_0] : memref<30x48xf32, #tpu.memory_space<vmem>>, vector<30x48xf32>
    %c0_1 = arith.constant 0 : index
    %c0_2 = arith.constant 0 : index
    %1 = vector.load %arg2[%c0_1, %c0_2] : memref<48x24xf32, #tpu.memory_space<vmem>>, vector<48x24xf32>
    %cst = arith.constant dense<0.000000e+00> : vector<30x24xf32>
    %2 = tpu.matmul %0, %1, %cst {dimension_numbers = #tpu.dot_dimension_numbers<[1], [0], [0], [1], [0, 0, 1, 1], [], []>} : vector<30x48xf32>, vector<48x24xf32>, vector<30x24xf32> -> vector<30x24xf32>
    %c0_3 = arith.constant 0 : index
    %c0_4 = arith.constant 0 : index
    %3 = vector.load %arg3[%c0_3, %c0_4] : memref<1x24xf32, #tpu.memory_space<vmem>>, vector<1x24xf32>
    %4 = vector.broadcast %3 : vector<1x24xf32> to vector<30x24xf32>
    %5 = arith.addf %2, %4 : vector<30x24xf32>
    %6 = arith.mulf %5, %5 : vector<30x24xf32>
    %7 = arith.mulf %5, %6 : vector<30x24xf32>
    %cst_5 = arith.constant 4.471500e-02 : f32
    %8 = vector.broadcast %cst_5 : f32 to vector<30x24xf32>
    %9 = arith.mulf %8, %7 : vector<30x24xf32>
    %10 = arith.addf %5, %9 : vector<30x24xf32>
    %cst_6 = arith.constant 0.797884583 : f32
    %11 = vector.broadcast %cst_6 : f32 to vector<30x24xf32>
    %12 = arith.mulf %11, %10 : vector<30x24xf32>
    %13 = math.tanh %12 : vector<30x24xf32>
    %cst_7 = arith.constant 1.000000e+00 : f32
    %14 = vector.broadcast %cst_7 : f32 to vector<30x24xf32>
    %15 = arith.addf %14, %13 : vector<30x24xf32>
    %cst_8 = arith.constant 5.000000e-01 : f32
    %16 = vector.broadcast %cst_8 : f32 to vector<30x24xf32>
    %17 = arith.mulf %16, %15 : vector<30x24xf32>
    %18 = arith.mulf %5, %17 : vector<30x24xf32>
    %c0_9 = arith.constant 0 : index
    %c0_10 = arith.constant 0 : index
    %19 = vector.load %arg4[%c0_9, %c0_10] : memref<30x24xf32, #tpu.memory_space<vmem>>, vector<30x24xf32>
    tpu.vector_store %arg4[%c0_9, %c0_10], %18 {strides = array<i32>} : memref<30x24xf32, #tpu.memory_space<vmem>>, vector<30x24xf32>,
    return
  }
  func.func @transform_0(%arg0: i32) -> (i32, i32) {
    %c0_i32 = arith.constant 0 : i32
    %c0_i32_0 = arith.constant 0 : i32
    %c0_i32_1 = arith.constant 0 : i32
    return %c0_i32, %c0_i32_0 : i32, i32
  }
  func.func @transform_1(%arg0: i32) -> (i32, i32) {
    %c0_i32 = arith.constant 0 : i32
    %c0_i32_0 = arith.constant 0 : i32
    %c0_i32_1 = arith.constant 0 : i32
    return %c0_i32, %c0_i32_0 : i32, i32
  }
  func.func @transform_2(%arg0: i32) -> (i32, i32) {
    %c0_i32 = arith.constant 0 : i32
    %c0_i32_0 = arith.constant 0 : i32
    %c0_i32_1 = arith.constant 0 : i32
    return %c0_i32, %c0_i32_0 : i32, i32
  }
  func.func @transform_3(%arg0: i32) -> (i32, i32) {
    %c0_i32 = arith.constant 0 : i32
    %c0_i32_0 = arith.constant 0 : i32
    %c0_i32_1 = arith.constant 0 : i32
    return %c0_i32, %c0_i32_0 : i32, i32
  }
}

module attributes {stable_mosaic.version = 11 : i64} {
  func.func @_frontend_proj_kernel(%arg0: i32, %arg1: memref<30x24xf32, #tpu.memory_space<vmem>>, %arg2: memref<1x24xf32, #tpu.memory_space<vmem>>, %arg3: memref<1x24xf32, #tpu.memory_space<vmem>>, %arg4: memref<24x32xf32, #tpu.memory_space<vmem>>, %arg5: memref<1x32xf32, #tpu.memory_space<vmem>>, %arg6: memref<1x32xf32, #tpu.memory_space<vmem>>, %arg7: memref<1x32xf32, #tpu.memory_space<vmem>>, %arg8: memref<30x32xf32, #tpu.memory_space<vmem>>) attributes {dimension_semantics = [#tpu.dimension_semantics<arbitrary>], iteration_bounds = array<i64: 1>, scalar_prefetch = 0 : i64, scratch_operands = 0 : i64, tpu.core_type = #tpu.core_type<tc>, window_params = [{pipeline_mode = #tpu.pipeline_mode<synchronous>, transform_indices = @transform_0, window_bounds = array<i64: 30, 24>}, {pipeline_mode = #tpu.pipeline_mode<synchronous>, transform_indices = @transform_1, window_bounds = array<i64: 1, 24>}, {pipeline_mode = #tpu.pipeline_mode<synchronous>, transform_indices = @transform_2, window_bounds = array<i64: 1, 24>}, {pipeline_mode = #tpu.pipeline_mode<synchronous>, transform_indices = @transform_3, window_bounds = array<i64: 24, 32>}, {pipeline_mode = #tpu.pipeline_mode<synchronous>, transform_indices = @transform_4, window_bounds = array<i64: 1, 32>}, {pipeline_mode = #tpu.pipeline_mode<synchronous>, transform_indices = @transform_5, window_bounds = array<i64: 1, 32>}, {pipeline_mode = #tpu.pipeline_mode<synchronous>, transform_indices = @transform_6, window_bounds = array<i64: 1, 32>}, {pipeline_mode = #tpu.pipeline_mode<synchronous>, transform_indices = @transform_7, window_bounds = array<i64: 30, 32>}]} {
    %c0 = arith.constant 0 : index
    %c0_0 = arith.constant 0 : index
    %0 = vector.load %arg1[%c0, %c0_0] : memref<30x24xf32, #tpu.memory_space<vmem>>, vector<30x24xf32>
    %c0_1 = arith.constant 0 : index
    %c0_2 = arith.constant 0 : index
    %1 = vector.load %arg2[%c0_1, %c0_2] : memref<1x24xf32, #tpu.memory_space<vmem>>, vector<1x24xf32>
    %c0_3 = arith.constant 0 : index
    %c0_4 = arith.constant 0 : index
    %2 = vector.load %arg3[%c0_3, %c0_4] : memref<1x24xf32, #tpu.memory_space<vmem>>, vector<1x24xf32>
    %cst = arith.constant dense<0.000000e+00> : vector<30xf32>
    %3 = vector.multi_reduction <add>, %0, %cst [1] : vector<30x24xf32> to vector<30xf32>
    %4 = vector.shape_cast %3 : vector<30xf32> to vector<30x1xf32>
    %cst_5 = arith.constant 2.400000e+01 : f32
    %5 = vector.broadcast %cst_5 : f32 to vector<30x1xf32>
    %6 = arith.divf %4, %5 : vector<30x1xf32>
    %7 = vector.broadcast %6 : vector<30x1xf32> to vector<30x24xf32>
    %8 = arith.subf %0, %7 : vector<30x24xf32>
    %9 = arith.mulf %8, %8 : vector<30x24xf32>
    %cst_6 = arith.constant dense<0.000000e+00> : vector<30xf32>
    %10 = vector.multi_reduction <add>, %9, %cst_6 [1] : vector<30x24xf32> to vector<30xf32>
    %11 = vector.shape_cast %10 : vector<30xf32> to vector<30x1xf32>
    %cst_7 = arith.constant 2.400000e+01 : f32
    %12 = vector.broadcast %cst_7 : f32 to vector<30x1xf32>
    %13 = arith.divf %11, %12 : vector<30x1xf32>
    %14 = vector.broadcast %6 : vector<30x1xf32> to vector<30x24xf32>
    %15 = arith.subf %0, %14 : vector<30x24xf32>
    %cst_8 = arith.constant 9.99999974E-6 : f32
    %16 = vector.broadcast %cst_8 : f32 to vector<30x1xf32>
    %17 = arith.addf %13, %16 : vector<30x1xf32>
    %18 = math.rsqrt %17 : vector<30x1xf32>
    %19 = vector.broadcast %18 : vector<30x1xf32> to vector<30x24xf32>
    %20 = arith.mulf %15, %19 : vector<30x24xf32>
    %21 = vector.broadcast %1 : vector<1x24xf32> to vector<30x24xf32>
    %22 = arith.mulf %20, %21 : vector<30x24xf32>
    %23 = vector.broadcast %2 : vector<1x24xf32> to vector<30x24xf32>
    %24 = arith.addf %22, %23 : vector<30x24xf32>
    %c0_9 = arith.constant 0 : index
    %c0_10 = arith.constant 0 : index
    %25 = vector.load %arg4[%c0_9, %c0_10] : memref<24x32xf32, #tpu.memory_space<vmem>>, vector<24x32xf32>
    %cst_11 = arith.constant dense<0.000000e+00> : vector<30x32xf32>
    %26 = tpu.matmul %24, %25, %cst_11 {dimension_numbers = #tpu.dot_dimension_numbers<[1], [0], [0], [1], [0, 0, 1, 1], [], []>} : vector<30x24xf32>, vector<24x32xf32>, vector<30x32xf32> -> vector<30x32xf32>
    %c0_12 = arith.constant 0 : index
    %c0_13 = arith.constant 0 : index
    %27 = vector.load %arg5[%c0_12, %c0_13] : memref<1x32xf32, #tpu.memory_space<vmem>>, vector<1x32xf32>
    %28 = vector.broadcast %27 : vector<1x32xf32> to vector<30x32xf32>
    %29 = arith.addf %26, %28 : vector<30x32xf32>
    %c0_14 = arith.constant 0 : index
    %c0_15 = arith.constant 0 : index
    %30 = vector.load %arg6[%c0_14, %c0_15] : memref<1x32xf32, #tpu.memory_space<vmem>>, vector<1x32xf32>
    %c0_16 = arith.constant 0 : index
    %c0_17 = arith.constant 0 : index
    %31 = vector.load %arg7[%c0_16, %c0_17] : memref<1x32xf32, #tpu.memory_space<vmem>>, vector<1x32xf32>
    %cst_18 = arith.constant dense<0.000000e+00> : vector<30xf32>
    %32 = vector.multi_reduction <add>, %29, %cst_18 [1] : vector<30x32xf32> to vector<30xf32>
    %33 = vector.shape_cast %32 : vector<30xf32> to vector<30x1xf32>
    %cst_19 = arith.constant 3.200000e+01 : f32
    %34 = vector.broadcast %cst_19 : f32 to vector<30x1xf32>
    %35 = arith.divf %33, %34 : vector<30x1xf32>
    %36 = vector.broadcast %35 : vector<30x1xf32> to vector<30x32xf32>
    %37 = arith.subf %29, %36 : vector<30x32xf32>
    %38 = arith.mulf %37, %37 : vector<30x32xf32>
    %cst_20 = arith.constant dense<0.000000e+00> : vector<30xf32>
    %39 = vector.multi_reduction <add>, %38, %cst_20 [1] : vector<30x32xf32> to vector<30xf32>
    %40 = vector.shape_cast %39 : vector<30xf32> to vector<30x1xf32>
    %cst_21 = arith.constant 3.200000e+01 : f32
    %41 = vector.broadcast %cst_21 : f32 to vector<30x1xf32>
    %42 = arith.divf %40, %41 : vector<30x1xf32>
    %43 = vector.broadcast %35 : vector<30x1xf32> to vector<30x32xf32>
    %44 = arith.subf %29, %43 : vector<30x32xf32>
    %cst_22 = arith.constant 9.99999974E-6 : f32
    %45 = vector.broadcast %cst_22 : f32 to vector<30x1xf32>
    %46 = arith.addf %42, %45 : vector<30x1xf32>
    %47 = math.rsqrt %46 : vector<30x1xf32>
    %48 = vector.broadcast %47 : vector<30x1xf32> to vector<30x32xf32>
    %49 = arith.mulf %44, %48 : vector<30x32xf32>
    %50 = vector.broadcast %30 : vector<1x32xf32> to vector<30x32xf32>
    %51 = arith.mulf %49, %50 : vector<30x32xf32>
    %52 = vector.broadcast %31 : vector<1x32xf32> to vector<30x32xf32>
    %53 = arith.addf %51, %52 : vector<30x32xf32>
    %c0_23 = arith.constant 0 : index
    %c0_24 = arith.constant 0 : index
    %54 = vector.load %arg8[%c0_23, %c0_24] : memref<30x32xf32, #tpu.memory_space<vmem>>, vector<30x32xf32>
    tpu.vector_store %arg8[%c0_23, %c0_24], %53 {strides = array<i32>} : memref<30x32xf32, #tpu.memory_space<vmem>>, vector<30x32xf32>,
    return
  }
  func.func @transform_0(%arg0: i32) -> (i32, i32) {
    %c0_i32 = arith.constant 0 : i32
    %c0_i32_0 = arith.constant 0 : i32
    %c0_i32_1 = arith.constant 0 : i32
    return %c0_i32, %c0_i32_0 : i32, i32
  }
  func.func @transform_1(%arg0: i32) -> (i32, i32) {
    %c0_i32 = arith.constant 0 : i32
    %c0_i32_0 = arith.constant 0 : i32
    %c0_i32_1 = arith.constant 0 : i32
    return %c0_i32, %c0_i32_0 : i32, i32
  }
  func.func @transform_2(%arg0: i32) -> (i32, i32) {
    %c0_i32 = arith.constant 0 : i32
    %c0_i32_0 = arith.constant 0 : i32
    %c0_i32_1 = arith.constant 0 : i32
    return %c0_i32, %c0_i32_0 : i32, i32
  }
  func.func @transform_3(%arg0: i32) -> (i32, i32) {
    %c0_i32 = arith.constant 0 : i32
    %c0_i32_0 = arith.constant 0 : i32
    %c0_i32_1 = arith.constant 0 : i32
    return %c0_i32, %c0_i32_0 : i32, i32
  }
  func.func @transform_4(%arg0: i32) -> (i32, i32) {
    %c0_i32 = arith.constant 0 : i32
    %c0_i32_0 = arith.constant 0 : i32
    %c0_i32_1 = arith.constant 0 : i32
    return %c0_i32, %c0_i32_0 : i32, i32
  }
  func.func @transform_5(%arg0: i32) -> (i32, i32) {
    %c0_i32 = arith.constant 0 : i32
    %c0_i32_0 = arith.constant 0 : i32
    %c0_i32_1 = arith.constant 0 : i32
    return %c0_i32, %c0_i32_0 : i32, i32
  }
  func.func @transform_6(%arg0: i32) -> (i32, i32) {
    %c0_i32 = arith.constant 0 : i32
    %c0_i32_0 = arith.constant 0 : i32
    %c0_i32_1 = arith.constant 0 : i32
    return %c0_i32, %c0_i32_0 : i32, i32
  }
  func.func @transform_7(%arg0: i32) -> (i32, i32) {
    %c0_i32 = arith.constant 0 : i32
    %c0_i32_0 = arith.constant 0 : i32
    %c0_i32_1 = arith.constant 0 : i32
    return %c0_i32, %c0_i32_0 : i32, i32
  }
}

module attributes {stable_mosaic.version = 11 : i64} {
  func.func @_fused_layer_kernel(%arg0: i32, %arg1: memref<1x15x32xf32, #tpu.memory_space<vmem>>, %arg2: memref<32x96xf32, #tpu.memory_space<vmem>>, %arg3: memref<1x96xf32, #tpu.memory_space<vmem>>, %arg4: memref<32x32xf32, #tpu.memory_space<vmem>>, %arg5: memref<1x32xf32, #tpu.memory_space<vmem>>, %arg6: memref<1x32xf32, #tpu.memory_space<vmem>>, %arg7: memref<1x32xf32, #tpu.memory_space<vmem>>, %arg8: memref<32x64xf32, #tpu.memory_space<vmem>>, %arg9: memref<1x64xf32, #tpu.memory_space<vmem>>, %arg10: memref<64x32xf32, #tpu.memory_space<vmem>>, %arg11: memref<1x32xf32, #tpu.memory_space<vmem>>, %arg12: memref<1x32xf32, #tpu.memory_space<vmem>>, %arg13: memref<1x32xf32, #tpu.memory_space<vmem>>, %arg14: memref<1x15x32xf32, #tpu.memory_space<vmem>>) attributes {dimension_semantics = [#tpu.dimension_semantics<parallel>], iteration_bounds = array<i64: 2>, scalar_prefetch = 0 : i64, scratch_operands = 0 : i64, tpu.core_type = #tpu.core_type<tc>, window_params = [{transform_indices = @transform_0, window_bounds = array<i64: 1, 15, 32>}, {pipeline_mode = #tpu.pipeline_mode<synchronous>, transform_indices = @transform_1, window_bounds = array<i64: 32, 96>}, {pipeline_mode = #tpu.pipeline_mode<synchronous>, transform_indices = @transform_2, window_bounds = array<i64: 1, 96>}, {pipeline_mode = #tpu.pipeline_mode<synchronous>, transform_indices = @transform_3, window_bounds = array<i64: 32, 32>}, {pipeline_mode = #tpu.pipeline_mode<synchronous>, transform_indices = @transform_4, window_bounds = array<i64: 1, 32>}, {pipeline_mode = #tpu.pipeline_mode<synchronous>, transform_indices = @transform_5, window_bounds = array<i64: 1, 32>}, {pipeline_mode = #tpu.pipeline_mode<synchronous>, transform_indices = @transform_6, window_bounds = array<i64: 1, 32>}, {pipeline_mode = #tpu.pipeline_mode<synchronous>, transform_indices = @transform_7, window_bounds = array<i64: 32, 64>}, {pipeline_mode = #tpu.pipeline_mode<synchronous>, transform_indices = @transform_8, window_bounds = array<i64: 1, 64>}, {pipeline_mode = #tpu.pipeline_mode<synchronous>, transform_indices = @transform_9, window_bounds = array<i64: 64, 32>}, {pipeline_mode = #tpu.pipeline_mode<synchronous>, transform_indices = @transform_10, window_bounds = array<i64: 1, 32>}, {pipeline_mode = #tpu.pipeline_mode<synchronous>, transform_indices = @transform_11, window_bounds = array<i64: 1, 32>}, {pipeline_mode = #tpu.pipeline_mode<synchronous>, transform_indices = @transform_12, window_bounds = array<i64: 1, 32>}, {transform_indices = @transform_13, window_bounds = array<i64: 1, 15, 32>}]} {
    %c0 = arith.constant 0 : index
    %c0_0 = arith.constant 0 : index
    %c0_1 = arith.constant 0 : index
    %0 = vector.load %arg1[%c0, %c0_0, %c0_1] : memref<1x15x32xf32, #tpu.memory_space<vmem>>, vector<1x15x32xf32>
    %1 = vector.shape_cast %0 : vector<1x15x32xf32> to vector<15x32xf32>
    %c0_2 = arith.constant 0 : index
    %c0_3 = arith.constant 0 : index
    %2 = vector.load %arg2[%c0_2, %c0_3] : memref<32x96xf32, #tpu.memory_space<vmem>>, vector<32x96xf32>
    %cst = arith.constant dense<0.000000e+00> : vector<15x96xf32>
    %3 = tpu.matmul %1, %2, %cst {dimension_numbers = #tpu.dot_dimension_numbers<[1], [0], [0], [1], [0, 0, 1, 1], [], []>} : vector<15x32xf32>, vector<32x96xf32>, vector<15x96xf32> -> vector<15x96xf32>
    %c0_4 = arith.constant 0 : index
    %c0_5 = arith.constant 0 : index
    %4 = vector.load %arg3[%c0_4, %c0_5] : memref<1x96xf32, #tpu.memory_space<vmem>>, vector<1x96xf32>
    %5 = vector.broadcast %4 : vector<1x96xf32> to vector<15x96xf32>
    %6 = arith.addf %3, %5 : vector<15x96xf32>
    %cst_6 = arith.constant 0.000000e+00 : f32
    %7 = vector.broadcast %cst_6 : f32 to vector<15x32xf32>
    %8 = vector.extract_strided_slice %6 {offsets = [0, 0], sizes = [15, 8], strides = [1, 1]} : vector<15x96xf32> to vector<15x8xf32>
    %9 = vector.extract_strided_slice %6 {offsets = [0, 32], sizes = [15, 8], strides = [1, 1]} : vector<15x96xf32> to vector<15x8xf32>
    %10 = vector.extract_strided_slice %6 {offsets = [0, 64], sizes = [15, 8], strides = [1, 1]} : vector<15x96xf32> to vector<15x8xf32>
    %cst_7 = arith.constant dense<0.000000e+00> : vector<15x15xf32>
    %11 = tpu.matmul %8, %9, %cst_7 {dimension_numbers = #tpu.dot_dimension_numbers<[1], [1], [0], [0], [0, 0, 1, 0], [], []>} : vector<15x8xf32>, vector<15x8xf32>, vector<15x15xf32> -> vector<15x15xf32>
    %cst_8 = arith.constant 0.353553385 : f32
    %12 = vector.broadcast %cst_8 : f32 to vector<15x15xf32>
    %13 = arith.mulf %11, %12 : vector<15x15xf32>
    %cst_9 = arith.constant dense<0xFF800000> : vector<15xf32>
    %14 = vector.multi_reduction <maximumf>, %13, %cst_9 [1] : vector<15x15xf32> to vector<15xf32>
    %15 = vector.shape_cast %14 : vector<15xf32> to vector<15x1xf32>
    %16 = vector.broadcast %15 : vector<15x1xf32> to vector<15x15xf32>
    %17 = arith.subf %13, %16 : vector<15x15xf32>
    %18 = math.exp %17 : vector<15x15xf32>
    %cst_10 = arith.constant dense<0.000000e+00> : vector<15xf32>
    %19 = vector.multi_reduction <add>, %18, %cst_10 [1] : vector<15x15xf32> to vector<15xf32>
    %20 = vector.shape_cast %19 : vector<15xf32> to vector<15x1xf32>
    %21 = tpu.reciprocal %20 {approx = true} : vector<15x1xf32> -> vector<15x1xf32>
    %22 = vector.broadcast %21 : vector<15x1xf32> to vector<15x15xf32>
    %23 = arith.mulf %18, %22 : vector<15x15xf32>
    %cst_11 = arith.constant dense<0.000000e+00> : vector<15x8xf32>
    %24 = tpu.matmul %23, %10, %cst_11 {dimension_numbers = #tpu.dot_dimension_numbers<[1], [0], [0], [1], [0, 0, 1, 1], [], []>} : vector<15x15xf32>, vector<15x8xf32>, vector<15x8xf32> -> vector<15x8xf32>
    %c0_12 = arith.constant 0 : index
    %c0_13 = arith.constant 0 : index
    %25 = vector.load %arg4[%c0_12, %c0_13] : memref<32x32xf32, #tpu.memory_space<vmem>>, vector<8x32xf32>
    %cst_14 = arith.constant dense<0.000000e+00> : vector<15x32xf32>
    %26 = tpu.matmul %24, %25, %cst_14 {dimension_numbers = #tpu.dot_dimension_numbers<[1], [0], [0], [1], [0, 0, 1, 1], [], []>} : vector<15x8xf32>, vector<8x32xf32>, vector<15x32xf32> -> vector<15x32xf32>
    %27 = arith.addf %7, %26 : vector<15x32xf32>
    %28 = vector.extract_strided_slice %6 {offsets = [0, 8], sizes = [15, 8], strides = [1, 1]} : vector<15x96xf32> to vector<15x8xf32>
    %29 = vector.extract_strided_slice %6 {offsets = [0, 40], sizes = [15, 8], strides = [1, 1]} : vector<15x96xf32> to vector<15x8xf32>
    %30 = vector.extract_strided_slice %6 {offsets = [0, 72], sizes = [15, 8], strides = [1, 1]} : vector<15x96xf32> to vector<15x8xf32>
    %cst_15 = arith.constant dense<0.000000e+00> : vector<15x15xf32>
    %31 = tpu.matmul %28, %29, %cst_15 {dimension_numbers = #tpu.dot_dimension_numbers<[1], [1], [0], [0], [0, 0, 1, 0], [], []>} : vector<15x8xf32>, vector<15x8xf32>, vector<15x15xf32> -> vector<15x15xf32>
    %cst_16 = arith.constant 0.353553385 : f32
    %32 = vector.broadcast %cst_16 : f32 to vector<15x15xf32>
    %33 = arith.mulf %31, %32 : vector<15x15xf32>
    %cst_17 = arith.constant dense<0xFF800000> : vector<15xf32>
    %34 = vector.multi_reduction <maximumf>, %33, %cst_17 [1] : vector<15x15xf32> to vector<15xf32>
    %35 = vector.shape_cast %34 : vector<15xf32> to vector<15x1xf32>
    %36 = vector.broadcast %35 : vector<15x1xf32> to vector<15x15xf32>
    %37 = arith.subf %33, %36 : vector<15x15xf32>
    %38 = math.exp %37 : vector<15x15xf32>
    %cst_18 = arith.constant dense<0.000000e+00> : vector<15xf32>
    %39 = vector.multi_reduction <add>, %38, %cst_18 [1] : vector<15x15xf32> to vector<15xf32>
    %40 = vector.shape_cast %39 : vector<15xf32> to vector<15x1xf32>
    %41 = tpu.reciprocal %40 {approx = true} : vector<15x1xf32> -> vector<15x1xf32>
    %42 = vector.broadcast %41 : vector<15x1xf32> to vector<15x15xf32>
    %43 = arith.mulf %38, %42 : vector<15x15xf32>
    %cst_19 = arith.constant dense<0.000000e+00> : vector<15x8xf32>
    %44 = tpu.matmul %43, %30, %cst_19 {dimension_numbers = #tpu.dot_dimension_numbers<[1], [0], [0], [1], [0, 0, 1, 1], [], []>} : vector<15x15xf32>, vector<15x8xf32>, vector<15x8xf32> -> vector<15x8xf32>
    %c8 = arith.constant 8 : index
    %c0_20 = arith.constant 0 : index
    %45 = vector.load %arg4[%c8, %c0_20] : memref<32x32xf32, #tpu.memory_space<vmem>>, vector<8x32xf32>
    %cst_21 = arith.constant dense<0.000000e+00> : vector<15x32xf32>
    %46 = tpu.matmul %44, %45, %cst_21 {dimension_numbers = #tpu.dot_dimension_numbers<[1], [0], [0], [1], [0, 0, 1, 1], [], []>} : vector<15x8xf32>, vector<8x32xf32>, vector<15x32xf32> -> vector<15x32xf32>
    %47 = arith.addf %27, %46 : vector<15x32xf32>
    %48 = vector.extract_strided_slice %6 {offsets = [0, 16], sizes = [15, 8], strides = [1, 1]} : vector<15x96xf32> to vector<15x8xf32>
    %49 = vector.extract_strided_slice %6 {offsets = [0, 48], sizes = [15, 8], strides = [1, 1]} : vector<15x96xf32> to vector<15x8xf32>
    %50 = vector.extract_strided_slice %6 {offsets = [0, 80], sizes = [15, 8], strides = [1, 1]} : vector<15x96xf32> to vector<15x8xf32>
    %cst_22 = arith.constant dense<0.000000e+00> : vector<15x15xf32>
    %51 = tpu.matmul %48, %49, %cst_22 {dimension_numbers = #tpu.dot_dimension_numbers<[1], [1], [0], [0], [0, 0, 1, 0], [], []>} : vector<15x8xf32>, vector<15x8xf32>, vector<15x15xf32> -> vector<15x15xf32>
    %cst_23 = arith.constant 0.353553385 : f32
    %52 = vector.broadcast %cst_23 : f32 to vector<15x15xf32>
    %53 = arith.mulf %51, %52 : vector<15x15xf32>
    %cst_24 = arith.constant dense<0xFF800000> : vector<15xf32>
    %54 = vector.multi_reduction <maximumf>, %53, %cst_24 [1] : vector<15x15xf32> to vector<15xf32>
    %55 = vector.shape_cast %54 : vector<15xf32> to vector<15x1xf32>
    %56 = vector.broadcast %55 : vector<15x1xf32> to vector<15x15xf32>
    %57 = arith.subf %53, %56 : vector<15x15xf32>
    %58 = math.exp %57 : vector<15x15xf32>
    %cst_25 = arith.constant dense<0.000000e+00> : vector<15xf32>
    %59 = vector.multi_reduction <add>, %58, %cst_25 [1] : vector<15x15xf32> to vector<15xf32>
    %60 = vector.shape_cast %59 : vector<15xf32> to vector<15x1xf32>
    %61 = tpu.reciprocal %60 {approx = true} : vector<15x1xf32> -> vector<15x1xf32>
    %62 = vector.broadcast %61 : vector<15x1xf32> to vector<15x15xf32>
    %63 = arith.mulf %58, %62 : vector<15x15xf32>
    %cst_26 = arith.constant dense<0.000000e+00> : vector<15x8xf32>
    %64 = tpu.matmul %63, %50, %cst_26 {dimension_numbers = #tpu.dot_dimension_numbers<[1], [0], [0], [1], [0, 0, 1, 1], [], []>} : vector<15x15xf32>, vector<15x8xf32>, vector<15x8xf32> -> vector<15x8xf32>
    %c16 = arith.constant 16 : index
    %c0_27 = arith.constant 0 : index
    %65 = vector.load %arg4[%c16, %c0_27] : memref<32x32xf32, #tpu.memory_space<vmem>>, vector<8x32xf32>
    %cst_28 = arith.constant dense<0.000000e+00> : vector<15x32xf32>
    %66 = tpu.matmul %64, %65, %cst_28 {dimension_numbers = #tpu.dot_dimension_numbers<[1], [0], [0], [1], [0, 0, 1, 1], [], []>} : vector<15x8xf32>, vector<8x32xf32>, vector<15x32xf32> -> vector<15x32xf32>
    %67 = arith.addf %47, %66 : vector<15x32xf32>
    %68 = vector.extract_strided_slice %6 {offsets = [0, 24], sizes = [15, 8], strides = [1, 1]} : vector<15x96xf32> to vector<15x8xf32>
    %69 = vector.extract_strided_slice %6 {offsets = [0, 56], sizes = [15, 8], strides = [1, 1]} : vector<15x96xf32> to vector<15x8xf32>
    %70 = vector.extract_strided_slice %6 {offsets = [0, 88], sizes = [15, 8], strides = [1, 1]} : vector<15x96xf32> to vector<15x8xf32>
    %cst_29 = arith.constant dense<0.000000e+00> : vector<15x15xf32>
    %71 = tpu.matmul %68, %69, %cst_29 {dimension_numbers = #tpu.dot_dimension_numbers<[1], [1], [0], [0], [0, 0, 1, 0], [], []>} : vector<15x8xf32>, vector<15x8xf32>, vector<15x15xf32> -> vector<15x15xf32>
    %cst_30 = arith.constant 0.353553385 : f32
    %72 = vector.broadcast %cst_30 : f32 to vector<15x15xf32>
    %73 = arith.mulf %71, %72 : vector<15x15xf32>
    %cst_31 = arith.constant dense<0xFF800000> : vector<15xf32>
    %74 = vector.multi_reduction <maximumf>, %73, %cst_31 [1] : vector<15x15xf32> to vector<15xf32>
    %75 = vector.shape_cast %74 : vector<15xf32> to vector<15x1xf32>
    %76 = vector.broadcast %75 : vector<15x1xf32> to vector<15x15xf32>
    %77 = arith.subf %73, %76 : vector<15x15xf32>
    %78 = math.exp %77 : vector<15x15xf32>
    %cst_32 = arith.constant dense<0.000000e+00> : vector<15xf32>
    %79 = vector.multi_reduction <add>, %78, %cst_32 [1] : vector<15x15xf32> to vector<15xf32>
    %80 = vector.shape_cast %79 : vector<15xf32> to vector<15x1xf32>
    %81 = tpu.reciprocal %80 {approx = true} : vector<15x1xf32> -> vector<15x1xf32>
    %82 = vector.broadcast %81 : vector<15x1xf32> to vector<15x15xf32>
    %83 = arith.mulf %78, %82 : vector<15x15xf32>
    %cst_33 = arith.constant dense<0.000000e+00> : vector<15x8xf32>
    %84 = tpu.matmul %83, %70, %cst_33 {dimension_numbers = #tpu.dot_dimension_numbers<[1], [0], [0], [1], [0, 0, 1, 1], [], []>} : vector<15x15xf32>, vector<15x8xf32>, vector<15x8xf32> -> vector<15x8xf32>
    %c24 = arith.constant 24 : index
    %c0_34 = arith.constant 0 : index
    %85 = vector.load %arg4[%c24, %c0_34] : memref<32x32xf32, #tpu.memory_space<vmem>>, vector<8x32xf32>
    %cst_35 = arith.constant dense<0.000000e+00> : vector<15x32xf32>
    %86 = tpu.matmul %84, %85, %cst_35 {dimension_numbers = #tpu.dot_dimension_numbers<[1], [0], [0], [1], [0, 0, 1, 1], [], []>} : vector<15x8xf32>, vector<8x32xf32>, vector<15x32xf32> -> vector<15x32xf32>
    %87 = arith.addf %67, %86 : vector<15x32xf32>
    %c0_36 = arith.constant 0 : index
    %c0_37 = arith.constant 0 : index
    %88 = vector.load %arg5[%c0_36, %c0_37] : memref<1x32xf32, #tpu.memory_space<vmem>>, vector<1x32xf32>
    %89 = vector.broadcast %88 : vector<1x32xf32> to vector<15x32xf32>
    %90 = arith.addf %87, %89 : vector<15x32xf32>
    %91 = arith.addf %1, %90 : vector<15x32xf32>
    %c0_38 = arith.constant 0 : index
    %c0_39 = arith.constant 0 : index
    %92 = vector.load %arg6[%c0_38, %c0_39] : memref<1x32xf32, #tpu.memory_space<vmem>>, vector<1x32xf32>
    %c0_40 = arith.constant 0 : index
    %c0_41 = arith.constant 0 : index
    %93 = vector.load %arg7[%c0_40, %c0_41] : memref<1x32xf32, #tpu.memory_space<vmem>>, vector<1x32xf32>
    %cst_42 = arith.constant dense<0.000000e+00> : vector<15xf32>
    %94 = vector.multi_reduction <add>, %91, %cst_42 [1] : vector<15x32xf32> to vector<15xf32>
    %95 = vector.shape_cast %94 : vector<15xf32> to vector<15x1xf32>
    %cst_43 = arith.constant 3.200000e+01 : f32
    %96 = vector.broadcast %cst_43 : f32 to vector<15x1xf32>
    %97 = arith.divf %95, %96 : vector<15x1xf32>
    %98 = vector.broadcast %97 : vector<15x1xf32> to vector<15x32xf32>
    %99 = arith.subf %91, %98 : vector<15x32xf32>
    %100 = arith.mulf %99, %99 : vector<15x32xf32>
    %cst_44 = arith.constant dense<0.000000e+00> : vector<15xf32>
    %101 = vector.multi_reduction <add>, %100, %cst_44 [1] : vector<15x32xf32> to vector<15xf32>
    %102 = vector.shape_cast %101 : vector<15xf32> to vector<15x1xf32>
    %cst_45 = arith.constant 3.200000e+01 : f32
    %103 = vector.broadcast %cst_45 : f32 to vector<15x1xf32>
    %104 = arith.divf %102, %103 : vector<15x1xf32>
    %105 = vector.broadcast %97 : vector<15x1xf32> to vector<15x32xf32>
    %106 = arith.subf %91, %105 : vector<15x32xf32>
    %cst_46 = arith.constant 9.99999974E-6 : f32
    %107 = vector.broadcast %cst_46 : f32 to vector<15x1xf32>
    %108 = arith.addf %104, %107 : vector<15x1xf32>
    %109 = math.rsqrt %108 : vector<15x1xf32>
    %110 = vector.broadcast %109 : vector<15x1xf32> to vector<15x32xf32>
    %111 = arith.mulf %106, %110 : vector<15x32xf32>
    %112 = vector.broadcast %92 : vector<1x32xf32> to vector<15x32xf32>
    %113 = arith.mulf %111, %112 : vector<15x32xf32>
    %114 = vector.broadcast %93 : vector<1x32xf32> to vector<15x32xf32>
    %115 = arith.addf %113, %114 : vector<15x32xf32>
    %c0_47 = arith.constant 0 : index
    %c0_48 = arith.constant 0 : index
    %116 = vector.load %arg8[%c0_47, %c0_48] : memref<32x64xf32, #tpu.memory_space<vmem>>, vector<32x64xf32>
    %cst_49 = arith.constant dense<0.000000e+00> : vector<15x64xf32>
    %117 = tpu.matmul %115, %116, %cst_49 {dimension_numbers = #tpu.dot_dimension_numbers<[1], [0], [0], [1], [0, 0, 1, 1], [], []>} : vector<15x32xf32>, vector<32x64xf32>, vector<15x64xf32> -> vector<15x64xf32>
    %c0_50 = arith.constant 0 : index
    %c0_51 = arith.constant 0 : index
    %118 = vector.load %arg9[%c0_50, %c0_51] : memref<1x64xf32, #tpu.memory_space<vmem>>, vector<1x64xf32>
    %119 = vector.broadcast %118 : vector<1x64xf32> to vector<15x64xf32>
    %120 = arith.addf %117, %119 : vector<15x64xf32>
    %121 = arith.mulf %120, %120 : vector<15x64xf32>
    %122 = arith.mulf %120, %121 : vector<15x64xf32>
    %cst_52 = arith.constant 4.471500e-02 : f32
    %123 = vector.broadcast %cst_52 : f32 to vector<15x64xf32>
    %124 = arith.mulf %123, %122 : vector<15x64xf32>
    %125 = arith.addf %120, %124 : vector<15x64xf32>
    %cst_53 = arith.constant 0.797884583 : f32
    %126 = vector.broadcast %cst_53 : f32 to vector<15x64xf32>
    %127 = arith.mulf %126, %125 : vector<15x64xf32>
    %128 = math.tanh %127 : vector<15x64xf32>
    %cst_54 = arith.constant 1.000000e+00 : f32
    %129 = vector.broadcast %cst_54 : f32 to vector<15x64xf32>
    %130 = arith.addf %129, %128 : vector<15x64xf32>
    %cst_55 = arith.constant 5.000000e-01 : f32
    %131 = vector.broadcast %cst_55 : f32 to vector<15x64xf32>
    %132 = arith.mulf %131, %130 : vector<15x64xf32>
    %133 = arith.mulf %120, %132 : vector<15x64xf32>
    %c0_56 = arith.constant 0 : index
    %c0_57 = arith.constant 0 : index
    %134 = vector.load %arg10[%c0_56, %c0_57] : memref<64x32xf32, #tpu.memory_space<vmem>>, vector<64x32xf32>
    %cst_58 = arith.constant dense<0.000000e+00> : vector<15x32xf32>
    %135 = tpu.matmul %133, %134, %cst_58 {dimension_numbers = #tpu.dot_dimension_numbers<[1], [0], [0], [1], [0, 0, 1, 1], [], []>} : vector<15x64xf32>, vector<64x32xf32>, vector<15x32xf32> -> vector<15x32xf32>
    %c0_59 = arith.constant 0 : index
    %c0_60 = arith.constant 0 : index
    %136 = vector.load %arg11[%c0_59, %c0_60] : memref<1x32xf32, #tpu.memory_space<vmem>>, vector<1x32xf32>
    %137 = vector.broadcast %136 : vector<1x32xf32> to vector<15x32xf32>
    %138 = arith.addf %135, %137 : vector<15x32xf32>
    %139 = arith.addf %115, %138 : vector<15x32xf32>
    %c0_61 = arith.constant 0 : index
    %c0_62 = arith.constant 0 : index
    %140 = vector.load %arg12[%c0_61, %c0_62] : memref<1x32xf32, #tpu.memory_space<vmem>>, vector<1x32xf32>
    %c0_63 = arith.constant 0 : index
    %c0_64 = arith.constant 0 : index
    %141 = vector.load %arg13[%c0_63, %c0_64] : memref<1x32xf32, #tpu.memory_space<vmem>>, vector<1x32xf32>
    %cst_65 = arith.constant dense<0.000000e+00> : vector<15xf32>
    %142 = vector.multi_reduction <add>, %139, %cst_65 [1] : vector<15x32xf32> to vector<15xf32>
    %143 = vector.shape_cast %142 : vector<15xf32> to vector<15x1xf32>
    %cst_66 = arith.constant 3.200000e+01 : f32
    %144 = vector.broadcast %cst_66 : f32 to vector<15x1xf32>
    %145 = arith.divf %143, %144 : vector<15x1xf32>
    %146 = vector.broadcast %145 : vector<15x1xf32> to vector<15x32xf32>
    %147 = arith.subf %139, %146 : vector<15x32xf32>
    %148 = arith.mulf %147, %147 : vector<15x32xf32>
    %cst_67 = arith.constant dense<0.000000e+00> : vector<15xf32>
    %149 = vector.multi_reduction <add>, %148, %cst_67 [1] : vector<15x32xf32> to vector<15xf32>
    %150 = vector.shape_cast %149 : vector<15xf32> to vector<15x1xf32>
    %cst_68 = arith.constant 3.200000e+01 : f32
    %151 = vector.broadcast %cst_68 : f32 to vector<15x1xf32>
    %152 = arith.divf %150, %151 : vector<15x1xf32>
    %153 = vector.broadcast %145 : vector<15x1xf32> to vector<15x32xf32>
    %154 = arith.subf %139, %153 : vector<15x32xf32>
    %cst_69 = arith.constant 9.99999974E-6 : f32
    %155 = vector.broadcast %cst_69 : f32 to vector<15x1xf32>
    %156 = arith.addf %152, %155 : vector<15x1xf32>
    %157 = math.rsqrt %156 : vector<15x1xf32>
    %158 = vector.broadcast %157 : vector<15x1xf32> to vector<15x32xf32>
    %159 = arith.mulf %154, %158 : vector<15x32xf32>
    %160 = vector.broadcast %140 : vector<1x32xf32> to vector<15x32xf32>
    %161 = arith.mulf %159, %160 : vector<15x32xf32>
    %162 = vector.broadcast %141 : vector<1x32xf32> to vector<15x32xf32>
    %163 = arith.addf %161, %162 : vector<15x32xf32>
    %c0_70 = arith.constant 0 : index
    %c0_71 = arith.constant 0 : index
    %c0_72 = arith.constant 0 : index
    %164 = vector.load %arg14[%c0_70, %c0_71, %c0_72] : memref<1x15x32xf32, #tpu.memory_space<vmem>>, vector<1x15x32xf32>
    %165 = vector.shape_cast %164 : vector<1x15x32xf32> to vector<15x32xf32>
    %166 = vector.shape_cast %163 : vector<15x32xf32> to vector<1x15x32xf32>
    tpu.vector_store %arg14[%c0_70, %c0_71, %c0_72], %166 {strides = array<i32>} : memref<1x15x32xf32, #tpu.memory_space<vmem>>, vector<1x15x32xf32>,
    return
  }
  func.func @transform_0(%arg0: i32) -> (i32, i32, i32) {
    %c0_i32 = arith.constant 0 : i32
    %c0_i32_0 = arith.constant 0 : i32
    %c0_i32_1 = arith.constant 0 : i32
    return %arg0, %c0_i32, %c0_i32_0 : i32, i32, i32
  }
  func.func @transform_1(%arg0: i32) -> (i32, i32) {
    %c0_i32 = arith.constant 0 : i32
    %c0_i32_0 = arith.constant 0 : i32
    %c0_i32_1 = arith.constant 0 : i32
    return %c0_i32, %c0_i32_0 : i32, i32
  }
  func.func @transform_2(%arg0: i32) -> (i32, i32) {
    %c0_i32 = arith.constant 0 : i32
    %c0_i32_0 = arith.constant 0 : i32
    %c0_i32_1 = arith.constant 0 : i32
    return %c0_i32, %c0_i32_0 : i32, i32
  }
  func.func @transform_3(%arg0: i32) -> (i32, i32) {
    %c0_i32 = arith.constant 0 : i32
    %c0_i32_0 = arith.constant 0 : i32
    %c0_i32_1 = arith.constant 0 : i32
    return %c0_i32, %c0_i32_0 : i32, i32
  }
  func.func @transform_4(%arg0: i32) -> (i32, i32) {
    %c0_i32 = arith.constant 0 : i32
    %c0_i32_0 = arith.constant 0 : i32
    %c0_i32_1 = arith.constant 0 : i32
    return %c0_i32, %c0_i32_0 : i32, i32
  }
  func.func @transform_5(%arg0: i32) -> (i32, i32) {
    %c0_i32 = arith.constant 0 : i32
    %c0_i32_0 = arith.constant 0 : i32
    %c0_i32_1 = arith.constant 0 : i32
    return %c0_i32, %c0_i32_0 : i32, i32
  }
  func.func @transform_6(%arg0: i32) -> (i32, i32) {
    %c0_i32 = arith.constant 0 : i32
    %c0_i32_0 = arith.constant 0 : i32
    %c0_i32_1 = arith.constant 0 : i32
    return %c0_i32, %c0_i32_0 : i32, i32
  }
  func.func @transform_7(%arg0: i32) -> (i32, i32) {
    %c0_i32 = arith.constant 0 : i32
    %c0_i32_0 = arith.constant 0 : i32
    %c0_i32_1 = arith.constant 0 : i32
    return %c0_i32, %c0_i32_0 : i32, i32
  }
  func.func @transform_8(%arg0: i32) -> (i32, i32) {
    %c0_i32 = arith.constant 0 : i32
    %c0_i32_0 = arith.constant 0 : i32
    %c0_i32_1 = arith.constant 0 : i32
    return %c0_i32, %c0_i32_0 : i32, i32
  }
  func.func @transform_9(%arg0: i32) -> (i32, i32) {
    %c0_i32 = arith.constant 0 : i32
    %c0_i32_0 = arith.constant 0 : i32
    %c0_i32_1 = arith.constant 0 : i32
    return %c0_i32, %c0_i32_0 : i32, i32
  }
  func.func @transform_10(%arg0: i32) -> (i32, i32) {
    %c0_i32 = arith.constant 0 : i32
    %c0_i32_0 = arith.constant 0 : i32
    %c0_i32_1 = arith.constant 0 : i32
    return %c0_i32, %c0_i32_0 : i32, i32
  }
  func.func @transform_11(%arg0: i32) -> (i32, i32) {
    %c0_i32 = arith.constant 0 : i32
    %c0_i32_0 = arith.constant 0 : i32
    %c0_i32_1 = arith.constant 0 : i32
    return %c0_i32, %c0_i32_0 : i32, i32
  }
  func.func @transform_12(%arg0: i32) -> (i32, i32) {
    %c0_i32 = arith.constant 0 : i32
    %c0_i32_0 = arith.constant 0 : i32
    %c0_i32_1 = arith.constant 0 : i32
    return %c0_i32, %c0_i32_0 : i32, i32
  }
  func.func @transform_13(%arg0: i32) -> (i32, i32, i32) {
    %c0_i32 = arith.constant 0 : i32
    %c0_i32_0 = arith.constant 0 : i32
    %c0_i32_1 = arith.constant 0 : i32
    return %arg0, %c0_i32, %c0_i32_0 : i32, i32, i32
  }
}

module attributes {stable_mosaic.version = 11 : i64} {
  func.func @_mean_axis1_kernel(%arg0: i32, %arg1: memref<2x45x32xf32, #tpu.memory_space<vmem>>, %arg2: memref<2x32xf32, #tpu.memory_space<vmem>>) attributes {dimension_semantics = [#tpu.dimension_semantics<arbitrary>], iteration_bounds = array<i64: 1>, scalar_prefetch = 0 : i64, scratch_operands = 0 : i64, tpu.core_type = #tpu.core_type<tc>, window_params = [{pipeline_mode = #tpu.pipeline_mode<synchronous>, transform_indices = @transform_0, window_bounds = array<i64: 2, 45, 32>}, {pipeline_mode = #tpu.pipeline_mode<synchronous>, transform_indices = @transform_1, window_bounds = array<i64: 2, 32>}]} {
    %c0 = arith.constant 0 : index
    %c0_0 = arith.constant 0 : index
    %c0_1 = arith.constant 0 : index
    %0 = vector.load %arg1[%c0, %c0_0, %c0_1] : memref<2x45x32xf32, #tpu.memory_space<vmem>>, vector<2x45x32xf32>
    %cst = arith.constant dense<0.000000e+00> : vector<2x32xf32>
    %1 = vector.multi_reduction <add>, %0, %cst [1] : vector<2x45x32xf32> to vector<2x32xf32>
    %cst_2 = arith.constant 4.500000e+01 : f32
    %2 = vector.broadcast %cst_2 : f32 to vector<2x32xf32>
    %3 = arith.divf %1, %2 : vector<2x32xf32>
    %c0_3 = arith.constant 0 : index
    %c0_4 = arith.constant 0 : index
    %4 = vector.load %arg2[%c0_3, %c0_4] : memref<2x32xf32, #tpu.memory_space<vmem>>, vector<2x32xf32>
    tpu.vector_store %arg2[%c0_3, %c0_4], %3 {strides = array<i32>} : memref<2x32xf32, #tpu.memory_space<vmem>>, vector<2x32xf32>,
    return
  }
  func.func @transform_0(%arg0: i32) -> (i32, i32, i32) {
    %c0_i32 = arith.constant 0 : i32
    %c0_i32_0 = arith.constant 0 : i32
    %c0_i32_1 = arith.constant 0 : i32
    %c0_i32_2 = arith.constant 0 : i32
    return %c0_i32, %c0_i32_0, %c0_i32_1 : i32, i32, i32
  }
  func.func @transform_1(%arg0: i32) -> (i32, i32) {
    %c0_i32 = arith.constant 0 : i32
    %c0_i32_0 = arith.constant 0 : i32
    %c0_i32_1 = arith.constant 0 : i32
    return %c0_i32, %c0_i32_0 : i32, i32
  }
}

module attributes {stable_mosaic.version = 11 : i64} {
  func.func @_cdist_kernel(%arg0: i32, %arg1: memref<2x32xf32, #tpu.memory_space<vmem>>, %arg2: memref<10x32xf32, #tpu.memory_space<vmem>>, %arg3: memref<1x10xf32, #tpu.memory_space<vmem>>, %arg4: memref<2x10xf32, #tpu.memory_space<vmem>>) attributes {dimension_semantics = [#tpu.dimension_semantics<arbitrary>], iteration_bounds = array<i64: 1>, scalar_prefetch = 0 : i64, scratch_operands = 0 : i64, tpu.core_type = #tpu.core_type<tc>, window_params = [{pipeline_mode = #tpu.pipeline_mode<synchronous>, transform_indices = @transform_0, window_bounds = array<i64: 2, 32>}, {pipeline_mode = #tpu.pipeline_mode<synchronous>, transform_indices = @transform_1, window_bounds = array<i64: 10, 32>}, {pipeline_mode = #tpu.pipeline_mode<synchronous>, transform_indices = @transform_2, window_bounds = array<i64: 1, 10>}, {pipeline_mode = #tpu.pipeline_mode<synchronous>, transform_indices = @transform_3, window_bounds = array<i64: 2, 10>}]} {
    %c0 = arith.constant 0 : index
    %c0_0 = arith.constant 0 : index
    %0 = vector.load %arg1[%c0, %c0_0] : memref<2x32xf32, #tpu.memory_space<vmem>>, vector<2x32xf32>
    %c0_1 = arith.constant 0 : index
    %c0_2 = arith.constant 0 : index
    %1 = vector.load %arg2[%c0_1, %c0_2] : memref<10x32xf32, #tpu.memory_space<vmem>>, vector<10x32xf32>
    %2 = arith.mulf %0, %0 : vector<2x32xf32>
    %cst = arith.constant dense<0.000000e+00> : vector<2xf32>
    %3 = vector.multi_reduction <add>, %2, %cst [1] : vector<2x32xf32> to vector<2xf32>
    %4 = vector.shape_cast %3 : vector<2xf32> to vector<2x1xf32>
    %cst_3 = arith.constant dense<0.000000e+00> : vector<2x10xf32>
    %5 = tpu.matmul %0, %1, %cst_3 {dimension_numbers = #tpu.dot_dimension_numbers<[1], [1], [0], [0], [0, 0, 1, 0], [], []>} : vector<2x32xf32>, vector<10x32xf32>, vector<2x10xf32> -> vector<2x10xf32>
    %c0_4 = arith.constant 0 : index
    %c0_5 = arith.constant 0 : index
    %6 = vector.load %arg3[%c0_4, %c0_5] : memref<1x10xf32, #tpu.memory_space<vmem>>, vector<1x10xf32>
    %7 = vector.broadcast %4 : vector<2x1xf32> to vector<2x10xf32>
    %8 = vector.broadcast %6 : vector<1x10xf32> to vector<2x10xf32>
    %9 = arith.addf %7, %8 : vector<2x10xf32>
    %cst_6 = arith.constant 2.000000e+00 : f32
    %10 = vector.broadcast %cst_6 : f32 to vector<2x10xf32>
    %11 = arith.mulf %10, %5 : vector<2x10xf32>
    %12 = arith.subf %9, %11 : vector<2x10xf32>
    %cst_7 = arith.constant 0.000000e+00 : f32
    %13 = vector.broadcast %cst_7 : f32 to vector<2x10xf32>
    %14 = arith.maximumf %12, %13 : vector<2x10xf32>
    %15 = math.sqrt %14 : vector<2x10xf32>
    %c0_8 = arith.constant 0 : index
    %c0_9 = arith.constant 0 : index
    %16 = vector.load %arg4[%c0_8, %c0_9] : memref<2x10xf32, #tpu.memory_space<vmem>>, vector<2x10xf32>
    tpu.vector_store %arg4[%c0_8, %c0_9], %15 {strides = array<i32>} : memref<2x10xf32, #tpu.memory_space<vmem>>, vector<2x10xf32>,
    return
  }
  func.func @transform_0(%arg0: i32) -> (i32, i32) {
    %c0_i32 = arith.constant 0 : i32
    %c0_i32_0 = arith.constant 0 : i32
    %c0_i32_1 = arith.constant 0 : i32
    return %c0_i32, %c0_i32_0 : i32, i32
  }
  func.func @transform_1(%arg0: i32) -> (i32, i32) {
    %c0_i32 = arith.constant 0 : i32
    %c0_i32_0 = arith.constant 0 : i32
    %c0_i32_1 = arith.constant 0 : i32
    return %c0_i32, %c0_i32_0 : i32, i32
  }
  func.func @transform_2(%arg0: i32) -> (i32, i32) {
    %c0_i32 = arith.constant 0 : i32
    %c0_i32_0 = arith.constant 0 : i32
    %c0_i32_1 = arith.constant 0 : i32
    return %c0_i32, %c0_i32_0 : i32, i32
  }
  func.func @transform_3(%arg0: i32) -> (i32, i32) {
    %c0_i32 = arith.constant 0 : i32
    %c0_i32_0 = arith.constant 0 : i32
    %c0_i32_1 = arith.constant 0 : i32
    return %c0_i32, %c0_i32_0 : i32, i32
  }
}

module attributes {stable_mosaic.version = 11 : i64} {
  func.func @_layernorm_kernel(%arg0: i32, %arg1: memref<50x32xf32, #tpu.memory_space<vmem>>, %arg2: memref<1x32xf32, #tpu.memory_space<vmem>>, %arg3: memref<1x32xf32, #tpu.memory_space<vmem>>, %arg4: memref<50x32xf32, #tpu.memory_space<vmem>>) attributes {dimension_semantics = [#tpu.dimension_semantics<arbitrary>], iteration_bounds = array<i64: 1>, scalar_prefetch = 0 : i64, scratch_operands = 0 : i64, tpu.core_type = #tpu.core_type<tc>, window_params = [{pipeline_mode = #tpu.pipeline_mode<synchronous>, transform_indices = @transform_0, window_bounds = array<i64: 50, 32>}, {pipeline_mode = #tpu.pipeline_mode<synchronous>, transform_indices = @transform_1, window_bounds = array<i64: 1, 32>}, {pipeline_mode = #tpu.pipeline_mode<synchronous>, transform_indices = @transform_2, window_bounds = array<i64: 1, 32>}, {pipeline_mode = #tpu.pipeline_mode<synchronous>, transform_indices = @transform_3, window_bounds = array<i64: 50, 32>}]} {
    %c0 = arith.constant 0 : index
    %c0_0 = arith.constant 0 : index
    %0 = vector.load %arg1[%c0, %c0_0] : memref<50x32xf32, #tpu.memory_space<vmem>>, vector<50x32xf32>
    %c0_1 = arith.constant 0 : index
    %c0_2 = arith.constant 0 : index
    %1 = vector.load %arg2[%c0_1, %c0_2] : memref<1x32xf32, #tpu.memory_space<vmem>>, vector<1x32xf32>
    %c0_3 = arith.constant 0 : index
    %c0_4 = arith.constant 0 : index
    %2 = vector.load %arg3[%c0_3, %c0_4] : memref<1x32xf32, #tpu.memory_space<vmem>>, vector<1x32xf32>
    %cst = arith.constant dense<0.000000e+00> : vector<50xf32>
    %3 = vector.multi_reduction <add>, %0, %cst [1] : vector<50x32xf32> to vector<50xf32>
    %4 = vector.shape_cast %3 : vector<50xf32> to vector<50x1xf32>
    %cst_5 = arith.constant 3.200000e+01 : f32
    %5 = vector.broadcast %cst_5 : f32 to vector<50x1xf32>
    %6 = arith.divf %4, %5 : vector<50x1xf32>
    %7 = vector.broadcast %6 : vector<50x1xf32> to vector<50x32xf32>
    %8 = arith.subf %0, %7 : vector<50x32xf32>
    %9 = arith.mulf %8, %8 : vector<50x32xf32>
    %cst_6 = arith.constant dense<0.000000e+00> : vector<50xf32>
    %10 = vector.multi_reduction <add>, %9, %cst_6 [1] : vector<50x32xf32> to vector<50xf32>
    %11 = vector.shape_cast %10 : vector<50xf32> to vector<50x1xf32>
    %cst_7 = arith.constant 3.200000e+01 : f32
    %12 = vector.broadcast %cst_7 : f32 to vector<50x1xf32>
    %13 = arith.divf %11, %12 : vector<50x1xf32>
    %14 = vector.broadcast %6 : vector<50x1xf32> to vector<50x32xf32>
    %15 = arith.subf %0, %14 : vector<50x32xf32>
    %cst_8 = arith.constant 9.99999974E-6 : f32
    %16 = vector.broadcast %cst_8 : f32 to vector<50x1xf32>
    %17 = arith.addf %13, %16 : vector<50x1xf32>
    %18 = math.rsqrt %17 : vector<50x1xf32>
    %19 = vector.broadcast %18 : vector<50x1xf32> to vector<50x32xf32>
    %20 = arith.mulf %15, %19 : vector<50x32xf32>
    %21 = vector.broadcast %1 : vector<1x32xf32> to vector<50x32xf32>
    %22 = arith.mulf %20, %21 : vector<50x32xf32>
    %23 = vector.broadcast %2 : vector<1x32xf32> to vector<50x32xf32>
    %24 = arith.addf %22, %23 : vector<50x32xf32>
    %c0_9 = arith.constant 0 : index
    %c0_10 = arith.constant 0 : index
    %25 = vector.load %arg4[%c0_9, %c0_10] : memref<50x32xf32, #tpu.memory_space<vmem>>, vector<50x32xf32>
    tpu.vector_store %arg4[%c0_9, %c0_10], %24 {strides = array<i32>} : memref<50x32xf32, #tpu.memory_space<vmem>>, vector<50x32xf32>,
    return
  }
  func.func @transform_0(%arg0: i32) -> (i32, i32) {
    %c0_i32 = arith.constant 0 : i32
    %c0_i32_0 = arith.constant 0 : i32
    %c0_i32_1 = arith.constant 0 : i32
    return %c0_i32, %c0_i32_0 : i32, i32
  }
  func.func @transform_1(%arg0: i32) -> (i32, i32) {
    %c0_i32 = arith.constant 0 : i32
    %c0_i32_0 = arith.constant 0 : i32
    %c0_i32_1 = arith.constant 0 : i32
    return %c0_i32, %c0_i32_0 : i32, i32
  }
  func.func @transform_2(%arg0: i32) -> (i32, i32) {
    %c0_i32 = arith.constant 0 : i32
    %c0_i32_0 = arith.constant 0 : i32
    %c0_i32_1 = arith.constant 0 : i32
    return %c0_i32, %c0_i32_0 : i32, i32
  }
  func.func @transform_3(%arg0: i32) -> (i32, i32) {
    %c0_i32 = arith.constant 0 : i32
    %c0_i32_0 = arith.constant 0 : i32
    %c0_i32_1 = arith.constant 0 : i32
    return %c0_i32, %c0_i32_0 : i32, i32
  }
}

module attributes {stable_mosaic.version = 11 : i64} {
  func.func @_fused_layer_kernel(%arg0: i32, %arg1: memref<1x40x32xf32, #tpu.memory_space<vmem>>, %arg2: memref<32x96xf32, #tpu.memory_space<vmem>>, %arg3: memref<1x96xf32, #tpu.memory_space<vmem>>, %arg4: memref<32x32xf32, #tpu.memory_space<vmem>>, %arg5: memref<1x32xf32, #tpu.memory_space<vmem>>, %arg6: memref<1x32xf32, #tpu.memory_space<vmem>>, %arg7: memref<1x32xf32, #tpu.memory_space<vmem>>, %arg8: memref<32x64xf32, #tpu.memory_space<vmem>>, %arg9: memref<1x64xf32, #tpu.memory_space<vmem>>, %arg10: memref<64x32xf32, #tpu.memory_space<vmem>>, %arg11: memref<1x32xf32, #tpu.memory_space<vmem>>, %arg12: memref<1x32xf32, #tpu.memory_space<vmem>>, %arg13: memref<1x32xf32, #tpu.memory_space<vmem>>, %arg14: memref<1x40x32xf32, #tpu.memory_space<vmem>>) attributes {dimension_semantics = [#tpu.dimension_semantics<parallel>], iteration_bounds = array<i64: 2>, scalar_prefetch = 0 : i64, scratch_operands = 0 : i64, tpu.core_type = #tpu.core_type<tc>, window_params = [{transform_indices = @transform_0, window_bounds = array<i64: 1, 40, 32>}, {pipeline_mode = #tpu.pipeline_mode<synchronous>, transform_indices = @transform_1, window_bounds = array<i64: 32, 96>}, {pipeline_mode = #tpu.pipeline_mode<synchronous>, transform_indices = @transform_2, window_bounds = array<i64: 1, 96>}, {pipeline_mode = #tpu.pipeline_mode<synchronous>, transform_indices = @transform_3, window_bounds = array<i64: 32, 32>}, {pipeline_mode = #tpu.pipeline_mode<synchronous>, transform_indices = @transform_4, window_bounds = array<i64: 1, 32>}, {pipeline_mode = #tpu.pipeline_mode<synchronous>, transform_indices = @transform_5, window_bounds = array<i64: 1, 32>}, {pipeline_mode = #tpu.pipeline_mode<synchronous>, transform_indices = @transform_6, window_bounds = array<i64: 1, 32>}, {pipeline_mode = #tpu.pipeline_mode<synchronous>, transform_indices = @transform_7, window_bounds = array<i64: 32, 64>}, {pipeline_mode = #tpu.pipeline_mode<synchronous>, transform_indices = @transform_8, window_bounds = array<i64: 1, 64>}, {pipeline_mode = #tpu.pipeline_mode<synchronous>, transform_indices = @transform_9, window_bounds = array<i64: 64, 32>}, {pipeline_mode = #tpu.pipeline_mode<synchronous>, transform_indices = @transform_10, window_bounds = array<i64: 1, 32>}, {pipeline_mode = #tpu.pipeline_mode<synchronous>, transform_indices = @transform_11, window_bounds = array<i64: 1, 32>}, {pipeline_mode = #tpu.pipeline_mode<synchronous>, transform_indices = @transform_12, window_bounds = array<i64: 1, 32>}, {transform_indices = @transform_13, window_bounds = array<i64: 1, 40, 32>}]} {
    %c0 = arith.constant 0 : index
    %c0_0 = arith.constant 0 : index
    %c0_1 = arith.constant 0 : index
    %0 = vector.load %arg1[%c0, %c0_0, %c0_1] : memref<1x40x32xf32, #tpu.memory_space<vmem>>, vector<1x40x32xf32>
    %1 = vector.shape_cast %0 : vector<1x40x32xf32> to vector<40x32xf32>
    %c0_2 = arith.constant 0 : index
    %c0_3 = arith.constant 0 : index
    %2 = vector.load %arg2[%c0_2, %c0_3] : memref<32x96xf32, #tpu.memory_space<vmem>>, vector<32x96xf32>
    %cst = arith.constant dense<0.000000e+00> : vector<40x96xf32>
    %3 = tpu.matmul %1, %2, %cst {dimension_numbers = #tpu.dot_dimension_numbers<[1], [0], [0], [1], [0, 0, 1, 1], [], []>} : vector<40x32xf32>, vector<32x96xf32>, vector<40x96xf32> -> vector<40x96xf32>
    %c0_4 = arith.constant 0 : index
    %c0_5 = arith.constant 0 : index
    %4 = vector.load %arg3[%c0_4, %c0_5] : memref<1x96xf32, #tpu.memory_space<vmem>>, vector<1x96xf32>
    %5 = vector.broadcast %4 : vector<1x96xf32> to vector<40x96xf32>
    %6 = arith.addf %3, %5 : vector<40x96xf32>
    %cst_6 = arith.constant 0.000000e+00 : f32
    %7 = vector.broadcast %cst_6 : f32 to vector<40x32xf32>
    %8 = vector.extract_strided_slice %6 {offsets = [0, 0], sizes = [40, 8], strides = [1, 1]} : vector<40x96xf32> to vector<40x8xf32>
    %9 = vector.extract_strided_slice %6 {offsets = [0, 32], sizes = [40, 8], strides = [1, 1]} : vector<40x96xf32> to vector<40x8xf32>
    %10 = vector.extract_strided_slice %6 {offsets = [0, 64], sizes = [40, 8], strides = [1, 1]} : vector<40x96xf32> to vector<40x8xf32>
    %cst_7 = arith.constant dense<0.000000e+00> : vector<40x40xf32>
    %11 = tpu.matmul %8, %9, %cst_7 {dimension_numbers = #tpu.dot_dimension_numbers<[1], [1], [0], [0], [0, 0, 1, 0], [], []>} : vector<40x8xf32>, vector<40x8xf32>, vector<40x40xf32> -> vector<40x40xf32>
    %cst_8 = arith.constant 0.353553385 : f32
    %12 = vector.broadcast %cst_8 : f32 to vector<40x40xf32>
    %13 = arith.mulf %11, %12 : vector<40x40xf32>
    %cst_9 = arith.constant dense<0xFF800000> : vector<40xf32>
    %14 = vector.multi_reduction <maximumf>, %13, %cst_9 [1] : vector<40x40xf32> to vector<40xf32>
    %15 = vector.shape_cast %14 : vector<40xf32> to vector<40x1xf32>
    %16 = vector.broadcast %15 : vector<40x1xf32> to vector<40x40xf32>
    %17 = arith.subf %13, %16 : vector<40x40xf32>
    %18 = math.exp %17 : vector<40x40xf32>
    %cst_10 = arith.constant dense<0.000000e+00> : vector<40xf32>
    %19 = vector.multi_reduction <add>, %18, %cst_10 [1] : vector<40x40xf32> to vector<40xf32>
    %20 = vector.shape_cast %19 : vector<40xf32> to vector<40x1xf32>
    %21 = tpu.reciprocal %20 {approx = true} : vector<40x1xf32> -> vector<40x1xf32>
    %22 = vector.broadcast %21 : vector<40x1xf32> to vector<40x40xf32>
    %23 = arith.mulf %18, %22 : vector<40x40xf32>
    %cst_11 = arith.constant dense<0.000000e+00> : vector<40x8xf32>
    %24 = tpu.matmul %23, %10, %cst_11 {dimension_numbers = #tpu.dot_dimension_numbers<[1], [0], [0], [1], [0, 0, 1, 1], [], []>} : vector<40x40xf32>, vector<40x8xf32>, vector<40x8xf32> -> vector<40x8xf32>
    %c0_12 = arith.constant 0 : index
    %c0_13 = arith.constant 0 : index
    %25 = vector.load %arg4[%c0_12, %c0_13] : memref<32x32xf32, #tpu.memory_space<vmem>>, vector<8x32xf32>
    %cst_14 = arith.constant dense<0.000000e+00> : vector<40x32xf32>
    %26 = tpu.matmul %24, %25, %cst_14 {dimension_numbers = #tpu.dot_dimension_numbers<[1], [0], [0], [1], [0, 0, 1, 1], [], []>} : vector<40x8xf32>, vector<8x32xf32>, vector<40x32xf32> -> vector<40x32xf32>
    %27 = arith.addf %7, %26 : vector<40x32xf32>
    %28 = vector.extract_strided_slice %6 {offsets = [0, 8], sizes = [40, 8], strides = [1, 1]} : vector<40x96xf32> to vector<40x8xf32>
    %29 = vector.extract_strided_slice %6 {offsets = [0, 40], sizes = [40, 8], strides = [1, 1]} : vector<40x96xf32> to vector<40x8xf32>
    %30 = vector.extract_strided_slice %6 {offsets = [0, 72], sizes = [40, 8], strides = [1, 1]} : vector<40x96xf32> to vector<40x8xf32>
    %cst_15 = arith.constant dense<0.000000e+00> : vector<40x40xf32>
    %31 = tpu.matmul %28, %29, %cst_15 {dimension_numbers = #tpu.dot_dimension_numbers<[1], [1], [0], [0], [0, 0, 1, 0], [], []>} : vector<40x8xf32>, vector<40x8xf32>, vector<40x40xf32> -> vector<40x40xf32>
    %cst_16 = arith.constant 0.353553385 : f32
    %32 = vector.broadcast %cst_16 : f32 to vector<40x40xf32>
    %33 = arith.mulf %31, %32 : vector<40x40xf32>
    %cst_17 = arith.constant dense<0xFF800000> : vector<40xf32>
    %34 = vector.multi_reduction <maximumf>, %33, %cst_17 [1] : vector<40x40xf32> to vector<40xf32>
    %35 = vector.shape_cast %34 : vector<40xf32> to vector<40x1xf32>
    %36 = vector.broadcast %35 : vector<40x1xf32> to vector<40x40xf32>
    %37 = arith.subf %33, %36 : vector<40x40xf32>
    %38 = math.exp %37 : vector<40x40xf32>
    %cst_18 = arith.constant dense<0.000000e+00> : vector<40xf32>
    %39 = vector.multi_reduction <add>, %38, %cst_18 [1] : vector<40x40xf32> to vector<40xf32>
    %40 = vector.shape_cast %39 : vector<40xf32> to vector<40x1xf32>
    %41 = tpu.reciprocal %40 {approx = true} : vector<40x1xf32> -> vector<40x1xf32>
    %42 = vector.broadcast %41 : vector<40x1xf32> to vector<40x40xf32>
    %43 = arith.mulf %38, %42 : vector<40x40xf32>
    %cst_19 = arith.constant dense<0.000000e+00> : vector<40x8xf32>
    %44 = tpu.matmul %43, %30, %cst_19 {dimension_numbers = #tpu.dot_dimension_numbers<[1], [0], [0], [1], [0, 0, 1, 1], [], []>} : vector<40x40xf32>, vector<40x8xf32>, vector<40x8xf32> -> vector<40x8xf32>
    %c8 = arith.constant 8 : index
    %c0_20 = arith.constant 0 : index
    %45 = vector.load %arg4[%c8, %c0_20] : memref<32x32xf32, #tpu.memory_space<vmem>>, vector<8x32xf32>
    %cst_21 = arith.constant dense<0.000000e+00> : vector<40x32xf32>
    %46 = tpu.matmul %44, %45, %cst_21 {dimension_numbers = #tpu.dot_dimension_numbers<[1], [0], [0], [1], [0, 0, 1, 1], [], []>} : vector<40x8xf32>, vector<8x32xf32>, vector<40x32xf32> -> vector<40x32xf32>
    %47 = arith.addf %27, %46 : vector<40x32xf32>
    %48 = vector.extract_strided_slice %6 {offsets = [0, 16], sizes = [40, 8], strides = [1, 1]} : vector<40x96xf32> to vector<40x8xf32>
    %49 = vector.extract_strided_slice %6 {offsets = [0, 48], sizes = [40, 8], strides = [1, 1]} : vector<40x96xf32> to vector<40x8xf32>
    %50 = vector.extract_strided_slice %6 {offsets = [0, 80], sizes = [40, 8], strides = [1, 1]} : vector<40x96xf32> to vector<40x8xf32>
    %cst_22 = arith.constant dense<0.000000e+00> : vector<40x40xf32>
    %51 = tpu.matmul %48, %49, %cst_22 {dimension_numbers = #tpu.dot_dimension_numbers<[1], [1], [0], [0], [0, 0, 1, 0], [], []>} : vector<40x8xf32>, vector<40x8xf32>, vector<40x40xf32> -> vector<40x40xf32>
    %cst_23 = arith.constant 0.353553385 : f32
    %52 = vector.broadcast %cst_23 : f32 to vector<40x40xf32>
    %53 = arith.mulf %51, %52 : vector<40x40xf32>
    %cst_24 = arith.constant dense<0xFF800000> : vector<40xf32>
    %54 = vector.multi_reduction <maximumf>, %53, %cst_24 [1] : vector<40x40xf32> to vector<40xf32>
    %55 = vector.shape_cast %54 : vector<40xf32> to vector<40x1xf32>
    %56 = vector.broadcast %55 : vector<40x1xf32> to vector<40x40xf32>
    %57 = arith.subf %53, %56 : vector<40x40xf32>
    %58 = math.exp %57 : vector<40x40xf32>
    %cst_25 = arith.constant dense<0.000000e+00> : vector<40xf32>
    %59 = vector.multi_reduction <add>, %58, %cst_25 [1] : vector<40x40xf32> to vector<40xf32>
    %60 = vector.shape_cast %59 : vector<40xf32> to vector<40x1xf32>
    %61 = tpu.reciprocal %60 {approx = true} : vector<40x1xf32> -> vector<40x1xf32>
    %62 = vector.broadcast %61 : vector<40x1xf32> to vector<40x40xf32>
    %63 = arith.mulf %58, %62 : vector<40x40xf32>
    %cst_26 = arith.constant dense<0.000000e+00> : vector<40x8xf32>
    %64 = tpu.matmul %63, %50, %cst_26 {dimension_numbers = #tpu.dot_dimension_numbers<[1], [0], [0], [1], [0, 0, 1, 1], [], []>} : vector<40x40xf32>, vector<40x8xf32>, vector<40x8xf32> -> vector<40x8xf32>
    %c16 = arith.constant 16 : index
    %c0_27 = arith.constant 0 : index
    %65 = vector.load %arg4[%c16, %c0_27] : memref<32x32xf32, #tpu.memory_space<vmem>>, vector<8x32xf32>
    %cst_28 = arith.constant dense<0.000000e+00> : vector<40x32xf32>
    %66 = tpu.matmul %64, %65, %cst_28 {dimension_numbers = #tpu.dot_dimension_numbers<[1], [0], [0], [1], [0, 0, 1, 1], [], []>} : vector<40x8xf32>, vector<8x32xf32>, vector<40x32xf32> -> vector<40x32xf32>
    %67 = arith.addf %47, %66 : vector<40x32xf32>
    %68 = vector.extract_strided_slice %6 {offsets = [0, 24], sizes = [40, 8], strides = [1, 1]} : vector<40x96xf32> to vector<40x8xf32>
    %69 = vector.extract_strided_slice %6 {offsets = [0, 56], sizes = [40, 8], strides = [1, 1]} : vector<40x96xf32> to vector<40x8xf32>
    %70 = vector.extract_strided_slice %6 {offsets = [0, 88], sizes = [40, 8], strides = [1, 1]} : vector<40x96xf32> to vector<40x8xf32>
    %cst_29 = arith.constant dense<0.000000e+00> : vector<40x40xf32>
    %71 = tpu.matmul %68, %69, %cst_29 {dimension_numbers = #tpu.dot_dimension_numbers<[1], [1], [0], [0], [0, 0, 1, 0], [], []>} : vector<40x8xf32>, vector<40x8xf32>, vector<40x40xf32> -> vector<40x40xf32>
    %cst_30 = arith.constant 0.353553385 : f32
    %72 = vector.broadcast %cst_30 : f32 to vector<40x40xf32>
    %73 = arith.mulf %71, %72 : vector<40x40xf32>
    %cst_31 = arith.constant dense<0xFF800000> : vector<40xf32>
    %74 = vector.multi_reduction <maximumf>, %73, %cst_31 [1] : vector<40x40xf32> to vector<40xf32>
    %75 = vector.shape_cast %74 : vector<40xf32> to vector<40x1xf32>
    %76 = vector.broadcast %75 : vector<40x1xf32> to vector<40x40xf32>
    %77 = arith.subf %73, %76 : vector<40x40xf32>
    %78 = math.exp %77 : vector<40x40xf32>
    %cst_32 = arith.constant dense<0.000000e+00> : vector<40xf32>
    %79 = vector.multi_reduction <add>, %78, %cst_32 [1] : vector<40x40xf32> to vector<40xf32>
    %80 = vector.shape_cast %79 : vector<40xf32> to vector<40x1xf32>
    %81 = tpu.reciprocal %80 {approx = true} : vector<40x1xf32> -> vector<40x1xf32>
    %82 = vector.broadcast %81 : vector<40x1xf32> to vector<40x40xf32>
    %83 = arith.mulf %78, %82 : vector<40x40xf32>
    %cst_33 = arith.constant dense<0.000000e+00> : vector<40x8xf32>
    %84 = tpu.matmul %83, %70, %cst_33 {dimension_numbers = #tpu.dot_dimension_numbers<[1], [0], [0], [1], [0, 0, 1, 1], [], []>} : vector<40x40xf32>, vector<40x8xf32>, vector<40x8xf32> -> vector<40x8xf32>
    %c24 = arith.constant 24 : index
    %c0_34 = arith.constant 0 : index
    %85 = vector.load %arg4[%c24, %c0_34] : memref<32x32xf32, #tpu.memory_space<vmem>>, vector<8x32xf32>
    %cst_35 = arith.constant dense<0.000000e+00> : vector<40x32xf32>
    %86 = tpu.matmul %84, %85, %cst_35 {dimension_numbers = #tpu.dot_dimension_numbers<[1], [0], [0], [1], [0, 0, 1, 1], [], []>} : vector<40x8xf32>, vector<8x32xf32>, vector<40x32xf32> -> vector<40x32xf32>
    %87 = arith.addf %67, %86 : vector<40x32xf32>
    %c0_36 = arith.constant 0 : index
    %c0_37 = arith.constant 0 : index
    %88 = vector.load %arg5[%c0_36, %c0_37] : memref<1x32xf32, #tpu.memory_space<vmem>>, vector<1x32xf32>
    %89 = vector.broadcast %88 : vector<1x32xf32> to vector<40x32xf32>
    %90 = arith.addf %87, %89 : vector<40x32xf32>
    %91 = arith.addf %1, %90 : vector<40x32xf32>
    %c0_38 = arith.constant 0 : index
    %c0_39 = arith.constant 0 : index
    %92 = vector.load %arg6[%c0_38, %c0_39] : memref<1x32xf32, #tpu.memory_space<vmem>>, vector<1x32xf32>
    %c0_40 = arith.constant 0 : index
    %c0_41 = arith.constant 0 : index
    %93 = vector.load %arg7[%c0_40, %c0_41] : memref<1x32xf32, #tpu.memory_space<vmem>>, vector<1x32xf32>
    %cst_42 = arith.constant dense<0.000000e+00> : vector<40xf32>
    %94 = vector.multi_reduction <add>, %91, %cst_42 [1] : vector<40x32xf32> to vector<40xf32>
    %95 = vector.shape_cast %94 : vector<40xf32> to vector<40x1xf32>
    %cst_43 = arith.constant 3.200000e+01 : f32
    %96 = vector.broadcast %cst_43 : f32 to vector<40x1xf32>
    %97 = arith.divf %95, %96 : vector<40x1xf32>
    %98 = vector.broadcast %97 : vector<40x1xf32> to vector<40x32xf32>
    %99 = arith.subf %91, %98 : vector<40x32xf32>
    %100 = arith.mulf %99, %99 : vector<40x32xf32>
    %cst_44 = arith.constant dense<0.000000e+00> : vector<40xf32>
    %101 = vector.multi_reduction <add>, %100, %cst_44 [1] : vector<40x32xf32> to vector<40xf32>
    %102 = vector.shape_cast %101 : vector<40xf32> to vector<40x1xf32>
    %cst_45 = arith.constant 3.200000e+01 : f32
    %103 = vector.broadcast %cst_45 : f32 to vector<40x1xf32>
    %104 = arith.divf %102, %103 : vector<40x1xf32>
    %105 = vector.broadcast %97 : vector<40x1xf32> to vector<40x32xf32>
    %106 = arith.subf %91, %105 : vector<40x32xf32>
    %cst_46 = arith.constant 9.99999974E-6 : f32
    %107 = vector.broadcast %cst_46 : f32 to vector<40x1xf32>
    %108 = arith.addf %104, %107 : vector<40x1xf32>
    %109 = math.rsqrt %108 : vector<40x1xf32>
    %110 = vector.broadcast %109 : vector<40x1xf32> to vector<40x32xf32>
    %111 = arith.mulf %106, %110 : vector<40x32xf32>
    %112 = vector.broadcast %92 : vector<1x32xf32> to vector<40x32xf32>
    %113 = arith.mulf %111, %112 : vector<40x32xf32>
    %114 = vector.broadcast %93 : vector<1x32xf32> to vector<40x32xf32>
    %115 = arith.addf %113, %114 : vector<40x32xf32>
    %c0_47 = arith.constant 0 : index
    %c0_48 = arith.constant 0 : index
    %116 = vector.load %arg8[%c0_47, %c0_48] : memref<32x64xf32, #tpu.memory_space<vmem>>, vector<32x64xf32>
    %cst_49 = arith.constant dense<0.000000e+00> : vector<40x64xf32>
    %117 = tpu.matmul %115, %116, %cst_49 {dimension_numbers = #tpu.dot_dimension_numbers<[1], [0], [0], [1], [0, 0, 1, 1], [], []>} : vector<40x32xf32>, vector<32x64xf32>, vector<40x64xf32> -> vector<40x64xf32>
    %c0_50 = arith.constant 0 : index
    %c0_51 = arith.constant 0 : index
    %118 = vector.load %arg9[%c0_50, %c0_51] : memref<1x64xf32, #tpu.memory_space<vmem>>, vector<1x64xf32>
    %119 = vector.broadcast %118 : vector<1x64xf32> to vector<40x64xf32>
    %120 = arith.addf %117, %119 : vector<40x64xf32>
    %121 = arith.mulf %120, %120 : vector<40x64xf32>
    %122 = arith.mulf %120, %121 : vector<40x64xf32>
    %cst_52 = arith.constant 4.471500e-02 : f32
    %123 = vector.broadcast %cst_52 : f32 to vector<40x64xf32>
    %124 = arith.mulf %123, %122 : vector<40x64xf32>
    %125 = arith.addf %120, %124 : vector<40x64xf32>
    %cst_53 = arith.constant 0.797884583 : f32
    %126 = vector.broadcast %cst_53 : f32 to vector<40x64xf32>
    %127 = arith.mulf %126, %125 : vector<40x64xf32>
    %128 = math.tanh %127 : vector<40x64xf32>
    %cst_54 = arith.constant 1.000000e+00 : f32
    %129 = vector.broadcast %cst_54 : f32 to vector<40x64xf32>
    %130 = arith.addf %129, %128 : vector<40x64xf32>
    %cst_55 = arith.constant 5.000000e-01 : f32
    %131 = vector.broadcast %cst_55 : f32 to vector<40x64xf32>
    %132 = arith.mulf %131, %130 : vector<40x64xf32>
    %133 = arith.mulf %120, %132 : vector<40x64xf32>
    %c0_56 = arith.constant 0 : index
    %c0_57 = arith.constant 0 : index
    %134 = vector.load %arg10[%c0_56, %c0_57] : memref<64x32xf32, #tpu.memory_space<vmem>>, vector<64x32xf32>
    %cst_58 = arith.constant dense<0.000000e+00> : vector<40x32xf32>
    %135 = tpu.matmul %133, %134, %cst_58 {dimension_numbers = #tpu.dot_dimension_numbers<[1], [0], [0], [1], [0, 0, 1, 1], [], []>} : vector<40x64xf32>, vector<64x32xf32>, vector<40x32xf32> -> vector<40x32xf32>
    %c0_59 = arith.constant 0 : index
    %c0_60 = arith.constant 0 : index
    %136 = vector.load %arg11[%c0_59, %c0_60] : memref<1x32xf32, #tpu.memory_space<vmem>>, vector<1x32xf32>
    %137 = vector.broadcast %136 : vector<1x32xf32> to vector<40x32xf32>
    %138 = arith.addf %135, %137 : vector<40x32xf32>
    %139 = arith.addf %115, %138 : vector<40x32xf32>
    %c0_61 = arith.constant 0 : index
    %c0_62 = arith.constant 0 : index
    %140 = vector.load %arg12[%c0_61, %c0_62] : memref<1x32xf32, #tpu.memory_space<vmem>>, vector<1x32xf32>
    %c0_63 = arith.constant 0 : index
    %c0_64 = arith.constant 0 : index
    %141 = vector.load %arg13[%c0_63, %c0_64] : memref<1x32xf32, #tpu.memory_space<vmem>>, vector<1x32xf32>
    %cst_65 = arith.constant dense<0.000000e+00> : vector<40xf32>
    %142 = vector.multi_reduction <add>, %139, %cst_65 [1] : vector<40x32xf32> to vector<40xf32>
    %143 = vector.shape_cast %142 : vector<40xf32> to vector<40x1xf32>
    %cst_66 = arith.constant 3.200000e+01 : f32
    %144 = vector.broadcast %cst_66 : f32 to vector<40x1xf32>
    %145 = arith.divf %143, %144 : vector<40x1xf32>
    %146 = vector.broadcast %145 : vector<40x1xf32> to vector<40x32xf32>
    %147 = arith.subf %139, %146 : vector<40x32xf32>
    %148 = arith.mulf %147, %147 : vector<40x32xf32>
    %cst_67 = arith.constant dense<0.000000e+00> : vector<40xf32>
    %149 = vector.multi_reduction <add>, %148, %cst_67 [1] : vector<40x32xf32> to vector<40xf32>
    %150 = vector.shape_cast %149 : vector<40xf32> to vector<40x1xf32>
    %cst_68 = arith.constant 3.200000e+01 : f32
    %151 = vector.broadcast %cst_68 : f32 to vector<40x1xf32>
    %152 = arith.divf %150, %151 : vector<40x1xf32>
    %153 = vector.broadcast %145 : vector<40x1xf32> to vector<40x32xf32>
    %154 = arith.subf %139, %153 : vector<40x32xf32>
    %cst_69 = arith.constant 9.99999974E-6 : f32
    %155 = vector.broadcast %cst_69 : f32 to vector<40x1xf32>
    %156 = arith.addf %152, %155 : vector<40x1xf32>
    %157 = math.rsqrt %156 : vector<40x1xf32>
    %158 = vector.broadcast %157 : vector<40x1xf32> to vector<40x32xf32>
    %159 = arith.mulf %154, %158 : vector<40x32xf32>
    %160 = vector.broadcast %140 : vector<1x32xf32> to vector<40x32xf32>
    %161 = arith.mulf %159, %160 : vector<40x32xf32>
    %162 = vector.broadcast %141 : vector<1x32xf32> to vector<40x32xf32>
    %163 = arith.addf %161, %162 : vector<40x32xf32>
    %c0_70 = arith.constant 0 : index
    %c0_71 = arith.constant 0 : index
    %c0_72 = arith.constant 0 : index
    %164 = vector.load %arg14[%c0_70, %c0_71, %c0_72] : memref<1x40x32xf32, #tpu.memory_space<vmem>>, vector<1x40x32xf32>
    %165 = vector.shape_cast %164 : vector<1x40x32xf32> to vector<40x32xf32>
    %166 = vector.shape_cast %163 : vector<40x32xf32> to vector<1x40x32xf32>
    tpu.vector_store %arg14[%c0_70, %c0_71, %c0_72], %166 {strides = array<i32>} : memref<1x40x32xf32, #tpu.memory_space<vmem>>, vector<1x40x32xf32>,
    return
  }
  func.func @transform_0(%arg0: i32) -> (i32, i32, i32) {
    %c0_i32 = arith.constant 0 : i32
    %c0_i32_0 = arith.constant 0 : i32
    %c0_i32_1 = arith.constant 0 : i32
    return %arg0, %c0_i32, %c0_i32_0 : i32, i32, i32
  }
  func.func @transform_1(%arg0: i32) -> (i32, i32) {
    %c0_i32 = arith.constant 0 : i32
    %c0_i32_0 = arith.constant 0 : i32
    %c0_i32_1 = arith.constant 0 : i32
    return %c0_i32, %c0_i32_0 : i32, i32
  }
  func.func @transform_2(%arg0: i32) -> (i32, i32) {
    %c0_i32 = arith.constant 0 : i32
    %c0_i32_0 = arith.constant 0 : i32
    %c0_i32_1 = arith.constant 0 : i32
    return %c0_i32, %c0_i32_0 : i32, i32
  }
  func.func @transform_3(%arg0: i32) -> (i32, i32) {
    %c0_i32 = arith.constant 0 : i32
    %c0_i32_0 = arith.constant 0 : i32
    %c0_i32_1 = arith.constant 0 : i32
    return %c0_i32, %c0_i32_0 : i32, i32
  }
  func.func @transform_4(%arg0: i32) -> (i32, i32) {
    %c0_i32 = arith.constant 0 : i32
    %c0_i32_0 = arith.constant 0 : i32
    %c0_i32_1 = arith.constant 0 : i32
    return %c0_i32, %c0_i32_0 : i32, i32
  }
  func.func @transform_5(%arg0: i32) -> (i32, i32) {
    %c0_i32 = arith.constant 0 : i32
    %c0_i32_0 = arith.constant 0 : i32
    %c0_i32_1 = arith.constant 0 : i32
    return %c0_i32, %c0_i32_0 : i32, i32
  }
  func.func @transform_6(%arg0: i32) -> (i32, i32) {
    %c0_i32 = arith.constant 0 : i32
    %c0_i32_0 = arith.constant 0 : i32
    %c0_i32_1 = arith.constant 0 : i32
    return %c0_i32, %c0_i32_0 : i32, i32
  }
  func.func @transform_7(%arg0: i32) -> (i32, i32) {
    %c0_i32 = arith.constant 0 : i32
    %c0_i32_0 = arith.constant 0 : i32
    %c0_i32_1 = arith.constant 0 : i32
    return %c0_i32, %c0_i32_0 : i32, i32
  }
  func.func @transform_8(%arg0: i32) -> (i32, i32) {
    %c0_i32 = arith.constant 0 : i32
    %c0_i32_0 = arith.constant 0 : i32
    %c0_i32_1 = arith.constant 0 : i32
    return %c0_i32, %c0_i32_0 : i32, i32
  }
  func.func @transform_9(%arg0: i32) -> (i32, i32) {
    %c0_i32 = arith.constant 0 : i32
    %c0_i32_0 = arith.constant 0 : i32
    %c0_i32_1 = arith.constant 0 : i32
    return %c0_i32, %c0_i32_0 : i32, i32
  }
  func.func @transform_10(%arg0: i32) -> (i32, i32) {
    %c0_i32 = arith.constant 0 : i32
    %c0_i32_0 = arith.constant 0 : i32
    %c0_i32_1 = arith.constant 0 : i32
    return %c0_i32, %c0_i32_0 : i32, i32
  }
  func.func @transform_11(%arg0: i32) -> (i32, i32) {
    %c0_i32 = arith.constant 0 : i32
    %c0_i32_0 = arith.constant 0 : i32
    %c0_i32_1 = arith.constant 0 : i32
    return %c0_i32, %c0_i32_0 : i32, i32
  }
  func.func @transform_12(%arg0: i32) -> (i32, i32) {
    %c0_i32 = arith.constant 0 : i32
    %c0_i32_0 = arith.constant 0 : i32
    %c0_i32_1 = arith.constant 0 : i32
    return %c0_i32, %c0_i32_0 : i32, i32
  }
  func.func @transform_13(%arg0: i32) -> (i32, i32, i32) {
    %c0_i32 = arith.constant 0 : i32
    %c0_i32_0 = arith.constant 0 : i32
    %c0_i32_1 = arith.constant 0 : i32
    return %arg0, %c0_i32, %c0_i32_0 : i32, i32, i32
  }
}

module attributes {stable_mosaic.version = 11 : i64} {
  func.func @_mean_axis1_kernel(%arg0: i32, %arg1: memref<6x25x32xf32, #tpu.memory_space<vmem>>, %arg2: memref<6x32xf32, #tpu.memory_space<vmem>>) attributes {dimension_semantics = [#tpu.dimension_semantics<arbitrary>], iteration_bounds = array<i64: 1>, scalar_prefetch = 0 : i64, scratch_operands = 0 : i64, tpu.core_type = #tpu.core_type<tc>, window_params = [{pipeline_mode = #tpu.pipeline_mode<synchronous>, transform_indices = @transform_0, window_bounds = array<i64: 6, 25, 32>}, {pipeline_mode = #tpu.pipeline_mode<synchronous>, transform_indices = @transform_1, window_bounds = array<i64: 6, 32>}]} {
    %c0 = arith.constant 0 : index
    %c0_0 = arith.constant 0 : index
    %c0_1 = arith.constant 0 : index
    %0 = vector.load %arg1[%c0, %c0_0, %c0_1] : memref<6x25x32xf32, #tpu.memory_space<vmem>>, vector<6x25x32xf32>
    %cst = arith.constant dense<0.000000e+00> : vector<6x32xf32>
    %1 = vector.multi_reduction <add>, %0, %cst [1] : vector<6x25x32xf32> to vector<6x32xf32>
    %cst_2 = arith.constant 2.500000e+01 : f32
    %2 = vector.broadcast %cst_2 : f32 to vector<6x32xf32>
    %3 = arith.divf %1, %2 : vector<6x32xf32>
    %c0_3 = arith.constant 0 : index
    %c0_4 = arith.constant 0 : index
    %4 = vector.load %arg2[%c0_3, %c0_4] : memref<6x32xf32, #tpu.memory_space<vmem>>, vector<6x32xf32>
    tpu.vector_store %arg2[%c0_3, %c0_4], %3 {strides = array<i32>} : memref<6x32xf32, #tpu.memory_space<vmem>>, vector<6x32xf32>,
    return
  }
  func.func @transform_0(%arg0: i32) -> (i32, i32, i32) {
    %c0_i32 = arith.constant 0 : i32
    %c0_i32_0 = arith.constant 0 : i32
    %c0_i32_1 = arith.constant 0 : i32
    %c0_i32_2 = arith.constant 0 : i32
    return %c0_i32, %c0_i32_0, %c0_i32_1 : i32, i32, i32
  }
  func.func @transform_1(%arg0: i32) -> (i32, i32) {
    %c0_i32 = arith.constant 0 : i32
    %c0_i32_0 = arith.constant 0 : i32
    %c0_i32_1 = arith.constant 0 : i32
    return %c0_i32, %c0_i32_0 : i32, i32
  }
}

</mosaic_0001>

<llo_original>
// kernel: mert_l2p_forward.11
$region0: #{mert_l2p_forward.11}
  #allocation0 [shape = 'u32[]', space=smem, size = 0x4, offset = 0x4, fixed_abs, tag = 'smem constant byte address 0x4 - core index']
  #allocation1 [shape = 'u32[144,128]{1,0:T(1,128)}', space=vmem, size = 0x12000, scoped, tag = 'internal scratch']
  %s0 = inlined_call_operand.vmem [shape: f32[62,10], index: 0, kind: input, shape index: {}]
  %s1 = inlined_call_operand.vmem [shape: f32[10,16], index: 1, kind: input, shape index: {}]
  %s2 = inlined_call_operand.vmem [shape: f32[1,16], index: 2, kind: input, shape index: {}]
  %s3 = inlined_call_operand.vmem [shape: f32[62,16], index: 3, kind: output, shape index: {}]
  %s4 = sld [smem:[#allocation0]]
  $region22: #{mert_l2p_forward.11} parent=0
    _
  %s6 = ssub.s32 1, %s4
  %s7 = scalar_select 0, %s6, %s4
  // Predicated region
  $region2: #{mert_l2p_forward.11} parent=0 // pred_check
    _
  $region3: #{mert_l2p_forward.11} parent=0 // pred_check_branch
    %9 = sbr.rel (0) target = $region5
  $region4: #{mert_l2p_forward.11} parent=0 // pred_region
    _
  $region5: #{mert_l2p_forward.11} parent=0 // pred_fallthru
    _
  // Predicated region
  $region6: #{mert_l2p_forward.11} parent=0 // pred_check
    _
  $region7: #{mert_l2p_forward.11} parent=0 // pred_check_branch
    %11 = sbr.rel (0) target = $region9
  $region8: #{mert_l2p_forward.11} parent=0 // pred_region
    _
  $region9: #{mert_l2p_forward.11} parent=0 // pred_fallthru
    _
  // Predicated region
  $region10: #{mert_l2p_forward.11} parent=0 // pred_check
    _
  $region11: #{mert_l2p_forward.11} parent=0 // pred_check_branch
    %13 = sbr.rel (0) target = $region13
  $region12: #{mert_l2p_forward.11} parent=0 // pred_region
    _
  $region13: #{mert_l2p_forward.11} parent=0 // pred_fallthru
    _
  %v14 = vld [vmem:[%s0] sm:$0xff]
  %v15 = vld [vmem:[%s0 + $0x8] sm:$0xff]
  %v16 = vld [vmem:[%s0 + $0x10] sm:$0xff]
  %v17 = vld [vmem:[%s0 + $0x18] sm:$0xff]
  %v18 = vld [vmem:[%s0 + $0x20] sm:$0xff]
  %v19 = vld [vmem:[%s0 + $0x28] sm:$0xff]
  %v20 = vld [vmem:[%s0 + $0x30] sm:$0xff]
  %v21 = vld [vmem:[%s0 + $0x38] sm:$0x3f]
  %v22 = vld [vmem:[%s1] sm:$0xff]
  %v23 = vld [vmem:[%s1 + $0x8] sm:$0x3]
  %v24 = vld [vmem:[%s2] sm:$0x1]
  %v26 = vlaneseq
  %v27 = vshrl.u32 %v26, 7
  %v28 = vsub.s32 0, %v27
  %v29 = vrot.slane %v24, %v28
  %vm31 = vcmask 80896
  %v33 = vsel %vm31, %v14, 0
  %v36 = vsel %vm31, %v15, 0
  %v39 = vsel %vm31, %v16, 0
  %v42 = vsel %vm31, %v17, 0
  %v45 = vsel %vm31, %v18, 0
  %v48 = vsel %vm31, %v19, 0
  %v51 = vsel %vm31, %v20, 0
  %v54 = vsel %vm31, %v21, 0
  %vm56 = vcmask 1041408
  %v58 = vsel %vm56, %v23, 0
  %60 = vmatprep.subr.mxu0 0.0
  %61 = vmatpush1.msra.mxu0 0.0
  %62 = vmatprep.subr.mxu0 0.0
  %63 = vmatpush1.msra.mxu0 0.0
  %64 = vmatprep.subr.mxu0 0.0
  %65 = vmatpush1.msra.mxu0 0.0
  %66 = vmatprep.subr.mxu0 0.0
  %67 = vmatpush1.msra.mxu0 0.0
  %68 = vmatprep.subr.mxu0 0.0
  %69 = vmatpush1.msra.mxu0 0.0
  %70 = vmatprep.subr.mxu0 0.0
  %71 = vmatpush1.msra.mxu0 0.0
  %72 = vmatprep.subr.mxu0 0.0
  %73 = vmatpush1.msra.mxu0 0.0
  %74 = vmatprep.subr.mxu0 0.0
  %75 = vmatpush1.msra.mxu0 0.0
  %76 = vmatprep.subr.mxu0 0.0
  %77 = vmatpush1.msra.mxu0 0.0
  %78 = vmatprep.subr.mxu0 0.0
  %79 = vmatpush1.msra.mxu0 0.0
  %80 = vmatprep.subr.mxu0 0.0
  %81 = vmatpush1.msra.mxu0 0.0
  %82 = vmatprep.subr.mxu0 0.0
  %83 = vmatpush1.msra.mxu0 0.0
  %84 = vmatprep.subr.mxu0 0.0
  %85 = vmatpush1.msra.mxu0 0.0
  %86 = vmatprep.subr.mxu0 0.0
  %87 = vmatpush1.msra.mxu0 0.0
  %88 = vmatprep.subr.mxu0 0.0
  %89 = vmatpush1.msra.mxu0 %v58
  %90 = vmatprep.subr.mxu0 0.0
  %91 = vmatpush1.msra.mxu0 %v22
  %92 = vmatprep.subr.mxu0 0.0
  %93 = vmatpush2.msra.mxu0 0.0
  %94 = vmatprep.subr.mxu0 0.0
  %95 = vmatpush2.msra.mxu0 0.0
  %96 = vmatprep.subr.mxu0 0.0
  %97 = vmatpush2.msra.mxu0 0.0
  %98 = vmatprep.subr.mxu0 0.0
  %99 = vmatpush2.msra.mxu0 0.0
  %100 = vmatprep.subr.mxu0 0.0
  %101 = vmatpush2.msra.mxu0 0.0
  %102 = vmatprep.subr.mxu0 0.0
  %103 = vmatpush2.msra.mxu0 0.0
  %104 = vmatprep.subr.mxu0 0.0
  %105 = vmatpush2.msra.mxu0 0.0
  %106 = vmatprep.subr.mxu0 0.0
  %107 = vmatpush2.msra.mxu0 0.0
  %108 = vmatprep.subr.mxu0 0.0
  %109 = vmatpush2.msra.mxu0 0.0
  %110 = vmatprep.subr.mxu0 0.0
  %111 = vmatpush2.msra.mxu0 0.0
  %112 = vmatprep.subr.mxu0 0.0
  %113 = vmatpush2.msra.mxu0 0.0
  %114 = vmatprep.subr.mxu0 0.0
  %115 = vmatpush2.msra.mxu0 0.0
  %116 = vmatprep.subr.mxu0 0.0
  %117 = vmatpush2.msra.mxu0 0.0
  %118 = vmatprep.subr.mxu0 0.0
  %119 = vmatpush2.msra.mxu0 0.0
  %120 = vmatprep.subr.mxu0 0.0
  %121 = vmatpush2.msra.mxu0 0.0
  %122 = vmatprep.subr.mxu0 0.0
  %123 = vmatpush2.msra.mxu0 0.0
  %124 = vmatprep.mubr.f32.mxu0 0.0
  %125 = vmatmul.mubr.f32.gmra.mxu0 %v33
  %v126 = vpop.f32.mrf.mxu0
  %v127 = vadd.f32 %v29, %v126
  %v128 = vpop.f32.mrf.mxu0
  %129 = vmatprep.mubr.f32.mxu0 0.0
  %130 = vmatmul.mubr.f32.gmra.mxu0 %v36
  %v131 = vpop.f32.mrf.mxu0
  %v132 = vadd.f32 %v29, %v131
  %v133 = vpop.f32.mrf.mxu0
  %134 = vmatprep.mubr.f32.mxu0 0.0
  %135 = vmatmul.mubr.f32.gmra.mxu0 %v39
  %v136 = vpop.f32.mrf.mxu0
  %v137 = vadd.f32 %v29, %v136
  %v138 = vpop.f32.mrf.mxu0
  %139 = vmatprep.mubr.f32.mxu0 0.0
  %140 = vmatmul.mubr.f32.gmra.mxu0 %v42
  %v141 = vpop.f32.mrf.mxu0
  %v142 = vadd.f32 %v29, %v141
  %v143 = vpop.f32.mrf.mxu0
  %144 = vmatprep.mubr.f32.mxu0 0.0
  %145 = vmatmul.mubr.f32.gmra.mxu0 %v45
  %v146 = vpop.f32.mrf.mxu0
  %v147 = vadd.f32 %v29, %v146
  %v148 = vpop.f32.mrf.mxu0
  %149 = vmatprep.mubr.f32.mxu0 0.0
  %150 = vmatmul.mubr.f32.gmra.mxu0 %v48
  %v151 = vpop.f32.mrf.mxu0
  %v152 = vadd.f32 %v29, %v151
  %v153 = vpop.f32.mrf.mxu0
  %154 = vmatprep.mubr.f32.mxu0 0.0
  %155 = vmatmul.mubr.f32.gmra.mxu0 %v51
  %v156 = vpop.f32.mrf.mxu0
  %v157 = vadd.f32 %v29, %v156
  %v158 = vpop.f32.mrf.mxu0
  %159 = vmatprep.mubr.f32.mxu0 0.0
  %160 = vmatmul.mubr.f32.gmra.mxu0 %v54
  %v161 = vpop.f32.mrf.mxu0
  %v162 = vadd.f32 %v29, %v161
  %v163 = vpop.f32.mrf.mxu0
  %164 = vdwg.mxu0
  %v165 = vmul.f32 %v127, %v127
  %v166 = vmul.f32 %v132, %v132
  %v167 = vmul.f32 %v137, %v137
  %v168 = vmul.f32 %v142, %v142
  %v169 = vmul.f32 %v147, %v147
  %v170 = vmul.f32 %v152, %v152
  %v171 = vmul.f32 %v157, %v157
  %v172 = vmul.f32 %v162, %v162
  %v173 = vmul.f32 %v127, %v165
  %v174 = vmul.f32 %v132, %v166
  %v175 = vmul.f32 %v137, %v167
  %v176 = vmul.f32 %v142, %v168
  %v177 = vmul.f32 %v147, %v169
  %v178 = vmul.f32 %v152, %v170
  %v179 = vmul.f32 %v157, %v171
  %v180 = vmul.f32 %v162, %v172
  %v181 = vmul.f32 %v173, 0.044715
  %v182 = vmul.f32 %v174, 0.044715
  %v183 = vmul.f32 %v175, 0.044715
  %v184 = vmul.f32 %v176, 0.044715
  %v185 = vmul.f32 %v177, 0.044715
  %v186 = vmul.f32 %v178, 0.044715
  %v187 = vmul.f32 %v179, 0.044715
  %v188 = vmul.f32 %v180, 0.044715
  %v189 = vadd.f32 %v127, %v181
  %v190 = vadd.f32 %v132, %v182
  %v191 = vadd.f32 %v137, %v183
  %v192 = vadd.f32 %v142, %v184
  %v193 = vadd.f32 %v147, %v185
  %v194 = vadd.f32 %v152, %v186
  %v195 = vadd.f32 %v157, %v187
  %v196 = vadd.f32 %v162, %v188
  %v197 = vmul.f32 %v189, 0.7978846
  %v198 = vmul.f32 %v190, 0.7978846
  %v199 = vmul.f32 %v191, 0.7978846
  %v200 = vmul.f32 %v192, 0.7978846
  %v201 = vmul.f32 %v193, 0.7978846
  %v202 = vmul.f32 %v194, 0.7978846
  %v203 = vmul.f32 %v195, 0.7978846
  %v204 = vmul.f32 %v196, 0.7978846
  %v205 = vtanh.pop %v197
  %v206 = vtanh.pop %v198
  %v207 = vtanh.pop %v199
  %v208 = vtanh.pop %v200
  %v209 = vtanh.pop %v201
  %v210 = vtanh.pop %v202
  %v211 = vtanh.pop %v203
  %v212 = vtanh.pop %v204
  %v213 = vadd.f32 %v205, 1.0
  %v214 = vadd.f32 %v206, 1.0
  %v215 = vadd.f32 %v207, 1.0
  %v216 = vadd.f32 %v208, 1.0
  %v217 = vadd.f32 %v209, 1.0
  %v218 = vadd.f32 %v210, 1.0
  %v219 = vadd.f32 %v211, 1.0
  %v220 = vadd.f32 %v212, 1.0
  %v221 = vmul.f32 %v213, 0.5
  %v222 = vmul.f32 %v214, 0.5
  %v223 = vmul.f32 %v215, 0.5
  %v224 = vmul.f32 %v216, 0.5
  %v225 = vmul.f32 %v217, 0.5
  %v226 = vmul.f32 %v218, 0.5
  %v227 = vmul.f32 %v219, 0.5
  %v228 = vmul.f32 %v220, 0.5
  %v229 = vmul.f32 %v127, %v221
  %v230 = vmul.f32 %v132, %v222
  %v231 = vmul.f32 %v137, %v223
  %v232 = vmul.f32 %v142, %v224
  %v233 = vmul.f32 %v147, %v225
  %v234 = vmul.f32 %v152, %v226
  %v235 = vmul.f32 %v157, %v227
  %v236 = vmul.f32 %v162, %v228
  %vm237 = vcmask 130048
  %238 = vst.msk [vmem:[%s3] sm:$0xff] %vm237, %v229
  %239 = vst.msk [vmem:[%s3 + $0x8] sm:$0xff] %vm237, %v230
  %240 = vst.msk [vmem:[%s3 + $0x10] sm:$0xff] %vm237, %v231
  %241 = vst.msk [vmem:[%s3 + $0x18] sm:$0xff] %vm237, %v232
  %242 = vst.msk [vmem:[%s3 + $0x20] sm:$0xff] %vm237, %v233
  %243 = vst.msk [vmem:[%s3 + $0x28] sm:$0xff] %vm237, %v234
  %244 = vst.msk [vmem:[%s3 + $0x30] sm:$0xff] %vm237, %v235
  %vm245 = vcmask 128000
  %246 = vst.msk [vmem:[%s3 + $0x38] sm:$0x3f] %vm245, %v236
  // Predicated region
  $region14: #{mert_l2p_forward.11} parent=0 // pred_check
    _
  $region15: #{mert_l2p_forward.11} parent=0 // pred_check_branch
    %248 = sbr.rel (0) target = $region17
  $region16: #{mert_l2p_forward.11} parent=0 // pred_region
    _
  $region17: #{mert_l2p_forward.11} parent=0 // pred_fallthru
    _
  // Predicated region
  $region18: #{mert_l2p_forward.11} parent=0 // pred_check
    _
  $region19: #{mert_l2p_forward.11} parent=0 // pred_check_branch
    %250 = sbr.rel (0) target = $region21
  $region20: #{mert_l2p_forward.11} parent=0 // pred_region
    _
  $region21: #{mert_l2p_forward.11} parent=0 // pred_fallthru
    _

// kernel: mert_l2p_forward.12
$region0: #{mert_l2p_forward.12}
  #allocation0 [shape = 'u32[]', space=smem, size = 0x4, offset = 0x4, fixed_abs, tag = 'smem constant byte address 0x4 - core index']
  #allocation1 [shape = 'u32[144,128]{1,0:T(1,128)}', space=vmem, size = 0x12000, scoped, tag = 'internal scratch']
  %s0 = inlined_call_operand.vmem [shape: f32[30,48], index: 0, kind: input, shape index: {}]
  %s1 = inlined_call_operand.vmem [shape: f32[48,24], index: 1, kind: input, shape index: {}]
  %s2 = inlined_call_operand.vmem [shape: f32[1,24], index: 2, kind: input, shape index: {}]
  %s3 = inlined_call_operand.vmem [shape: f32[30,24], index: 3, kind: output, shape index: {}]
  %s4 = sld [smem:[#allocation0]]
  $region22: #{mert_l2p_forward.12} parent=0
    _
  %s6 = ssub.s32 1, %s4
  %s7 = scalar_select 0, %s6, %s4
  // Predicated region
  $region2: #{mert_l2p_forward.12} parent=0 // pred_check
    _
  $region3: #{mert_l2p_forward.12} parent=0 // pred_check_branch
    %9 = sbr.rel (0) target = $region5
  $region4: #{mert_l2p_forward.12} parent=0 // pred_region
    _
  $region5: #{mert_l2p_forward.12} parent=0 // pred_fallthru
    _
  // Predicated region
  $region6: #{mert_l2p_forward.12} parent=0 // pred_check
    _
  $region7: #{mert_l2p_forward.12} parent=0 // pred_check_branch
    %11 = sbr.rel (0) target = $region9
  $region8: #{mert_l2p_forward.12} parent=0 // pred_region
    _
  $region9: #{mert_l2p_forward.12} parent=0 // pred_fallthru
    _
  // Predicated region
  $region10: #{mert_l2p_forward.12} parent=0 // pred_check
    _
  $region11: #{mert_l2p_forward.12} parent=0 // pred_check_branch
    %13 = sbr.rel (0) target = $region13
  $region12: #{mert_l2p_forward.12} parent=0 // pred_region
    _
  $region13: #{mert_l2p_forward.12} parent=0 // pred_fallthru
    _
  %v14 = vld [vmem:[%s0] sm:$0xff]
  %v15 = vld [vmem:[%s0 + $0x8] sm:$0xff]
  %v16 = vld [vmem:[%s0 + $0x10] sm:$0xff]
  %v17 = vld [vmem:[%s0 + $0x18] sm:$0x3f]
  %v18 = vld [vmem:[%s1] sm:$0xff]
  %v19 = vld [vmem:[%s1 + $0x8] sm:$0xff]
  %v20 = vld [vmem:[%s1 + $0x10] sm:$0xff]
  %v21 = vld [vmem:[%s1 + $0x18] sm:$0xff]
  %v22 = vld [vmem:[%s1 + $0x20] sm:$0xff]
  %v23 = vld [vmem:[%s1 + $0x28] sm:$0xff]
  %v24 = vld [vmem:[%s2] sm:$0x1]
  %v26 = vlaneseq
  %v27 = vshrl.u32 %v26, 7
  %v28 = vsub.s32 0, %v27
  %v29 = vrot.slane %v24, %v28
  %vm31 = vcmask 392192
  %v33 = vsel %vm31, %v14, 0
  %v36 = vsel %vm31, %v15, 0
  %v39 = vsel %vm31, %v16, 0
  %v42 = vsel %vm31, %v17, 0
  %44 = vmatprep.subr.mxu0 0.0
  %45 = vmatpush1.msra.mxu0 0.0
  %46 = vmatprep.subr.mxu0 0.0
  %47 = vmatpush1.msra.mxu0 0.0
  %48 = vmatprep.subr.mxu0 0.0
  %49 = vmatpush1.msra.mxu0 0.0
  %50 = vmatprep.subr.mxu0 0.0
  %51 = vmatpush1.msra.mxu0 0.0
  %52 = vmatprep.subr.mxu0 0.0
  %53 = vmatpush1.msra.mxu0 0.0
  %54 = vmatprep.subr.mxu0 0.0
  %55 = vmatpush1.msra.mxu0 0.0
  %56 = vmatprep.subr.mxu0 0.0
  %57 = vmatpush1.msra.mxu0 0.0
  %58 = vmatprep.subr.mxu0 0.0
  %59 = vmatpush1.msra.mxu0 0.0
  %60 = vmatprep.subr.mxu0 0.0
  %61 = vmatpush1.msra.mxu0 0.0
  %62 = vmatprep.subr.mxu0 0.0
  %63 = vmatpush1.msra.mxu0 0.0
  %64 = vmatprep.subr.mxu0 0.0
  %65 = vmatpush1.msra.mxu0 %v23
  %66 = vmatprep.subr.mxu0 0.0
  %67 = vmatpush1.msra.mxu0 %v22
  %68 = vmatprep.subr.mxu0 0.0
  %69 = vmatpush1.msra.mxu0 %v21
  %70 = vmatprep.subr.mxu0 0.0
  %71 = vmatpush1.msra.mxu0 %v20
  %72 = vmatprep.subr.mxu0 0.0
  %73 = vmatpush1.msra.mxu0 %v19
  %74 = vmatprep.subr.mxu0 0.0
  %75 = vmatpush1.msra.mxu0 %v18
  %76 = vmatprep.subr.mxu0 0.0
  %77 = vmatpush2.msra.mxu0 0.0
  %78 = vmatprep.subr.mxu0 0.0
  %79 = vmatpush2.msra.mxu0 0.0
  %80 = vmatprep.subr.mxu0 0.0
  %81 = vmatpush2.msra.mxu0 0.0
  %82 = vmatprep.subr.mxu0 0.0
  %83 = vmatpush2.msra.mxu0 0.0
  %84 = vmatprep.subr.mxu0 0.0
  %85 = vmatpush2.msra.mxu0 0.0
  %86 = vmatprep.subr.mxu0 0.0
  %87 = vmatpush2.msra.mxu0 0.0
  %88 = vmatprep.subr.mxu0 0.0
  %89 = vmatpush2.msra.mxu0 0.0
  %90 = vmatprep.subr.mxu0 0.0
  %91 = vmatpush2.msra.mxu0 0.0
  %92 = vmatprep.subr.mxu0 0.0
  %93 = vmatpush2.msra.mxu0 0.0
  %94 = vmatprep.subr.mxu0 0.0
  %95 = vmatpush2.msra.mxu0 0.0
  %96 = vmatprep.subr.mxu0 0.0
  %97 = vmatpush2.msra.mxu0 0.0
  %98 = vmatprep.subr.mxu0 0.0
  %99 = vmatpush2.msra.mxu0 0.0
  %100 = vmatprep.subr.mxu0 0.0
  %101 = vmatpush2.msra.mxu0 0.0
  %102 = vmatprep.subr.mxu0 0.0
  %103 = vmatpush2.msra.mxu0 0.0
  %104 = vmatprep.subr.mxu0 0.0
  %105 = vmatpush2.msra.mxu0 0.0
  %106 = vmatprep.subr.mxu0 0.0
  %107 = vmatpush2.msra.mxu0 0.0
  %108 = vmatprep.mubr.f32.mxu0 0.0
  %109 = vmatmul.mubr.f32.gmra.mxu0 %v33
  %v110 = vpop.f32.mrf.mxu0
  %v111 = vadd.f32 %v29, %v110
  %v112 = vpop.f32.mrf.mxu0
  %113 = vmatprep.mubr.f32.mxu0 0.0
  %114 = vmatmul.mubr.f32.gmra.mxu0 %v36
  %v115 = vpop.f32.mrf.mxu0
  %v116 = vadd.f32 %v29, %v115
  %v117 = vpop.f32.mrf.mxu0
  %118 = vmatprep.mubr.f32.mxu0 0.0
  %119 = vmatmul.mubr.f32.gmra.mxu0 %v39
  %v120 = vpop.f32.mrf.mxu0
  %v121 = vadd.f32 %v29, %v120
  %v122 = vpop.f32.mrf.mxu0
  %123 = vmatprep.mubr.f32.mxu0 0.0
  %124 = vmatmul.mubr.f32.gmra.mxu0 %v42
  %v125 = vpop.f32.mrf.mxu0
  %v126 = vadd.f32 %v29, %v125
  %v127 = vpop.f32.mrf.mxu0
  %128 = vdwg.mxu0
  %v129 = vmul.f32 %v111, %v111
  %v130 = vmul.f32 %v116, %v116
  %v131 = vmul.f32 %v121, %v121
  %v132 = vmul.f32 %v126, %v126
  %v133 = vmul.f32 %v111, %v129
  %v134 = vmul.f32 %v116, %v130
  %v135 = vmul.f32 %v121, %v131
  %v136 = vmul.f32 %v126, %v132
  %v137 = vmul.f32 %v133, 0.044715
  %v138 = vmul.f32 %v134, 0.044715
  %v139 = vmul.f32 %v135, 0.044715
  %v140 = vmul.f32 %v136, 0.044715
  %v141 = vadd.f32 %v111, %v137
  %v142 = vadd.f32 %v116, %v138
  %v143 = vadd.f32 %v121, %v139
  %v144 = vadd.f32 %v126, %v140
  %v145 = vmul.f32 %v141, 0.7978846
  %v146 = vmul.f32 %v142, 0.7978846
  %v147 = vmul.f32 %v143, 0.7978846
  %v148 = vmul.f32 %v144, 0.7978846
  %v149 = vtanh.pop %v145
  %v150 = vtanh.pop %v146
  %v151 = vtanh.pop %v147
  %v152 = vtanh.pop %v148
  %v153 = vadd.f32 %v149, 1.0
  %v154 = vadd.f32 %v150, 1.0
  %v155 = vadd.f32 %v151, 1.0
  %v156 = vadd.f32 %v152, 1.0
  %v157 = vmul.f32 %v153, 0.5
  %v158 = vmul.f32 %v154, 0.5
  %v159 = vmul.f32 %v155, 0.5
  %v160 = vmul.f32 %v156, 0.5
  %v161 = vmul.f32 %v111, %v157
  %v162 = vmul.f32 %v116, %v158
  %v163 = vmul.f32 %v121, %v159
  %v164 = vmul.f32 %v126, %v160
  %vm165 = vcmask 195584
  %166 = vst.msk [vmem:[%s3] sm:$0xff] %vm165, %v161
  %167 = vst.msk [vmem:[%s3 + $0x8] sm:$0xff] %vm165, %v162
  %168 = vst.msk [vmem:[%s3 + $0x10] sm:$0xff] %vm165, %v163
  %vm169 = vcmask 193536
  %170 = vst.msk [vmem:[%s3 + $0x18] sm:$0x3f] %vm169, %v164
  // Predicated region
  $region14: #{mert_l2p_forward.12} parent=0 // pred_check
    _
  $region15: #{mert_l2p_forward.12} parent=0 // pred_check_branch
    %172 = sbr.rel (0) target = $region17
  $region16: #{mert_l2p_forward.12} parent=0 // pred_region
    _
  $region17: #{mert_l2p_forward.12} parent=0 // pred_fallthru
    _
  // Predicated region
  $region18: #{mert_l2p_forward.12} parent=0 // pred_check
    _
  $region19: #{mert_l2p_forward.12} parent=0 // pred_check_branch
    %174 = sbr.rel (0) target = $region21
  $region20: #{mert_l2p_forward.12} parent=0 // pred_region
    _
  $region21: #{mert_l2p_forward.12} parent=0 // pred_fallthru
    _

// kernel: mert_l2p_forward.13
$region0: #{mert_l2p_forward.13}
  #allocation0 [shape = 'u32[]', space=smem, size = 0x4, offset = 0x4, fixed_abs, tag = 'smem constant byte address 0x4 - core index']
  #allocation1 [shape = 'u32[144,128]{1,0:T(1,128)}', space=vmem, size = 0x12000, scoped, tag = 'internal scratch']
  %s0 = inlined_call_operand.vmem [shape: f32[30,24], index: 0, kind: input, shape index: {}]
  %s1 = inlined_call_operand.vmem [shape: f32[1,24], index: 1, kind: input, shape index: {}]
  %s2 = inlined_call_operand.vmem [shape: f32[1,24], index: 2, kind: input, shape index: {}]
  %s3 = inlined_call_operand.vmem [shape: f32[24,32], index: 3, kind: input, shape index: {}]
  %s4 = inlined_call_operand.vmem [shape: f32[1,32], index: 4, kind: input, shape index: {}]
  %s5 = inlined_call_operand.vmem [shape: f32[1,32], index: 5, kind: input, shape index: {}]
  %s6 = inlined_call_operand.vmem [shape: f32[1,32], index: 6, kind: input, shape index: {}]
  %s7 = inlined_call_operand.vmem [shape: f32[30,32], index: 7, kind: output, shape index: {}]
  %s8 = sld [smem:[#allocation0]]
  $region38: #{mert_l2p_forward.13} parent=0
    _
  %s10 = ssub.s32 1, %s8
  %s11 = scalar_select 0, %s10, %s8
  // Predicated region
  $region2: #{mert_l2p_forward.13} parent=0 // pred_check
    _
  $region3: #{mert_l2p_forward.13} parent=0 // pred_check_branch
    %13 = sbr.rel (0) target = $region5
  $region4: #{mert_l2p_forward.13} parent=0 // pred_region
    _
  $region5: #{mert_l2p_forward.13} parent=0 // pred_fallthru
    _
  // Predicated region
  $region6: #{mert_l2p_forward.13} parent=0 // pred_check
    _
  $region7: #{mert_l2p_forward.13} parent=0 // pred_check_branch
    %15 = sbr.rel (0) target = $region9
  $region8: #{mert_l2p_forward.13} parent=0 // pred_region
    _
  $region9: #{mert_l2p_forward.13} parent=0 // pred_fallthru
    _
  // Predicated region
  $region10: #{mert_l2p_forward.13} parent=0 // pred_check
    _
  $region11: #{mert_l2p_forward.13} parent=0 // pred_check_branch
    %17 = sbr.rel (0) target = $region13
  $region12: #{mert_l2p_forward.13} parent=0 // pred_region
    _
  $region13: #{mert_l2p_forward.13} parent=0 // pred_fallthru
    _
  // Predicated region
  $region14: #{mert_l2p_forward.13} parent=0 // pred_check
    _
  $region15: #{mert_l2p_forward.13} parent=0 // pred_check_branch
    %19 = sbr.rel (0) target = $region17
  $region16: #{mert_l2p_forward.13} parent=0 // pred_region
    _
  $region17: #{mert_l2p_forward.13} parent=0 // pred_fallthru
    _
  // Predicated region
  $region18: #{mert_l2p_forward.13} parent=0 // pred_check
    _
  $region19: #{mert_l2p_forward.13} parent=0 // pred_check_branch
    %21 = sbr.rel (0) target = $region21
  $region20: #{mert_l2p_forward.13} parent=0 // pred_region
    _
  $region21: #{mert_l2p_forward.13} parent=0 // pred_fallthru
    _
  // Predicated region
  $region22: #{mert_l2p_forward.13} parent=0 // pred_check
    _
  $region23: #{mert_l2p_forward.13} parent=0 // pred_check_branch
    %23 = sbr.rel (0) target = $region25
  $region24: #{mert_l2p_forward.13} parent=0 // pred_region
    _
  $region25: #{mert_l2p_forward.13} parent=0 // pred_fallthru
    _
  // Predicated region
  $region26: #{mert_l2p_forward.13} parent=0 // pred_check
    _
  $region27: #{mert_l2p_forward.13} parent=0 // pred_check_branch
    %25 = sbr.rel (0) target = $region29
  $region28: #{mert_l2p_forward.13} parent=0 // pred_region
    _
  $region29: #{mert_l2p_forward.13} parent=0 // pred_fallthru
    _
  %v26 = vld [vmem:[%s0] sm:$0xff]
  %v27 = vld [vmem:[%s0 + $0x8] sm:$0xff]
  %v28 = vld [vmem:[%s0 + $0x10] sm:$0xff]
  %v29 = vld [vmem:[%s0 + $0x18] sm:$0x3f]
  %v30 = vld [vmem:[%s1] sm:$0x1]
  %v31 = vld [vmem:[%s2] sm:$0x1]
  %vm32 = vcmask 195584
  %v33 = vsel %vm32, %v26, 0.0
  %34 = vadd.xlane.f32.xlu0 %v33
  %v35 = vpop.xlane.xlu0 %34
  %v36 = vsel %vm32, %v27, 0.0
  %37 = vadd.xlane.f32.xlu0 %v36
  %v38 = vpop.xlane.xlu0 %37
  %v39 = vsel %vm32, %v28, 0.0
  %40 = vadd.xlane.f32.xlu0 %v39
  %v41 = vpop.xlane.xlu0 %40
  %vm42 = vcmask 193536
  %v43 = vsel %vm42, %v29, 0.0
  %44 = vadd.xlane.f32.xlu0 %v43
  %v45 = vpop.xlane.xlu0 %44
  %v46 = vrcp.pop 24.0
  %v47 = vmul.f32 %v35, %v46
  %v48 = vmul.f32 %v38, %v46
  %v49 = vmul.f32 %v41, %v46
  %v50 = vmul.f32 %v45, %v46
  %v51 = vsub.f32 %v26, %v47
  %v52 = vsub.f32 %v27, %v48
  %v53 = vsub.f32 %v28, %v49
  %v54 = vsub.f32 %v29, %v50
  %v55 = vmul.f32 %v51, %v51
  %v56 = vmul.f32 %v52, %v52
  %v57 = vmul.f32 %v53, %v53
  %v58 = vmul.f32 %v54, %v54
  %v59 = vsel %vm32, %v55, 0.0
  %60 = vadd.xlane.f32.xlu0 %v59
  %v61 = vpop.xlane.xlu0 %60
  %v62 = vsel %vm32, %v56, 0.0
  %63 = vadd.xlane.f32.xlu0 %v62
  %v64 = vpop.xlane.xlu0 %63
  %v65 = vsel %vm32, %v57, 0.0
  %66 = vadd.xlane.f32.xlu0 %v65
  %v67 = vpop.xlane.xlu0 %66
  %v68 = vsel %vm42, %v58, 0.0
  %69 = vadd.xlane.f32.xlu0 %v68
  %v70 = vpop.xlane.xlu0 %69
  %v71 = vmul.f32 %v61, %v46
  %v72 = vmul.f32 %v64, %v46
  %v73 = vmul.f32 %v67, %v46
  %v74 = vmul.f32 %v70, %v46
  %v75 = vadd.f32 %v71, 1e-05
  %v76 = vadd.f32 %v72, 1e-05
  %v77 = vadd.f32 %v73, 1e-05
  %v78 = vadd.f32 %v74, 1e-05
  %v79 = vrsqrt.pop %v75
  %v80 = vrsqrt.pop %v76
  %v81 = vrsqrt.pop %v77
  %v82 = vrsqrt.pop %v78
  %v83 = vmul.f32 %v51, %v79
  %v84 = vmul.f32 %v52, %v80
  %v85 = vmul.f32 %v53, %v81
  %v86 = vmul.f32 %v54, %v82
  %v88 = vlaneseq
  %v89 = vshrl.u32 %v88, 7
  %v90 = vsub.s32 0, %v89
  %v91 = vrot.slane %v30, %v90
  %v93 = vmul.f32 %v83, %v91
  %v94 = vmul.f32 %v84, %v91
  %v95 = vmul.f32 %v85, %v91
  %v96 = vmul.f32 %v86, %v91
  %v98 = vlaneseq
  %v99 = vshrl.u32 %v98, 7
  %v100 = vsub.s32 0, %v99
  %v101 = vrot.slane %v31, %v100
  %v103 = vadd.f32 %v93, %v101
  %v104 = vadd.f32 %v94, %v101
  %v105 = vadd.f32 %v95, %v101
  %v106 = vadd.f32 %v96, %v101
  %v107 = vld [vmem:[%s3] sm:$0xff]
  %v108 = vld [vmem:[%s3 + $0x8] sm:$0xff]
  %v109 = vld [vmem:[%s3 + $0x10] sm:$0xff]
  %v110 = vld [vmem:[%s4] sm:$0x1]
  %v112 = vlaneseq
  %v113 = vshrl.u32 %v112, 7
  %v114 = vsub.s32 0, %v113
  %v115 = vrot.slane %v110, %v114
  %v118 = vsel %vm32, %v103, 0
  %v121 = vsel %vm32, %v104, 0
  %v124 = vsel %vm32, %v105, 0
  %v127 = vsel %vm32, %v106, 0
  %129 = vmatprep.subr.mxu0 0.0
  %130 = vmatpush1.msra.mxu0 0.0
  %131 = vmatprep.subr.mxu0 0.0
  %132 = vmatpush1.msra.mxu0 0.0
  %133 = vmatprep.subr.mxu0 0.0
  %134 = vmatpush1.msra.mxu0 0.0
  %135 = vmatprep.subr.mxu0 0.0
  %136 = vmatpush1.msra.mxu0 0.0
  %137 = vmatprep.subr.mxu0 0.0
  %138 = vmatpush1.msra.mxu0 0.0
  %139 = vmatprep.subr.mxu0 0.0
  %140 = vmatpush1.msra.mxu0 0.0
  %141 = vmatprep.subr.mxu0 0.0
  %142 = vmatpush1.msra.mxu0 0.0
  %143 = vmatprep.subr.mxu0 0.0
  %144 = vmatpush1.msra.mxu0 0.0
  %145 = vmatprep.subr.mxu0 0.0
  %146 = vmatpush1.msra.mxu0 0.0
  %147 = vmatprep.subr.mxu0 0.0
  %148 = vmatpush1.msra.mxu0 0.0
  %149 = vmatprep.subr.mxu0 0.0
  %150 = vmatpush1.msra.mxu0 0.0
  %151 = vmatprep.subr.mxu0 0.0
  %152 = vmatpush1.msra.mxu0 0.0
  %153 = vmatprep.subr.mxu0 0.0
  %154 = vmatpush1.msra.mxu0 0.0
  %155 = vmatprep.subr.mxu0 0.0
  %156 = vmatpush1.msra.mxu0 %v109
  %157 = vmatprep.subr.mxu0 0.0
  %158 = vmatpush1.msra.mxu0 %v108
  %159 = vmatprep.subr.mxu0 0.0
  %160 = vmatpush1.msra.mxu0 %v107
  %161 = vmatprep.subr.mxu0 0.0
  %162 = vmatpush2.msra.mxu0 0.0
  %163 = vmatprep.subr.mxu0 0.0
  %164 = vmatpush2.msra.mxu0 0.0
  %165 = vmatprep.subr.mxu0 0.0
  %166 = vmatpush2.msra.mxu0 0.0
  %167 = vmatprep.subr.mxu0 0.0
  %168 = vmatpush2.msra.mxu0 0.0
  %169 = vmatprep.subr.mxu0 0.0
  %170 = vmatpush2.msra.mxu0 0.0
  %171 = vmatprep.subr.mxu0 0.0
  %172 = vmatpush2.msra.mxu0 0.0
  %173 = vmatprep.subr.mxu0 0.0
  %174 = vmatpush2.msra.mxu0 0.0
  %175 = vmatprep.subr.mxu0 0.0
  %176 = vmatpush2.msra.mxu0 0.0
  %177 = vmatprep.subr.mxu0 0.0
  %178 = vmatpush2.msra.mxu0 0.0
  %179 = vmatprep.subr.mxu0 0.0
  %180 = vmatpush2.msra.mxu0 0.0
  %181 = vmatprep.subr.mxu0 0.0
  %182 = vmatpush2.msra.mxu0 0.0
  %183 = vmatprep.subr.mxu0 0.0
  %184 = vmatpush2.msra.mxu0 0.0
  %185 = vmatprep.subr.mxu0 0.0
  %186 = vmatpush2.msra.mxu0 0.0
  %187 = vmatprep.subr.mxu0 0.0
  %188 = vmatpush2.msra.mxu0 0.0
  %189 = vmatprep.subr.mxu0 0.0
  %190 = vmatpush2.msra.mxu0 0.0
  %191 = vmatprep.subr.mxu0 0.0
  %192 = vmatpush2.msra.mxu0 0.0
  %193 = vmatprep.mubr.f32.mxu0 0.0
  %194 = vmatmul.mubr.f32.gmra.mxu0 %v118
  %v195 = vpop.f32.mrf.mxu0
  %v196 = vadd.f32 %v115, %v195
  %v197 = vpop.f32.mrf.mxu0
  %198 = vmatprep.mubr.f32.mxu0 0.0
  %199 = vmatmul.mubr.f32.gmra.mxu0 %v121
  %v200 = vpop.f32.mrf.mxu0
  %v201 = vadd.f32 %v115, %v200
  %v202 = vpop.f32.mrf.mxu0
  %203 = vmatprep.mubr.f32.mxu0 0.0
  %204 = vmatmul.mubr.f32.gmra.mxu0 %v124
  %v205 = vpop.f32.mrf.mxu0
  %v206 = vadd.f32 %v115, %v205
  %v207 = vpop.f32.mrf.mxu0
  %208 = vmatprep.mubr.f32.mxu0 0.0
  %209 = vmatmul.mubr.f32.gmra.mxu0 %v127
  %v210 = vpop.f32.mrf.mxu0
  %v211 = vadd.f32 %v115, %v210
  %v212 = vpop.f32.mrf.mxu0
  %213 = vdwg.mxu0
  %v214 = vld [vmem:[%s5] sm:$0x1]
  %v215 = vld [vmem:[%s6] sm:$0x1]
  %vm216 = vcmask 261120
  %v217 = vsel %vm216, %v196, 0.0
  %218 = vadd.xlane.f32.xlu0 %v217
  %v219 = vpop.xlane.xlu0 %218
  %v220 = vsel %vm216, %v201, 0.0
  %221 = vadd.xlane.f32.xlu0 %v220
  %v222 = vpop.xlane.xlu0 %221
  %v223 = vsel %vm216, %v206, 0.0
  %224 = vadd.xlane.f32.xlu0 %v223
  %v225 = vpop.xlane.xlu0 %224
  %vm226 = vcmask 259072
  %v227 = vsel %vm226, %v211, 0.0
  %228 = vadd.xlane.f32.xlu0 %v227
  %v229 = vpop.xlane.xlu0 %228
  %v230 = vrcp.pop 32.0
  %v231 = vmul.f32 %v219, %v230
  %v232 = vmul.f32 %v222, %v230
  %v233 = vmul.f32 %v225, %v230
  %v234 = vmul.f32 %v229, %v230
  %v235 = vsub.f32 %v196, %v231
  %v236 = vsub.f32 %v201, %v232
  %v237 = vsub.f32 %v206, %v233
  %v238 = vsub.f32 %v211, %v234
  %v239 = vmul.f32 %v235, %v235
  %v240 = vmul.f32 %v236, %v236
  %v241 = vmul.f32 %v237, %v237
  %v242 = vmul.f32 %v238, %v238
  %v243 = vsel %vm216, %v239, 0.0
  %244 = vadd.xlane.f32.xlu0 %v243
  %v245 = vpop.xlane.xlu0 %244
  %v246 = vsel %vm216, %v240, 0.0
  %247 = vadd.xlane.f32.xlu0 %v246
  %v248 = vpop.xlane.xlu0 %247
  %v249 = vsel %vm216, %v241, 0.0
  %250 = vadd.xlane.f32.xlu0 %v249
  %v251 = vpop.xlane.xlu0 %250
  %v252 = vsel %vm226, %v242, 0.0
  %253 = vadd.xlane.f32.xlu0 %v252
  %v254 = vpop.xlane.xlu0 %253
  %v255 = vmul.f32 %v245, %v230
  %v256 = vmul.f32 %v248, %v230
  %v257 = vmul.f32 %v251, %v230
  %v258 = vmul.f32 %v254, %v230
  %v259 = vadd.f32 %v255, 1e-05
  %v260 = vadd.f32 %v256, 1e-05
  %v261 = vadd.f32 %v257, 1e-05
  %v262 = vadd.f32 %v258, 1e-05
  %v263 = vrsqrt.pop %v259
  %v264 = vrsqrt.pop %v260
  %v265 = vrsqrt.pop %v261
  %v266 = vrsqrt.pop %v262
  %v267 = vmul.f32 %v235, %v263
  %v268 = vmul.f32 %v236, %v264
  %v269 = vmul.f32 %v237, %v265
  %v270 = vmul.f32 %v238, %v266
  %v272 = vlaneseq
  %v273 = vshrl.u32 %v272, 7
  %v274 = vsub.s32 0, %v273
  %v275 = vrot.slane %v214, %v274
  %v277 = vmul.f32 %v267, %v275
  %v278 = vmul.f32 %v268, %v275
  %v279 = vmul.f32 %v269, %v275
  %v280 = vmul.f32 %v270, %v275
  %v282 = vlaneseq
  %v283 = vshrl.u32 %v282, 7
  %v284 = vsub.s32 0, %v283
  %v285 = vrot.slane %v215, %v284
  %v287 = vadd.f32 %v277, %v285
  %v288 = vadd.f32 %v278, %v285
  %v289 = vadd.f32 %v279, %v285
  %v290 = vadd.f32 %v280, %v285
  %291 = vst.msk [vmem:[%s7] sm:$0xff] %vm216, %v287
  %292 = vst.msk [vmem:[%s7 + $0x8] sm:$0xff] %vm216, %v288
  %293 = vst.msk [vmem:[%s7 + $0x10] sm:$0xff] %vm216, %v289
  %294 = vst.msk [vmem:[%s7 + $0x18] sm:$0x3f] %vm226, %v290
  // Predicated region
  $region30: #{mert_l2p_forward.13} parent=0 // pred_check
    _
  $region31: #{mert_l2p_forward.13} parent=0 // pred_check_branch
    %296 = sbr.rel (0) target = $region33
  $region32: #{mert_l2p_forward.13} parent=0 // pred_region
    _
  $region33: #{mert_l2p_forward.13} parent=0 // pred_fallthru
    _
  // Predicated region
  $region34: #{mert_l2p_forward.13} parent=0 // pred_check
    _
  $region35: #{mert_l2p_forward.13} parent=0 // pred_check_branch
    %298 = sbr.rel (0) target = $region37
  $region36: #{mert_l2p_forward.13} parent=0 // pred_region
    _
  $region37: #{mert_l2p_forward.13} parent=0 // pred_fallthru
    _

// kernel: neg.2
$region0: #{neg.2}
  #allocation0 [shape = 's32[1]{0}', space=sflag, size = 0x4, scoped, tag = 'scoped memory for neg.2']
  %s0 = inlined_call_operand.vmem [shape: f32[2,10], index: 0, kind: input, shape index: {}]
  %s1 = inlined_call_operand.vmem [shape: f32[2,10], index: 1, kind: output, shape index: {}]
  %v2 = vld [vmem:[%s0] sm:$0x3]
  %3 = xla_tuple %v2
  %4 = xla_tuple %3
  %v5 = vxor.u32 %v2, 2147483648
  %6 = xla_tuple %v5
  %7 = vst [vmem:[%s1] sm:$0x3] %v5

// kernel: mert_l2p_forward.16
$region0: #{mert_l2p_forward.16}
  #allocation0 [shape = 'u32[]', space=smem, size = 0x4, offset = 0x4, fixed_abs, tag = 'smem constant byte address 0x4 - core index']
  #allocation1 [shape = 'u32[144,128]{1,0:T(1,128)}', space=vmem, size = 0x12000, scoped, tag = 'internal scratch']
  %s0 = inlined_call_operand.vmem [shape: f32[2,45,32], index: 0, kind: input, shape index: {}]
  %s1 = inlined_call_operand.vmem [shape: f32[2,32], index: 1, kind: output, shape index: {}]
  %s2 = sld [smem:[#allocation0]]
  $region14: #{mert_l2p_forward.16} parent=0
    _
  %s4 = ssub.s32 1, %s2
  %s5 = scalar_select 0, %s4, %s2
  // Predicated region
  $region2: #{mert_l2p_forward.16} parent=0 // pred_check
    _
  $region3: #{mert_l2p_forward.16} parent=0 // pred_check_branch
    %7 = sbr.rel (0) target = $region5
  $region4: #{mert_l2p_forward.16} parent=0 // pred_region
    _
  $region5: #{mert_l2p_forward.16} parent=0 // pred_fallthru
    _
  %v8 = vld [vmem:[%s0] sm:$0xff]
  %v9 = vld [vmem:[%s0 + $0x8] sm:$0xff]
  %v10 = vld [vmem:[%s0 + $0x10] sm:$0xff]
  %v11 = vld [vmem:[%s0 + $0x18] sm:$0xff]
  %v12 = vld [vmem:[%s0 + $0x20] sm:$0xff]
  %v13 = vld [vmem:[%s0 + $0x28] sm:$0x1f]
  %v14 = vld [vmem:[%s0 + $0x30] sm:$0xff]
  %v15 = vld [vmem:[%s0 + $0x38] sm:$0xff]
  %v16 = vld [vmem:[%s0 + $0x40] sm:$0xff]
  %v17 = vld [vmem:[%s0 + $0x48] sm:$0xff]
  %v18 = vld [vmem:[%s0 + $0x50] sm:$0xff]
  %v19 = vld [vmem:[%s0 + $0x58] sm:$0x1f]
  %vm20 = vcmask 261120
  %v21 = vsel %vm20, %v8, 0.0
  %v22 = vsel %vm20, %v9, 0.0
  %v23 = vadd.f32 %v21, %v22
  %v24 = vsel %vm20, %v10, 0.0
  %v25 = vadd.f32 %v23, %v24
  %v26 = vsel %vm20, %v11, 0.0
  %v27 = vadd.f32 %v25, %v26
  %v28 = vsel %vm20, %v12, 0.0
  %v29 = vadd.f32 %v27, %v28
  %vm30 = vcmask 258048
  %v31 = vsel %vm30, %v13, 0.0
  %v32 = vadd.f32 %v29, %v31
  %v33 = vrot.slane %v32, 4
  %v34 = vadd.f32 %v32, %v33
  %v35 = vrot.slane %v34, 2
  %v36 = vadd.f32 %v34, %v35
  %v37 = vrot.slane %v36, 1
  %v38 = vadd.f32 %v36, %v37
  %v39 = vsel %vm20, %v14, 0.0
  %v40 = vsel %vm20, %v15, 0.0
  %v41 = vadd.f32 %v39, %v40
  %v42 = vsel %vm20, %v16, 0.0
  %v43 = vadd.f32 %v41, %v42
  %v44 = vsel %vm20, %v17, 0.0
  %v45 = vadd.f32 %v43, %v44
  %v46 = vsel %vm20, %v18, 0.0
  %v47 = vadd.f32 %v45, %v46
  %v48 = vsel %vm30, %v19, 0.0
  %v49 = vadd.f32 %v47, %v48
  %v50 = vrot.slane %v49, 4
  %v51 = vadd.f32 %v49, %v50
  %v52 = vrot.slane %v51, 2
  %v53 = vadd.f32 %v51, %v52
  %v54 = vrot.slane %v53, 1
  %v55 = vadd.f32 %v53, %v54
  %v56 = vrcp.pop 45.0
  %v57 = vmul.f32 %v38, %v56
  %v58 = vmul.f32 %v55, %v56
  %vm61 = vcmask 1041409
  %v62 = vsel %vm61, %v58, %v57
  %vm64 = vcmask 254976
  %65 = vst.msk [vmem:[%s1] sm:$0x3] %vm64, %v62
  // Predicated region
  $region6: #{mert_l2p_forward.16} parent=0 // pred_check
    _
  $region7: #{mert_l2p_forward.16} parent=0 // pred_check_branch
    %67 = sbr.rel (0) target = $region9
  $region8: #{mert_l2p_forward.16} parent=0 // pred_region
    _
  $region9: #{mert_l2p_forward.16} parent=0 // pred_fallthru
    _
  // Predicated region
  $region10: #{mert_l2p_forward.16} parent=0 // pred_check
    _
  $region11: #{mert_l2p_forward.16} parent=0 // pred_check_branch
    %69 = sbr.rel (0) target = $region13
  $region12: #{mert_l2p_forward.16} parent=0 // pred_region
    _
  $region13: #{mert_l2p_forward.16} parent=0 // pred_fallthru
    _

// kernel: mert_l2p_forward.17
$region0: #{mert_l2p_forward.17}
  #allocation0 [shape = 'u32[]', space=smem, size = 0x4, offset = 0x4, fixed_abs, tag = 'smem constant byte address 0x4 - core index']
  #allocation1 [shape = 'u32[144,128]{1,0:T(1,128)}', space=vmem, size = 0x12000, scoped, tag = 'internal scratch']
  %s0 = inlined_call_operand.vmem [shape: f32[2,32], index: 0, kind: input, shape index: {}]
  %s1 = inlined_call_operand.vmem [shape: f32[10,32], index: 1, kind: input, shape index: {}]
  %s2 = inlined_call_operand.vmem [shape: f32[1,10], index: 2, kind: input, shape index: {}]
  %s3 = inlined_call_operand.vmem [shape: f32[2,10], index: 3, kind: output, shape index: {}]
  %s4 = sld [smem:[#allocation0]]
  $region22: #{mert_l2p_forward.17} parent=0
    _
  %s6 = ssub.s32 1, %s4
  %s7 = scalar_select 0, %s6, %s4
  // Predicated region
  $region2: #{mert_l2p_forward.17} parent=0 // pred_check
    _
  $region3: #{mert_l2p_forward.17} parent=0 // pred_check_branch
    %9 = sbr.rel (0) target = $region5
  $region4: #{mert_l2p_forward.17} parent=0 // pred_region
    _
  $region5: #{mert_l2p_forward.17} parent=0 // pred_fallthru
    _
  // Predicated region
  $region6: #{mert_l2p_forward.17} parent=0 // pred_check
    _
  $region7: #{mert_l2p_forward.17} parent=0 // pred_check_branch
    %11 = sbr.rel (0) target = $region9
  $region8: #{mert_l2p_forward.17} parent=0 // pred_region
    _
  $region9: #{mert_l2p_forward.17} parent=0 // pred_fallthru
    _
  // Predicated region
  $region10: #{mert_l2p_forward.17} parent=0 // pred_check
    _
  $region11: #{mert_l2p_forward.17} parent=0 // pred_check_branch
    %13 = sbr.rel (0) target = $region13
  $region12: #{mert_l2p_forward.17} parent=0 // pred_region
    _
  $region13: #{mert_l2p_forward.17} parent=0 // pred_fallthru
    _
  %v14 = vld [vmem:[%s0] sm:$0x3]
  %v15 = vld [vmem:[%s1] sm:$0xff]
  %v16 = vld [vmem:[%s1 + $0x8] sm:$0x3]
  %v17 = vmul.f32 %v14, %v14
  %vm18 = vcmask 254976
  %v19 = vsel %vm18, %v17, 0.0
  %20 = vadd.xlane.f32.xlu0 %v19
  %v21 = vpop.xlane.xlu0 %20
  %vm22 = vcmask 261120
  %v24 = vsel %vm22, %v14, 0
  %v27 = vsel %vm22, %v15, 0
  %v30 = vsel %vm22, %v16, 0
  %32 = vmatprep.subr.mxu0 0.0
  %33 = vmatpush1.xpose.msra.mxu0 0.0
  %34 = vmatprep.subr.mxu0 0.0
  %35 = vmatpush1.xpose.msra.mxu0 0.0
  %36 = vmatprep.subr.mxu0 0.0
  %37 = vmatpush1.xpose.msra.mxu0 0.0
  %38 = vmatprep.subr.mxu0 0.0
  %39 = vmatpush1.xpose.msra.mxu0 0.0
  %40 = vmatprep.subr.mxu0 0.0
  %41 = vmatpush1.xpose.msra.mxu0 0.0
  %42 = vmatprep.subr.mxu0 0.0
  %43 = vmatpush1.xpose.msra.mxu0 0.0
  %44 = vmatprep.subr.mxu0 0.0
  %45 = vmatpush1.xpose.msra.mxu0 0.0
  %46 = vmatprep.subr.mxu0 0.0
  %47 = vmatpush1.xpose.msra.mxu0 0.0
  %48 = vmatprep.subr.mxu0 0.0
  %49 = vmatpush1.xpose.msra.mxu0 0.0
  %50 = vmatprep.subr.mxu0 0.0
  %51 = vmatpush1.xpose.msra.mxu0 0.0
  %52 = vmatprep.subr.mxu0 0.0
  %53 = vmatpush1.xpose.msra.mxu0 0.0
  %54 = vmatprep.subr.mxu0 0.0
  %55 = vmatpush1.xpose.msra.mxu0 0.0
  %56 = vmatprep.subr.mxu0 0.0
  %57 = vmatpush1.xpose.msra.mxu0 0.0
  %58 = vmatprep.subr.mxu0 0.0
  %59 = vmatpush1.xpose.msra.mxu0 0.0
  %60 = vmatprep.subr.mxu0 0.0
  %61 = vmatpush1.xpose.msra.mxu0 %v30
  %62 = vmatprep.subr.mxu0 0.0
  %63 = vmatpush1.xpose.msra.mxu0 %v27
  %64 = vmatprep.subr.mxu0 0.0
  %65 = vmatpush2.xpose.msra.mxu0 0.0
  %66 = vmatprep.subr.mxu0 0.0
  %67 = vmatpush2.xpose.msra.mxu0 0.0
  %68 = vmatprep.subr.mxu0 0.0
  %69 = vmatpush2.xpose.msra.mxu0 0.0
  %70 = vmatprep.subr.mxu0 0.0
  %71 = vmatpush2.xpose.msra.mxu0 0.0
  %72 = vmatprep.subr.mxu0 0.0
  %73 = vmatpush2.xpose.msra.mxu0 0.0
  %74 = vmatprep.subr.mxu0 0.0
  %75 = vmatpush2.xpose.msra.mxu0 0.0
  %76 = vmatprep.subr.mxu0 0.0
  %77 = vmatpush2.xpose.msra.mxu0 0.0
  %78 = vmatprep.subr.mxu0 0.0
  %79 = vmatpush2.xpose.msra.mxu0 0.0
  %80 = vmatprep.subr.mxu0 0.0
  %81 = vmatpush2.xpose.msra.mxu0 0.0
  %82 = vmatprep.subr.mxu0 0.0
  %83 = vmatpush2.xpose.msra.mxu0 0.0
  %84 = vmatprep.subr.mxu0 0.0
  %85 = vmatpush2.xpose.msra.mxu0 0.0
  %86 = vmatprep.subr.mxu0 0.0
  %87 = vmatpush2.xpose.msra.mxu0 0.0
  %88 = vmatprep.subr.mxu0 0.0
  %89 = vmatpush2.xpose.msra.mxu0 0.0
  %90 = vmatprep.subr.mxu0 0.0
  %91 = vmatpush2.xpose.msra.mxu0 0.0
  %92 = vmatprep.subr.mxu0 0.0
  %93 = vmatpush2.xpose.msra.mxu0 0.0
  %94 = vmatprep.subr.mxu0 0.0
  %95 = vmatpush2.xpose.msra.mxu0 0.0
  %96 = vmatprep.mubr.f32.mxu0 0.0
  %97 = vmatmul.mubr.f32.gmra.mxu0 %v24
  %v98 = vpop.f32.mrf.mxu0
  %v99 = vadd.f32 0.0, %v98
  %v100 = vpop.f32.mrf.mxu0
  %101 = vdwg.mxu0
  %v102 = vld [vmem:[%s2] sm:$0x1]
  %v104 = vlaneseq
  %v105 = vshrl.u32 %v104, 7
  %v106 = vsub.s32 0, %v105
  %v107 = vrot.slane %v102, %v106
  %v109 = vadd.f32 %v21, %v107
  %v110 = vmul.f32 %v99, 2.0
  %v111 = vsub.f32 %v109, %v110
  %v112 = vmax.f32 %v111, 0.0
  %v113 = vrsqrt.pop %v112
  %v114 = vmul.f32 %v112, %v113
  %vm115 = vcmp.eq.f32.partialorder %v112, inf
  %v116 = vsel %vm115, %v112, %v114
  %vm117 = vcmp.eq.f32.partialorder %v112, 0.0
  %v118 = vand.u32 %v112, 2147483648
  %v119 = vsel %vm117, %v118, %v116
  %vm120 = vcmask 74752
  %121 = vst.msk [vmem:[%s3] sm:$0x3] %vm120, %v119
  // Predicated region
  $region14: #{mert_l2p_forward.17} parent=0 // pred_check
    _
  $region15: #{mert_l2p_forward.17} parent=0 // pred_check_branch
    %123 = sbr.rel (0) target = $region17
  $region16: #{mert_l2p_forward.17} parent=0 // pred_region
    _
  $region17: #{mert_l2p_forward.17} parent=0 // pred_fallthru
    _
  // Predicated region
  $region18: #{mert_l2p_forward.17} parent=0 // pred_check
    _
  $region19: #{mert_l2p_forward.17} parent=0 // pred_check_branch
    %125 = sbr.rel (0) target = $region21
  $region20: #{mert_l2p_forward.17} parent=0 // pred_region
    _
  $region21: #{mert_l2p_forward.17} parent=0 // pred_fallthru
    _

// kernel: mert_l2p_forward.14
$region0: #{mert_l2p_forward.14}
  #allocation0 [shape = 'u32[]', space=smem, size = 0x4, offset = 0x4, fixed_abs, tag = 'smem constant byte address 0x4 - core index']
  #allocation1 [shape = 'u32[144,128]{1,0:T(1,128)}', space=vmem, size = 0x12000, scoped, tag = 'internal scratch']
  %s0 = inlined_call_operand.vmem [shape: f32[2,15,32], index: 0, kind: input, shape index: {}]
  %s1 = inlined_call_operand.vmem [shape: f32[32,96], index: 1, kind: input, shape index: {}]
  %s2 = inlined_call_operand.vmem [shape: f32[1,96], index: 2, kind: input, shape index: {}]
  %s3 = inlined_call_operand.vmem [shape: f32[32,32], index: 3, kind: input, shape index: {}]
  %s4 = inlined_call_operand.vmem [shape: f32[1,32], index: 4, kind: input, shape index: {}]
  %s5 = inlined_call_operand.vmem [shape: f32[1,32], index: 5, kind: input, shape index: {}]
  %s6 = inlined_call_operand.vmem [shape: f32[1,32], index: 6, kind: input, shape index: {}]
  %s7 = inlined_call_operand.vmem [shape: f32[32,64], index: 7, kind: input, shape index: {}]
  %s8 = inlined_call_operand.vmem [shape: f32[1,64], index: 8, kind: input, shape index: {}]
  %s9 = inlined_call_operand.vmem [shape: f32[64,32], index: 9, kind: input, shape index: {}]
  %s10 = inlined_call_operand.vmem [shape: f32[1,32], index: 10, kind: input, shape index: {}]
  %s11 = inlined_call_operand.vmem [shape: f32[1,32], index: 11, kind: input, shape index: {}]
  %s12 = inlined_call_operand.vmem [shape: f32[1,32], index: 12, kind: input, shape index: {}]
  %s13 = inlined_call_operand.vmem [shape: f32[2,15,32], index: 13, kind: output, shape index: {}]
  %s14 = sld [smem:[#allocation0]]
  $region85: #{mert_l2p_forward.14} parent=0
    _
  %s16 = ssub.s32 1, %s14
  %s17 = scalar_select 0, %s16, %s14
  loop: start=0, step=1, limit=4
  $region2: #{mert_l2p_forward.14} parent=0 // loop_pre_header
    _
  $region3: #{mert_l2p_forward.14} parent=0 // loop_header
    %s19 = sphi 0, %s23
    %p20 = scmp.ge.s32.totalorder %s19, 4
    %s29 = sphi 0, %s31
    %s32 = sphi 0, %s29
    %s33 = sphi 0, %s32
    %s49 = sphi 0, %s33
    %s53 = sphi 0, %s53
    %s55 = sphi 0, %s53
    %s56 = sphi 0, %s55
    %s70 = sphi 0, %s56
    %s74 = sphi 0, %s74
    %s76 = sphi 0, %s74
    %s77 = sphi 0, %s76
    %s91 = sphi 0, %s77
    %s95 = sphi 0, %s95
    %s97 = sphi 0, %s95
    %s98 = sphi 0, %s97
    %s112 = sphi 0, %s98
    %s116 = sphi 0, %s116
    %s118 = sphi 0, %s116
    %s119 = sphi 0, %s118
    %s133 = sphi 0, %s119
    %s137 = sphi 0, %s137
    %s139 = sphi 0, %s137
    %s140 = sphi 0, %s139
    %s154 = sphi 0, %s140
    %s158 = sphi 0, %s158
    %s160 = sphi 0, %s158
    %s161 = sphi 0, %s160
    %s175 = sphi 0, %s161
    %s179 = sphi 0, %s179
    %s181 = sphi 0, %s179
    %s182 = sphi 0, %s181
    %s196 = sphi 0, %s182
    %s200 = sphi 0, %s200
    %s202 = sphi 0, %s200
    %s203 = sphi 0, %s202
    %s217 = sphi 0, %s203
    %s221 = sphi 0, %s221
    %s223 = sphi 0, %s221
    %s224 = sphi 0, %s223
    %s238 = sphi 0, %s224
    %s242 = sphi 0, %s242
    %s244 = sphi 0, %s242
    %s245 = sphi 0, %s244
    %s259 = sphi 0, %s245
    %s263 = sphi 0, %s263
    %s265 = sphi 0, %s263
    %s266 = sphi 0, %s265
    %s280 = sphi 0, %s266
    %s284 = sphi 0, %s284
    %s286 = sphi 0, %s284
    %s287 = sphi 0, %s286
    %s301 = sphi 0, %s287
    %s307 = sphi 0, %s309
    %s310 = sphi 0, %s307
    %s311 = sphi 0, %s310
    %s327 = sphi 0, %s311
  $region4: #{mert_l2p_forward.14} parent=0 // loop_header_branch
    %22 = sbr.rel (%p20) target = $region8
  $region5: #{mert_l2p_forward.14} parent=0 // loop_body
    %s24 = ssub.s32 %s19, 1
    %s25 = ssub.s32 %s19, 2
    %s26 = sadd.s32 %s19, 1
    %s27 = ssub.s32 %s19, %s26
    %p28 = scmp.eq.s32.totalorder %s27, 0
    %s30 = sadd.s32 %s29, 1
    %s31 = scalar_select %p28, %s29, %s30
    %p34 = pneg %p28
    %p35 = scmp.eq.s32.totalorder %s19, 1
    %p36 = por %p34, %p35
    %p37 = scmp.ne.s32.totalorder %s29, %s32
    %p38 = scmp.eq.s32.totalorder %s19, 0
    %p39 = por %p37, %p38
    %p40 = scmp.ne.s32.totalorder %s29, %s32
    %p41 = scmp.eq.s32.totalorder %s24, 1
    %p42 = por %p40, %p41
    %p43 = scmp.ne.s32.totalorder %s32, %s33
    %p44 = scmp.eq.s32.totalorder %s24, 0
    %p45 = por %p43, %p44
    %p46 = scmp.ne.s32.totalorder %s32, %s33
    %p47 = scmp.eq.s32.totalorder %s25, 1
    %p48 = por %p46, %p47
    %p50 = scmp.ne.s32.totalorder %s33, %s49
    %p51 = scmp.eq.s32.totalorder %s25, 0
    %p52 = por %p50, %p51
    %s54 = sadd.s32 %s53, 1
    %p57 = scmp.eq.s32.totalorder %s19, 1
    %p58 = scmp.ne.s32.totalorder %s53, %s55
    %p59 = scmp.eq.s32.totalorder %s19, 0
    %p60 = por %p58, %p59
    %p61 = scmp.ne.s32.totalorder %s53, %s55
    %p62 = scmp.eq.s32.totalorder %s24, 1
    %p63 = por %p61, %p62
    %p64 = scmp.ne.s32.totalorder %s55, %s56
    %p65 = scmp.eq.s32.totalorder %s24, 0
    %p66 = por %p64, %p65
    %p67 = scmp.ne.s32.totalorder %s55, %s56
    %p68 = scmp.eq.s32.totalorder %s25, 1
    %p69 = por %p67, %p68
    %p71 = scmp.ne.s32.totalorder %s56, %s70
    %p72 = scmp.eq.s32.totalorder %s25, 0
    %p73 = por %p71, %p72
    %s75 = sadd.s32 %s74, 1
    %p78 = scmp.eq.s32.totalorder %s19, 1
    %p79 = scmp.ne.s32.totalorder %s74, %s76
    %p80 = scmp.eq.s32.totalorder %s19, 0
    %p81 = por %p79, %p80
    %p82 = scmp.ne.s32.totalorder %s74, %s76
    %p83 = scmp.eq.s32.totalorder %s24, 1
    %p84 = por %p82, %p83
    %p85 = scmp.ne.s32.totalorder %s76, %s77
    %p86 = scmp.eq.s32.totalorder %s24, 0
    %p87 = por %p85, %p86
    %p88 = scmp.ne.s32.totalorder %s76, %s77
    %p89 = scmp.eq.s32.totalorder %s25, 1
    %p90 = por %p88, %p89
    %p92 = scmp.ne.s32.totalorder %s77, %s91
    %p93 = scmp.eq.s32.totalorder %s25, 0
    %p94 = por %p92, %p93
    %s96 = sadd.s32 %s95, 1
    %p99 = scmp.eq.s32.totalorder %s19, 1
    %p100 = scmp.ne.s32.totalorder %s95, %s97
    %p101 = scmp.eq.s32.totalorder %s19, 0
    %p102 = por %p100, %p101
    %p103 = scmp.ne.s32.totalorder %s95, %s97
    %p104 = scmp.eq.s32.totalorder %s24, 1
    %p105 = por %p103, %p104
    %p106 = scmp.ne.s32.totalorder %s97, %s98
    %p107 = scmp.eq.s32.totalorder %s24, 0
    %p108 = por %p106, %p107
    %p109 = scmp.ne.s32.totalorder %s97, %s98
    %p110 = scmp.eq.s32.totalorder %s25, 1
    %p111 = por %p109, %p110
    %p113 = scmp.ne.s32.totalorder %s98, %s112
    %p114 = scmp.eq.s32.totalorder %s25, 0
    %p115 = por %p113, %p114
    %s117 = sadd.s32 %s116, 1
    %p120 = scmp.eq.s32.totalorder %s19, 1
    %p121 = scmp.ne.s32.totalorder %s116, %s118
    %p122 = scmp.eq.s32.totalorder %s19, 0
    %p123 = por %p121, %p122
    %p124 = scmp.ne.s32.totalorder %s116, %s118
    %p125 = scmp.eq.s32.totalorder %s24, 1
    %p126 = por %p124, %p125
    %p127 = scmp.ne.s32.totalorder %s118, %s119
    %p128 = scmp.eq.s32.totalorder %s24, 0
    %p129 = por %p127, %p128
    %p130 = scmp.ne.s32.totalorder %s118, %s119
    %p131 = scmp.eq.s32.totalorder %s25, 1
    %p132 = por %p130, %p131
    %p134 = scmp.ne.s32.totalorder %s119, %s133
    %p135 = scmp.eq.s32.totalorder %s25, 0
    %p136 = por %p134, %p135
    %s138 = sadd.s32 %s137, 1
    %p141 = scmp.eq.s32.totalorder %s19, 1
    %p142 = scmp.ne.s32.totalorder %s137, %s139
    %p143 = scmp.eq.s32.totalorder %s19, 0
    %p144 = por %p142, %p143
    %p145 = scmp.ne.s32.totalorder %s137, %s139
    %p146 = scmp.eq.s32.totalorder %s24, 1
    %p147 = por %p145, %p146
    %p148 = scmp.ne.s32.totalorder %s139, %s140
    %p149 = scmp.eq.s32.totalorder %s24, 0
    %p150 = por %p148, %p149
    %p151 = scmp.ne.s32.totalorder %s139, %s140
    %p152 = scmp.eq.s32.totalorder %s25, 1
    %p153 = por %p151, %p152
    %p155 = scmp.ne.s32.totalorder %s140, %s154
    %p156 = scmp.eq.s32.totalorder %s25, 0
    %p157 = por %p155, %p156
    %s159 = sadd.s32 %s158, 1
    %p162 = scmp.eq.s32.totalorder %s19, 1
    %p163 = scmp.ne.s32.totalorder %s158, %s160
    %p164 = scmp.eq.s32.totalorder %s19, 0
    %p165 = por %p163, %p164
    %p166 = scmp.ne.s32.totalorder %s158, %s160
    %p167 = scmp.eq.s32.totalorder %s24, 1
    %p168 = por %p166, %p167
    %p169 = scmp.ne.s32.totalorder %s160, %s161
    %p170 = scmp.eq.s32.totalorder %s24, 0
    %p171 = por %p169, %p170
    %p172 = scmp.ne.s32.totalorder %s160, %s161
    %p173 = scmp.eq.s32.totalorder %s25, 1
    %p174 = por %p172, %p173
    %p176 = scmp.ne.s32.totalorder %s161, %s175
    %p177 = scmp.eq.s32.totalorder %s25, 0
    %p178 = por %p176, %p177
    %s180 = sadd.s32 %s179, 1
    %p183 = scmp.eq.s32.totalorder %s19, 1
    %p184 = scmp.ne.s32.totalorder %s179, %s181
    %p185 = scmp.eq.s32.totalorder %s19, 0
    %p186 = por %p184, %p185
    %p187 = scmp.ne.s32.totalorder %s179, %s181
    %p188 = scmp.eq.s32.totalorder %s24, 1
    %p189 = por %p187, %p188
    %p190 = scmp.ne.s32.totalorder %s181, %s182
    %p191 = scmp.eq.s32.totalorder %s24, 0
    %p192 = por %p190, %p191
    %p193 = scmp.ne.s32.totalorder %s181, %s182
    %p194 = scmp.eq.s32.totalorder %s25, 1
    %p195 = por %p193, %p194
    %p197 = scmp.ne.s32.totalorder %s182, %s196
    %p198 = scmp.eq.s32.totalorder %s25, 0
    %p199 = por %p197, %p198
    %s201 = sadd.s32 %s200, 1
    %p204 = scmp.eq.s32.totalorder %s19, 1
    %p205 = scmp.ne.s32.totalorder %s200, %s202
    %p206 = scmp.eq.s32.totalorder %s19, 0
    %p207 = por %p205, %p206
    %p208 = scmp.ne.s32.totalorder %s200, %s202
    %p209 = scmp.eq.s32.totalorder %s24, 1
    %p210 = por %p208, %p209
    %p211 = scmp.ne.s32.totalorder %s202, %s203
    %p212 = scmp.eq.s32.totalorder %s24, 0
    %p213 = por %p211, %p212
    %p214 = scmp.ne.s32.totalorder %s202, %s203
    %p215 = scmp.eq.s32.totalorder %s25, 1
    %p216 = por %p214, %p215
    %p218 = scmp.ne.s32.totalorder %s203, %s217
    %p219 = scmp.eq.s32.totalorder %s25, 0
    %p220 = por %p218, %p219
    %s222 = sadd.s32 %s221, 1
    %p225 = scmp.eq.s32.totalorder %s19, 1
    %p226 = scmp.ne.s32.totalorder %s221, %s223
    %p227 = scmp.eq.s32.totalorder %s19, 0
    %p228 = por %p226, %p227
    %p229 = scmp.ne.s32.totalorder %s221, %s223
    %p230 = scmp.eq.s32.totalorder %s24, 1
    %p231 = por %p229, %p230
    %p232 = scmp.ne.s32.totalorder %s223, %s224
    %p233 = scmp.eq.s32.totalorder %s24, 0
    %p234 = por %p232, %p233
    %p235 = scmp.ne.s32.totalorder %s223, %s224
    %p236 = scmp.eq.s32.totalorder %s25, 1
    %p237 = por %p235, %p236
    %p239 = scmp.ne.s32.totalorder %s224, %s238
    %p240 = scmp.eq.s32.totalorder %s25, 0
    %p241 = por %p239, %p240
    %s243 = sadd.s32 %s242, 1
    %p246 = scmp.eq.s32.totalorder %s19, 1
    %p247 = scmp.ne.s32.totalorder %s242, %s244
    %p248 = scmp.eq.s32.totalorder %s19, 0
    %p249 = por %p247, %p248
    %p250 = scmp.ne.s32.totalorder %s242, %s244
    %p251 = scmp.eq.s32.totalorder %s24, 1
    %p252 = por %p250, %p251
    %p253 = scmp.ne.s32.totalorder %s244, %s245
    %p254 = scmp.eq.s32.totalorder %s24, 0
    %p255 = por %p253, %p254
    %p256 = scmp.ne.s32.totalorder %s244, %s245
    %p257 = scmp.eq.s32.totalorder %s25, 1
    %p258 = por %p256, %p257
    %p260 = scmp.ne.s32.totalorder %s245, %s259
    %p261 = scmp.eq.s32.totalorder %s25, 0
    %p262 = por %p260, %p261
    %s264 = sadd.s32 %s263, 1
    %p267 = scmp.eq.s32.totalorder %s19, 1
    %p268 = scmp.ne.s32.totalorder %s263, %s265
    %p269 = scmp.eq.s32.totalorder %s19, 0
    %p270 = por %p268, %p269
    %p271 = scmp.ne.s32.totalorder %s263, %s265
    %p272 = scmp.eq.s32.totalorder %s24, 1
    %p273 = por %p271, %p272
    %p274 = scmp.ne.s32.totalorder %s265, %s266
    %p275 = scmp.eq.s32.totalorder %s24, 0
    %p276 = por %p274, %p275
    %p277 = scmp.ne.s32.totalorder %s265, %s266
    %p278 = scmp.eq.s32.totalorder %s25, 1
    %p279 = por %p277, %p278
    %p281 = scmp.ne.s32.totalorder %s266, %s280
    %p282 = scmp.eq.s32.totalorder %s25, 0
    %p283 = por %p281, %p282
    %s285 = sadd.s32 %s284, 1
    %p288 = scmp.eq.s32.totalorder %s19, 1
    %p289 = scmp.ne.s32.totalorder %s284, %s286
    %p290 = scmp.eq.s32.totalorder %s19, 0
    %p291 = por %p289, %p290
    %p292 = scmp.ne.s32.totalorder %s284, %s286
    %p293 = scmp.eq.s32.totalorder %s24, 1
    %p294 = por %p292, %p293
    %p295 = scmp.ne.s32.totalorder %s286, %s287
    %p296 = scmp.eq.s32.totalorder %s24, 0
    %p297 = por %p295, %p296
    %p298 = scmp.ne.s32.totalorder %s286, %s287
    %p299 = scmp.eq.s32.totalorder %s25, 1
    %p300 = por %p298, %p299
    %p302 = scmp.ne.s32.totalorder %s287, %s301
    %p303 = scmp.eq.s32.totalorder %s25, 0
    %p304 = por %p302, %p303
    %s305 = ssub.s32 %s19, %s26
    %p306 = scmp.eq.s32.totalorder %s305, 0
    %s308 = sadd.s32 %s307, 1
    %s309 = scalar_select %p306, %s307, %s308
    %p312 = pneg %p306
    %p313 = scmp.eq.s32.totalorder %s19, 1
    %p314 = por %p312, %p313
    %p315 = scmp.ne.s32.totalorder %s307, %s310
    %p316 = scmp.eq.s32.totalorder %s19, 0
    %p317 = por %p315, %p316
    %p318 = scmp.ne.s32.totalorder %s307, %s310
    %p319 = scmp.eq.s32.totalorder %s24, 1
    %p320 = por %p318, %p319
    %p321 = scmp.ne.s32.totalorder %s310, %s311
    %p322 = scmp.eq.s32.totalorder %s24, 0
    %p323 = por %p321, %p322
    %p324 = scmp.ne.s32.totalorder %s310, %s311
    %p325 = scmp.eq.s32.totalorder %s25, 1
    %p326 = por %p324, %p325
    %p328 = scmp.ne.s32.totalorder %s311, %s327
    %p329 = scmp.eq.s32.totalorder %s25, 0
    %p330 = por %p328, %p329
    %p331 = scmp.le.s32.totalorder 1, %s19
    %p332 = scmp.lt.s32.totalorder %s19, 3
    %p333 = pnand %p331, %p332
    %p334 = pneg %p333
    // Predicated region
    $region9: #{mert_l2p_forward.14} parent=5 // pred_check
      _
    $region10: #{mert_l2p_forward.14} parent=5 // pred_check_branch
      %336 = sbr.rel (%p333) target = $region12
    $region11: #{mert_l2p_forward.14} parent=5 // pred_region
      %s337 = ssub.s32 %s19, 1
      // Predicated region
      $region13: #{mert_l2p_forward.14} parent=11 // pred_check
        %p338 = pneg %p66
      $region14: #{mert_l2p_forward.14} parent=11 // pred_check_branch
        %340 = sbr.rel (%p338) target = $region16
      $region15: #{mert_l2p_forward.14} parent=11 // pred_region
        _
      $region16: #{mert_l2p_forward.14} parent=11 // pred_fallthru
        _
      // Predicated region
      $region17: #{mert_l2p_forward.14} parent=11 // pred_check
        %p341 = pneg %p87
      $region18: #{mert_l2p_forward.14} parent=11 // pred_check_branch
        %343 = sbr.rel (%p341) target = $region20
      $region19: #{mert_l2p_forward.14} parent=11 // pred_region
        _
      $region20: #{mert_l2p_forward.14} parent=11 // pred_fallthru
        _
      // Predicated region
      $region21: #{mert_l2p_forward.14} parent=11 // pred_check
        %p344 = pneg %p108
      $region22: #{mert_l2p_forward.14} parent=11 // pred_check_branch
        %346 = sbr.rel (%p344) target = $region24
      $region23: #{mert_l2p_forward.14} parent=11 // pred_region
        _
      $region24: #{mert_l2p_forward.14} parent=11 // pred_fallthru
        _
      // Predicated region
      $region25: #{mert_l2p_forward.14} parent=11 // pred_check
        %p347 = pneg %p129
      $region26: #{mert_l2p_forward.14} parent=11 // pred_check_branch
        %349 = sbr.rel (%p347) target = $region28
      $region27: #{mert_l2p_forward.14} parent=11 // pred_region
        _
      $region28: #{mert_l2p_forward.14} parent=11 // pred_fallthru
        _
      // Predicated region
      $region29: #{mert_l2p_forward.14} parent=11 // pred_check
        %p350 = pneg %p150
      $region30: #{mert_l2p_forward.14} parent=11 // pred_check_branch
        %352 = sbr.rel (%p350) target = $region32
      $region31: #{mert_l2p_forward.14} parent=11 // pred_region
        _
      $region32: #{mert_l2p_forward.14} parent=11 // pred_fallthru
        _
      // Predicated region
      $region33: #{mert_l2p_forward.14} parent=11 // pred_check
        %p353 = pneg %p171
      $region34: #{mert_l2p_forward.14} parent=11 // pred_check_branch
        %355 = sbr.rel (%p353) target = $region36
      $region35: #{mert_l2p_forward.14} parent=11 // pred_region
        _
      $region36: #{mert_l2p_forward.14} parent=11 // pred_fallthru
        _
      // Predicated region
      $region37: #{mert_l2p_forward.14} parent=11 // pred_check
        %p356 = pneg %p192
      $region38: #{mert_l2p_forward.14} parent=11 // pred_check_branch
        %358 = sbr.rel (%p356) target = $region40
      $region39: #{mert_l2p_forward.14} parent=11 // pred_region
        _
      $region40: #{mert_l2p_forward.14} parent=11 // pred_fallthru
        _
      // Predicated region
      $region41: #{mert_l2p_forward.14} parent=11 // pred_check
        %p359 = pneg %p213
      $region42: #{mert_l2p_forward.14} parent=11 // pred_check_branch
        %361 = sbr.rel (%p359) target = $region44
      $region43: #{mert_l2p_forward.14} parent=11 // pred_region
        _
      $region44: #{mert_l2p_forward.14} parent=11 // pred_fallthru
        _
      // Predicated region
      $region45: #{mert_l2p_forward.14} parent=11 // pred_check
        %p362 = pneg %p234
      $region46: #{mert_l2p_forward.14} parent=11 // pred_check_branch
        %364 = sbr.rel (%p362) target = $region48
      $region47: #{mert_l2p_forward.14} parent=11 // pred_region
        _
      $region48: #{mert_l2p_forward.14} parent=11 // pred_fallthru
        _
      // Predicated region
      $region49: #{mert_l2p_forward.14} parent=11 // pred_check
        %p365 = pneg %p255
      $region50: #{mert_l2p_forward.14} parent=11 // pred_check_branch
        %367 = sbr.rel (%p365) target = $region52
      $region51: #{mert_l2p_forward.14} parent=11 // pred_region
        _
      $region52: #{mert_l2p_forward.14} parent=11 // pred_fallthru
        _
      // Predicated region
      $region53: #{mert_l2p_forward.14} parent=11 // pred_check
        %p368 = pneg %p276
      $region54: #{mert_l2p_forward.14} parent=11 // pred_check_branch
        %370 = sbr.rel (%p368) target = $region56
      $region55: #{mert_l2p_forward.14} parent=11 // pred_region
        _
      $region56: #{mert_l2p_forward.14} parent=11 // pred_fallthru
        _
      // Predicated region
      $region57: #{mert_l2p_forward.14} parent=11 // pred_check
        %p371 = pneg %p297
      $region58: #{mert_l2p_forward.14} parent=11 // pred_check_branch
        %373 = sbr.rel (%p371) target = $region60
      $region59: #{mert_l2p_forward.14} parent=11 // pred_region
        _
      $region60: #{mert_l2p_forward.14} parent=11 // pred_fallthru
        _
    $region12: #{mert_l2p_forward.14} parent=5 // pred_fallthru
      _
    %p374 = scmp.lt.s32.totalorder %s19, 2
    // Predicated region
    $region61: #{mert_l2p_forward.14} parent=5 // pred_check
      %p375 = pneg %p374
    $region62: #{mert_l2p_forward.14} parent=5 // pred_check_branch
      %377 = sbr.rel (%p375) target = $region64
    $region63: #{mert_l2p_forward.14} parent=5 // pred_region
      // Predicated region
      $region65: #{mert_l2p_forward.14} parent=63 // pred_check
        %p378 = pneg %p39
      $region66: #{mert_l2p_forward.14} parent=63 // pred_check_branch
        %380 = sbr.rel (%p378) target = $region68
      $region67: #{mert_l2p_forward.14} parent=63 // pred_region
        %p381 = scmp.lt.s32.totalorder %s19, 1
        %s382 = scalar_select %p381, %s19, 1
        %s383 = smul.addr %s382, 2
        %s384 = smul.addr %s383, 8
        %s385 = scalar_lea.vmem %s0, %s384
      $region68: #{mert_l2p_forward.14} parent=63 // pred_fallthru
        _
    $region64: #{mert_l2p_forward.14} parent=5 // pred_fallthru
      _
    %p386 = scmp.le.s32.totalorder 1, %s19
    %p387 = scmp.lt.s32.totalorder %s19, 3
    %p388 = pnand %p386, %p387
    %p389 = pneg %p388
    // Predicated region
    $region69: #{mert_l2p_forward.14} parent=5 // pred_check
      _
    $region70: #{mert_l2p_forward.14} parent=5 // pred_check_branch
      %391 = sbr.rel (%p388) target = $region72
    $region71: #{mert_l2p_forward.14} parent=5 // pred_region
      %s392 = ssub.s32 %s19, 1
      %p393 = scmp.lt.s32.totalorder %s24, 1
      %s394 = scalar_select %p393, %s24, 1
      %s395 = smul.addr %s394, 2
      %s396 = smul.addr %s395, 8
      %s397 = scalar_lea.vmem %s0, %s396
      %p398 = pneg %p45
      %p399 = pneg %p42
      %p400 = pneg %p66
      %p401 = pneg %p63
      %p402 = pneg %p87
      %p403 = pneg %p84
      %p404 = pneg %p108
      %p405 = pneg %p105
      %p406 = pneg %p129
      %p407 = pneg %p126
      %p408 = pneg %p150
      %p409 = pneg %p147
      %p410 = pneg %p171
      %p411 = pneg %p168
      %p412 = pneg %p192
      %p413 = pneg %p189
      %p414 = pneg %p213
      %p415 = pneg %p210
      %p416 = pneg %p234
      %p417 = pneg %p231
      %p418 = pneg %p255
      %p419 = pneg %p252
      %p420 = pneg %p276
      %p421 = pneg %p273
      %p422 = pneg %p297
      %p423 = pneg %p294
      %p424 = pneg %p323
      %p425 = pneg %p320
      %p426 = scmp.lt.s32.totalorder %s24, 1
      %s427 = scalar_select %p426, %s24, 1
      %s428 = smul.addr %s427, 2
      %s429 = smul.addr %s428, 8
      %s430 = scalar_lea.vmem %s13, %s429
      %p431 = scmp.lt.s32.totalorder %s24, 1
      %s432 = scalar_select %p431, %s24, 1
      %s433 = smul.addr %s432, 2
      %s434 = smul.addr %s433, 8
      %s435 = scalar_lea.vmem %s0, %s434
      %p436 = scmp.lt.s32.totalorder %s24, 1
      %s437 = scalar_select %p436, %s24, 1
      %s438 = smul.addr %s437, 2
      %s439 = smul.addr %s438, 8
      %s440 = scalar_lea.vmem %s13, %s439
      %v441 = vld [vmem:[%s435] sm:$0xff]
      %v442 = vld [vmem:[%s435 + $0x8] sm:$0x7f]
      %v443 = vld [vmem:[%s1] sm:$0xff]
      %v444 = vld [vmem:[%s1 + $0x8] sm:$0xff]
      %v445 = vld [vmem:[%s1 + $0x10] sm:$0xff]
      %v446 = vld [vmem:[%s1 + $0x18] sm:$0xff]
      %v447 = vld [vmem:[%s2] sm:$0x1]
      %v449 = vlaneseq
      %v450 = vshrl.u32 %v449, 7
      %v451 = vsub.s32 0, %v450
      %v452 = vrot.slane %v447, %v451
      %vm454 = vcmask 261120
      %v456 = vsel %vm454, %v441, 0
      %v459 = vsel %vm454, %v442, 0
      %461 = vmatprep.subr.mxu0 0.0
      %462 = vmatpush1.msra.mxu0 0.0
      %463 = vmatprep.subr.mxu0 0.0
      %464 = vmatpush1.msra.mxu0 0.0
      %465 = vmatprep.subr.mxu0 0.0
      %466 = vmatpush1.msra.mxu0 0.0
      %467 = vmatprep.subr.mxu0 0.0
      %468 = vmatpush1.msra.mxu0 0.0
      %469 = vmatprep.subr.mxu0 0.0
      %470 = vmatpush1.msra.mxu0 0.0
      %471 = vmatprep.subr.mxu0 0.0
      %472 = vmatpush1.msra.mxu0 0.0
      %473 = vmatprep.subr.mxu0 0.0
      %474 = vmatpush1.msra.mxu0 0.0
      %475 = vmatprep.subr.mxu0 0.0
      %476 = vmatpush1.msra.mxu0 0.0
      %477 = vmatprep.subr.mxu0 0.0
      %478 = vmatpush1.msra.mxu0 0.0
      %479 = vmatprep.subr.mxu0 0.0
      %480 = vmatpush1.msra.mxu0 0.0
      %481 = vmatprep.subr.mxu0 0.0
      %482 = vmatpush1.msra.mxu0 0.0
      %483 = vmatprep.subr.mxu0 0.0
      %484 = vmatpush1.msra.mxu0 0.0
      %485 = vmatprep.subr.mxu0 0.0
      %486 = vmatpush1.msra.mxu0 %v446
      %487 = vmatprep.subr.mxu0 0.0
      %488 = vmatpush1.msra.mxu0 %v445
      %489 = vmatprep.subr.mxu0 0.0
      %490 = vmatpush1.msra.mxu0 %v444
      %491 = vmatprep.subr.mxu0 0.0
      %492 = vmatpush1.msra.mxu0 %v443
      %493 = vmatprep.subr.mxu0 0.0
      %494 = vmatpush2.msra.mxu0 0.0
      %495 = vmatprep.subr.mxu0 0.0
      %496 = vmatpush2.msra.mxu0 0.0
      %497 = vmatprep.subr.mxu0 0.0
      %498 = vmatpush2.msra.mxu0 0.0
      %499 = vmatprep.subr.mxu0 0.0
      %500 = vmatpush2.msra.mxu0 0.0
      %501 = vmatprep.subr.mxu0 0.0
      %502 = vmatpush2.msra.mxu0 0.0
      %503 = vmatprep.subr.mxu0 0.0
      %504 = vmatpush2.msra.mxu0 0.0
      %505 = vmatprep.subr.mxu0 0.0
      %506 = vmatpush2.msra.mxu0 0.0
      %507 = vmatprep.subr.mxu0 0.0
      %508 = vmatpush2.msra.mxu0 0.0
      %509 = vmatprep.subr.mxu0 0.0
      %510 = vmatpush2.msra.mxu0 0.0
      %511 = vmatprep.subr.mxu0 0.0
      %512 = vmatpush2.msra.mxu0 0.0
      %513 = vmatprep.subr.mxu0 0.0
      %514 = vmatpush2.msra.mxu0 0.0
      %515 = vmatprep.subr.mxu0 0.0
      %516 = vmatpush2.msra.mxu0 0.0
      %517 = vmatprep.subr.mxu0 0.0
      %518 = vmatpush2.msra.mxu0 0.0
      %519 = vmatprep.subr.mxu0 0.0
      %520 = vmatpush2.msra.mxu0 0.0
      %521 = vmatprep.subr.mxu0 0.0
      %522 = vmatpush2.msra.mxu0 0.0
      %523 = vmatprep.subr.mxu0 0.0
      %524 = vmatpush2.msra.mxu0 0.0
      %525 = vmatprep.mubr.f32.mxu0 0.0
      %526 = vmatmul.mubr.f32.gmra.mxu0 %v456
      %v527 = vpop.f32.mrf.mxu0
      %v528 = vadd.f32 %v452, %v527
      %v529 = vpop.f32.mrf.mxu0
      %530 = vmatprep.mubr.f32.mxu0 0.0
      %531 = vmatmul.mubr.f32.gmra.mxu0 %v459
      %v532 = vpop.f32.mrf.mxu0
      %v533 = vadd.f32 %v452, %v532
      %v534 = vpop.f32.mrf.mxu0
      %535 = vdwg.mxu0
      %538 = vrot.lane.b32.xlu0 %v528, 96
      %v539 = vpop.permute.xlu0 %538
      %540 = vrot.lane.b32.xlu0 %v533, 96
      %v541 = vpop.permute.xlu0 %540
      %vm542 = vcmask 64512
      %v543 = vsel %vm542, %v528, 0
      %v545 = vsel %vm542, %v533, 0
      %v547 = vsel %vm542, %v539, 0
      %v549 = vsel %vm542, %v541, 0
      %551 = vmatprep.subr.mxu0 0.0
      %552 = vmatpush1.xpose.msra.mxu0 0.0
      %553 = vmatprep.subr.mxu0 0.0
      %554 = vmatpush1.xpose.msra.mxu0 0.0
      %555 = vmatprep.subr.mxu0 0.0
      %556 = vmatpush1.xpose.msra.mxu0 0.0
      %557 = vmatprep.subr.mxu0 0.0
      %558 = vmatpush1.xpose.msra.mxu0 0.0
      %559 = vmatprep.subr.mxu0 0.0
      %560 = vmatpush1.xpose.msra.mxu0 0.0
      %561 = vmatprep.subr.mxu0 0.0
      %562 = vmatpush1.xpose.msra.mxu0 0.0
      %563 = vmatprep.subr.mxu0 0.0
      %564 = vmatpush1.xpose.msra.mxu0 0.0
      %565 = vmatprep.subr.mxu0 0.0
      %566 = vmatpush1.xpose.msra.mxu0 0.0
      %567 = vmatprep.subr.mxu0 0.0
      %568 = vmatpush1.xpose.msra.mxu0 0.0
      %569 = vmatprep.subr.mxu0 0.0
      %570 = vmatpush1.xpose.msra.mxu0 0.0
      %571 = vmatprep.subr.mxu0 0.0
      %572 = vmatpush1.xpose.msra.mxu0 0.0
      %573 = vmatprep.subr.mxu0 0.0
      %574 = vmatpush1.xpose.msra.mxu0 0.0
      %575 = vmatprep.subr.mxu0 0.0
      %576 = vmatpush1.xpose.msra.mxu0 0.0
      %577 = vmatprep.subr.mxu0 0.0
      %578 = vmatpush1.xpose.msra.mxu0 0.0
      %579 = vmatprep.subr.mxu0 0.0
      %580 = vmatpush1.xpose.msra.mxu0 %v549
      %581 = vmatprep.subr.mxu0 0.0
      %582 = vmatpush1.xpose.msra.mxu0 %v547
      %583 = vmatprep.subr.mxu0 0.0
      %584 = vmatpush2.xpose.msra.mxu0 0.0
      %585 = vmatprep.subr.mxu0 0.0
      %586 = vmatpush2.xpose.msra.mxu0 0.0
      %587 = vmatprep.subr.mxu0 0.0
      %588 = vmatpush2.xpose.msra.mxu0 0.0
      %589 = vmatprep.subr.mxu0 0.0
      %590 = vmatpush2.xpose.msra.mxu0 0.0
      %591 = vmatprep.subr.mxu0 0.0
      %592 = vmatpush2.xpose.msra.mxu0 0.0
      %593 = vmatprep.subr.mxu0 0.0
      %594 = vmatpush2.xpose.msra.mxu0 0.0
      %595 = vmatprep.subr.mxu0 0.0
      %596 = vmatpush2.xpose.msra.mxu0 0.0
      %597 = vmatprep.subr.mxu0 0.0
      %598 = vmatpush2.xpose.msra.mxu0 0.0
      %599 = vmatprep.subr.mxu0 0.0
      %600 = vmatpush2.xpose.msra.mxu0 0.0
      %601 = vmatprep.subr.mxu0 0.0
      %602 = vmatpush2.xpose.msra.mxu0 0.0
      %603 = vmatprep.subr.mxu0 0.0
      %604 = vmatpush2.xpose.msra.mxu0 0.0
      %605 = vmatprep.subr.mxu0 0.0
      %606 = vmatpush2.xpose.msra.mxu0 0.0
      %607 = vmatprep.subr.mxu0 0.0
      %608 = vmatpush2.xpose.msra.mxu0 0.0
      %609 = vmatprep.subr.mxu0 0.0
      %610 = vmatpush2.xpose.msra.mxu0 0.0
      %611 = vmatprep.subr.mxu0 0.0
      %612 = vmatpush2.xpose.msra.mxu0 0.0
      %613 = vmatprep.subr.mxu0 0.0
      %614 = vmatpush2.xpose.msra.mxu0 0.0
      %615 = vmatprep.mubr.f32.mxu0 0.0
      %616 = vmatmul.mubr.f32.gmra.mxu0 %v543
      %v617 = vpop.f32.mrf.mxu0
      %v618 = vadd.f32 0.0, %v617
      %v619 = vpop.f32.mrf.mxu0
      %620 = vmatprep.mubr.f32.mxu0 0.0
      %621 = vmatmul.mubr.f32.gmra.mxu0 %v545
      %v622 = vpop.f32.mrf.mxu0
      %v623 = vadd.f32 0.0, %v622
      %v624 = vpop.f32.mrf.mxu0
      %625 = vdwg.mxu0
      %v626 = vmul.f32 %v618, 0.35355338
      %v627 = vmul.f32 %v623, 0.35355338
      %vm628 = vcmask 121856
      %v629 = vsel %vm628, %v626, -inf
      %630 = vmax.xlane.f32.xlu0 %v629
      %v631 = vpop.xlane.xlu0 %630
      %vm632 = vcmask 120832
      %v633 = vsel %vm632, %v627, -inf
      %634 = vmax.xlane.f32.xlu0 %v633
      %v635 = vpop.xlane.xlu0 %634
      %v636 = vsub.f32 %v626, %v631
      %v637 = vsub.f32 %v627, %v635
      %v638 = vmul.f32 %v636, 1.442695
      %v639 = vpow.pop %v638
      %v640 = vmul.f32 %v637, 1.442695
      %v641 = vpow.pop %v640
      %v642 = vsel %vm628, %v639, 0.0
      %643 = vadd.xlane.f32.xlu0 %v642
      %v644 = vpop.xlane.xlu0 %643
      %v645 = vsel %vm632, %v641, 0.0
      %646 = vadd.xlane.f32.xlu0 %v645
      %v647 = vpop.xlane.xlu0 %646
      %v648 = vrcp.pop %v644
      %v649 = vrcp.pop %v647
      %v650 = vmul.f32 %v639, %v648
      %v651 = vmul.f32 %v641, %v649
      %652 = vrot.lane.b32.xlu0 %v528, 64
      %v653 = vpop.permute.xlu0 %652
      %654 = vrot.lane.b32.xlu0 %v533, 64
      %v655 = vpop.permute.xlu0 %654
      %v658 = vsel %vm628, %v650, 0
      %v661 = vsel %vm628, %v651, 0
      %vm663 = vcmask 1046528
      %v664 = vsel %vm663, %v655, 0
      %666 = vmatprep.subr.mxu0 0.0
      %667 = vmatpush1.msra.mxu0 0.0
      %668 = vmatprep.subr.mxu0 0.0
      %669 = vmatpush1.msra.mxu0 0.0
      %670 = vmatprep.subr.mxu0 0.0
      %671 = vmatpush1.msra.mxu0 0.0
      %672 = vmatprep.subr.mxu0 0.0
      %673 = vmatpush1.msra.mxu0 0.0
      %674 = vmatprep.subr.mxu0 0.0
      %675 = vmatpush1.msra.mxu0 0.0
      %676 = vmatprep.subr.mxu0 0.0
      %677 = vmatpush1.msra.mxu0 0.0
      %678 = vmatprep.subr.mxu0 0.0
      %679 = vmatpush1.msra.mxu0 0.0
      %680 = vmatprep.subr.mxu0 0.0
      %681 = vmatpush1.msra.mxu0 0.0
      %682 = vmatprep.subr.mxu0 0.0
      %683 = vmatpush1.msra.mxu0 0.0
      %684 = vmatprep.subr.mxu0 0.0
      %685 = vmatpush1.msra.mxu0 0.0
      %686 = vmatprep.subr.mxu0 0.0
      %687 = vmatpush1.msra.mxu0 0.0
      %688 = vmatprep.subr.mxu0 0.0
      %689 = vmatpush1.msra.mxu0 0.0
      %690 = vmatprep.subr.mxu0 0.0
      %691 = vmatpush1.msra.mxu0 0.0
      %692 = vmatprep.subr.mxu0 0.0
      %693 = vmatpush1.msra.mxu0 0.0
      %694 = vmatprep.subr.mxu0 0.0
      %695 = vmatpush1.msra.mxu0 %v664
      %696 = vmatprep.subr.mxu0 0.0
      %697 = vmatpush1.msra.mxu0 %v653
      %698 = vmatprep.subr.mxu0 0.0
      %699 = vmatpush2.msra.mxu0 0.0
      %700 = vmatprep.subr.mxu0 0.0
      %701 = vmatpush2.msra.mxu0 0.0
      %702 = vmatprep.subr.mxu0 0.0
      %703 = vmatpush2.msra.mxu0 0.0
      %704 = vmatprep.subr.mxu0 0.0
      %705 = vmatpush2.msra.mxu0 0.0
      %706 = vmatprep.subr.mxu0 0.0
      %707 = vmatpush2.msra.mxu0 0.0
      %708 = vmatprep.subr.mxu0 0.0
      %709 = vmatpush2.msra.mxu0 0.0
      %710 = vmatprep.subr.mxu0 0.0
      %711 = vmatpush2.msra.mxu0 0.0
      %712 = vmatprep.subr.mxu0 0.0
      %713 = vmatpush2.msra.mxu0 0.0
      %714 = vmatprep.subr.mxu0 0.0
      %715 = vmatpush2.msra.mxu0 0.0
      %716 = vmatprep.subr.mxu0 0.0
      %717 = vmatpush2.msra.mxu0 0.0
      %718 = vmatprep.subr.mxu0 0.0
      %719 = vmatpush2.msra.mxu0 0.0
      %720 = vmatprep.subr.mxu0 0.0
      %721 = vmatpush2.msra.mxu0 0.0
      %722 = vmatprep.subr.mxu0 0.0
      %723 = vmatpush2.msra.mxu0 0.0
      %724 = vmatprep.subr.mxu0 0.0
      %725 = vmatpush2.msra.mxu0 0.0
      %726 = vmatprep.subr.mxu0 0.0
      %727 = vmatpush2.msra.mxu0 0.0
      %728 = vmatprep.subr.mxu0 0.0
      %729 = vmatpush2.msra.mxu0 0.0
      %730 = vmatprep.mubr.f32.mxu0 0.0
      %731 = vmatmul.mubr.f32.gmra.mxu0 %v658
      %v732 = vpop.f32.mrf.mxu0
      %v733 = vadd.f32 0.0, %v732
      %v734 = vpop.f32.mrf.mxu0
      %735 = vmatprep.mubr.f32.mxu0 0.0
      %736 = vmatmul.mubr.f32.gmra.mxu0 %v661
      %v737 = vpop.f32.mrf.mxu0
      %v738 = vadd.f32 0.0, %v737
      %v739 = vpop.f32.mrf.mxu0
      %740 = vdwg.mxu0
      %v741 = vld [vmem:[%s3] sm:$0xff]
      %742 = vrot.lane.b32.xlu0 %v528, 120
      %v743 = vpop.permute.xlu0 %742
      %744 = vrot.lane.b32.xlu0 %v533, 120
      %v745 = vpop.permute.xlu0 %744
      %746 = vrot.lane.b32.xlu0 %v528, 88
      %v747 = vpop.permute.xlu0 %746
      %748 = vrot.lane.b32.xlu0 %v533, 88
      %v749 = vpop.permute.xlu0 %748
      %v750 = vsel %vm542, %v743, 0
      %v752 = vsel %vm542, %v745, 0
      %v754 = vsel %vm542, %v747, 0
      %v756 = vsel %vm542, %v749, 0
      %758 = vmatprep.subr.mxu0 0.0
      %759 = vmatpush1.xpose.msra.mxu0 0.0
      %760 = vmatprep.subr.mxu0 0.0
      %761 = vmatpush1.xpose.msra.mxu0 0.0
      %762 = vmatprep.subr.mxu0 0.0
      %763 = vmatpush1.xpose.msra.mxu0 0.0
      %764 = vmatprep.subr.mxu0 0.0
      %765 = vmatpush1.xpose.msra.mxu0 0.0
      %766 = vmatprep.subr.mxu0 0.0
      %767 = vmatpush1.xpose.msra.mxu0 0.0
      %768 = vmatprep.subr.mxu0 0.0
      %769 = vmatpush1.xpose.msra.mxu0 0.0
      %770 = vmatprep.subr.mxu0 0.0
      %771 = vmatpush1.xpose.msra.mxu0 0.0
      %772 = vmatprep.subr.mxu0 0.0
      %773 = vmatpush1.xpose.msra.mxu0 0.0
      %774 = vmatprep.subr.mxu0 0.0
      %775 = vmatpush1.xpose.msra.mxu0 0.0
      %776 = vmatprep.subr.mxu0 0.0
      %777 = vmatpush1.xpose.msra.mxu0 0.0
      %778 = vmatprep.subr.mxu0 0.0
      %779 = vmatpush1.xpose.msra.mxu0 0.0
      %780 = vmatprep.subr.mxu0 0.0
      %781 = vmatpush1.xpose.msra.mxu0 0.0
      %782 = vmatprep.subr.mxu0 0.0
      %783 = vmatpush1.xpose.msra.mxu0 0.0
      %784 = vmatprep.subr.mxu0 0.0
      %785 = vmatpush1.xpose.msra.mxu0 0.0
      %786 = vmatprep.subr.mxu0 0.0
      %787 = vmatpush1.xpose.msra.mxu0 %v756
      %788 = vmatprep.subr.mxu0 0.0
      %789 = vmatpush1.xpose.msra.mxu0 %v754
      %790 = vmatprep.subr.mxu0 0.0
      %791 = vmatpush2.xpose.msra.mxu0 0.0
      %792 = vmatprep.subr.mxu0 0.0
      %793 = vmatpush2.xpose.msra.mxu0 0.0
      %794 = vmatprep.subr.mxu0 0.0
      %795 = vmatpush2.xpose.msra.mxu0 0.0
      %796 = vmatprep.subr.mxu0 0.0
      %797 = vmatpush2.xpose.msra.mxu0 0.0
      %798 = vmatprep.subr.mxu0 0.0
      %799 = vmatpush2.xpose.msra.mxu0 0.0
      %800 = vmatprep.subr.mxu0 0.0
      %801 = vmatpush2.xpose.msra.mxu0 0.0
      %802 = vmatprep.subr.mxu0 0.0
      %803 = vmatpush2.xpose.msra.mxu0 0.0
      %804 = vmatprep.subr.mxu0 0.0
      %805 = vmatpush2.xpose.msra.mxu0 0.0
      %806 = vmatprep.subr.mxu0 0.0
      %807 = vmatpush2.xpose.msra.mxu0 0.0
      %808 = vmatprep.subr.mxu0 0.0
      %809 = vmatpush2.xpose.msra.mxu0 0.0
      %810 = vmatprep.subr.mxu0 0.0
      %811 = vmatpush2.xpose.msra.mxu0 0.0
      %812 = vmatprep.subr.mxu0 0.0
      %813 = vmatpush2.xpose.msra.mxu0 0.0
      %814 = vmatprep.subr.mxu0 0.0
      %815 = vmatpush2.xpose.msra.mxu0 0.0
      %816 = vmatprep.subr.mxu0 0.0
      %817 = vmatpush2.xpose.msra.mxu0 0.0
      %818 = vmatprep.subr.mxu0 0.0
      %819 = vmatpush2.xpose.msra.mxu0 0.0
      %820 = vmatprep.subr.mxu0 0.0
      %821 = vmatpush2.xpose.msra.mxu0 0.0
      %822 = vmatprep.mubr.f32.mxu0 0.0
      %823 = vmatmul.mubr.f32.gmra.mxu0 %v750
      %v824 = vpop.f32.mrf.mxu0
      %v825 = vadd.f32 0.0, %v824
      %v826 = vpop.f32.mrf.mxu0
      %827 = vmatprep.mubr.f32.mxu0 0.0
      %828 = vmatmul.mubr.f32.gmra.mxu0 %v752
      %v829 = vpop.f32.mrf.mxu0
      %v830 = vadd.f32 0.0, %v829
      %v831 = vpop.f32.mrf.mxu0
      %832 = vdwg.mxu0
      %v833 = vmul.f32 %v825, 0.35355338
      %v834 = vmul.f32 %v830, 0.35355338
      %v835 = vsel %vm628, %v833, -inf
      %836 = vmax.xlane.f32.xlu0 %v835
      %v837 = vpop.xlane.xlu0 %836
      %v838 = vsel %vm632, %v834, -inf
      %839 = vmax.xlane.f32.xlu0 %v838
      %v840 = vpop.xlane.xlu0 %839
      %v841 = vsub.f32 %v833, %v837
      %v842 = vsub.f32 %v834, %v840
      %v843 = vmul.f32 %v841, 1.442695
      %v844 = vpow.pop %v843
      %v845 = vmul.f32 %v842, 1.442695
      %v846 = vpow.pop %v845
      %v847 = vsel %vm628, %v844, 0.0
      %848 = vadd.xlane.f32.xlu0 %v847
      %v849 = vpop.xlane.xlu0 %848
      %v850 = vsel %vm632, %v846, 0.0
      %851 = vadd.xlane.f32.xlu0 %v850
      %v852 = vpop.xlane.xlu0 %851
      %v853 = vrcp.pop %v849
      %v854 = vrcp.pop %v852
      %v855 = vmul.f32 %v844, %v853
      %v856 = vmul.f32 %v846, %v854
      %857 = vrot.lane.b32.xlu0 %v528, 56
      %v858 = vpop.permute.xlu0 %857
      %859 = vrot.lane.b32.xlu0 %v533, 56
      %v860 = vpop.permute.xlu0 %859
      %v863 = vsel %vm628, %v855, 0
      %v866 = vsel %vm628, %v856, 0
      %v868 = vsel %vm663, %v860, 0
      %870 = vmatprep.subr.mxu0 0.0
      %871 = vmatpush1.msra.mxu0 0.0
      %872 = vmatprep.subr.mxu0 0.0
      %873 = vmatpush1.msra.mxu0 0.0
      %874 = vmatprep.subr.mxu0 0.0
      %875 = vmatpush1.msra.mxu0 0.0
      %876 = vmatprep.subr.mxu0 0.0
      %877 = vmatpush1.msra.mxu0 0.0
      %878 = vmatprep.subr.mxu0 0.0
      %879 = vmatpush1.msra.mxu0 0.0
      %880 = vmatprep.subr.mxu0 0.0
      %881 = vmatpush1.msra.mxu0 0.0
      %882 = vmatprep.subr.mxu0 0.0
      %883 = vmatpush1.msra.mxu0 0.0
      %884 = vmatprep.subr.mxu0 0.0
      %885 = vmatpush1.msra.mxu0 0.0
      %886 = vmatprep.subr.mxu0 0.0
      %887 = vmatpush1.msra.mxu0 0.0
      %888 = vmatprep.subr.mxu0 0.0
      %889 = vmatpush1.msra.mxu0 0.0
      %890 = vmatprep.subr.mxu0 0.0
      %891 = vmatpush1.msra.mxu0 0.0
      %892 = vmatprep.subr.mxu0 0.0
      %893 = vmatpush1.msra.mxu0 0.0
      %894 = vmatprep.subr.mxu0 0.0
      %895 = vmatpush1.msra.mxu0 0.0
      %896 = vmatprep.subr.mxu0 0.0
      %897 = vmatpush1.msra.mxu0 0.0
      %898 = vmatprep.subr.mxu0 0.0
      %899 = vmatpush1.msra.mxu0 %v868
      %900 = vmatprep.subr.mxu0 0.0
      %901 = vmatpush1.msra.mxu0 %v858
      %902 = vmatprep.subr.mxu0 0.0
      %903 = vmatpush2.msra.mxu0 0.0
      %904 = vmatprep.subr.mxu0 0.0
      %905 = vmatpush2.msra.mxu0 0.0
      %906 = vmatprep.subr.mxu0 0.0
      %907 = vmatpush2.msra.mxu0 0.0
      %908 = vmatprep.subr.mxu0 0.0
      %909 = vmatpush2.msra.mxu0 0.0
      %910 = vmatprep.subr.mxu0 0.0
      %911 = vmatpush2.msra.mxu0 0.0
      %912 = vmatprep.subr.mxu0 0.0
      %913 = vmatpush2.msra.mxu0 0.0
      %914 = vmatprep.subr.mxu0 0.0
      %915 = vmatpush2.msra.mxu0 0.0
      %916 = vmatprep.subr.mxu0 0.0
      %917 = vmatpush2.msra.mxu0 0.0
      %918 = vmatprep.subr.mxu0 0.0
      %919 = vmatpush2.msra.mxu0 0.0
      %920 = vmatprep.subr.mxu0 0.0
      %921 = vmatpush2.msra.mxu0 0.0
      %922 = vmatprep.subr.mxu0 0.0
      %923 = vmatpush2.msra.mxu0 0.0
      %924 = vmatprep.subr.mxu0 0.0
      %925 = vmatpush2.msra.mxu0 0.0
      %926 = vmatprep.subr.mxu0 0.0
      %927 = vmatpush2.msra.mxu0 0.0
      %928 = vmatprep.subr.mxu0 0.0
      %929 = vmatpush2.msra.mxu0 0.0
      %930 = vmatprep.subr.mxu0 0.0
      %931 = vmatpush2.msra.mxu0 0.0
      %932 = vmatprep.subr.mxu0 0.0
      %933 = vmatpush2.msra.mxu0 0.0
      %934 = vmatprep.mubr.f32.mxu0 0.0
      %935 = vmatmul.mubr.f32.gmra.mxu0 %v863
      %v936 = vpop.f32.mrf.mxu0
      %v937 = vadd.f32 0.0, %v936
      %v938 = vpop.f32.mrf.mxu0
      %939 = vmatprep.mubr.f32.mxu0 0.0
      %940 = vmatmul.mubr.f32.gmra.mxu0 %v866
      %v941 = vpop.f32.mrf.mxu0
      %v942 = vadd.f32 0.0, %v941
      %v943 = vpop.f32.mrf.mxu0
      %944 = vdwg.mxu0
      %v945 = vld [vmem:[%s3 + $0x8] sm:$0xff]
      %v947 = vsel %vm542, %v937, 0
      %v950 = vsel %vm542, %v942, 0
      %952 = vmatprep.subr.mxu0 0.0
      %953 = vmatpush1.msra.mxu0 0.0
      %954 = vmatprep.subr.mxu0 0.0
      %955 = vmatpush1.msra.mxu0 0.0
      %956 = vmatprep.subr.mxu0 0.0
      %957 = vmatpush1.msra.mxu0 0.0
      %958 = vmatprep.subr.mxu0 0.0
      %959 = vmatpush1.msra.mxu0 0.0
      %960 = vmatprep.subr.mxu0 0.0
      %961 = vmatpush1.msra.mxu0 0.0
      %962 = vmatprep.subr.mxu0 0.0
      %963 = vmatpush1.msra.mxu0 0.0
      %964 = vmatprep.subr.mxu0 0.0
      %965 = vmatpush1.msra.mxu0 0.0
      %966 = vmatprep.subr.mxu0 0.0
      %967 = vmatpush1.msra.mxu0 0.0
      %968 = vmatprep.subr.mxu0 0.0
      %969 = vmatpush1.msra.mxu0 0.0
      %970 = vmatprep.subr.mxu0 0.0
      %971 = vmatpush1.msra.mxu0 0.0
      %972 = vmatprep.subr.mxu0 0.0
      %973 = vmatpush1.msra.mxu0 0.0
      %974 = vmatprep.subr.mxu0 0.0
      %975 = vmatpush1.msra.mxu0 0.0
      %976 = vmatprep.subr.mxu0 0.0
      %977 = vmatpush1.msra.mxu0 0.0
      %978 = vmatprep.subr.mxu0 0.0
      %979 = vmatpush1.msra.mxu0 0.0
      %980 = vmatprep.subr.mxu0 0.0
      %981 = vmatpush1.msra.mxu0 0.0
      %982 = vmatprep.subr.mxu0 0.0
      %983 = vmatpush1.msra.mxu0 %v945
      %984 = vmatprep.subr.mxu0 0.0
      %985 = vmatpush2.msra.mxu0 0.0
      %986 = vmatprep.subr.mxu0 0.0
      %987 = vmatpush2.msra.mxu0 0.0
      %988 = vmatprep.subr.mxu0 0.0
      %989 = vmatpush2.msra.mxu0 0.0
      %990 = vmatprep.subr.mxu0 0.0
      %991 = vmatpush2.msra.mxu0 0.0
      %992 = vmatprep.subr.mxu0 0.0
      %993 = vmatpush2.msra.mxu0 0.0
      %994 = vmatprep.subr.mxu0 0.0
      %995 = vmatpush2.msra.mxu0 0.0
      %996 = vmatprep.subr.mxu0 0.0
      %997 = vmatpush2.msra.mxu0 0.0
      %998 = vmatprep.subr.mxu0 0.0
      %999 = vmatpush2.msra.mxu0 0.0
      %1000 = vmatprep.subr.mxu0 0.0
      %1001 = vmatpush2.msra.mxu0 0.0
      %1002 = vmatprep.subr.mxu0 0.0
      %1003 = vmatpush2.msra.mxu0 0.0
      %1004 = vmatprep.subr.mxu0 0.0
      %1005 = vmatpush2.msra.mxu0 0.0
      %1006 = vmatprep.subr.mxu0 0.0
      %1007 = vmatpush2.msra.mxu0 0.0
      %1008 = vmatprep.subr.mxu0 0.0
      %1009 = vmatpush2.msra.mxu0 0.0
      %1010 = vmatprep.subr.mxu0 0.0
      %1011 = vmatpush2.msra.mxu0 0.0
      %1012 = vmatprep.subr.mxu0 0.0
      %1013 = vmatpush2.msra.mxu0 0.0
      %1014 = vmatprep.subr.mxu0 0.0
      %1015 = vmatpush2.msra.mxu0 0.0
      %1016 = vmatprep.mubr.f32.mxu0 0.0
      %1017 = vmatmul.mubr.f32.gmra.mxu0 %v947
      %v1018 = vpop.f32.mrf.mxu0
      %v1019 = vadd.f32 0.0, %v1018
      %v1020 = vpop.f32.mrf.mxu0
      %1021 = vmatprep.mubr.f32.mxu0 0.0
      %1022 = vmatmul.mubr.f32.gmra.mxu0 %v950
      %v1023 = vpop.f32.mrf.mxu0
      %v1024 = vadd.f32 0.0, %v1023
      %v1025 = vpop.f32.mrf.mxu0
      %1026 = vdwg.mxu0
      %v1028 = vsel %vm542, %v733, 0
      %v1031 = vsel %vm542, %v738, 0
      %1033 = vmatprep.subr.mxu0 0.0
      %1034 = vmatpush1.msra.mxu0 0.0
      %1035 = vmatprep.subr.mxu0 0.0
      %1036 = vmatpush1.msra.mxu0 0.0
      %1037 = vmatprep.subr.mxu0 0.0
      %1038 = vmatpush1.msra.mxu0 0.0
      %1039 = vmatprep.subr.mxu0 0.0
      %1040 = vmatpush1.msra.mxu0 0.0
      %1041 = vmatprep.subr.mxu0 0.0
      %1042 = vmatpush1.msra.mxu0 0.0
      %1043 = vmatprep.subr.mxu0 0.0
      %1044 = vmatpush1.msra.mxu0 0.0
      %1045 = vmatprep.subr.mxu0 0.0
      %1046 = vmatpush1.msra.mxu0 0.0
      %1047 = vmatprep.subr.mxu0 0.0
      %1048 = vmatpush1.msra.mxu0 0.0
      %1049 = vmatprep.subr.mxu0 0.0
      %1050 = vmatpush1.msra.mxu0 0.0
      %1051 = vmatprep.subr.mxu0 0.0
      %1052 = vmatpush1.msra.mxu0 0.0
      %1053 = vmatprep.subr.mxu0 0.0
      %1054 = vmatpush1.msra.mxu0 0.0
      %1055 = vmatprep.subr.mxu0 0.0
      %1056 = vmatpush1.msra.mxu0 0.0
      %1057 = vmatprep.subr.mxu0 0.0
      %1058 = vmatpush1.msra.mxu0 0.0
      %1059 = vmatprep.subr.mxu0 0.0
      %1060 = vmatpush1.msra.mxu0 0.0
      %1061 = vmatprep.subr.mxu0 0.0
      %1062 = vmatpush1.msra.mxu0 0.0
      %1063 = vmatprep.subr.mxu0 0.0
      %1064 = vmatpush1.msra.mxu0 %v741
      %1065 = vmatprep.subr.mxu0 0.0
      %1066 = vmatpush2.msra.mxu0 0.0
      %1067 = vmatprep.subr.mxu0 0.0
      %1068 = vmatpush2.msra.mxu0 0.0
      %1069 = vmatprep.subr.mxu0 0.0
      %1070 = vmatpush2.msra.mxu0 0.0
      %1071 = vmatprep.subr.mxu0 0.0
      %1072 = vmatpush2.msra.mxu0 0.0
      %1073 = vmatprep.subr.mxu0 0.0
      %1074 = vmatpush2.msra.mxu0 0.0
      %1075 = vmatprep.subr.mxu0 0.0
      %1076 = vmatpush2.msra.mxu0 0.0
      %1077 = vmatprep.subr.mxu0 0.0
      %1078 = vmatpush2.msra.mxu0 0.0
      %1079 = vmatprep.subr.mxu0 0.0
      %1080 = vmatpush2.msra.mxu0 0.0
      %1081 = vmatprep.subr.mxu0 0.0
      %1082 = vmatpush2.msra.mxu0 0.0
      %1083 = vmatprep.subr.mxu0 0.0
      %1084 = vmatpush2.msra.mxu0 0.0
      %1085 = vmatprep.subr.mxu0 0.0
      %1086 = vmatpush2.msra.mxu0 0.0
      %1087 = vmatprep.subr.mxu0 0.0
      %1088 = vmatpush2.msra.mxu0 0.0
      %1089 = vmatprep.subr.mxu0 0.0
      %1090 = vmatpush2.msra.mxu0 0.0
      %1091 = vmatprep.subr.mxu0 0.0
      %1092 = vmatpush2.msra.mxu0 0.0
      %1093 = vmatprep.subr.mxu0 0.0
      %1094 = vmatpush2.msra.mxu0 0.0
      %1095 = vmatprep.subr.mxu0 0.0
      %1096 = vmatpush2.msra.mxu0 0.0
      %1097 = vmatprep.mubr.f32.mxu0 0.0
      %1098 = vmatmul.mubr.f32.gmra.mxu0 %v1028
      %v1099 = vpop.f32.mrf.mxu0
      %v1100 = vadd.f32 %v1019, %v1099
      %v1101 = vpop.f32.mrf.mxu0
      %1102 = vmatprep.mubr.f32.mxu0 0.0
      %1103 = vmatmul.mubr.f32.gmra.mxu0 %v1031
      %v1104 = vpop.f32.mrf.mxu0
      %v1105 = vadd.f32 %v1024, %v1104
      %v1106 = vpop.f32.mrf.mxu0
      %1107 = vdwg.mxu0
      %1108 = vrot.lane.b32.xlu0 %v528, 112
      %v1109 = vpop.permute.xlu0 %1108
      %1110 = vrot.lane.b32.xlu0 %v533, 112
      %v1111 = vpop.permute.xlu0 %1110
      %1112 = vrot.lane.b32.xlu0 %v528, 80
      %v1113 = vpop.permute.xlu0 %1112
      %1114 = vrot.lane.b32.xlu0 %v533, 80
      %v1115 = vpop.permute.xlu0 %1114
      %v1116 = vsel %vm542, %v1109, 0
      %v1118 = vsel %vm542, %v1111, 0
      %v1120 = vsel %vm542, %v1113, 0
      %v1122 = vsel %vm542, %v1115, 0
      %1124 = vmatprep.subr.mxu0 0.0
      %1125 = vmatpush1.xpose.msra.mxu0 0.0
      %1126 = vmatprep.subr.mxu0 0.0
      %1127 = vmatpush1.xpose.msra.mxu0 0.0
      %1128 = vmatprep.subr.mxu0 0.0
      %1129 = vmatpush1.xpose.msra.mxu0 0.0
      %1130 = vmatprep.subr.mxu0 0.0
      %1131 = vmatpush1.xpose.msra.mxu0 0.0
      %1132 = vmatprep.subr.mxu0 0.0
      %1133 = vmatpush1.xpose.msra.mxu0 0.0
      %1134 = vmatprep.subr.mxu0 0.0
      %1135 = vmatpush1.xpose.msra.mxu0 0.0
      %1136 = vmatprep.subr.mxu0 0.0
      %1137 = vmatpush1.xpose.msra.mxu0 0.0
      %1138 = vmatprep.subr.mxu0 0.0
      %1139 = vmatpush1.xpose.msra.mxu0 0.0
      %1140 = vmatprep.subr.mxu0 0.0
      %1141 = vmatpush1.xpose.msra.mxu0 0.0
      %1142 = vmatprep.subr.mxu0 0.0
      %1143 = vmatpush1.xpose.msra.mxu0 0.0
      %1144 = vmatprep.subr.mxu0 0.0
      %1145 = vmatpush1.xpose.msra.mxu0 0.0
      %1146 = vmatprep.subr.mxu0 0.0
      %1147 = vmatpush1.xpose.msra.mxu0 0.0
      %1148 = vmatprep.subr.mxu0 0.0
      %1149 = vmatpush1.xpose.msra.mxu0 0.0
      %1150 = vmatprep.subr.mxu0 0.0
      %1151 = vmatpush1.xpose.msra.mxu0 0.0
      %1152 = vmatprep.subr.mxu0 0.0
      %1153 = vmatpush1.xpose.msra.mxu0 %v1122
      %1154 = vmatprep.subr.mxu0 0.0
      %1155 = vmatpush1.xpose.msra.mxu0 %v1120
      %1156 = vmatprep.subr.mxu0 0.0
      %1157 = vmatpush2.xpose.msra.mxu0 0.0
      %1158 = vmatprep.subr.mxu0 0.0
      %1159 = vmatpush2.xpose.msra.mxu0 0.0
      %1160 = vmatprep.subr.mxu0 0.0
      %1161 = vmatpush2.xpose.msra.mxu0 0.0
      %1162 = vmatprep.subr.mxu0 0.0
      %1163 = vmatpush2.xpose.msra.mxu0 0.0
      %1164 = vmatprep.subr.mxu0 0.0
      %1165 = vmatpush2.xpose.msra.mxu0 0.0
      %1166 = vmatprep.subr.mxu0 0.0
      %1167 = vmatpush2.xpose.msra.mxu0 0.0
      %1168 = vmatprep.subr.mxu0 0.0
      %1169 = vmatpush2.xpose.msra.mxu0 0.0
      %1170 = vmatprep.subr.mxu0 0.0
      %1171 = vmatpush2.xpose.msra.mxu0 0.0
      %1172 = vmatprep.subr.mxu0 0.0
      %1173 = vmatpush2.xpose.msra.mxu0 0.0
      %1174 = vmatprep.subr.mxu0 0.0
      %1175 = vmatpush2.xpose.msra.mxu0 0.0
      %1176 = vmatprep.subr.mxu0 0.0
      %1177 = vmatpush2.xpose.msra.mxu0 0.0
      %1178 = vmatprep.subr.mxu0 0.0
      %1179 = vmatpush2.xpose.msra.mxu0 0.0
      %1180 = vmatprep.subr.mxu0 0.0
      %1181 = vmatpush2.xpose.msra.mxu0 0.0
      %1182 = vmatprep.subr.mxu0 0.0
      %1183 = vmatpush2.xpose.msra.mxu0 0.0
      %1184 = vmatprep.subr.mxu0 0.0
      %1185 = vmatpush2.xpose.msra.mxu0 0.0
      %1186 = vmatprep.subr.mxu0 0.0
      %1187 = vmatpush2.xpose.msra.mxu0 0.0
      %1188 = vmatprep.mubr.f32.mxu0 0.0
      %1189 = vmatmul.mubr.f32.gmra.mxu0 %v1116
      %v1190 = vpop.f32.mrf.mxu0
      %v1191 = vadd.f32 0.0, %v1190
      %v1192 = vpop.f32.mrf.mxu0
      %1193 = vmatprep.mubr.f32.mxu0 0.0
      %1194 = vmatmul.mubr.f32.gmra.mxu0 %v1118
      %v1195 = vpop.f32.mrf.mxu0
      %v1196 = vadd.f32 0.0, %v1195
      %v1197 = vpop.f32.mrf.mxu0
      %1198 = vdwg.mxu0
      %v1199 = vmul.f32 %v1191, 0.35355338
      %v1200 = vmul.f32 %v1196, 0.35355338
      %v1201 = vsel %vm628, %v1199, -inf
      %1202 = vmax.xlane.f32.xlu0 %v1201
      %v1203 = vpop.xlane.xlu0 %1202
      %v1204 = vsel %vm632, %v1200, -inf
      %1205 = vmax.xlane.f32.xlu0 %v1204
      %v1206 = vpop.xlane.xlu0 %1205
      %v1207 = vsub.f32 %v1199, %v1203
      %v1208 = vsub.f32 %v1200, %v1206
      %v1209 = vmul.f32 %v1207, 1.442695
      %v1210 = vpow.pop %v1209
      %v1211 = vmul.f32 %v1208, 1.442695
      %v1212 = vpow.pop %v1211
      %v1213 = vsel %vm628, %v1210, 0.0
      %1214 = vadd.xlane.f32.xlu0 %v1213
      %v1215 = vpop.xlane.xlu0 %1214
      %v1216 = vsel %vm632, %v1212, 0.0
      %1217 = vadd.xlane.f32.xlu0 %v1216
      %v1218 = vpop.xlane.xlu0 %1217
      %v1219 = vrcp.pop %v1215
      %v1220 = vrcp.pop %v1218
      %v1221 = vmul.f32 %v1210, %v1219
      %v1222 = vmul.f32 %v1212, %v1220
      %1223 = vrot.lane.b32.xlu0 %v528, 48
      %v1224 = vpop.permute.xlu0 %1223
      %1225 = vrot.lane.b32.xlu0 %v533, 48
      %v1226 = vpop.permute.xlu0 %1225
      %v1229 = vsel %vm628, %v1221, 0
      %v1232 = vsel %vm628, %v1222, 0
      %v1234 = vsel %vm663, %v1226, 0
      %1236 = vmatprep.subr.mxu0 0.0
      %1237 = vmatpush1.msra.mxu0 0.0
      %1238 = vmatprep.subr.mxu0 0.0
      %1239 = vmatpush1.msra.mxu0 0.0
      %1240 = vmatprep.subr.mxu0 0.0
      %1241 = vmatpush1.msra.mxu0 0.0
      %1242 = vmatprep.subr.mxu0 0.0
      %1243 = vmatpush1.msra.mxu0 0.0
      %1244 = vmatprep.subr.mxu0 0.0
      %1245 = vmatpush1.msra.mxu0 0.0
      %1246 = vmatprep.subr.mxu0 0.0
      %1247 = vmatpush1.msra.mxu0 0.0
      %1248 = vmatprep.subr.mxu0 0.0
      %1249 = vmatpush1.msra.mxu0 0.0
      %1250 = vmatprep.subr.mxu0 0.0
      %1251 = vmatpush1.msra.mxu0 0.0
      %1252 = vmatprep.subr.mxu0 0.0
      %1253 = vmatpush1.msra.mxu0 0.0
      %1254 = vmatprep.subr.mxu0 0.0
      %1255 = vmatpush1.msra.mxu0 0.0
      %1256 = vmatprep.subr.mxu0 0.0
      %1257 = vmatpush1.msra.mxu0 0.0
      %1258 = vmatprep.subr.mxu0 0.0
      %1259 = vmatpush1.msra.mxu0 0.0
      %1260 = vmatprep.subr.mxu0 0.0
      %1261 = vmatpush1.msra.mxu0 0.0
      %1262 = vmatprep.subr.mxu0 0.0
      %1263 = vmatpush1.msra.mxu0 0.0
      %1264 = vmatprep.subr.mxu0 0.0
      %1265 = vmatpush1.msra.mxu0 %v1234
      %1266 = vmatprep.subr.mxu0 0.0
      %1267 = vmatpush1.msra.mxu0 %v1224
      %1268 = vmatprep.subr.mxu0 0.0
      %1269 = vmatpush2.msra.mxu0 0.0
      %1270 = vmatprep.subr.mxu0 0.0
      %1271 = vmatpush2.msra.mxu0 0.0
      %1272 = vmatprep.subr.mxu0 0.0
      %1273 = vmatpush2.msra.mxu0 0.0
      %1274 = vmatprep.subr.mxu0 0.0
      %1275 = vmatpush2.msra.mxu0 0.0
      %1276 = vmatprep.subr.mxu0 0.0
      %1277 = vmatpush2.msra.mxu0 0.0
      %1278 = vmatprep.subr.mxu0 0.0
      %1279 = vmatpush2.msra.mxu0 0.0
      %1280 = vmatprep.subr.mxu0 0.0
      %1281 = vmatpush2.msra.mxu0 0.0
      %1282 = vmatprep.subr.mxu0 0.0
      %1283 = vmatpush2.msra.mxu0 0.0
      %1284 = vmatprep.subr.mxu0 0.0
      %1285 = vmatpush2.msra.mxu0 0.0
      %1286 = vmatprep.subr.mxu0 0.0
      %1287 = vmatpush2.msra.mxu0 0.0
      %1288 = vmatprep.subr.mxu0 0.0
      %1289 = vmatpush2.msra.mxu0 0.0
      %1290 = vmatprep.subr.mxu0 0.0
      %1291 = vmatpush2.msra.mxu0 0.0
      %1292 = vmatprep.subr.mxu0 0.0
      %1293 = vmatpush2.msra.mxu0 0.0
      %1294 = vmatprep.subr.mxu0 0.0
      %1295 = vmatpush2.msra.mxu0 0.0
      %1296 = vmatprep.subr.mxu0 0.0
      %1297 = vmatpush2.msra.mxu0 0.0
      %1298 = vmatprep.subr.mxu0 0.0
      %1299 = vmatpush2.msra.mxu0 0.0
      %1300 = vmatprep.mubr.f32.mxu0 0.0
      %1301 = vmatmul.mubr.f32.gmra.mxu0 %v1229
      %v1302 = vpop.f32.mrf.mxu0
      %v1303 = vadd.f32 0.0, %v1302
      %v1304 = vpop.f32.mrf.mxu0
      %1305 = vmatprep.mubr.f32.mxu0 0.0
      %1306 = vmatmul.mubr.f32.gmra.mxu0 %v1232
      %v1307 = vpop.f32.mrf.mxu0
      %v1308 = vadd.f32 0.0, %v1307
      %v1309 = vpop.f32.mrf.mxu0
      %1310 = vdwg.mxu0
      %v1311 = vld [vmem:[%s3 + $0x10] sm:$0xff]
      %v1313 = vsel %vm542, %v1303, 0
      %v1316 = vsel %vm542, %v1308, 0
      %1318 = vmatprep.subr.mxu0 0.0
      %1319 = vmatpush1.msra.mxu0 0.0
      %1320 = vmatprep.subr.mxu0 0.0
      %1321 = vmatpush1.msra.mxu0 0.0
      %1322 = vmatprep.subr.mxu0 0.0
      %1323 = vmatpush1.msra.mxu0 0.0
      %1324 = vmatprep.subr.mxu0 0.0
      %1325 = vmatpush1.msra.mxu0 0.0
      %1326 = vmatprep.subr.mxu0 0.0
      %1327 = vmatpush1.msra.mxu0 0.0
      %1328 = vmatprep.subr.mxu0 0.0
      %1329 = vmatpush1.msra.mxu0 0.0
      %1330 = vmatprep.subr.mxu0 0.0
      %1331 = vmatpush1.msra.mxu0 0.0
      %1332 = vmatprep.subr.mxu0 0.0
      %1333 = vmatpush1.msra.mxu0 0.0
      %1334 = vmatprep.subr.mxu0 0.0
      %1335 = vmatpush1.msra.mxu0 0.0
      %1336 = vmatprep.subr.mxu0 0.0
      %1337 = vmatpush1.msra.mxu0 0.0
      %1338 = vmatprep.subr.mxu0 0.0
      %1339 = vmatpush1.msra.mxu0 0.0
      %1340 = vmatprep.subr.mxu0 0.0
      %1341 = vmatpush1.msra.mxu0 0.0
      %1342 = vmatprep.subr.mxu0 0.0
      %1343 = vmatpush1.msra.mxu0 0.0
      %1344 = vmatprep.subr.mxu0 0.0
      %1345 = vmatpush1.msra.mxu0 0.0
      %1346 = vmatprep.subr.mxu0 0.0
      %1347 = vmatpush1.msra.mxu0 0.0
      %1348 = vmatprep.subr.mxu0 0.0
      %1349 = vmatpush1.msra.mxu0 %v1311
      %1350 = vmatprep.subr.mxu0 0.0
      %1351 = vmatpush2.msra.mxu0 0.0
      %1352 = vmatprep.subr.mxu0 0.0
      %1353 = vmatpush2.msra.mxu0 0.0
      %1354 = vmatprep.subr.mxu0 0.0
      %1355 = vmatpush2.msra.mxu0 0.0
      %1356 = vmatprep.subr.mxu0 0.0
      %1357 = vmatpush2.msra.mxu0 0.0
      %1358 = vmatprep.subr.mxu0 0.0
      %1359 = vmatpush2.msra.mxu0 0.0
      %1360 = vmatprep.subr.mxu0 0.0
      %1361 = vmatpush2.msra.mxu0 0.0
      %1362 = vmatprep.subr.mxu0 0.0
      %1363 = vmatpush2.msra.mxu0 0.0
      %1364 = vmatprep.subr.mxu0 0.0
      %1365 = vmatpush2.msra.mxu0 0.0
      %1366 = vmatprep.subr.mxu0 0.0
      %1367 = vmatpush2.msra.mxu0 0.0
      %1368 = vmatprep.subr.mxu0 0.0
      %1369 = vmatpush2.msra.mxu0 0.0
      %1370 = vmatprep.subr.mxu0 0.0
      %1371 = vmatpush2.msra.mxu0 0.0
      %1372 = vmatprep.subr.mxu0 0.0
      %1373 = vmatpush2.msra.mxu0 0.0
      %1374 = vmatprep.subr.mxu0 0.0
      %1375 = vmatpush2.msra.mxu0 0.0
      %1376 = vmatprep.subr.mxu0 0.0
      %1377 = vmatpush2.msra.mxu0 0.0
      %1378 = vmatprep.subr.mxu0 0.0
      %1379 = vmatpush2.msra.mxu0 0.0
      %1380 = vmatprep.subr.mxu0 0.0
      %1381 = vmatpush2.msra.mxu0 0.0
      %1382 = vmatprep.mubr.f32.mxu0 0.0
      %1383 = vmatmul.mubr.f32.gmra.mxu0 %v1313
      %v1384 = vpop.f32.mrf.mxu0
      %v1385 = vadd.f32 0.0, %v1384
      %v1386 = vpop.f32.mrf.mxu0
      %1387 = vmatprep.mubr.f32.mxu0 0.0
      %1388 = vmatmul.mubr.f32.gmra.mxu0 %v1316
      %v1389 = vpop.f32.mrf.mxu0
      %v1390 = vadd.f32 0.0, %v1389
      %v1391 = vpop.f32.mrf.mxu0
      %1392 = vdwg.mxu0
      %v1393 = vadd.f32 %v1100, %v1385
      %v1394 = vadd.f32 %v1105, %v1390
      %1395 = vrot.lane.b32.xlu0 %v528, 104
      %v1396 = vpop.permute.xlu0 %1395
      %1397 = vrot.lane.b32.xlu0 %v533, 104
      %v1398 = vpop.permute.xlu0 %1397
      %1399 = vrot.lane.b32.xlu0 %v528, 72
      %v1400 = vpop.permute.xlu0 %1399
      %1401 = vrot.lane.b32.xlu0 %v533, 72
      %v1402 = vpop.permute.xlu0 %1401
      %v1403 = vsel %vm542, %v1396, 0
      %v1405 = vsel %vm542, %v1398, 0
      %v1407 = vsel %vm542, %v1400, 0
      %v1409 = vsel %vm542, %v1402, 0
      %1411 = vmatprep.subr.mxu0 0.0
      %1412 = vmatpush1.xpose.msra.mxu0 0.0
      %1413 = vmatprep.subr.mxu0 0.0
      %1414 = vmatpush1.xpose.msra.mxu0 0.0
      %1415 = vmatprep.subr.mxu0 0.0
      %1416 = vmatpush1.xpose.msra.mxu0 0.0
      %1417 = vmatprep.subr.mxu0 0.0
      %1418 = vmatpush1.xpose.msra.mxu0 0.0
      %1419 = vmatprep.subr.mxu0 0.0
      %1420 = vmatpush1.xpose.msra.mxu0 0.0
      %1421 = vmatprep.subr.mxu0 0.0
      %1422 = vmatpush1.xpose.msra.mxu0 0.0
      %1423 = vmatprep.subr.mxu0 0.0
      %1424 = vmatpush1.xpose.msra.mxu0 0.0
      %1425 = vmatprep.subr.mxu0 0.0
      %1426 = vmatpush1.xpose.msra.mxu0 0.0
      %1427 = vmatprep.subr.mxu0 0.0
      %1428 = vmatpush1.xpose.msra.mxu0 0.0
      %1429 = vmatprep.subr.mxu0 0.0
      %1430 = vmatpush1.xpose.msra.mxu0 0.0
      %1431 = vmatprep.subr.mxu0 0.0
      %1432 = vmatpush1.xpose.msra.mxu0 0.0
      %1433 = vmatprep.subr.mxu0 0.0
      %1434 = vmatpush1.xpose.msra.mxu0 0.0
      %1435 = vmatprep.subr.mxu0 0.0
      %1436 = vmatpush1.xpose.msra.mxu0 0.0
      %1437 = vmatprep.subr.mxu0 0.0
      %1438 = vmatpush1.xpose.msra.mxu0 0.0
      %1439 = vmatprep.subr.mxu0 0.0
      %1440 = vmatpush1.xpose.msra.mxu0 %v1409
      %1441 = vmatprep.subr.mxu0 0.0
      %1442 = vmatpush1.xpose.msra.mxu0 %v1407
      %1443 = vmatprep.subr.mxu0 0.0
      %1444 = vmatpush2.xpose.msra.mxu0 0.0
      %1445 = vmatprep.subr.mxu0 0.0
      %1446 = vmatpush2.xpose.msra.mxu0 0.0
      %1447 = vmatprep.subr.mxu0 0.0
      %1448 = vmatpush2.xpose.msra.mxu0 0.0
      %1449 = vmatprep.subr.mxu0 0.0
      %1450 = vmatpush2.xpose.msra.mxu0 0.0
      %1451 = vmatprep.subr.mxu0 0.0
      %1452 = vmatpush2.xpose.msra.mxu0 0.0
      %1453 = vmatprep.subr.mxu0 0.0
      %1454 = vmatpush2.xpose.msra.mxu0 0.0
      %1455 = vmatprep.subr.mxu0 0.0
      %1456 = vmatpush2.xpose.msra.mxu0 0.0
      %1457 = vmatprep.subr.mxu0 0.0
      %1458 = vmatpush2.xpose.msra.mxu0 0.0
      %1459 = vmatprep.subr.mxu0 0.0
      %1460 = vmatpush2.xpose.msra.mxu0 0.0
      %1461 = vmatprep.subr.mxu0 0.0
      %1462 = vmatpush2.xpose.msra.mxu0 0.0
      %1463 = vmatprep.subr.mxu0 0.0
      %1464 = vmatpush2.xpose.msra.mxu0 0.0
      %1465 = vmatprep.subr.mxu0 0.0
      %1466 = vmatpush2.xpose.msra.mxu0 0.0
      %1467 = vmatprep.subr.mxu0 0.0
      %1468 = vmatpush2.xpose.msra.mxu0 0.0
      %1469 = vmatprep.subr.mxu0 0.0
      %1470 = vmatpush2.xpose.msra.mxu0 0.0
      %1471 = vmatprep.subr.mxu0 0.0
      %1472 = vmatpush2.xpose.msra.mxu0 0.0
      %1473 = vmatprep.subr.mxu0 0.0
      %1474 = vmatpush2.xpose.msra.mxu0 0.0
      %1475 = vmatprep.mubr.f32.mxu0 0.0
      %1476 = vmatmul.mubr.f32.gmra.mxu0 %v1403
      %v1477 = vpop.f32.mrf.mxu0
      %v1478 = vadd.f32 0.0, %v1477
      %v1479 = vpop.f32.mrf.mxu0
      %1480 = vmatprep.mubr.f32.mxu0 0.0
      %1481 = vmatmul.mubr.f32.gmra.mxu0 %v1405
      %v1482 = vpop.f32.mrf.mxu0
      %v1483 = vadd.f32 0.0, %v1482
      %v1484 = vpop.f32.mrf.mxu0
      %1485 = vdwg.mxu0
      %v1486 = vmul.f32 %v1478, 0.35355338
      %v1487 = vmul.f32 %v1483, 0.35355338
      %v1488 = vsel %vm628, %v1486, -inf
      %1489 = vmax.xlane.f32.xlu0 %v1488
      %v1490 = vpop.xlane.xlu0 %1489
      %v1491 = vsel %vm632, %v1487, -inf
      %1492 = vmax.xlane.f32.xlu0 %v1491
      %v1493 = vpop.xlane.xlu0 %1492
      %v1494 = vsub.f32 %v1486, %v1490
      %v1495 = vsub.f32 %v1487, %v1493
      %v1496 = vmul.f32 %v1494, 1.442695
      %v1497 = vpow.pop %v1496
      %v1498 = vmul.f32 %v1495, 1.442695
      %v1499 = vpow.pop %v1498
      %v1500 = vsel %vm628, %v1497, 0.0
      %1501 = vadd.xlane.f32.xlu0 %v1500
      %v1502 = vpop.xlane.xlu0 %1501
      %v1503 = vsel %vm632, %v1499, 0.0
      %1504 = vadd.xlane.f32.xlu0 %v1503
      %v1505 = vpop.xlane.xlu0 %1504
      %v1506 = vrcp.pop %v1502
      %v1507 = vrcp.pop %v1505
      %v1508 = vmul.f32 %v1497, %v1506
      %v1509 = vmul.f32 %v1499, %v1507
      %1510 = vrot.lane.b32.xlu0 %v528, 40
      %v1511 = vpop.permute.xlu0 %1510
      %1512 = vrot.lane.b32.xlu0 %v533, 40
      %v1513 = vpop.permute.xlu0 %1512
      %v1516 = vsel %vm628, %v1508, 0
      %v1519 = vsel %vm628, %v1509, 0
      %v1521 = vsel %vm663, %v1513, 0
      %1523 = vmatprep.subr.mxu0 0.0
      %1524 = vmatpush1.msra.mxu0 0.0
      %1525 = vmatprep.subr.mxu0 0.0
      %1526 = vmatpush1.msra.mxu0 0.0
      %1527 = vmatprep.subr.mxu0 0.0
      %1528 = vmatpush1.msra.mxu0 0.0
      %1529 = vmatprep.subr.mxu0 0.0
      %1530 = vmatpush1.msra.mxu0 0.0
      %1531 = vmatprep.subr.mxu0 0.0
      %1532 = vmatpush1.msra.mxu0 0.0
      %1533 = vmatprep.subr.mxu0 0.0
      %1534 = vmatpush1.msra.mxu0 0.0
      %1535 = vmatprep.subr.mxu0 0.0
      %1536 = vmatpush1.msra.mxu0 0.0
      %1537 = vmatprep.subr.mxu0 0.0
      %1538 = vmatpush1.msra.mxu0 0.0
      %1539 = vmatprep.subr.mxu0 0.0
      %1540 = vmatpush1.msra.mxu0 0.0
      %1541 = vmatprep.subr.mxu0 0.0
      %1542 = vmatpush1.msra.mxu0 0.0
      %1543 = vmatprep.subr.mxu0 0.0
      %1544 = vmatpush1.msra.mxu0 0.0
      %1545 = vmatprep.subr.mxu0 0.0
      %1546 = vmatpush1.msra.mxu0 0.0
      %1547 = vmatprep.subr.mxu0 0.0
      %1548 = vmatpush1.msra.mxu0 0.0
      %1549 = vmatprep.subr.mxu0 0.0
      %1550 = vmatpush1.msra.mxu0 0.0
      %1551 = vmatprep.subr.mxu0 0.0
      %1552 = vmatpush1.msra.mxu0 %v1521
      %1553 = vmatprep.subr.mxu0 0.0
      %1554 = vmatpush1.msra.mxu0 %v1511
      %1555 = vmatprep.subr.mxu0 0.0
      %1556 = vmatpush2.msra.mxu0 0.0
      %1557 = vmatprep.subr.mxu0 0.0
      %1558 = vmatpush2.msra.mxu0 0.0
      %1559 = vmatprep.subr.mxu0 0.0
      %1560 = vmatpush2.msra.mxu0 0.0
      %1561 = vmatprep.subr.mxu0 0.0
      %1562 = vmatpush2.msra.mxu0 0.0
      %1563 = vmatprep.subr.mxu0 0.0
      %1564 = vmatpush2.msra.mxu0 0.0
      %1565 = vmatprep.subr.mxu0 0.0
      %1566 = vmatpush2.msra.mxu0 0.0
      %1567 = vmatprep.subr.mxu0 0.0
      %1568 = vmatpush2.msra.mxu0 0.0
      %1569 = vmatprep.subr.mxu0 0.0
      %1570 = vmatpush2.msra.mxu0 0.0
      %1571 = vmatprep.subr.mxu0 0.0
      %1572 = vmatpush2.msra.mxu0 0.0
      %1573 = vmatprep.subr.mxu0 0.0
      %1574 = vmatpush2.msra.mxu0 0.0
      %1575 = vmatprep.subr.mxu0 0.0
      %1576 = vmatpush2.msra.mxu0 0.0
      %1577 = vmatprep.subr.mxu0 0.0
      %1578 = vmatpush2.msra.mxu0 0.0
      %1579 = vmatprep.subr.mxu0 0.0
      %1580 = vmatpush2.msra.mxu0 0.0
      %1581 = vmatprep.subr.mxu0 0.0
      %1582 = vmatpush2.msra.mxu0 0.0
      %1583 = vmatprep.subr.mxu0 0.0
      %1584 = vmatpush2.msra.mxu0 0.0
      %1585 = vmatprep.subr.mxu0 0.0
      %1586 = vmatpush2.msra.mxu0 0.0
      %1587 = vmatprep.mubr.f32.mxu0 0.0
      %1588 = vmatmul.mubr.f32.gmra.mxu0 %v1516
      %v1589 = vpop.f32.mrf.mxu0
      %v1590 = vadd.f32 0.0, %v1589
      %v1591 = vpop.f32.mrf.mxu0
      %1592 = vmatprep.mubr.f32.mxu0 0.0
      %1593 = vmatmul.mubr.f32.gmra.mxu0 %v1519
      %v1594 = vpop.f32.mrf.mxu0
      %v1595 = vadd.f32 0.0, %v1594
      %v1596 = vpop.f32.mrf.mxu0
      %1597 = vdwg.mxu0
      %v1598 = vld [vmem:[%s3 + $0x18] sm:$0xff]
      %v1600 = vsel %vm542, %v1590, 0
      %v1603 = vsel %vm542, %v1595, 0
      %1605 = vmatprep.subr.mxu0 0.0
      %1606 = vmatpush1.msra.mxu0 0.0
      %1607 = vmatprep.subr.mxu0 0.0
      %1608 = vmatpush1.msra.mxu0 0.0
      %1609 = vmatprep.subr.mxu0 0.0
      %1610 = vmatpush1.msra.mxu0 0.0
      %1611 = vmatprep.subr.mxu0 0.0
      %1612 = vmatpush1.msra.mxu0 0.0
      %1613 = vmatprep.subr.mxu0 0.0
      %1614 = vmatpush1.msra.mxu0 0.0
      %1615 = vmatprep.subr.mxu0 0.0
      %1616 = vmatpush1.msra.mxu0 0.0
      %1617 = vmatprep.subr.mxu0 0.0
      %1618 = vmatpush1.msra.mxu0 0.0
      %1619 = vmatprep.subr.mxu0 0.0
      %1620 = vmatpush1.msra.mxu0 0.0
      %1621 = vmatprep.subr.mxu0 0.0
      %1622 = vmatpush1.msra.mxu0 0.0
      %1623 = vmatprep.subr.mxu0 0.0
      %1624 = vmatpush1.msra.mxu0 0.0
      %1625 = vmatprep.subr.mxu0 0.0
      %1626 = vmatpush1.msra.mxu0 0.0
      %1627 = vmatprep.subr.mxu0 0.0
      %1628 = vmatpush1.msra.mxu0 0.0
      %1629 = vmatprep.subr.mxu0 0.0
      %1630 = vmatpush1.msra.mxu0 0.0
      %1631 = vmatprep.subr.mxu0 0.0
      %1632 = vmatpush1.msra.mxu0 0.0
      %1633 = vmatprep.subr.mxu0 0.0
      %1634 = vmatpush1.msra.mxu0 0.0
      %1635 = vmatprep.subr.mxu0 0.0
      %1636 = vmatpush1.msra.mxu0 %v1598
      %1637 = vmatprep.subr.mxu0 0.0
      %1638 = vmatpush2.msra.mxu0 0.0
      %1639 = vmatprep.subr.mxu0 0.0
      %1640 = vmatpush2.msra.mxu0 0.0
      %1641 = vmatprep.subr.mxu0 0.0
      %1642 = vmatpush2.msra.mxu0 0.0
      %1643 = vmatprep.subr.mxu0 0.0
      %1644 = vmatpush2.msra.mxu0 0.0
      %1645 = vmatprep.subr.mxu0 0.0
      %1646 = vmatpush2.msra.mxu0 0.0
      %1647 = vmatprep.subr.mxu0 0.0
      %1648 = vmatpush2.msra.mxu0 0.0
      %1649 = vmatprep.subr.mxu0 0.0
      %1650 = vmatpush2.msra.mxu0 0.0
      %1651 = vmatprep.subr.mxu0 0.0
      %1652 = vmatpush2.msra.mxu0 0.0
      %1653 = vmatprep.subr.mxu0 0.0
      %1654 = vmatpush2.msra.mxu0 0.0
      %1655 = vmatprep.subr.mxu0 0.0
      %1656 = vmatpush2.msra.mxu0 0.0
      %1657 = vmatprep.subr.mxu0 0.0
      %1658 = vmatpush2.msra.mxu0 0.0
      %1659 = vmatprep.subr.mxu0 0.0
      %1660 = vmatpush2.msra.mxu0 0.0
      %1661 = vmatprep.subr.mxu0 0.0
      %1662 = vmatpush2.msra.mxu0 0.0
      %1663 = vmatprep.subr.mxu0 0.0
      %1664 = vmatpush2.msra.mxu0 0.0
      %1665 = vmatprep.subr.mxu0 0.0
      %1666 = vmatpush2.msra.mxu0 0.0
      %1667 = vmatprep.subr.mxu0 0.0
      %1668 = vmatpush2.msra.mxu0 0.0
      %1669 = vmatprep.mubr.f32.mxu0 0.0
      %1670 = vmatmul.mubr.f32.gmra.mxu0 %v1600
      %v1671 = vpop.f32.mrf.mxu0
      %v1672 = vadd.f32 0.0, %v1671
      %v1673 = vpop.f32.mrf.mxu0
      %1674 = vmatprep.mubr.f32.mxu0 0.0
      %1675 = vmatmul.mubr.f32.gmra.mxu0 %v1603
      %v1676 = vpop.f32.mrf.mxu0
      %v1677 = vadd.f32 0.0, %v1676
      %v1678 = vpop.f32.mrf.mxu0
      %1679 = vdwg.mxu0
      %v1680 = vadd.f32 %v1393, %v1672
      %v1681 = vadd.f32 %v1394, %v1677
      %v1682 = vld [vmem:[%s4] sm:$0x1]
      %v1684 = vlaneseq
      %v1685 = vshrl.u32 %v1684, 7
      %v1686 = vsub.s32 0, %v1685
      %v1687 = vrot.slane %v1682, %v1686
      %v1689 = vadd.f32 %v1680, %v1687
      %v1690 = vadd.f32 %v1681, %v1687
      %v1691 = vadd.f32 %v441, %v1689
      %v1692 = vadd.f32 %v442, %v1690
      %v1693 = vld [vmem:[%s5] sm:$0x1]
      %v1694 = vld [vmem:[%s6] sm:$0x1]
      %v1695 = vsel %vm454, %v1691, 0.0
      %1696 = vadd.xlane.f32.xlu0 %v1695
      %v1697 = vpop.xlane.xlu0 %1696
      %vm1698 = vcmask 260096
      %v1699 = vsel %vm1698, %v1692, 0.0
      %1700 = vadd.xlane.f32.xlu0 %v1699
      %v1701 = vpop.xlane.xlu0 %1700
      %v1702 = vrcp.pop 32.0
      %v1703 = vmul.f32 %v1697, %v1702
      %v1704 = vmul.f32 %v1701, %v1702
      %v1705 = vsub.f32 %v1691, %v1703
      %v1706 = vsub.f32 %v1692, %v1704
      %v1707 = vmul.f32 %v1705, %v1705
      %v1708 = vmul.f32 %v1706, %v1706
      %v1709 = vsel %vm454, %v1707, 0.0
      %1710 = vadd.xlane.f32.xlu0 %v1709
      %v1711 = vpop.xlane.xlu0 %1710
      %v1712 = vsel %vm1698, %v1708, 0.0
      %1713 = vadd.xlane.f32.xlu0 %v1712
      %v1714 = vpop.xlane.xlu0 %1713
      %v1715 = vmul.f32 %v1711, %v1702
      %v1716 = vmul.f32 %v1714, %v1702
      %v1717 = vadd.f32 %v1715, 1e-05
      %v1718 = vadd.f32 %v1716, 1e-05
      %v1719 = vrsqrt.pop %v1717
      %v1720 = vrsqrt.pop %v1718
      %v1721 = vmul.f32 %v1705, %v1719
      %v1722 = vmul.f32 %v1706, %v1720
      %v1724 = vlaneseq
      %v1725 = vshrl.u32 %v1724, 7
      %v1726 = vsub.s32 0, %v1725
      %v1727 = vrot.slane %v1693, %v1726
      %v1729 = vmul.f32 %v1721, %v1727
      %v1730 = vmul.f32 %v1722, %v1727
      %v1732 = vlaneseq
      %v1733 = vshrl.u32 %v1732, 7
      %v1734 = vsub.s32 0, %v1733
      %v1735 = vrot.slane %v1694, %v1734
      %v1737 = vadd.f32 %v1729, %v1735
      %v1738 = vadd.f32 %v1730, %v1735
      %v1739 = vld [vmem:[%s7] sm:$0xff]
      %v1740 = vld [vmem:[%s7 + $0x8] sm:$0xff]
      %v1741 = vld [vmem:[%s7 + $0x10] sm:$0xff]
      %v1742 = vld [vmem:[%s7 + $0x18] sm:$0xff]
      %v1743 = vld [vmem:[%s8] sm:$0x1]
      %v1745 = vlaneseq
      %v1746 = vshrl.u32 %v1745, 7
      %v1747 = vsub.s32 0, %v1746
      %v1748 = vrot.slane %v1743, %v1747
      %v1751 = vsel %vm454, %v1737, 0
      %v1754 = vsel %vm454, %v1738, 0
      %1756 = vmatprep.subr.mxu0 0.0
      %1757 = vmatpush1.msra.mxu0 0.0
      %1758 = vmatprep.subr.mxu0 0.0
      %1759 = vmatpush1.msra.mxu0 0.0
      %1760 = vmatprep.subr.mxu0 0.0
      %1761 = vmatpush1.msra.mxu0 0.0
      %1762 = vmatprep.subr.mxu0 0.0
      %1763 = vmatpush1.msra.mxu0 0.0
      %1764 = vmatprep.subr.mxu0 0.0
      %1765 = vmatpush1.msra.mxu0 0.0
      %1766 = vmatprep.subr.mxu0 0.0
      %1767 = vmatpush1.msra.mxu0 0.0
      %1768 = vmatprep.subr.mxu0 0.0
      %1769 = vmatpush1.msra.mxu0 0.0
      %1770 = vmatprep.subr.mxu0 0.0
      %1771 = vmatpush1.msra.mxu0 0.0
      %1772 = vmatprep.subr.mxu0 0.0
      %1773 = vmatpush1.msra.mxu0 0.0
      %1774 = vmatprep.subr.mxu0 0.0
      %1775 = vmatpush1.msra.mxu0 0.0
      %1776 = vmatprep.subr.mxu0 0.0
      %1777 = vmatpush1.msra.mxu0 0.0
      %1778 = vmatprep.subr.mxu0 0.0
      %1779 = vmatpush1.msra.mxu0 0.0
      %1780 = vmatprep.subr.mxu0 0.0
      %1781 = vmatpush1.msra.mxu0 %v1742
      %1782 = vmatprep.subr.mxu0 0.0
      %1783 = vmatpush1.msra.mxu0 %v1741
      %1784 = vmatprep.subr.mxu0 0.0
      %1785 = vmatpush1.msra.mxu0 %v1740
      %1786 = vmatprep.subr.mxu0 0.0
      %1787 = vmatpush1.msra.mxu0 %v1739
      %1788 = vmatprep.subr.mxu0 0.0
      %1789 = vmatpush2.msra.mxu0 0.0
      %1790 = vmatprep.subr.mxu0 0.0
      %1791 = vmatpush2.msra.mxu0 0.0
      %1792 = vmatprep.subr.mxu0 0.0
      %1793 = vmatpush2.msra.mxu0 0.0
      %1794 = vmatprep.subr.mxu0 0.0
      %1795 = vmatpush2.msra.mxu0 0.0
      %1796 = vmatprep.subr.mxu0 0.0
      %1797 = vmatpush2.msra.mxu0 0.0
      %1798 = vmatprep.subr.mxu0 0.0
      %1799 = vmatpush2.msra.mxu0 0.0
      %1800 = vmatprep.subr.mxu0 0.0
      %1801 = vmatpush2.msra.mxu0 0.0
      %1802 = vmatprep.subr.mxu0 0.0
      %1803 = vmatpush2.msra.mxu0 0.0
      %1804 = vmatprep.subr.mxu0 0.0
      %1805 = vmatpush2.msra.mxu0 0.0
      %1806 = vmatprep.subr.mxu0 0.0
      %1807 = vmatpush2.msra.mxu0 0.0
      %1808 = vmatprep.subr.mxu0 0.0
      %1809 = vmatpush2.msra.mxu0 0.0
      %1810 = vmatprep.subr.mxu0 0.0
      %1811 = vmatpush2.msra.mxu0 0.0
      %1812 = vmatprep.subr.mxu0 0.0
      %1813 = vmatpush2.msra.mxu0 0.0
      %1814 = vmatprep.subr.mxu0 0.0
      %1815 = vmatpush2.msra.mxu0 0.0
      %1816 = vmatprep.subr.mxu0 0.0
      %1817 = vmatpush2.msra.mxu0 0.0
      %1818 = vmatprep.subr.mxu0 0.0
      %1819 = vmatpush2.msra.mxu0 0.0
      %1820 = vmatprep.mubr.f32.mxu0 0.0
      %1821 = vmatmul.mubr.f32.gmra.mxu0 %v1751
      %v1822 = vpop.f32.mrf.mxu0
      %v1823 = vadd.f32 %v1748, %v1822
      %v1824 = vpop.f32.mrf.mxu0
      %1825 = vmatprep.mubr.f32.mxu0 0.0
      %1826 = vmatmul.mubr.f32.gmra.mxu0 %v1754
      %v1827 = vpop.f32.mrf.mxu0
      %v1828 = vadd.f32 %v1748, %v1827
      %v1829 = vpop.f32.mrf.mxu0
      %1830 = vdwg.mxu0
      %v1831 = vmul.f32 %v1823, %v1823
      %v1832 = vmul.f32 %v1828, %v1828
      %v1833 = vmul.f32 %v1823, %v1831
      %v1834 = vmul.f32 %v1828, %v1832
      %v1835 = vmul.f32 %v1833, 0.044715
      %v1836 = vmul.f32 %v1834, 0.044715
      %v1837 = vadd.f32 %v1823, %v1835
      %v1838 = vadd.f32 %v1828, %v1836
      %v1839 = vmul.f32 %v1837, 0.7978846
      %v1840 = vmul.f32 %v1838, 0.7978846
      %v1841 = vtanh.pop %v1839
      %v1842 = vtanh.pop %v1840
      %v1843 = vadd.f32 %v1841, 1.0
      %v1844 = vadd.f32 %v1842, 1.0
      %v1845 = vmul.f32 %v1843, 0.5
      %v1846 = vmul.f32 %v1844, 0.5
      %v1847 = vmul.f32 %v1823, %v1845
      %v1848 = vmul.f32 %v1828, %v1846
      %v1849 = vld [vmem:[%s9] sm:$0xff]
      %v1850 = vld [vmem:[%s9 + $0x8] sm:$0xff]
      %v1851 = vld [vmem:[%s9 + $0x10] sm:$0xff]
      %v1852 = vld [vmem:[%s9 + $0x18] sm:$0xff]
      %v1853 = vld [vmem:[%s9 + $0x20] sm:$0xff]
      %v1854 = vld [vmem:[%s9 + $0x28] sm:$0xff]
      %v1855 = vld [vmem:[%s9 + $0x30] sm:$0xff]
      %v1856 = vld [vmem:[%s9 + $0x38] sm:$0xff]
      %v1857 = vld [vmem:[%s10] sm:$0x1]
      %v1859 = vlaneseq
      %v1860 = vshrl.u32 %v1859, 7
      %v1861 = vsub.s32 0, %v1860
      %v1862 = vrot.slane %v1857, %v1861
      %vm1864 = vcmask 523264
      %v1866 = vsel %vm1864, %v1847, 0
      %v1869 = vsel %vm1864, %v1848, 0
      %1871 = vmatprep.subr.mxu0 0.0
      %1872 = vmatpush1.msra.mxu0 0.0
      %1873 = vmatprep.subr.mxu0 0.0
      %1874 = vmatpush1.msra.mxu0 0.0
      %1875 = vmatprep.subr.mxu0 0.0
      %1876 = vmatpush1.msra.mxu0 0.0
      %1877 = vmatprep.subr.mxu0 0.0
      %1878 = vmatpush1.msra.mxu0 0.0
      %1879 = vmatprep.subr.mxu0 0.0
      %1880 = vmatpush1.msra.mxu0 0.0
      %1881 = vmatprep.subr.mxu0 0.0
      %1882 = vmatpush1.msra.mxu0 0.0
      %1883 = vmatprep.subr.mxu0 0.0
      %1884 = vmatpush1.msra.mxu0 0.0
      %1885 = vmatprep.subr.mxu0 0.0
      %1886 = vmatpush1.msra.mxu0 0.0
      %1887 = vmatprep.subr.mxu0 0.0
      %1888 = vmatpush1.msra.mxu0 %v1856
      %1889 = vmatprep.subr.mxu0 0.0
      %1890 = vmatpush1.msra.mxu0 %v1855
      %1891 = vmatprep.subr.mxu0 0.0
      %1892 = vmatpush1.msra.mxu0 %v1854
      %1893 = vmatprep.subr.mxu0 0.0
      %1894 = vmatpush1.msra.mxu0 %v1853
      %1895 = vmatprep.subr.mxu0 0.0
      %1896 = vmatpush1.msra.mxu0 %v1852
      %1897 = vmatprep.subr.mxu0 0.0
      %1898 = vmatpush1.msra.mxu0 %v1851
      %1899 = vmatprep.subr.mxu0 0.0
      %1900 = vmatpush1.msra.mxu0 %v1850
      %1901 = vmatprep.subr.mxu0 0.0
      %1902 = vmatpush1.msra.mxu0 %v1849
      %1903 = vmatprep.subr.mxu0 0.0
      %1904 = vmatpush2.msra.mxu0 0.0
      %1905 = vmatprep.subr.mxu0 0.0
      %1906 = vmatpush2.msra.mxu0 0.0
      %1907 = vmatprep.subr.mxu0 0.0
      %1908 = vmatpush2.msra.mxu0 0.0
      %1909 = vmatprep.subr.mxu0 0.0
      %1910 = vmatpush2.msra.mxu0 0.0
      %1911 = vmatprep.subr.mxu0 0.0
      %1912 = vmatpush2.msra.mxu0 0.0
      %1913 = vmatprep.subr.mxu0 0.0
      %1914 = vmatpush2.msra.mxu0 0.0
      %1915 = vmatprep.subr.mxu0 0.0
      %1916 = vmatpush2.msra.mxu0 0.0
      %1917 = vmatprep.subr.mxu0 0.0
      %1918 = vmatpush2.msra.mxu0 0.0
      %1919 = vmatprep.subr.mxu0 0.0
      %1920 = vmatpush2.msra.mxu0 0.0
      %1921 = vmatprep.subr.mxu0 0.0
      %1922 = vmatpush2.msra.mxu0 0.0
      %1923 = vmatprep.subr.mxu0 0.0
      %1924 = vmatpush2.msra.mxu0 0.0
      %1925 = vmatprep.subr.mxu0 0.0
      %1926 = vmatpush2.msra.mxu0 0.0
      %1927 = vmatprep.subr.mxu0 0.0
      %1928 = vmatpush2.msra.mxu0 0.0
      %1929 = vmatprep.subr.mxu0 0.0
      %1930 = vmatpush2.msra.mxu0 0.0
      %1931 = vmatprep.subr.mxu0 0.0
      %1932 = vmatpush2.msra.mxu0 0.0
      %1933 = vmatprep.subr.mxu0 0.0
      %1934 = vmatpush2.msra.mxu0 0.0
      %1935 = vmatprep.mubr.f32.mxu0 0.0
      %1936 = vmatmul.mubr.f32.gmra.mxu0 %v1866
      %v1937 = vpop.f32.mrf.mxu0
      %v1938 = vadd.f32 %v1862, %v1937
      %v1939 = vpop.f32.mrf.mxu0
      %1940 = vmatprep.mubr.f32.mxu0 0.0
      %1941 = vmatmul.mubr.f32.gmra.mxu0 %v1869
      %v1942 = vpop.f32.mrf.mxu0
      %v1943 = vadd.f32 %v1862, %v1942
      %v1944 = vpop.f32.mrf.mxu0
      %1945 = vdwg.mxu0
      %v1946 = vadd.f32 %v1737, %v1938
      %v1947 = vadd.f32 %v1738, %v1943
      %v1948 = vld [vmem:[%s11] sm:$0x1]
      %v1949 = vld [vmem:[%s12] sm:$0x1]
      %v1950 = vsel %vm454, %v1946, 0.0
      %1951 = vadd.xlane.f32.xlu0 %v1950
      %v1952 = vpop.xlane.xlu0 %1951
      %v1953 = vsel %vm1698, %v1947, 0.0
      %1954 = vadd.xlane.f32.xlu0 %v1953
      %v1955 = vpop.xlane.xlu0 %1954
      %v1956 = vmul.f32 %v1952, %v1702
      %v1957 = vmul.f32 %v1955, %v1702
      %v1958 = vsub.f32 %v1946, %v1956
      %v1959 = vsub.f32 %v1947, %v1957
      %v1960 = vmul.f32 %v1958, %v1958
      %v1961 = vmul.f32 %v1959, %v1959
      %v1962 = vsel %vm454, %v1960, 0.0
      %1963 = vadd.xlane.f32.xlu0 %v1962
      %v1964 = vpop.xlane.xlu0 %1963
      %v1965 = vsel %vm1698, %v1961, 0.0
      %1966 = vadd.xlane.f32.xlu0 %v1965
      %v1967 = vpop.xlane.xlu0 %1966
      %v1968 = vmul.f32 %v1964, %v1702
      %v1969 = vmul.f32 %v1967, %v1702
      %v1970 = vadd.f32 %v1968, 1e-05
      %v1971 = vadd.f32 %v1969, 1e-05
      %v1972 = vrsqrt.pop %v1970
      %v1973 = vrsqrt.pop %v1971
      %v1974 = vmul.f32 %v1958, %v1972
      %v1975 = vmul.f32 %v1959, %v1973
      %v1977 = vlaneseq
      %v1978 = vshrl.u32 %v1977, 7
      %v1979 = vsub.s32 0, %v1978
      %v1980 = vrot.slane %v1948, %v1979
      %v1982 = vmul.f32 %v1974, %v1980
      %v1983 = vmul.f32 %v1975, %v1980
      %v1985 = vlaneseq
      %v1986 = vshrl.u32 %v1985, 7
      %v1987 = vsub.s32 0, %v1986
      %v1988 = vrot.slane %v1949, %v1987
      %v1990 = vadd.f32 %v1982, %v1988
      %v1991 = vadd.f32 %v1983, %v1988
      %1992 = vst.msk [vmem:[%s440] sm:$0xff] %vm454, %v1990
      %1993 = vst.msk [vmem:[%s440 + $0x8] sm:$0x7f] %vm1698, %v1991
      %p1994 = scmp.lt.s32.totalorder %s24, 1
      %s1995 = scalar_select %p1994, %s24, 1
      %s1996 = smul.addr %s1995, 2
      %s1997 = smul.addr %s1996, 8
      %s1998 = scalar_lea.vmem %s13, %s1997
      // Predicated region
      $region73: #{mert_l2p_forward.14} parent=71 // pred_check
        %p1999 = pneg %p320
      $region74: #{mert_l2p_forward.14} parent=71 // pred_check_branch
        %2001 = sbr.rel (%p1999) target = $region76
      $region75: #{mert_l2p_forward.14} parent=71 // pred_region
        _
      $region76: #{mert_l2p_forward.14} parent=71 // pred_fallthru
        _
    $region72: #{mert_l2p_forward.14} parent=5 // pred_fallthru
      _
    %p2002 = scmp.le.s32.totalorder 2, %s19
    // Predicated region
    $region77: #{mert_l2p_forward.14} parent=5 // pred_check
      %p2003 = pneg %p2002
    $region78: #{mert_l2p_forward.14} parent=5 // pred_check_branch
      %2005 = sbr.rel (%p2003) target = $region80
    $region79: #{mert_l2p_forward.14} parent=5 // pred_region
      %s2006 = ssub.s32 %s19, 2
      // Predicated region
      $region81: #{mert_l2p_forward.14} parent=79 // pred_check
        %p2007 = pneg %p326
      $region82: #{mert_l2p_forward.14} parent=79 // pred_check_branch
        %2009 = sbr.rel (%p2007) target = $region84
      $region83: #{mert_l2p_forward.14} parent=79 // pred_region
        %p2010 = scmp.lt.s32.totalorder %s25, 1
        %s2011 = scalar_select %p2010, %s25, 1
        %s2012 = smul.addr %s2011, 2
        %s2013 = smul.addr %s2012, 8
        %s2014 = scalar_lea.vmem %s13, %s2013
      $region84: #{mert_l2p_forward.14} parent=79 // pred_fallthru
        _
    $region80: #{mert_l2p_forward.14} parent=5 // pred_fallthru
      _
  $region6: #{mert_l2p_forward.14} parent=0 // loop_footer
    %s23 = sadd.s32 1, %s19
  $region7: #{mert_l2p_forward.14} parent=0 // loop_footer_branch
    %18 = sbr.rel target = $region3
  $region8: #{mert_l2p_forward.14} parent=0 // loop_exit
    _

// kernel: mert_l2p_forward.18
$region0: #{mert_l2p_forward.18}
  #allocation0 [shape = 'u32[]', space=smem, size = 0x4, offset = 0x4, fixed_abs, tag = 'smem constant byte address 0x4 - core index']
  #allocation1 [shape = 'u32[144,128]{1,0:T(1,128)}', space=vmem, size = 0x12000, scoped, tag = 'internal scratch']
  %s0 = inlined_call_operand.vmem [shape: f32[50,32], index: 0, kind: input, shape index: {}]
  %s1 = inlined_call_operand.vmem [shape: f32[1,32], index: 1, kind: input, shape index: {}]
  %s2 = inlined_call_operand.vmem [shape: f32[1,32], index: 2, kind: input, shape index: {}]
  %s3 = inlined_call_operand.vmem [shape: f32[50,32], index: 3, kind: output, shape index: {}]
  %s4 = sld [smem:[#allocation0]]
  $region22: #{mert_l2p_forward.18} parent=0
    _
  %s6 = ssub.s32 1, %s4
  %s7 = scalar_select 0, %s6, %s4
  // Predicated region
  $region2: #{mert_l2p_forward.18} parent=0 // pred_check
    _
  $region3: #{mert_l2p_forward.18} parent=0 // pred_check_branch
    %9 = sbr.rel (0) target = $region5
  $region4: #{mert_l2p_forward.18} parent=0 // pred_region
    _
  $region5: #{mert_l2p_forward.18} parent=0 // pred_fallthru
    _
  // Predicated region
  $region6: #{mert_l2p_forward.18} parent=0 // pred_check
    _
  $region7: #{mert_l2p_forward.18} parent=0 // pred_check_branch
    %11 = sbr.rel (0) target = $region9
  $region8: #{mert_l2p_forward.18} parent=0 // pred_region
    _
  $region9: #{mert_l2p_forward.18} parent=0 // pred_fallthru
    _
  // Predicated region
  $region10: #{mert_l2p_forward.18} parent=0 // pred_check
    _
  $region11: #{mert_l2p_forward.18} parent=0 // pred_check_branch
    %13 = sbr.rel (0) target = $region13
  $region12: #{mert_l2p_forward.18} parent=0 // pred_region
    _
  $region13: #{mert_l2p_forward.18} parent=0 // pred_fallthru
    _
  %v14 = vld [vmem:[%s0] sm:$0xff]
  %v15 = vld [vmem:[%s0 + $0x8] sm:$0xff]
  %v16 = vld [vmem:[%s0 + $0x10] sm:$0xff]
  %v17 = vld [vmem:[%s0 + $0x18] sm:$0xff]
  %v18 = vld [vmem:[%s0 + $0x20] sm:$0xff]
  %v19 = vld [vmem:[%s0 + $0x28] sm:$0xff]
  %v20 = vld [vmem:[%s0 + $0x30] sm:$0x3]
  %v21 = vld [vmem:[%s1] sm:$0x1]
  %v22 = vld [vmem:[%s2] sm:$0x1]
  %vm23 = vcmask 261120
  %v24 = vsel %vm23, %v14, 0.0
  %25 = vadd.xlane.f32.xlu0 %v24
  %v26 = vpop.xlane.xlu0 %25
  %v27 = vsel %vm23, %v15, 0.0
  %28 = vadd.xlane.f32.xlu0 %v27
  %v29 = vpop.xlane.xlu0 %28
  %v30 = vsel %vm23, %v16, 0.0
  %31 = vadd.xlane.f32.xlu0 %v30
  %v32 = vpop.xlane.xlu0 %31
  %v33 = vsel %vm23, %v17, 0.0
  %34 = vadd.xlane.f32.xlu0 %v33
  %v35 = vpop.xlane.xlu0 %34
  %v36 = vsel %vm23, %v18, 0.0
  %37 = vadd.xlane.f32.xlu0 %v36
  %v38 = vpop.xlane.xlu0 %37
  %v39 = vsel %vm23, %v19, 0.0
  %40 = vadd.xlane.f32.xlu0 %v39
  %v41 = vpop.xlane.xlu0 %40
  %vm42 = vcmask 254976
  %v43 = vsel %vm42, %v20, 0.0
  %44 = vadd.xlane.f32.xlu0 %v43
  %v45 = vpop.xlane.xlu0 %44
  %v46 = vrcp.pop 32.0
  %v47 = vmul.f32 %v26, %v46
  %v48 = vmul.f32 %v29, %v46
  %v49 = vmul.f32 %v32, %v46
  %v50 = vmul.f32 %v35, %v46
  %v51 = vmul.f32 %v38, %v46
  %v52 = vmul.f32 %v41, %v46
  %v53 = vmul.f32 %v45, %v46
  %v54 = vsub.f32 %v14, %v47
  %v55 = vsub.f32 %v15, %v48
  %v56 = vsub.f32 %v16, %v49
  %v57 = vsub.f32 %v17, %v50
  %v58 = vsub.f32 %v18, %v51
  %v59 = vsub.f32 %v19, %v52
  %v60 = vsub.f32 %v20, %v53
  %v61 = vmul.f32 %v54, %v54
  %v62 = vmul.f32 %v55, %v55
  %v63 = vmul.f32 %v56, %v56
  %v64 = vmul.f32 %v57, %v57
  %v65 = vmul.f32 %v58, %v58
  %v66 = vmul.f32 %v59, %v59
  %v67 = vmul.f32 %v60, %v60
  %v68 = vsel %vm23, %v61, 0.0
  %69 = vadd.xlane.f32.xlu0 %v68
  %v70 = vpop.xlane.xlu0 %69
  %v71 = vsel %vm23, %v62, 0.0
  %72 = vadd.xlane.f32.xlu0 %v71
  %v73 = vpop.xlane.xlu0 %72
  %v74 = vsel %vm23, %v63, 0.0
  %75 = vadd.xlane.f32.xlu0 %v74
  %v76 = vpop.xlane.xlu0 %75
  %v77 = vsel %vm23, %v64, 0.0
  %78 = vadd.xlane.f32.xlu0 %v77
  %v79 = vpop.xlane.xlu0 %78
  %v80 = vsel %vm23, %v65, 0.0
  %81 = vadd.xlane.f32.xlu0 %v80
  %v82 = vpop.xlane.xlu0 %81
  %v83 = vsel %vm23, %v66, 0.0
  %84 = vadd.xlane.f32.xlu0 %v83
  %v85 = vpop.xlane.xlu0 %84
  %v86 = vsel %vm42, %v67, 0.0
  %87 = vadd.xlane.f32.xlu0 %v86
  %v88 = vpop.xlane.xlu0 %87
  %v89 = vmul.f32 %v70, %v46
  %v90 = vmul.f32 %v73, %v46
  %v91 = vmul.f32 %v76, %v46
  %v92 = vmul.f32 %v79, %v46
  %v93 = vmul.f32 %v82, %v46
  %v94 = vmul.f32 %v85, %v46
  %v95 = vmul.f32 %v88, %v46
  %v96 = vadd.f32 %v89, 1e-05
  %v97 = vadd.f32 %v90, 1e-05
  %v98 = vadd.f32 %v91, 1e-05
  %v99 = vadd.f32 %v92, 1e-05
  %v100 = vadd.f32 %v93, 1e-05
  %v101 = vadd.f32 %v94, 1e-05
  %v102 = vadd.f32 %v95, 1e-05
  %v103 = vrsqrt.pop %v96
  %v104 = vrsqrt.pop %v97
  %v105 = vrsqrt.pop %v98
  %v106 = vrsqrt.pop %v99
  %v107 = vrsqrt.pop %v100
  %v108 = vrsqrt.pop %v101
  %v109 = vrsqrt.pop %v102
  %v110 = vmul.f32 %v54, %v103
  %v111 = vmul.f32 %v55, %v104
  %v112 = vmul.f32 %v56, %v105
  %v113 = vmul.f32 %v57, %v106
  %v114 = vmul.f32 %v58, %v107
  %v115 = vmul.f32 %v59, %v108
  %v116 = vmul.f32 %v60, %v109
  %v118 = vlaneseq
  %v119 = vshrl.u32 %v118, 7
  %v120 = vsub.s32 0, %v119
  %v121 = vrot.slane %v21, %v120
  %v123 = vmul.f32 %v110, %v121
  %v124 = vmul.f32 %v111, %v121
  %v125 = vmul.f32 %v112, %v121
  %v126 = vmul.f32 %v113, %v121
  %v127 = vmul.f32 %v114, %v121
  %v128 = vmul.f32 %v115, %v121
  %v129 = vmul.f32 %v116, %v121
  %v131 = vlaneseq
  %v132 = vshrl.u32 %v131, 7
  %v133 = vsub.s32 0, %v132
  %v134 = vrot.slane %v22, %v133
  %v136 = vadd.f32 %v123, %v134
  %v137 = vadd.f32 %v124, %v134
  %v138 = vadd.f32 %v125, %v134
  %v139 = vadd.f32 %v126, %v134
  %v140 = vadd.f32 %v127, %v134
  %v141 = vadd.f32 %v128, %v134
  %v142 = vadd.f32 %v129, %v134
  %143 = vst.msk [vmem:[%s3] sm:$0xff] %vm23, %v136
  %144 = vst.msk [vmem:[%s3 + $0x8] sm:$0xff] %vm23, %v137
  %145 = vst.msk [vmem:[%s3 + $0x10] sm:$0xff] %vm23, %v138
  %146 = vst.msk [vmem:[%s3 + $0x18] sm:$0xff] %vm23, %v139
  %147 = vst.msk [vmem:[%s3 + $0x20] sm:$0xff] %vm23, %v140
  %148 = vst.msk [vmem:[%s3 + $0x28] sm:$0xff] %vm23, %v141
  %149 = vst.msk [vmem:[%s3 + $0x30] sm:$0x3] %vm42, %v142
  // Predicated region
  $region14: #{mert_l2p_forward.18} parent=0 // pred_check
    _
  $region15: #{mert_l2p_forward.18} parent=0 // pred_check_branch
    %151 = sbr.rel (0) target = $region17
  $region16: #{mert_l2p_forward.18} parent=0 // pred_region
    _
  $region17: #{mert_l2p_forward.18} parent=0 // pred_fallthru
    _
  // Predicated region
  $region18: #{mert_l2p_forward.18} parent=0 // pred_check
    _
  $region19: #{mert_l2p_forward.18} parent=0 // pred_check_branch
    %153 = sbr.rel (0) target = $region21
  $region20: #{mert_l2p_forward.18} parent=0 // pred_region
    _
  $region21: #{mert_l2p_forward.18} parent=0 // pred_fallthru
    _

// kernel: mert_l2p_forward.21
$region0: #{mert_l2p_forward.21}
  #allocation0 [shape = 'u32[]', space=smem, size = 0x4, offset = 0x4, fixed_abs, tag = 'smem constant byte address 0x4 - core index']
  #allocation1 [shape = 'u32[144,128]{1,0:T(1,128)}', space=vmem, size = 0x12000, scoped, tag = 'internal scratch']
  %s0 = inlined_call_operand.vmem [shape: f32[6,25,32], index: 0, kind: input, shape index: {}]
  %s1 = inlined_call_operand.vmem [shape: f32[6,32], index: 1, kind: output, shape index: {}]
  %s2 = sld [smem:[#allocation0]]
  $region14: #{mert_l2p_forward.21} parent=0
    _
  %s4 = ssub.s32 1, %s2
  %s5 = scalar_select 0, %s4, %s2
  // Predicated region
  $region2: #{mert_l2p_forward.21} parent=0 // pred_check
    _
  $region3: #{mert_l2p_forward.21} parent=0 // pred_check_branch
    %7 = sbr.rel (0) target = $region5
  $region4: #{mert_l2p_forward.21} parent=0 // pred_region
    _
  $region5: #{mert_l2p_forward.21} parent=0 // pred_fallthru
    _
  %v8 = vld [vmem:[%s0] sm:$0xff]
  %v9 = vld [vmem:[%s0 + $0x8] sm:$0xff]
  %v10 = vld [vmem:[%s0 + $0x10] sm:$0xff]
  %v11 = vld [vmem:[%s0 + $0x18] sm:$0x1]
  %v12 = vld [vmem:[%s0 + $0x20] sm:$0xff]
  %v13 = vld [vmem:[%s0 + $0x28] sm:$0xff]
  %v14 = vld [vmem:[%s0 + $0x30] sm:$0xff]
  %v15 = vld [vmem:[%s0 + $0x38] sm:$0x1]
  %v16 = vld [vmem:[%s0 + $0x40] sm:$0xff]
  %v17 = vld [vmem:[%s0 + $0x48] sm:$0xff]
  %v18 = vld [vmem:[%s0 + $0x50] sm:$0xff]
  %v19 = vld [vmem:[%s0 + $0x58] sm:$0x1]
  %v20 = vld [vmem:[%s0 + $0x60] sm:$0xff]
  %v21 = vld [vmem:[%s0 + $0x68] sm:$0xff]
  %v22 = vld [vmem:[%s0 + $0x70] sm:$0xff]
  %v23 = vld [vmem:[%s0 + $0x78] sm:$0x1]
  %v24 = vld [vmem:[%s0 + $0x80] sm:$0xff]
  %v25 = vld [vmem:[%s0 + $0x88] sm:$0xff]
  %v26 = vld [vmem:[%s0 + $0x90] sm:$0xff]
  %v27 = vld [vmem:[%s0 + $0x98] sm:$0x1]
  %v28 = vld [vmem:[%s0 + $0xa0] sm:$0xff]
  %v29 = vld [vmem:[%s0 + $0xa8] sm:$0xff]
  %v30 = vld [vmem:[%s0 + $0xb0] sm:$0xff]
  %v31 = vld [vmem:[%s0 + $0xb8] sm:$0x1]
  %vm32 = vcmask 261120
  %v33 = vsel %vm32, %v8, 0.0
  %v34 = vsel %vm32, %v9, 0.0
  %v35 = vadd.f32 %v33, %v34
  %v36 = vsel %vm32, %v10, 0.0
  %v37 = vadd.f32 %v35, %v36
  %vm38 = vcmask 253952
  %v39 = vsel %vm38, %v11, 0.0
  %v40 = vadd.f32 %v37, %v39
  %v41 = vrot.slane %v40, 4
  %v42 = vadd.f32 %v40, %v41
  %v43 = vrot.slane %v42, 2
  %v44 = vadd.f32 %v42, %v43
  %v45 = vrot.slane %v44, 1
  %v46 = vadd.f32 %v44, %v45
  %v47 = vsel %vm32, %v12, 0.0
  %v48 = vsel %vm32, %v13, 0.0
  %v49 = vadd.f32 %v47, %v48
  %v50 = vsel %vm32, %v14, 0.0
  %v51 = vadd.f32 %v49, %v50
  %v52 = vsel %vm38, %v15, 0.0
  %v53 = vadd.f32 %v51, %v52
  %v54 = vrot.slane %v53, 4
  %v55 = vadd.f32 %v53, %v54
  %v56 = vrot.slane %v55, 2
  %v57 = vadd.f32 %v55, %v56
  %v58 = vrot.slane %v57, 1
  %v59 = vadd.f32 %v57, %v58
  %v60 = vsel %vm32, %v16, 0.0
  %v61 = vsel %vm32, %v17, 0.0
  %v62 = vadd.f32 %v60, %v61
  %v63 = vsel %vm32, %v18, 0.0
  %v64 = vadd.f32 %v62, %v63
  %v65 = vsel %vm38, %v19, 0.0
  %v66 = vadd.f32 %v64, %v65
  %v67 = vrot.slane %v66, 4
  %v68 = vadd.f32 %v66, %v67
  %v69 = vrot.slane %v68, 2
  %v70 = vadd.f32 %v68, %v69
  %v71 = vrot.slane %v70, 1
  %v72 = vadd.f32 %v70, %v71
  %v73 = vsel %vm32, %v20, 0.0
  %v74 = vsel %vm32, %v21, 0.0
  %v75 = vadd.f32 %v73, %v74
  %v76 = vsel %vm32, %v22, 0.0
  %v77 = vadd.f32 %v75, %v76
  %v78 = vsel %vm38, %v23, 0.0
  %v79 = vadd.f32 %v77, %v78
  %v80 = vrot.slane %v79, 4
  %v81 = vadd.f32 %v79, %v80
  %v82 = vrot.slane %v81, 2
  %v83 = vadd.f32 %v81, %v82
  %v84 = vrot.slane %v83, 1
  %v85 = vadd.f32 %v83, %v84
  %v86 = vsel %vm32, %v24, 0.0
  %v87 = vsel %vm32, %v25, 0.0
  %v88 = vadd.f32 %v86, %v87
  %v89 = vsel %vm32, %v26, 0.0
  %v90 = vadd.f32 %v88, %v89
  %v91 = vsel %vm38, %v27, 0.0
  %v92 = vadd.f32 %v90, %v91
  %v93 = vrot.slane %v92, 4
  %v94 = vadd.f32 %v92, %v93
  %v95 = vrot.slane %v94, 2
  %v96 = vadd.f32 %v94, %v95
  %v97 = vrot.slane %v96, 1
  %v98 = vadd.f32 %v96, %v97
  %v99 = vsel %vm32, %v28, 0.0
  %v100 = vsel %vm32, %v29, 0.0
  %v101 = vadd.f32 %v99, %v100
  %v102 = vsel %vm32, %v30, 0.0
  %v103 = vadd.f32 %v101, %v102
  %v104 = vsel %vm38, %v31, 0.0
  %v105 = vadd.f32 %v103, %v104
  %v106 = vrot.slane %v105, 4
  %v107 = vadd.f32 %v105, %v106
  %v108 = vrot.slane %v107, 2
  %v109 = vadd.f32 %v107, %v108
  %v110 = vrot.slane %v109, 1
  %v111 = vadd.f32 %v109, %v110
  %v112 = vrcp.pop 25.0
  %v113 = vmul.f32 %v46, %v112
  %v114 = vmul.f32 %v59, %v112
  %v115 = vmul.f32 %v72, %v112
  %v116 = vmul.f32 %v85, %v112
  %v117 = vmul.f32 %v98, %v112
  %v118 = vmul.f32 %v111, %v112
  %vm125 = vcmask 1041409
  %v126 = vsel %vm125, %v114, %v113
  %vm127 = vcmask 1042434
  %v128 = vsel %vm127, %v115, %v126
  %vm129 = vcmask 1043459
  %v130 = vsel %vm129, %v116, %v128
  %vm131 = vcmask 1044484
  %v132 = vsel %vm131, %v117, %v130
  %vm133 = vcmask 1045509
  %v134 = vsel %vm133, %v118, %v132
  %vm136 = vcmask 259072
  %137 = vst.msk [vmem:[%s1] sm:$0x3f] %vm136, %v134
  // Predicated region
  $region6: #{mert_l2p_forward.21} parent=0 // pred_check
    _
  $region7: #{mert_l2p_forward.21} parent=0 // pred_check_branch
    %139 = sbr.rel (0) target = $region9
  $region8: #{mert_l2p_forward.21} parent=0 // pred_region
    _
  $region9: #{mert_l2p_forward.21} parent=0 // pred_fallthru
    _
  // Predicated region
  $region10: #{mert_l2p_forward.21} parent=0 // pred_check
    _
  $region11: #{mert_l2p_forward.21} parent=0 // pred_check_branch
    %141 = sbr.rel (0) target = $region13
  $region12: #{mert_l2p_forward.21} parent=0 // pred_region
    _
  $region13: #{mert_l2p_forward.21} parent=0 // pred_fallthru
    _

// kernel: mert_l2p_forward.19
$region0: #{mert_l2p_forward.19}
  #allocation0 [shape = 'u32[]', space=smem, size = 0x4, offset = 0x4, fixed_abs, tag = 'smem constant byte address 0x4 - core index']
  #allocation1 [shape = 'u32[144,128]{1,0:T(1,128)}', space=vmem, size = 0x12000, scoped, tag = 'internal scratch']
  %s0 = inlined_call_operand.vmem [shape: f32[2,40,32], index: 0, kind: input, shape index: {}]
  %s1 = inlined_call_operand.vmem [shape: f32[32,96], index: 1, kind: input, shape index: {}]
  %s2 = inlined_call_operand.vmem [shape: f32[1,96], index: 2, kind: input, shape index: {}]
  %s3 = inlined_call_operand.vmem [shape: f32[32,32], index: 3, kind: input, shape index: {}]
  %s4 = inlined_call_operand.vmem [shape: f32[1,32], index: 4, kind: input, shape index: {}]
  %s5 = inlined_call_operand.vmem [shape: f32[1,32], index: 5, kind: input, shape index: {}]
  %s6 = inlined_call_operand.vmem [shape: f32[1,32], index: 6, kind: input, shape index: {}]
  %s7 = inlined_call_operand.vmem [shape: f32[32,64], index: 7, kind: input, shape index: {}]
  %s8 = inlined_call_operand.vmem [shape: f32[1,64], index: 8, kind: input, shape index: {}]
  %s9 = inlined_call_operand.vmem [shape: f32[64,32], index: 9, kind: input, shape index: {}]
  %s10 = inlined_call_operand.vmem [shape: f32[1,32], index: 10, kind: input, shape index: {}]
  %s11 = inlined_call_operand.vmem [shape: f32[1,32], index: 11, kind: input, shape index: {}]
  %s12 = inlined_call_operand.vmem [shape: f32[1,32], index: 12, kind: input, shape index: {}]
  %s13 = inlined_call_operand.vmem [shape: f32[2,40,32], index: 13, kind: output, shape index: {}]
  %s14 = sld [smem:[#allocation0]]
  $region85: #{mert_l2p_forward.19} parent=0
    _
  %s16 = ssub.s32 1, %s14
  %s17 = scalar_select 0, %s16, %s14
  loop: start=0, step=1, limit=4
  $region2: #{mert_l2p_forward.19} parent=0 // loop_pre_header
    _
  $region3: #{mert_l2p_forward.19} parent=0 // loop_header
    %s19 = sphi 0, %s23
    %p20 = scmp.ge.s32.totalorder %s19, 4
    %s29 = sphi 0, %s31
    %s32 = sphi 0, %s29
    %s33 = sphi 0, %s32
    %s49 = sphi 0, %s33
    %s53 = sphi 0, %s53
    %s55 = sphi 0, %s53
    %s56 = sphi 0, %s55
    %s70 = sphi 0, %s56
    %s74 = sphi 0, %s74
    %s76 = sphi 0, %s74
    %s77 = sphi 0, %s76
    %s91 = sphi 0, %s77
    %s95 = sphi 0, %s95
    %s97 = sphi 0, %s95
    %s98 = sphi 0, %s97
    %s112 = sphi 0, %s98
    %s116 = sphi 0, %s116
    %s118 = sphi 0, %s116
    %s119 = sphi 0, %s118
    %s133 = sphi 0, %s119
    %s137 = sphi 0, %s137
    %s139 = sphi 0, %s137
    %s140 = sphi 0, %s139
    %s154 = sphi 0, %s140
    %s158 = sphi 0, %s158
    %s160 = sphi 0, %s158
    %s161 = sphi 0, %s160
    %s175 = sphi 0, %s161
    %s179 = sphi 0, %s179
    %s181 = sphi 0, %s179
    %s182 = sphi 0, %s181
    %s196 = sphi 0, %s182
    %s200 = sphi 0, %s200
    %s202 = sphi 0, %s200
    %s203 = sphi 0, %s202
    %s217 = sphi 0, %s203
    %s221 = sphi 0, %s221
    %s223 = sphi 0, %s221
    %s224 = sphi 0, %s223
    %s238 = sphi 0, %s224
    %s242 = sphi 0, %s242
    %s244 = sphi 0, %s242
    %s245 = sphi 0, %s244
    %s259 = sphi 0, %s245
    %s263 = sphi 0, %s263
    %s265 = sphi 0, %s263
    %s266 = sphi 0, %s265
    %s280 = sphi 0, %s266
    %s284 = sphi 0, %s284
    %s286 = sphi 0, %s284
    %s287 = sphi 0, %s286
    %s301 = sphi 0, %s287
    %s307 = sphi 0, %s309
    %s310 = sphi 0, %s307
    %s311 = sphi 0, %s310
    %s327 = sphi 0, %s311
  $region4: #{mert_l2p_forward.19} parent=0 // loop_header_branch
    %22 = sbr.rel (%p20) target = $region8
  $region5: #{mert_l2p_forward.19} parent=0 // loop_body
    %s24 = ssub.s32 %s19, 1
    %s25 = ssub.s32 %s19, 2
    %s26 = sadd.s32 %s19, 1
    %s27 = ssub.s32 %s19, %s26
    %p28 = scmp.eq.s32.totalorder %s27, 0
    %s30 = sadd.s32 %s29, 1
    %s31 = scalar_select %p28, %s29, %s30
    %p34 = pneg %p28
    %p35 = scmp.eq.s32.totalorder %s19, 1
    %p36 = por %p34, %p35
    %p37 = scmp.ne.s32.totalorder %s29, %s32
    %p38 = scmp.eq.s32.totalorder %s19, 0
    %p39 = por %p37, %p38
    %p40 = scmp.ne.s32.totalorder %s29, %s32
    %p41 = scmp.eq.s32.totalorder %s24, 1
    %p42 = por %p40, %p41
    %p43 = scmp.ne.s32.totalorder %s32, %s33
    %p44 = scmp.eq.s32.totalorder %s24, 0
    %p45 = por %p43, %p44
    %p46 = scmp.ne.s32.totalorder %s32, %s33
    %p47 = scmp.eq.s32.totalorder %s25, 1
    %p48 = por %p46, %p47
    %p50 = scmp.ne.s32.totalorder %s33, %s49
    %p51 = scmp.eq.s32.totalorder %s25, 0
    %p52 = por %p50, %p51
    %s54 = sadd.s32 %s53, 1
    %p57 = scmp.eq.s32.totalorder %s19, 1
    %p58 = scmp.ne.s32.totalorder %s53, %s55
    %p59 = scmp.eq.s32.totalorder %s19, 0
    %p60 = por %p58, %p59
    %p61 = scmp.ne.s32.totalorder %s53, %s55
    %p62 = scmp.eq.s32.totalorder %s24, 1
    %p63 = por %p61, %p62
    %p64 = scmp.ne.s32.totalorder %s55, %s56
    %p65 = scmp.eq.s32.totalorder %s24, 0
    %p66 = por %p64, %p65
    %p67 = scmp.ne.s32.totalorder %s55, %s56
    %p68 = scmp.eq.s32.totalorder %s25, 1
    %p69 = por %p67, %p68
    %p71 = scmp.ne.s32.totalorder %s56, %s70
    %p72 = scmp.eq.s32.totalorder %s25, 0
    %p73 = por %p71, %p72
    %s75 = sadd.s32 %s74, 1
    %p78 = scmp.eq.s32.totalorder %s19, 1
    %p79 = scmp.ne.s32.totalorder %s74, %s76
    %p80 = scmp.eq.s32.totalorder %s19, 0
    %p81 = por %p79, %p80
    %p82 = scmp.ne.s32.totalorder %s74, %s76
    %p83 = scmp.eq.s32.totalorder %s24, 1
    %p84 = por %p82, %p83
    %p85 = scmp.ne.s32.totalorder %s76, %s77
    %p86 = scmp.eq.s32.totalorder %s24, 0
    %p87 = por %p85, %p86
    %p88 = scmp.ne.s32.totalorder %s76, %s77
    %p89 = scmp.eq.s32.totalorder %s25, 1
    %p90 = por %p88, %p89
    %p92 = scmp.ne.s32.totalorder %s77, %s91
    %p93 = scmp.eq.s32.totalorder %s25, 0
    %p94 = por %p92, %p93
    %s96 = sadd.s32 %s95, 1
    %p99 = scmp.eq.s32.totalorder %s19, 1
    %p100 = scmp.ne.s32.totalorder %s95, %s97
    %p101 = scmp.eq.s32.totalorder %s19, 0
    %p102 = por %p100, %p101
    %p103 = scmp.ne.s32.totalorder %s95, %s97
    %p104 = scmp.eq.s32.totalorder %s24, 1
    %p105 = por %p103, %p104
    %p106 = scmp.ne.s32.totalorder %s97, %s98
    %p107 = scmp.eq.s32.totalorder %s24, 0
    %p108 = por %p106, %p107
    %p109 = scmp.ne.s32.totalorder %s97, %s98
    %p110 = scmp.eq.s32.totalorder %s25, 1
    %p111 = por %p109, %p110
    %p113 = scmp.ne.s32.totalorder %s98, %s112
    %p114 = scmp.eq.s32.totalorder %s25, 0
    %p115 = por %p113, %p114
    %s117 = sadd.s32 %s116, 1
    %p120 = scmp.eq.s32.totalorder %s19, 1
    %p121 = scmp.ne.s32.totalorder %s116, %s118
    %p122 = scmp.eq.s32.totalorder %s19, 0
    %p123 = por %p121, %p122
    %p124 = scmp.ne.s32.totalorder %s116, %s118
    %p125 = scmp.eq.s32.totalorder %s24, 1
    %p126 = por %p124, %p125
    %p127 = scmp.ne.s32.totalorder %s118, %s119
    %p128 = scmp.eq.s32.totalorder %s24, 0
    %p129 = por %p127, %p128
    %p130 = scmp.ne.s32.totalorder %s118, %s119
    %p131 = scmp.eq.s32.totalorder %s25, 1
    %p132 = por %p130, %p131
    %p134 = scmp.ne.s32.totalorder %s119, %s133
    %p135 = scmp.eq.s32.totalorder %s25, 0
    %p136 = por %p134, %p135
    %s138 = sadd.s32 %s137, 1
    %p141 = scmp.eq.s32.totalorder %s19, 1
    %p142 = scmp.ne.s32.totalorder %s137, %s139
    %p143 = scmp.eq.s32.totalorder %s19, 0
    %p144 = por %p142, %p143
    %p145 = scmp.ne.s32.totalorder %s137, %s139
    %p146 = scmp.eq.s32.totalorder %s24, 1
    %p147 = por %p145, %p146
    %p148 = scmp.ne.s32.totalorder %s139, %s140
    %p149 = scmp.eq.s32.totalorder %s24, 0
    %p150 = por %p148, %p149
    %p151 = scmp.ne.s32.totalorder %s139, %s140
    %p152 = scmp.eq.s32.totalorder %s25, 1
    %p153 = por %p151, %p152
    %p155 = scmp.ne.s32.totalorder %s140, %s154
    %p156 = scmp.eq.s32.totalorder %s25, 0
    %p157 = por %p155, %p156
    %s159 = sadd.s32 %s158, 1
    %p162 = scmp.eq.s32.totalorder %s19, 1
    %p163 = scmp.ne.s32.totalorder %s158, %s160
    %p164 = scmp.eq.s32.totalorder %s19, 0
    %p165 = por %p163, %p164
    %p166 = scmp.ne.s32.totalorder %s158, %s160
    %p167 = scmp.eq.s32.totalorder %s24, 1
    %p168 = por %p166, %p167
    %p169 = scmp.ne.s32.totalorder %s160, %s161
    %p170 = scmp.eq.s32.totalorder %s24, 0
    %p171 = por %p169, %p170
    %p172 = scmp.ne.s32.totalorder %s160, %s161
    %p173 = scmp.eq.s32.totalorder %s25, 1
    %p174 = por %p172, %p173
    %p176 = scmp.ne.s32.totalorder %s161, %s175
    %p177 = scmp.eq.s32.totalorder %s25, 0
    %p178 = por %p176, %p177
    %s180 = sadd.s32 %s179, 1
    %p183 = scmp.eq.s32.totalorder %s19, 1
    %p184 = scmp.ne.s32.totalorder %s179, %s181
    %p185 = scmp.eq.s32.totalorder %s19, 0
    %p186 = por %p184, %p185
    %p187 = scmp.ne.s32.totalorder %s179, %s181
    %p188 = scmp.eq.s32.totalorder %s24, 1
    %p189 = por %p187, %p188
    %p190 = scmp.ne.s32.totalorder %s181, %s182
    %p191 = scmp.eq.s32.totalorder %s24, 0
    %p192 = por %p190, %p191
    %p193 = scmp.ne.s32.totalorder %s181, %s182
    %p194 = scmp.eq.s32.totalorder %s25, 1
    %p195 = por %p193, %p194
    %p197 = scmp.ne.s32.totalorder %s182, %s196
    %p198 = scmp.eq.s32.totalorder %s25, 0
    %p199 = por %p197, %p198
    %s201 = sadd.s32 %s200, 1
    %p204 = scmp.eq.s32.totalorder %s19, 1
    %p205 = scmp.ne.s32.totalorder %s200, %s202
    %p206 = scmp.eq.s32.totalorder %s19, 0
    %p207 = por %p205, %p206
    %p208 = scmp.ne.s32.totalorder %s200, %s202
    %p209 = scmp.eq.s32.totalorder %s24, 1
    %p210 = por %p208, %p209
    %p211 = scmp.ne.s32.totalorder %s202, %s203
    %p212 = scmp.eq.s32.totalorder %s24, 0
    %p213 = por %p211, %p212
    %p214 = scmp.ne.s32.totalorder %s202, %s203
    %p215 = scmp.eq.s32.totalorder %s25, 1
    %p216 = por %p214, %p215
    %p218 = scmp.ne.s32.totalorder %s203, %s217
    %p219 = scmp.eq.s32.totalorder %s25, 0
    %p220 = por %p218, %p219
    %s222 = sadd.s32 %s221, 1
    %p225 = scmp.eq.s32.totalorder %s19, 1
    %p226 = scmp.ne.s32.totalorder %s221, %s223
    %p227 = scmp.eq.s32.totalorder %s19, 0
    %p228 = por %p226, %p227
    %p229 = scmp.ne.s32.totalorder %s221, %s223
    %p230 = scmp.eq.s32.totalorder %s24, 1
    %p231 = por %p229, %p230
    %p232 = scmp.ne.s32.totalorder %s223, %s224
    %p233 = scmp.eq.s32.totalorder %s24, 0
    %p234 = por %p232, %p233
    %p235 = scmp.ne.s32.totalorder %s223, %s224
    %p236 = scmp.eq.s32.totalorder %s25, 1
    %p237 = por %p235, %p236
    %p239 = scmp.ne.s32.totalorder %s224, %s238
    %p240 = scmp.eq.s32.totalorder %s25, 0
    %p241 = por %p239, %p240
    %s243 = sadd.s32 %s242, 1
    %p246 = scmp.eq.s32.totalorder %s19, 1
    %p247 = scmp.ne.s32.totalorder %s242, %s244
    %p248 = scmp.eq.s32.totalorder %s19, 0
    %p249 = por %p247, %p248
    %p250 = scmp.ne.s32.totalorder %s242, %s244
    %p251 = scmp.eq.s32.totalorder %s24, 1
    %p252 = por %p250, %p251
    %p253 = scmp.ne.s32.totalorder %s244, %s245
    %p254 = scmp.eq.s32.totalorder %s24, 0
    %p255 = por %p253, %p254
    %p256 = scmp.ne.s32.totalorder %s244, %s245
    %p257 = scmp.eq.s32.totalorder %s25, 1
    %p258 = por %p256, %p257
    %p260 = scmp.ne.s32.totalorder %s245, %s259
    %p261 = scmp.eq.s32.totalorder %s25, 0
    %p262 = por %p260, %p261
    %s264 = sadd.s32 %s263, 1
    %p267 = scmp.eq.s32.totalorder %s19, 1
    %p268 = scmp.ne.s32.totalorder %s263, %s265
    %p269 = scmp.eq.s32.totalorder %s19, 0
    %p270 = por %p268, %p269
    %p271 = scmp.ne.s32.totalorder %s263, %s265
    %p272 = scmp.eq.s32.totalorder %s24, 1
    %p273 = por %p271, %p272
    %p274 = scmp.ne.s32.totalorder %s265, %s266
    %p275 = scmp.eq.s32.totalorder %s24, 0
    %p276 = por %p274, %p275
    %p277 = scmp.ne.s32.totalorder %s265, %s266
    %p278 = scmp.eq.s32.totalorder %s25, 1
    %p279 = por %p277, %p278
    %p281 = scmp.ne.s32.totalorder %s266, %s280
    %p282 = scmp.eq.s32.totalorder %s25, 0
    %p283 = por %p281, %p282
    %s285 = sadd.s32 %s284, 1
    %p288 = scmp.eq.s32.totalorder %s19, 1
    %p289 = scmp.ne.s32.totalorder %s284, %s286
    %p290 = scmp.eq.s32.totalorder %s19, 0
    %p291 = por %p289, %p290
    %p292 = scmp.ne.s32.totalorder %s284, %s286
    %p293 = scmp.eq.s32.totalorder %s24, 1
    %p294 = por %p292, %p293
    %p295 = scmp.ne.s32.totalorder %s286, %s287
    %p296 = scmp.eq.s32.totalorder %s24, 0
    %p297 = por %p295, %p296
    %p298 = scmp.ne.s32.totalorder %s286, %s287
    %p299 = scmp.eq.s32.totalorder %s25, 1
    %p300 = por %p298, %p299
    %p302 = scmp.ne.s32.totalorder %s287, %s301
    %p303 = scmp.eq.s32.totalorder %s25, 0
    %p304 = por %p302, %p303
    %s305 = ssub.s32 %s19, %s26
    %p306 = scmp.eq.s32.totalorder %s305, 0
    %s308 = sadd.s32 %s307, 1
    %s309 = scalar_select %p306, %s307, %s308
    %p312 = pneg %p306
    %p313 = scmp.eq.s32.totalorder %s19, 1
    %p314 = por %p312, %p313
    %p315 = scmp.ne.s32.totalorder %s307, %s310
    %p316 = scmp.eq.s32.totalorder %s19, 0
    %p317 = por %p315, %p316
    %p318 = scmp.ne.s32.totalorder %s307, %s310
    %p319 = scmp.eq.s32.totalorder %s24, 1
    %p320 = por %p318, %p319
    %p321 = scmp.ne.s32.totalorder %s310, %s311
    %p322 = scmp.eq.s32.totalorder %s24, 0
    %p323 = por %p321, %p322
    %p324 = scmp.ne.s32.totalorder %s310, %s311
    %p325 = scmp.eq.s32.totalorder %s25, 1
    %p326 = por %p324, %p325
    %p328 = scmp.ne.s32.totalorder %s311, %s327
    %p329 = scmp.eq.s32.totalorder %s25, 0
    %p330 = por %p328, %p329
    %p331 = scmp.le.s32.totalorder 1, %s19
    %p332 = scmp.lt.s32.totalorder %s19, 3
    %p333 = pnand %p331, %p332
    %p334 = pneg %p333
    // Predicated region
    $region9: #{mert_l2p_forward.19} parent=5 // pred_check
      _
    $region10: #{mert_l2p_forward.19} parent=5 // pred_check_branch
      %336 = sbr.rel (%p333) target = $region12
    $region11: #{mert_l2p_forward.19} parent=5 // pred_region
      %s337 = ssub.s32 %s19, 1
      // Predicated region
      $region13: #{mert_l2p_forward.19} parent=11 // pred_check
        %p338 = pneg %p66
      $region14: #{mert_l2p_forward.19} parent=11 // pred_check_branch
        %340 = sbr.rel (%p338) target = $region16
      $region15: #{mert_l2p_forward.19} parent=11 // pred_region
        _
      $region16: #{mert_l2p_forward.19} parent=11 // pred_fallthru
        _
      // Predicated region
      $region17: #{mert_l2p_forward.19} parent=11 // pred_check
        %p341 = pneg %p87
      $region18: #{mert_l2p_forward.19} parent=11 // pred_check_branch
        %343 = sbr.rel (%p341) target = $region20
      $region19: #{mert_l2p_forward.19} parent=11 // pred_region
        _
      $region20: #{mert_l2p_forward.19} parent=11 // pred_fallthru
        _
      // Predicated region
      $region21: #{mert_l2p_forward.19} parent=11 // pred_check
        %p344 = pneg %p108
      $region22: #{mert_l2p_forward.19} parent=11 // pred_check_branch
        %346 = sbr.rel (%p344) target = $region24
      $region23: #{mert_l2p_forward.19} parent=11 // pred_region
        _
      $region24: #{mert_l2p_forward.19} parent=11 // pred_fallthru
        _
      // Predicated region
      $region25: #{mert_l2p_forward.19} parent=11 // pred_check
        %p347 = pneg %p129
      $region26: #{mert_l2p_forward.19} parent=11 // pred_check_branch
        %349 = sbr.rel (%p347) target = $region28
      $region27: #{mert_l2p_forward.19} parent=11 // pred_region
        _
      $region28: #{mert_l2p_forward.19} parent=11 // pred_fallthru
        _
      // Predicated region
      $region29: #{mert_l2p_forward.19} parent=11 // pred_check
        %p350 = pneg %p150
      $region30: #{mert_l2p_forward.19} parent=11 // pred_check_branch
        %352 = sbr.rel (%p350) target = $region32
      $region31: #{mert_l2p_forward.19} parent=11 // pred_region
        _
      $region32: #{mert_l2p_forward.19} parent=11 // pred_fallthru
        _
      // Predicated region
      $region33: #{mert_l2p_forward.19} parent=11 // pred_check
        %p353 = pneg %p171
      $region34: #{mert_l2p_forward.19} parent=11 // pred_check_branch
        %355 = sbr.rel (%p353) target = $region36
      $region35: #{mert_l2p_forward.19} parent=11 // pred_region
        _
      $region36: #{mert_l2p_forward.19} parent=11 // pred_fallthru
        _
      // Predicated region
      $region37: #{mert_l2p_forward.19} parent=11 // pred_check
        %p356 = pneg %p192
      $region38: #{mert_l2p_forward.19} parent=11 // pred_check_branch
        %358 = sbr.rel (%p356) target = $region40
      $region39: #{mert_l2p_forward.19} parent=11 // pred_region
        _
      $region40: #{mert_l2p_forward.19} parent=11 // pred_fallthru
        _
      // Predicated region
      $region41: #{mert_l2p_forward.19} parent=11 // pred_check
        %p359 = pneg %p213
      $region42: #{mert_l2p_forward.19} parent=11 // pred_check_branch
        %361 = sbr.rel (%p359) target = $region44
      $region43: #{mert_l2p_forward.19} parent=11 // pred_region
        _
      $region44: #{mert_l2p_forward.19} parent=11 // pred_fallthru
        _
      // Predicated region
      $region45: #{mert_l2p_forward.19} parent=11 // pred_check
        %p362 = pneg %p234
      $region46: #{mert_l2p_forward.19} parent=11 // pred_check_branch
        %364 = sbr.rel (%p362) target = $region48
      $region47: #{mert_l2p_forward.19} parent=11 // pred_region
        _
      $region48: #{mert_l2p_forward.19} parent=11 // pred_fallthru
        _
      // Predicated region
      $region49: #{mert_l2p_forward.19} parent=11 // pred_check
        %p365 = pneg %p255
      $region50: #{mert_l2p_forward.19} parent=11 // pred_check_branch
        %367 = sbr.rel (%p365) target = $region52
      $region51: #{mert_l2p_forward.19} parent=11 // pred_region
        _
      $region52: #{mert_l2p_forward.19} parent=11 // pred_fallthru
        _
      // Predicated region
      $region53: #{mert_l2p_forward.19} parent=11 // pred_check
        %p368 = pneg %p276
      $region54: #{mert_l2p_forward.19} parent=11 // pred_check_branch
        %370 = sbr.rel (%p368) target = $region56
      $region55: #{mert_l2p_forward.19} parent=11 // pred_region
        _
      $region56: #{mert_l2p_forward.19} parent=11 // pred_fallthru
        _
      // Predicated region
      $region57: #{mert_l2p_forward.19} parent=11 // pred_check
        %p371 = pneg %p297
      $region58: #{mert_l2p_forward.19} parent=11 // pred_check_branch
        %373 = sbr.rel (%p371) target = $region60
      $region59: #{mert_l2p_forward.19} parent=11 // pred_region
        _
      $region60: #{mert_l2p_forward.19} parent=11 // pred_fallthru
        _
    $region12: #{mert_l2p_forward.19} parent=5 // pred_fallthru
      _
    %p374 = scmp.lt.s32.totalorder %s19, 2
    // Predicated region
    $region61: #{mert_l2p_forward.19} parent=5 // pred_check
      %p375 = pneg %p374
    $region62: #{mert_l2p_forward.19} parent=5 // pred_check_branch
      %377 = sbr.rel (%p375) target = $region64
    $region63: #{mert_l2p_forward.19} parent=5 // pred_region
      // Predicated region
      $region65: #{mert_l2p_forward.19} parent=63 // pred_check
        %p378 = pneg %p39
      $region66: #{mert_l2p_forward.19} parent=63 // pred_check_branch
        %380 = sbr.rel (%p378) target = $region68
      $region67: #{mert_l2p_forward.19} parent=63 // pred_region
        %p381 = scmp.lt.s32.totalorder %s19, 1
        %s382 = scalar_select %p381, %s19, 1
        %s383 = smul.addr %s382, 5
        %s384 = smul.addr %s383, 8
        %s385 = scalar_lea.vmem %s0, %s384
      $region68: #{mert_l2p_forward.19} parent=63 // pred_fallthru
        _
    $region64: #{mert_l2p_forward.19} parent=5 // pred_fallthru
      _
    %p386 = scmp.le.s32.totalorder 1, %s19
    %p387 = scmp.lt.s32.totalorder %s19, 3
    %p388 = pnand %p386, %p387
    %p389 = pneg %p388
    // Predicated region
    $region69: #{mert_l2p_forward.19} parent=5 // pred_check
      _
    $region70: #{mert_l2p_forward.19} parent=5 // pred_check_branch
      %391 = sbr.rel (%p388) target = $region72
    $region71: #{mert_l2p_forward.19} parent=5 // pred_region
      %s392 = ssub.s32 %s19, 1
      %p393 = scmp.lt.s32.totalorder %s24, 1
      %s394 = scalar_select %p393, %s24, 1
      %s395 = smul.addr %s394, 5
      %s396 = smul.addr %s395, 8
      %s397 = scalar_lea.vmem %s0, %s396
      %p398 = pneg %p45
      %p399 = pneg %p42
      %p400 = pneg %p66
      %p401 = pneg %p63
      %p402 = pneg %p87
      %p403 = pneg %p84
      %p404 = pneg %p108
      %p405 = pneg %p105
      %p406 = pneg %p129
      %p407 = pneg %p126
      %p408 = pneg %p150
      %p409 = pneg %p147
      %p410 = pneg %p171
      %p411 = pneg %p168
      %p412 = pneg %p192
      %p413 = pneg %p189
      %p414 = pneg %p213
      %p415 = pneg %p210
      %p416 = pneg %p234
      %p417 = pneg %p231
      %p418 = pneg %p255
      %p419 = pneg %p252
      %p420 = pneg %p276
      %p421 = pneg %p273
      %p422 = pneg %p297
      %p423 = pneg %p294
      %p424 = pneg %p323
      %p425 = pneg %p320
      %p426 = scmp.lt.s32.totalorder %s24, 1
      %s427 = scalar_select %p426, %s24, 1
      %s428 = smul.addr %s427, 5
      %s429 = smul.addr %s428, 8
      %s430 = scalar_lea.vmem %s13, %s429
      %p431 = scmp.lt.s32.totalorder %s24, 1
      %s432 = scalar_select %p431, %s24, 1
      %s433 = smul.addr %s432, 5
      %s434 = smul.addr %s433, 8
      %s435 = scalar_lea.vmem %s0, %s434
      %p436 = scmp.lt.s32.totalorder %s24, 1
      %s437 = scalar_select %p436, %s24, 1
      %s438 = smul.addr %s437, 5
      %s439 = smul.addr %s438, 8
      %s440 = scalar_lea.vmem %s13, %s439
      %v441 = vld [vmem:[%s435] sm:$0xff]
      %v442 = vld [vmem:[%s435 + $0x8] sm:$0xff]
      %v443 = vld [vmem:[%s435 + $0x10] sm:$0xff]
      %v444 = vld [vmem:[%s435 + $0x18] sm:$0xff]
      %v445 = vld [vmem:[%s435 + $0x20] sm:$0xff]
      %v446 = vld [vmem:[%s1] sm:$0xff]
      %v447 = vld [vmem:[%s1 + $0x8] sm:$0xff]
      %v448 = vld [vmem:[%s1 + $0x10] sm:$0xff]
      %v449 = vld [vmem:[%s1 + $0x18] sm:$0xff]
      %v450 = vld [vmem:[%s2] sm:$0x1]
      %v452 = vlaneseq
      %v453 = vshrl.u32 %v452, 7
      %v454 = vsub.s32 0, %v453
      %v455 = vrot.slane %v450, %v454
      %vm457 = vcmask 261120
      %v459 = vsel %vm457, %v441, 0
      %v462 = vsel %vm457, %v442, 0
      %v465 = vsel %vm457, %v443, 0
      %v468 = vsel %vm457, %v444, 0
      %v471 = vsel %vm457, %v445, 0
      %473 = vmatprep.subr.mxu0 0.0
      %474 = vmatpush1.msra.mxu0 0.0
      %475 = vmatprep.subr.mxu0 0.0
      %476 = vmatpush1.msra.mxu0 0.0
      %477 = vmatprep.subr.mxu0 0.0
      %478 = vmatpush1.msra.mxu0 0.0
      %479 = vmatprep.subr.mxu0 0.0
      %480 = vmatpush1.msra.mxu0 0.0
      %481 = vmatprep.subr.mxu0 0.0
      %482 = vmatpush1.msra.mxu0 0.0
      %483 = vmatprep.subr.mxu0 0.0
      %484 = vmatpush1.msra.mxu0 0.0
      %485 = vmatprep.subr.mxu0 0.0
      %486 = vmatpush1.msra.mxu0 0.0
      %487 = vmatprep.subr.mxu0 0.0
      %488 = vmatpush1.msra.mxu0 0.0
      %489 = vmatprep.subr.mxu0 0.0
      %490 = vmatpush1.msra.mxu0 0.0
      %491 = vmatprep.subr.mxu0 0.0
      %492 = vmatpush1.msra.mxu0 0.0
      %493 = vmatprep.subr.mxu0 0.0
      %494 = vmatpush1.msra.mxu0 0.0
      %495 = vmatprep.subr.mxu0 0.0
      %496 = vmatpush1.msra.mxu0 0.0
      %497 = vmatprep.subr.mxu0 0.0
      %498 = vmatpush1.msra.mxu0 %v449
      %499 = vmatprep.subr.mxu0 0.0
      %500 = vmatpush1.msra.mxu0 %v448
      %501 = vmatprep.subr.mxu0 0.0
      %502 = vmatpush1.msra.mxu0 %v447
      %503 = vmatprep.subr.mxu0 0.0
      %504 = vmatpush1.msra.mxu0 %v446
      %505 = vmatprep.subr.mxu0 0.0
      %506 = vmatpush2.msra.mxu0 0.0
      %507 = vmatprep.subr.mxu0 0.0
      %508 = vmatpush2.msra.mxu0 0.0
      %509 = vmatprep.subr.mxu0 0.0
      %510 = vmatpush2.msra.mxu0 0.0
      %511 = vmatprep.subr.mxu0 0.0
      %512 = vmatpush2.msra.mxu0 0.0
      %513 = vmatprep.subr.mxu0 0.0
      %514 = vmatpush2.msra.mxu0 0.0
      %515 = vmatprep.subr.mxu0 0.0
      %516 = vmatpush2.msra.mxu0 0.0
      %517 = vmatprep.subr.mxu0 0.0
      %518 = vmatpush2.msra.mxu0 0.0
      %519 = vmatprep.subr.mxu0 0.0
      %520 = vmatpush2.msra.mxu0 0.0
      %521 = vmatprep.subr.mxu0 0.0
      %522 = vmatpush2.msra.mxu0 0.0
      %523 = vmatprep.subr.mxu0 0.0
      %524 = vmatpush2.msra.mxu0 0.0
      %525 = vmatprep.subr.mxu0 0.0
      %526 = vmatpush2.msra.mxu0 0.0
      %527 = vmatprep.subr.mxu0 0.0
      %528 = vmatpush2.msra.mxu0 0.0
      %529 = vmatprep.subr.mxu0 0.0
      %530 = vmatpush2.msra.mxu0 0.0
      %531 = vmatprep.subr.mxu0 0.0
      %532 = vmatpush2.msra.mxu0 0.0
      %533 = vmatprep.subr.mxu0 0.0
      %534 = vmatpush2.msra.mxu0 0.0
      %535 = vmatprep.subr.mxu0 0.0
      %536 = vmatpush2.msra.mxu0 0.0
      %537 = vmatprep.mubr.f32.mxu0 0.0
      %538 = vmatmul.mubr.f32.gmra.mxu0 %v459
      %v539 = vpop.f32.mrf.mxu0
      %v540 = vadd.f32 %v455, %v539
      %v541 = vpop.f32.mrf.mxu0
      %542 = vmatprep.mubr.f32.mxu0 0.0
      %543 = vmatmul.mubr.f32.gmra.mxu0 %v462
      %v544 = vpop.f32.mrf.mxu0
      %v545 = vadd.f32 %v455, %v544
      %v546 = vpop.f32.mrf.mxu0
      %547 = vmatprep.mubr.f32.mxu0 0.0
      %548 = vmatmul.mubr.f32.gmra.mxu0 %v465
      %v549 = vpop.f32.mrf.mxu0
      %v550 = vadd.f32 %v455, %v549
      %v551 = vpop.f32.mrf.mxu0
      %552 = vmatprep.mubr.f32.mxu0 0.0
      %553 = vmatmul.mubr.f32.gmra.mxu0 %v468
      %v554 = vpop.f32.mrf.mxu0
      %v555 = vadd.f32 %v455, %v554
      %v556 = vpop.f32.mrf.mxu0
      %557 = vmatprep.mubr.f32.mxu0 0.0
      %558 = vmatmul.mubr.f32.gmra.mxu0 %v471
      %v559 = vpop.f32.mrf.mxu0
      %v560 = vadd.f32 %v455, %v559
      %v561 = vpop.f32.mrf.mxu0
      %562 = vdwg.mxu0
      %568 = vrot.lane.b32.xlu0 %v540, 96
      %v569 = vpop.permute.xlu0 %568
      %570 = vrot.lane.b32.xlu0 %v545, 96
      %v571 = vpop.permute.xlu0 %570
      %572 = vrot.lane.b32.xlu0 %v550, 96
      %v573 = vpop.permute.xlu0 %572
      %574 = vrot.lane.b32.xlu0 %v555, 96
      %v575 = vpop.permute.xlu0 %574
      %576 = vrot.lane.b32.xlu0 %v560, 96
      %v577 = vpop.permute.xlu0 %576
      %vm578 = vcmask 64512
      %v579 = vsel %vm578, %v540, 0
      %v581 = vsel %vm578, %v545, 0
      %v583 = vsel %vm578, %v550, 0
      %v585 = vsel %vm578, %v555, 0
      %v587 = vsel %vm578, %v560, 0
      %v589 = vsel %vm578, %v569, 0
      %v591 = vsel %vm578, %v571, 0
      %v593 = vsel %vm578, %v573, 0
      %v595 = vsel %vm578, %v575, 0
      %v597 = vsel %vm578, %v577, 0
      %599 = vmatprep.subr.mxu0 0.0
      %600 = vmatpush1.xpose.msra.mxu0 0.0
      %601 = vmatprep.subr.mxu0 0.0
      %602 = vmatpush1.xpose.msra.mxu0 0.0
      %603 = vmatprep.subr.mxu0 0.0
      %604 = vmatpush1.xpose.msra.mxu0 0.0
      %605 = vmatprep.subr.mxu0 0.0
      %606 = vmatpush1.xpose.msra.mxu0 0.0
      %607 = vmatprep.subr.mxu0 0.0
      %608 = vmatpush1.xpose.msra.mxu0 0.0
      %609 = vmatprep.subr.mxu0 0.0
      %610 = vmatpush1.xpose.msra.mxu0 0.0
      %611 = vmatprep.subr.mxu0 0.0
      %612 = vmatpush1.xpose.msra.mxu0 0.0
      %613 = vmatprep.subr.mxu0 0.0
      %614 = vmatpush1.xpose.msra.mxu0 0.0
      %615 = vmatprep.subr.mxu0 0.0
      %616 = vmatpush1.xpose.msra.mxu0 0.0
      %617 = vmatprep.subr.mxu0 0.0
      %618 = vmatpush1.xpose.msra.mxu0 0.0
      %619 = vmatprep.subr.mxu0 0.0
      %620 = vmatpush1.xpose.msra.mxu0 0.0
      %621 = vmatprep.subr.mxu0 0.0
      %622 = vmatpush1.xpose.msra.mxu0 %v597
      %623 = vmatprep.subr.mxu0 0.0
      %624 = vmatpush1.xpose.msra.mxu0 %v595
      %625 = vmatprep.subr.mxu0 0.0
      %626 = vmatpush1.xpose.msra.mxu0 %v593
      %627 = vmatprep.subr.mxu0 0.0
      %628 = vmatpush1.xpose.msra.mxu0 %v591
      %629 = vmatprep.subr.mxu0 0.0
      %630 = vmatpush1.xpose.msra.mxu0 %v589
      %631 = vmatprep.subr.mxu0 0.0
      %632 = vmatpush2.xpose.msra.mxu0 0.0
      %633 = vmatprep.subr.mxu0 0.0
      %634 = vmatpush2.xpose.msra.mxu0 0.0
      %635 = vmatprep.subr.mxu0 0.0
      %636 = vmatpush2.xpose.msra.mxu0 0.0
      %637 = vmatprep.subr.mxu0 0.0
      %638 = vmatpush2.xpose.msra.mxu0 0.0
      %639 = vmatprep.subr.mxu0 0.0
      %640 = vmatpush2.xpose.msra.mxu0 0.0
      %641 = vmatprep.subr.mxu0 0.0
      %642 = vmatpush2.xpose.msra.mxu0 0.0
      %643 = vmatprep.subr.mxu0 0.0
      %644 = vmatpush2.xpose.msra.mxu0 0.0
      %645 = vmatprep.subr.mxu0 0.0
      %646 = vmatpush2.xpose.msra.mxu0 0.0
      %647 = vmatprep.subr.mxu0 0.0
      %648 = vmatpush2.xpose.msra.mxu0 0.0
      %649 = vmatprep.subr.mxu0 0.0
      %650 = vmatpush2.xpose.msra.mxu0 0.0
      %651 = vmatprep.subr.mxu0 0.0
      %652 = vmatpush2.xpose.msra.mxu0 0.0
      %653 = vmatprep.subr.mxu0 0.0
      %654 = vmatpush2.xpose.msra.mxu0 0.0
      %655 = vmatprep.subr.mxu0 0.0
      %656 = vmatpush2.xpose.msra.mxu0 0.0
      %657 = vmatprep.subr.mxu0 0.0
      %658 = vmatpush2.xpose.msra.mxu0 0.0
      %659 = vmatprep.subr.mxu0 0.0
      %660 = vmatpush2.xpose.msra.mxu0 0.0
      %661 = vmatprep.subr.mxu0 0.0
      %662 = vmatpush2.xpose.msra.mxu0 0.0
      %663 = vmatprep.mubr.f32.mxu0 0.0
      %664 = vmatmul.mubr.f32.gmra.mxu0 %v579
      %v665 = vpop.f32.mrf.mxu0
      %v666 = vadd.f32 0.0, %v665
      %v667 = vpop.f32.mrf.mxu0
      %668 = vmatprep.mubr.f32.mxu0 0.0
      %669 = vmatmul.mubr.f32.gmra.mxu0 %v581
      %v670 = vpop.f32.mrf.mxu0
      %v671 = vadd.f32 0.0, %v670
      %v672 = vpop.f32.mrf.mxu0
      %673 = vmatprep.mubr.f32.mxu0 0.0
      %674 = vmatmul.mubr.f32.gmra.mxu0 %v583
      %v675 = vpop.f32.mrf.mxu0
      %v676 = vadd.f32 0.0, %v675
      %v677 = vpop.f32.mrf.mxu0
      %678 = vmatprep.mubr.f32.mxu0 0.0
      %679 = vmatmul.mubr.f32.gmra.mxu0 %v585
      %v680 = vpop.f32.mrf.mxu0
      %v681 = vadd.f32 0.0, %v680
      %v682 = vpop.f32.mrf.mxu0
      %683 = vmatprep.mubr.f32.mxu0 0.0
      %684 = vmatmul.mubr.f32.gmra.mxu0 %v587
      %v685 = vpop.f32.mrf.mxu0
      %v686 = vadd.f32 0.0, %v685
      %v687 = vpop.f32.mrf.mxu0
      %688 = vdwg.mxu0
      %v689 = vmul.f32 %v666, 0.35355338
      %v690 = vmul.f32 %v671, 0.35355338
      %v691 = vmul.f32 %v676, 0.35355338
      %v692 = vmul.f32 %v681, 0.35355338
      %v693 = vmul.f32 %v686, 0.35355338
      %vm694 = vcmask 326656
      %v695 = vsel %vm694, %v689, -inf
      %696 = vmax.xlane.f32.xlu0 %v695
      %v697 = vpop.xlane.xlu0 %696
      %v698 = vsel %vm694, %v690, -inf
      %699 = vmax.xlane.f32.xlu0 %v698
      %v700 = vpop.xlane.xlu0 %699
      %v701 = vsel %vm694, %v691, -inf
      %702 = vmax.xlane.f32.xlu0 %v701
      %v703 = vpop.xlane.xlu0 %702
      %v704 = vsel %vm694, %v692, -inf
      %705 = vmax.xlane.f32.xlu0 %v704
      %v706 = vpop.xlane.xlu0 %705
      %v707 = vsel %vm694, %v693, -inf
      %708 = vmax.xlane.f32.xlu0 %v707
      %v709 = vpop.xlane.xlu0 %708
      %v710 = vsub.f32 %v689, %v697
      %v711 = vsub.f32 %v690, %v700
      %v712 = vsub.f32 %v691, %v703
      %v713 = vsub.f32 %v692, %v706
      %v714 = vsub.f32 %v693, %v709
      %v715 = vmul.f32 %v710, 1.442695
      %v716 = vpow.pop %v715
      %v717 = vmul.f32 %v711, 1.442695
      %v718 = vpow.pop %v717
      %v719 = vmul.f32 %v712, 1.442695
      %v720 = vpow.pop %v719
      %v721 = vmul.f32 %v713, 1.442695
      %v722 = vpow.pop %v721
      %v723 = vmul.f32 %v714, 1.442695
      %v724 = vpow.pop %v723
      %v725 = vsel %vm694, %v716, 0.0
      %726 = vadd.xlane.f32.xlu0 %v725
      %v727 = vpop.xlane.xlu0 %726
      %v728 = vsel %vm694, %v718, 0.0
      %729 = vadd.xlane.f32.xlu0 %v728
      %v730 = vpop.xlane.xlu0 %729
      %v731 = vsel %vm694, %v720, 0.0
      %732 = vadd.xlane.f32.xlu0 %v731
      %v733 = vpop.xlane.xlu0 %732
      %v734 = vsel %vm694, %v722, 0.0
      %735 = vadd.xlane.f32.xlu0 %v734
      %v736 = vpop.xlane.xlu0 %735
      %v737 = vsel %vm694, %v724, 0.0
      %738 = vadd.xlane.f32.xlu0 %v737
      %v739 = vpop.xlane.xlu0 %738
      %v740 = vrcp.pop %v727
      %v741 = vrcp.pop %v730
      %v742 = vrcp.pop %v733
      %v743 = vrcp.pop %v736
      %v744 = vrcp.pop %v739
      %v745 = vmul.f32 %v716, %v740
      %v746 = vmul.f32 %v718, %v741
      %v747 = vmul.f32 %v720, %v742
      %v748 = vmul.f32 %v722, %v743
      %v749 = vmul.f32 %v724, %v744
      %750 = vrot.lane.b32.xlu0 %v540, 64
      %v751 = vpop.permute.xlu0 %750
      %752 = vrot.lane.b32.xlu0 %v545, 64
      %v753 = vpop.permute.xlu0 %752
      %754 = vrot.lane.b32.xlu0 %v550, 64
      %v755 = vpop.permute.xlu0 %754
      %756 = vrot.lane.b32.xlu0 %v555, 64
      %v757 = vpop.permute.xlu0 %756
      %758 = vrot.lane.b32.xlu0 %v560, 64
      %v759 = vpop.permute.xlu0 %758
      %v766 = vsel %vm694, %v745, 0
      %v769 = vsel %vm694, %v746, 0
      %v772 = vsel %vm694, %v747, 0
      %v775 = vsel %vm694, %v748, 0
      %v778 = vsel %vm694, %v749, 0
      %780 = vmatprep.subr.mxu0 0.0
      %781 = vmatpush1.msra.mxu0 0.0
      %782 = vmatprep.subr.mxu0 0.0
      %783 = vmatpush1.msra.mxu0 0.0
      %784 = vmatprep.subr.mxu0 0.0
      %785 = vmatpush1.msra.mxu0 0.0
      %786 = vmatprep.subr.mxu0 0.0
      %787 = vmatpush1.msra.mxu0 0.0
      %788 = vmatprep.subr.mxu0 0.0
      %789 = vmatpush1.msra.mxu0 0.0
      %790 = vmatprep.subr.mxu0 0.0
      %791 = vmatpush1.msra.mxu0 0.0
      %792 = vmatprep.subr.mxu0 0.0
      %793 = vmatpush1.msra.mxu0 0.0
      %794 = vmatprep.subr.mxu0 0.0
      %795 = vmatpush1.msra.mxu0 0.0
      %796 = vmatprep.subr.mxu0 0.0
      %797 = vmatpush1.msra.mxu0 0.0
      %798 = vmatprep.subr.mxu0 0.0
      %799 = vmatpush1.msra.mxu0 0.0
      %800 = vmatprep.subr.mxu0 0.0
      %801 = vmatpush1.msra.mxu0 0.0
      %802 = vmatprep.subr.mxu0 0.0
      %803 = vmatpush1.msra.mxu0 %v759
      %804 = vmatprep.subr.mxu0 0.0
      %805 = vmatpush1.msra.mxu0 %v757
      %806 = vmatprep.subr.mxu0 0.0
      %807 = vmatpush1.msra.mxu0 %v755
      %808 = vmatprep.subr.mxu0 0.0
      %809 = vmatpush1.msra.mxu0 %v753
      %810 = vmatprep.subr.mxu0 0.0
      %811 = vmatpush1.msra.mxu0 %v751
      %812 = vmatprep.subr.mxu0 0.0
      %813 = vmatpush2.msra.mxu0 0.0
      %814 = vmatprep.subr.mxu0 0.0
      %815 = vmatpush2.msra.mxu0 0.0
      %816 = vmatprep.subr.mxu0 0.0
      %817 = vmatpush2.msra.mxu0 0.0
      %818 = vmatprep.subr.mxu0 0.0
      %819 = vmatpush2.msra.mxu0 0.0
      %820 = vmatprep.subr.mxu0 0.0
      %821 = vmatpush2.msra.mxu0 0.0
      %822 = vmatprep.subr.mxu0 0.0
      %823 = vmatpush2.msra.mxu0 0.0
      %824 = vmatprep.subr.mxu0 0.0
      %825 = vmatpush2.msra.mxu0 0.0
      %826 = vmatprep.subr.mxu0 0.0
      %827 = vmatpush2.msra.mxu0 0.0
      %828 = vmatprep.subr.mxu0 0.0
      %829 = vmatpush2.msra.mxu0 0.0
      %830 = vmatprep.subr.mxu0 0.0
      %831 = vmatpush2.msra.mxu0 0.0
      %832 = vmatprep.subr.mxu0 0.0
      %833 = vmatpush2.msra.mxu0 0.0
      %834 = vmatprep.subr.mxu0 0.0
      %835 = vmatpush2.msra.mxu0 0.0
      %836 = vmatprep.subr.mxu0 0.0
      %837 = vmatpush2.msra.mxu0 0.0
      %838 = vmatprep.subr.mxu0 0.0
      %839 = vmatpush2.msra.mxu0 0.0
      %840 = vmatprep.subr.mxu0 0.0
      %841 = vmatpush2.msra.mxu0 0.0
      %842 = vmatprep.subr.mxu0 0.0
      %843 = vmatpush2.msra.mxu0 0.0
      %844 = vmatprep.mubr.f32.mxu0 0.0
      %845 = vmatmul.mubr.f32.gmra.mxu0 %v766
      %v846 = vpop.f32.mrf.mxu0
      %v847 = vadd.f32 0.0, %v846
      %v848 = vpop.f32.mrf.mxu0
      %849 = vmatprep.mubr.f32.mxu0 0.0
      %850 = vmatmul.mubr.f32.gmra.mxu0 %v769
      %v851 = vpop.f32.mrf.mxu0
      %v852 = vadd.f32 0.0, %v851
      %v853 = vpop.f32.mrf.mxu0
      %854 = vmatprep.mubr.f32.mxu0 0.0
      %855 = vmatmul.mubr.f32.gmra.mxu0 %v772
      %v856 = vpop.f32.mrf.mxu0
      %v857 = vadd.f32 0.0, %v856
      %v858 = vpop.f32.mrf.mxu0
      %859 = vmatprep.mubr.f32.mxu0 0.0
      %860 = vmatmul.mubr.f32.gmra.mxu0 %v775
      %v861 = vpop.f32.mrf.mxu0
      %v862 = vadd.f32 0.0, %v861
      %v863 = vpop.f32.mrf.mxu0
      %864 = vmatprep.mubr.f32.mxu0 0.0
      %865 = vmatmul.mubr.f32.gmra.mxu0 %v778
      %v866 = vpop.f32.mrf.mxu0
      %v867 = vadd.f32 0.0, %v866
      %v868 = vpop.f32.mrf.mxu0
      %869 = vdwg.mxu0
      %v870 = vld [vmem:[%s3] sm:$0xff]
      %871 = vrot.lane.b32.xlu0 %v540, 120
      %v872 = vpop.permute.xlu0 %871
      %873 = vrot.lane.b32.xlu0 %v545, 120
      %v874 = vpop.permute.xlu0 %873
      %875 = vrot.lane.b32.xlu0 %v550, 120
      %v876 = vpop.permute.xlu0 %875
      %877 = vrot.lane.b32.xlu0 %v555, 120
      %v878 = vpop.permute.xlu0 %877
      %879 = vrot.lane.b32.xlu0 %v560, 120
      %v880 = vpop.permute.xlu0 %879
      %881 = vrot.lane.b32.xlu0 %v540, 88
      %v882 = vpop.permute.xlu0 %881
      %883 = vrot.lane.b32.xlu0 %v545, 88
      %v884 = vpop.permute.xlu0 %883
      %885 = vrot.lane.b32.xlu0 %v550, 88
      %v886 = vpop.permute.xlu0 %885
      %887 = vrot.lane.b32.xlu0 %v555, 88
      %v888 = vpop.permute.xlu0 %887
      %889 = vrot.lane.b32.xlu0 %v560, 88
      %v890 = vpop.permute.xlu0 %889
      %v891 = vsel %vm578, %v872, 0
      %v893 = vsel %vm578, %v874, 0
      %v895 = vsel %vm578, %v876, 0
      %v897 = vsel %vm578, %v878, 0
      %v899 = vsel %vm578, %v880, 0
      %v901 = vsel %vm578, %v882, 0
      %v903 = vsel %vm578, %v884, 0
      %v905 = vsel %vm578, %v886, 0
      %v907 = vsel %vm578, %v888, 0
      %v909 = vsel %vm578, %v890, 0
      %911 = vmatprep.subr.mxu0 0.0
      %912 = vmatpush1.xpose.msra.mxu0 0.0
      %913 = vmatprep.subr.mxu0 0.0
      %914 = vmatpush1.xpose.msra.mxu0 0.0
      %915 = vmatprep.subr.mxu0 0.0
      %916 = vmatpush1.xpose.msra.mxu0 0.0
      %917 = vmatprep.subr.mxu0 0.0
      %918 = vmatpush1.xpose.msra.mxu0 0.0
      %919 = vmatprep.subr.mxu0 0.0
      %920 = vmatpush1.xpose.msra.mxu0 0.0
      %921 = vmatprep.subr.mxu0 0.0
      %922 = vmatpush1.xpose.msra.mxu0 0.0
      %923 = vmatprep.subr.mxu0 0.0
      %924 = vmatpush1.xpose.msra.mxu0 0.0
      %925 = vmatprep.subr.mxu0 0.0
      %926 = vmatpush1.xpose.msra.mxu0 0.0
      %927 = vmatprep.subr.mxu0 0.0
      %928 = vmatpush1.xpose.msra.mxu0 0.0
      %929 = vmatprep.subr.mxu0 0.0
      %930 = vmatpush1.xpose.msra.mxu0 0.0
      %931 = vmatprep.subr.mxu0 0.0
      %932 = vmatpush1.xpose.msra.mxu0 0.0
      %933 = vmatprep.subr.mxu0 0.0
      %934 = vmatpush1.xpose.msra.mxu0 %v909
      %935 = vmatprep.subr.mxu0 0.0
      %936 = vmatpush1.xpose.msra.mxu0 %v907
      %937 = vmatprep.subr.mxu0 0.0
      %938 = vmatpush1.xpose.msra.mxu0 %v905
      %939 = vmatprep.subr.mxu0 0.0
      %940 = vmatpush1.xpose.msra.mxu0 %v903
      %941 = vmatprep.subr.mxu0 0.0
      %942 = vmatpush1.xpose.msra.mxu0 %v901
      %943 = vmatprep.subr.mxu0 0.0
      %944 = vmatpush2.xpose.msra.mxu0 0.0
      %945 = vmatprep.subr.mxu0 0.0
      %946 = vmatpush2.xpose.msra.mxu0 0.0
      %947 = vmatprep.subr.mxu0 0.0
      %948 = vmatpush2.xpose.msra.mxu0 0.0
      %949 = vmatprep.subr.mxu0 0.0
      %950 = vmatpush2.xpose.msra.mxu0 0.0
      %951 = vmatprep.subr.mxu0 0.0
      %952 = vmatpush2.xpose.msra.mxu0 0.0
      %953 = vmatprep.subr.mxu0 0.0
      %954 = vmatpush2.xpose.msra.mxu0 0.0
      %955 = vmatprep.subr.mxu0 0.0
      %956 = vmatpush2.xpose.msra.mxu0 0.0
      %957 = vmatprep.subr.mxu0 0.0
      %958 = vmatpush2.xpose.msra.mxu0 0.0
      %959 = vmatprep.subr.mxu0 0.0
      %960 = vmatpush2.xpose.msra.mxu0 0.0
      %961 = vmatprep.subr.mxu0 0.0
      %962 = vmatpush2.xpose.msra.mxu0 0.0
      %963 = vmatprep.subr.mxu0 0.0
      %964 = vmatpush2.xpose.msra.mxu0 0.0
      %965 = vmatprep.subr.mxu0 0.0
      %966 = vmatpush2.xpose.msra.mxu0 0.0
      %967 = vmatprep.subr.mxu0 0.0
      %968 = vmatpush2.xpose.msra.mxu0 0.0
      %969 = vmatprep.subr.mxu0 0.0
      %970 = vmatpush2.xpose.msra.mxu0 0.0
      %971 = vmatprep.subr.mxu0 0.0
      %972 = vmatpush2.xpose.msra.mxu0 0.0
      %973 = vmatprep.subr.mxu0 0.0
      %974 = vmatpush2.xpose.msra.mxu0 0.0
      %975 = vmatprep.mubr.f32.mxu0 0.0
      %976 = vmatmul.mubr.f32.gmra.mxu0 %v891
      %v977 = vpop.f32.mrf.mxu0
      %v978 = vadd.f32 0.0, %v977
      %v979 = vpop.f32.mrf.mxu0
      %980 = vmatprep.mubr.f32.mxu0 0.0
      %981 = vmatmul.mubr.f32.gmra.mxu0 %v893
      %v982 = vpop.f32.mrf.mxu0
      %v983 = vadd.f32 0.0, %v982
      %v984 = vpop.f32.mrf.mxu0
      %985 = vmatprep.mubr.f32.mxu0 0.0
      %986 = vmatmul.mubr.f32.gmra.mxu0 %v895
      %v987 = vpop.f32.mrf.mxu0
      %v988 = vadd.f32 0.0, %v987
      %v989 = vpop.f32.mrf.mxu0
      %990 = vmatprep.mubr.f32.mxu0 0.0
      %991 = vmatmul.mubr.f32.gmra.mxu0 %v897
      %v992 = vpop.f32.mrf.mxu0
      %v993 = vadd.f32 0.0, %v992
      %v994 = vpop.f32.mrf.mxu0
      %995 = vmatprep.mubr.f32.mxu0 0.0
      %996 = vmatmul.mubr.f32.gmra.mxu0 %v899
      %v997 = vpop.f32.mrf.mxu0
      %v998 = vadd.f32 0.0, %v997
      %v999 = vpop.f32.mrf.mxu0
      %1000 = vdwg.mxu0
      %v1001 = vmul.f32 %v978, 0.35355338
      %v1002 = vmul.f32 %v983, 0.35355338
      %v1003 = vmul.f32 %v988, 0.35355338
      %v1004 = vmul.f32 %v993, 0.35355338
      %v1005 = vmul.f32 %v998, 0.35355338
      %v1006 = vsel %vm694, %v1001, -inf
      %1007 = vmax.xlane.f32.xlu0 %v1006
      %v1008 = vpop.xlane.xlu0 %1007
      %v1009 = vsel %vm694, %v1002, -inf
      %1010 = vmax.xlane.f32.xlu0 %v1009
      %v1011 = vpop.xlane.xlu0 %1010
      %v1012 = vsel %vm694, %v1003, -inf
      %1013 = vmax.xlane.f32.xlu0 %v1012
      %v1014 = vpop.xlane.xlu0 %1013
      %v1015 = vsel %vm694, %v1004, -inf
      %1016 = vmax.xlane.f32.xlu0 %v1015
      %v1017 = vpop.xlane.xlu0 %1016
      %v1018 = vsel %vm694, %v1005, -inf
      %1019 = vmax.xlane.f32.xlu0 %v1018
      %v1020 = vpop.xlane.xlu0 %1019
      %v1021 = vsub.f32 %v1001, %v1008
      %v1022 = vsub.f32 %v1002, %v1011
      %v1023 = vsub.f32 %v1003, %v1014
      %v1024 = vsub.f32 %v1004, %v1017
      %v1025 = vsub.f32 %v1005, %v1020
      %v1026 = vmul.f32 %v1021, 1.442695
      %v1027 = vpow.pop %v1026
      %v1028 = vmul.f32 %v1022, 1.442695
      %v1029 = vpow.pop %v1028
      %v1030 = vmul.f32 %v1023, 1.442695
      %v1031 = vpow.pop %v1030
      %v1032 = vmul.f32 %v1024, 1.442695
      %v1033 = vpow.pop %v1032
      %v1034 = vmul.f32 %v1025, 1.442695
      %v1035 = vpow.pop %v1034
      %v1036 = vsel %vm694, %v1027, 0.0
      %1037 = vadd.xlane.f32.xlu0 %v1036
      %v1038 = vpop.xlane.xlu0 %1037
      %v1039 = vsel %vm694, %v1029, 0.0
      %1040 = vadd.xlane.f32.xlu0 %v1039
      %v1041 = vpop.xlane.xlu0 %1040
      %v1042 = vsel %vm694, %v1031, 0.0
      %1043 = vadd.xlane.f32.xlu0 %v1042
      %v1044 = vpop.xlane.xlu0 %1043
      %v1045 = vsel %vm694, %v1033, 0.0
      %1046 = vadd.xlane.f32.xlu0 %v1045
      %v1047 = vpop.xlane.xlu0 %1046
      %v1048 = vsel %vm694, %v1035, 0.0
      %1049 = vadd.xlane.f32.xlu0 %v1048
      %v1050 = vpop.xlane.xlu0 %1049
      %v1051 = vrcp.pop %v1038
      %v1052 = vrcp.pop %v1041
      %v1053 = vrcp.pop %v1044
      %v1054 = vrcp.pop %v1047
      %v1055 = vrcp.pop %v1050
      %v1056 = vmul.f32 %v1027, %v1051
      %v1057 = vmul.f32 %v1029, %v1052
      %v1058 = vmul.f32 %v1031, %v1053
      %v1059 = vmul.f32 %v1033, %v1054
      %v1060 = vmul.f32 %v1035, %v1055
      %1061 = vrot.lane.b32.xlu0 %v540, 56
      %v1062 = vpop.permute.xlu0 %1061
      %1063 = vrot.lane.b32.xlu0 %v545, 56
      %v1064 = vpop.permute.xlu0 %1063
      %1065 = vrot.lane.b32.xlu0 %v550, 56
      %v1066 = vpop.permute.xlu0 %1065
      %1067 = vrot.lane.b32.xlu0 %v555, 56
      %v1068 = vpop.permute.xlu0 %1067
      %1069 = vrot.lane.b32.xlu0 %v560, 56
      %v1070 = vpop.permute.xlu0 %1069
      %v1077 = vsel %vm694, %v1056, 0
      %v1080 = vsel %vm694, %v1057, 0
      %v1083 = vsel %vm694, %v1058, 0
      %v1086 = vsel %vm694, %v1059, 0
      %v1089 = vsel %vm694, %v1060, 0
      %1091 = vmatprep.subr.mxu0 0.0
      %1092 = vmatpush1.msra.mxu0 0.0
      %1093 = vmatprep.subr.mxu0 0.0
      %1094 = vmatpush1.msra.mxu0 0.0
      %1095 = vmatprep.subr.mxu0 0.0
      %1096 = vmatpush1.msra.mxu0 0.0
      %1097 = vmatprep.subr.mxu0 0.0
      %1098 = vmatpush1.msra.mxu0 0.0
      %1099 = vmatprep.subr.mxu0 0.0
      %1100 = vmatpush1.msra.mxu0 0.0
      %1101 = vmatprep.subr.mxu0 0.0
      %1102 = vmatpush1.msra.mxu0 0.0
      %1103 = vmatprep.subr.mxu0 0.0
      %1104 = vmatpush1.msra.mxu0 0.0
      %1105 = vmatprep.subr.mxu0 0.0
      %1106 = vmatpush1.msra.mxu0 0.0
      %1107 = vmatprep.subr.mxu0 0.0
      %1108 = vmatpush1.msra.mxu0 0.0
      %1109 = vmatprep.subr.mxu0 0.0
      %1110 = vmatpush1.msra.mxu0 0.0
      %1111 = vmatprep.subr.mxu0 0.0
      %1112 = vmatpush1.msra.mxu0 0.0
      %1113 = vmatprep.subr.mxu0 0.0
      %1114 = vmatpush1.msra.mxu0 %v1070
      %1115 = vmatprep.subr.mxu0 0.0
      %1116 = vmatpush1.msra.mxu0 %v1068
      %1117 = vmatprep.subr.mxu0 0.0
      %1118 = vmatpush1.msra.mxu0 %v1066
      %1119 = vmatprep.subr.mxu0 0.0
      %1120 = vmatpush1.msra.mxu0 %v1064
      %1121 = vmatprep.subr.mxu0 0.0
      %1122 = vmatpush1.msra.mxu0 %v1062
      %1123 = vmatprep.subr.mxu0 0.0
      %1124 = vmatpush2.msra.mxu0 0.0
      %1125 = vmatprep.subr.mxu0 0.0
      %1126 = vmatpush2.msra.mxu0 0.0
      %1127 = vmatprep.subr.mxu0 0.0
      %1128 = vmatpush2.msra.mxu0 0.0
      %1129 = vmatprep.subr.mxu0 0.0
      %1130 = vmatpush2.msra.mxu0 0.0
      %1131 = vmatprep.subr.mxu0 0.0
      %1132 = vmatpush2.msra.mxu0 0.0
      %1133 = vmatprep.subr.mxu0 0.0
      %1134 = vmatpush2.msra.mxu0 0.0
      %1135 = vmatprep.subr.mxu0 0.0
      %1136 = vmatpush2.msra.mxu0 0.0
      %1137 = vmatprep.subr.mxu0 0.0
      %1138 = vmatpush2.msra.mxu0 0.0
      %1139 = vmatprep.subr.mxu0 0.0
      %1140 = vmatpush2.msra.mxu0 0.0
      %1141 = vmatprep.subr.mxu0 0.0
      %1142 = vmatpush2.msra.mxu0 0.0
      %1143 = vmatprep.subr.mxu0 0.0
      %1144 = vmatpush2.msra.mxu0 0.0
      %1145 = vmatprep.subr.mxu0 0.0
      %1146 = vmatpush2.msra.mxu0 0.0
      %1147 = vmatprep.subr.mxu0 0.0
      %1148 = vmatpush2.msra.mxu0 0.0
      %1149 = vmatprep.subr.mxu0 0.0
      %1150 = vmatpush2.msra.mxu0 0.0
      %1151 = vmatprep.subr.mxu0 0.0
      %1152 = vmatpush2.msra.mxu0 0.0
      %1153 = vmatprep.subr.mxu0 0.0
      %1154 = vmatpush2.msra.mxu0 0.0
      %1155 = vmatprep.mubr.f32.mxu0 0.0
      %1156 = vmatmul.mubr.f32.gmra.mxu0 %v1077
      %v1157 = vpop.f32.mrf.mxu0
      %v1158 = vadd.f32 0.0, %v1157
      %v1159 = vpop.f32.mrf.mxu0
      %1160 = vmatprep.mubr.f32.mxu0 0.0
      %1161 = vmatmul.mubr.f32.gmra.mxu0 %v1080
      %v1162 = vpop.f32.mrf.mxu0
      %v1163 = vadd.f32 0.0, %v1162
      %v1164 = vpop.f32.mrf.mxu0
      %1165 = vmatprep.mubr.f32.mxu0 0.0
      %1166 = vmatmul.mubr.f32.gmra.mxu0 %v1083
      %v1167 = vpop.f32.mrf.mxu0
      %v1168 = vadd.f32 0.0, %v1167
      %v1169 = vpop.f32.mrf.mxu0
      %1170 = vmatprep.mubr.f32.mxu0 0.0
      %1171 = vmatmul.mubr.f32.gmra.mxu0 %v1086
      %v1172 = vpop.f32.mrf.mxu0
      %v1173 = vadd.f32 0.0, %v1172
      %v1174 = vpop.f32.mrf.mxu0
      %1175 = vmatprep.mubr.f32.mxu0 0.0
      %1176 = vmatmul.mubr.f32.gmra.mxu0 %v1089
      %v1177 = vpop.f32.mrf.mxu0
      %v1178 = vadd.f32 0.0, %v1177
      %v1179 = vpop.f32.mrf.mxu0
      %1180 = vdwg.mxu0
      %v1181 = vld [vmem:[%s3 + $0x8] sm:$0xff]
      %v1183 = vsel %vm578, %v1158, 0
      %v1186 = vsel %vm578, %v1163, 0
      %v1189 = vsel %vm578, %v1168, 0
      %v1192 = vsel %vm578, %v1173, 0
      %v1195 = vsel %vm578, %v1178, 0
      %1197 = vmatprep.subr.mxu0 0.0
      %1198 = vmatpush1.msra.mxu0 0.0
      %1199 = vmatprep.subr.mxu0 0.0
      %1200 = vmatpush1.msra.mxu0 0.0
      %1201 = vmatprep.subr.mxu0 0.0
      %1202 = vmatpush1.msra.mxu0 0.0
      %1203 = vmatprep.subr.mxu0 0.0
      %1204 = vmatpush1.msra.mxu0 0.0
      %1205 = vmatprep.subr.mxu0 0.0
      %1206 = vmatpush1.msra.mxu0 0.0
      %1207 = vmatprep.subr.mxu0 0.0
      %1208 = vmatpush1.msra.mxu0 0.0
      %1209 = vmatprep.subr.mxu0 0.0
      %1210 = vmatpush1.msra.mxu0 0.0
      %1211 = vmatprep.subr.mxu0 0.0
      %1212 = vmatpush1.msra.mxu0 0.0
      %1213 = vmatprep.subr.mxu0 0.0
      %1214 = vmatpush1.msra.mxu0 0.0
      %1215 = vmatprep.subr.mxu0 0.0
      %1216 = vmatpush1.msra.mxu0 0.0
      %1217 = vmatprep.subr.mxu0 0.0
      %1218 = vmatpush1.msra.mxu0 0.0
      %1219 = vmatprep.subr.mxu0 0.0
      %1220 = vmatpush1.msra.mxu0 0.0
      %1221 = vmatprep.subr.mxu0 0.0
      %1222 = vmatpush1.msra.mxu0 0.0
      %1223 = vmatprep.subr.mxu0 0.0
      %1224 = vmatpush1.msra.mxu0 0.0
      %1225 = vmatprep.subr.mxu0 0.0
      %1226 = vmatpush1.msra.mxu0 0.0
      %1227 = vmatprep.subr.mxu0 0.0
      %1228 = vmatpush1.msra.mxu0 %v1181
      %1229 = vmatprep.subr.mxu0 0.0
      %1230 = vmatpush2.msra.mxu0 0.0
      %1231 = vmatprep.subr.mxu0 0.0
      %1232 = vmatpush2.msra.mxu0 0.0
      %1233 = vmatprep.subr.mxu0 0.0
      %1234 = vmatpush2.msra.mxu0 0.0
      %1235 = vmatprep.subr.mxu0 0.0
      %1236 = vmatpush2.msra.mxu0 0.0
      %1237 = vmatprep.subr.mxu0 0.0
      %1238 = vmatpush2.msra.mxu0 0.0
      %1239 = vmatprep.subr.mxu0 0.0
      %1240 = vmatpush2.msra.mxu0 0.0
      %1241 = vmatprep.subr.mxu0 0.0
      %1242 = vmatpush2.msra.mxu0 0.0
      %1243 = vmatprep.subr.mxu0 0.0
      %1244 = vmatpush2.msra.mxu0 0.0
      %1245 = vmatprep.subr.mxu0 0.0
      %1246 = vmatpush2.msra.mxu0 0.0
      %1247 = vmatprep.subr.mxu0 0.0
      %1248 = vmatpush2.msra.mxu0 0.0
      %1249 = vmatprep.subr.mxu0 0.0
      %1250 = vmatpush2.msra.mxu0 0.0
      %1251 = vmatprep.subr.mxu0 0.0
      %1252 = vmatpush2.msra.mxu0 0.0
      %1253 = vmatprep.subr.mxu0 0.0
      %1254 = vmatpush2.msra.mxu0 0.0
      %1255 = vmatprep.subr.mxu0 0.0
      %1256 = vmatpush2.msra.mxu0 0.0
      %1257 = vmatprep.subr.mxu0 0.0
      %1258 = vmatpush2.msra.mxu0 0.0
      %1259 = vmatprep.subr.mxu0 0.0
      %1260 = vmatpush2.msra.mxu0 0.0
      %1261 = vmatprep.mubr.f32.mxu0 0.0
      %1262 = vmatmul.mubr.f32.gmra.mxu0 %v1183
      %v1263 = vpop.f32.mrf.mxu0
      %v1264 = vadd.f32 0.0, %v1263
      %v1265 = vpop.f32.mrf.mxu0
      %1266 = vmatprep.mubr.f32.mxu0 0.0
      %1267 = vmatmul.mubr.f32.gmra.mxu0 %v1186
      %v1268 = vpop.f32.mrf.mxu0
      %v1269 = vadd.f32 0.0, %v1268
      %v1270 = vpop.f32.mrf.mxu0
      %1271 = vmatprep.mubr.f32.mxu0 0.0
      %1272 = vmatmul.mubr.f32.gmra.mxu0 %v1189
      %v1273 = vpop.f32.mrf.mxu0
      %v1274 = vadd.f32 0.0, %v1273
      %v1275 = vpop.f32.mrf.mxu0
      %1276 = vmatprep.mubr.f32.mxu0 0.0
      %1277 = vmatmul.mubr.f32.gmra.mxu0 %v1192
      %v1278 = vpop.f32.mrf.mxu0
      %v1279 = vadd.f32 0.0, %v1278
      %v1280 = vpop.f32.mrf.mxu0
      %1281 = vmatprep.mubr.f32.mxu0 0.0
      %1282 = vmatmul.mubr.f32.gmra.mxu0 %v1195
      %v1283 = vpop.f32.mrf.mxu0
      %v1284 = vadd.f32 0.0, %v1283
      %v1285 = vpop.f32.mrf.mxu0
      %1286 = vdwg.mxu0
      %v1288 = vsel %vm578, %v847, 0
      %v1291 = vsel %vm578, %v852, 0
      %v1294 = vsel %vm578, %v857, 0
      %v1297 = vsel %vm578, %v862, 0
      %v1300 = vsel %vm578, %v867, 0
      %1302 = vmatprep.subr.mxu0 0.0
      %1303 = vmatpush1.msra.mxu0 0.0
      %1304 = vmatprep.subr.mxu0 0.0
      %1305 = vmatpush1.msra.mxu0 0.0
      %1306 = vmatprep.subr.mxu0 0.0
      %1307 = vmatpush1.msra.mxu0 0.0
      %1308 = vmatprep.subr.mxu0 0.0
      %1309 = vmatpush1.msra.mxu0 0.0
      %1310 = vmatprep.subr.mxu0 0.0
      %1311 = vmatpush1.msra.mxu0 0.0
      %1312 = vmatprep.subr.mxu0 0.0
      %1313 = vmatpush1.msra.mxu0 0.0
      %1314 = vmatprep.subr.mxu0 0.0
      %1315 = vmatpush1.msra.mxu0 0.0
      %1316 = vmatprep.subr.mxu0 0.0
      %1317 = vmatpush1.msra.mxu0 0.0
      %1318 = vmatprep.subr.mxu0 0.0
      %1319 = vmatpush1.msra.mxu0 0.0
      %1320 = vmatprep.subr.mxu0 0.0
      %1321 = vmatpush1.msra.mxu0 0.0
      %1322 = vmatprep.subr.mxu0 0.0
      %1323 = vmatpush1.msra.mxu0 0.0
      %1324 = vmatprep.subr.mxu0 0.0
      %1325 = vmatpush1.msra.mxu0 0.0
      %1326 = vmatprep.subr.mxu0 0.0
      %1327 = vmatpush1.msra.mxu0 0.0
      %1328 = vmatprep.subr.mxu0 0.0
      %1329 = vmatpush1.msra.mxu0 0.0
      %1330 = vmatprep.subr.mxu0 0.0
      %1331 = vmatpush1.msra.mxu0 0.0
      %1332 = vmatprep.subr.mxu0 0.0
      %1333 = vmatpush1.msra.mxu0 %v870
      %1334 = vmatprep.subr.mxu0 0.0
      %1335 = vmatpush2.msra.mxu0 0.0
      %1336 = vmatprep.subr.mxu0 0.0
      %1337 = vmatpush2.msra.mxu0 0.0
      %1338 = vmatprep.subr.mxu0 0.0
      %1339 = vmatpush2.msra.mxu0 0.0
      %1340 = vmatprep.subr.mxu0 0.0
      %1341 = vmatpush2.msra.mxu0 0.0
      %1342 = vmatprep.subr.mxu0 0.0
      %1343 = vmatpush2.msra.mxu0 0.0
      %1344 = vmatprep.subr.mxu0 0.0
      %1345 = vmatpush2.msra.mxu0 0.0
      %1346 = vmatprep.subr.mxu0 0.0
      %1347 = vmatpush2.msra.mxu0 0.0
      %1348 = vmatprep.subr.mxu0 0.0
      %1349 = vmatpush2.msra.mxu0 0.0
      %1350 = vmatprep.subr.mxu0 0.0
      %1351 = vmatpush2.msra.mxu0 0.0
      %1352 = vmatprep.subr.mxu0 0.0
      %1353 = vmatpush2.msra.mxu0 0.0
      %1354 = vmatprep.subr.mxu0 0.0
      %1355 = vmatpush2.msra.mxu0 0.0
      %1356 = vmatprep.subr.mxu0 0.0
      %1357 = vmatpush2.msra.mxu0 0.0
      %1358 = vmatprep.subr.mxu0 0.0
      %1359 = vmatpush2.msra.mxu0 0.0
      %1360 = vmatprep.subr.mxu0 0.0
      %1361 = vmatpush2.msra.mxu0 0.0
      %1362 = vmatprep.subr.mxu0 0.0
      %1363 = vmatpush2.msra.mxu0 0.0
      %1364 = vmatprep.subr.mxu0 0.0
      %1365 = vmatpush2.msra.mxu0 0.0
      %1366 = vmatprep.mubr.f32.mxu0 0.0
      %1367 = vmatmul.mubr.f32.gmra.mxu0 %v1288
      %v1368 = vpop.f32.mrf.mxu0
      %v1369 = vadd.f32 %v1264, %v1368
      %v1370 = vpop.f32.mrf.mxu0
      %1371 = vmatprep.mubr.f32.mxu0 0.0
      %1372 = vmatmul.mubr.f32.gmra.mxu0 %v1291
      %v1373 = vpop.f32.mrf.mxu0
      %v1374 = vadd.f32 %v1269, %v1373
      %v1375 = vpop.f32.mrf.mxu0
      %1376 = vmatprep.mubr.f32.mxu0 0.0
      %1377 = vmatmul.mubr.f32.gmra.mxu0 %v1294
      %v1378 = vpop.f32.mrf.mxu0
      %v1379 = vadd.f32 %v1274, %v1378
      %v1380 = vpop.f32.mrf.mxu0
      %1381 = vmatprep.mubr.f32.mxu0 0.0
      %1382 = vmatmul.mubr.f32.gmra.mxu0 %v1297
      %v1383 = vpop.f32.mrf.mxu0
      %v1384 = vadd.f32 %v1279, %v1383
      %v1385 = vpop.f32.mrf.mxu0
      %1386 = vmatprep.mubr.f32.mxu0 0.0
      %1387 = vmatmul.mubr.f32.gmra.mxu0 %v1300
      %v1388 = vpop.f32.mrf.mxu0
      %v1389 = vadd.f32 %v1284, %v1388
      %v1390 = vpop.f32.mrf.mxu0
      %1391 = vdwg.mxu0
      %1392 = vrot.lane.b32.xlu0 %v540, 112
      %v1393 = vpop.permute.xlu0 %1392
      %1394 = vrot.lane.b32.xlu0 %v545, 112
      %v1395 = vpop.permute.xlu0 %1394
      %1396 = vrot.lane.b32.xlu0 %v550, 112
      %v1397 = vpop.permute.xlu0 %1396
      %1398 = vrot.lane.b32.xlu0 %v555, 112
      %v1399 = vpop.permute.xlu0 %1398
      %1400 = vrot.lane.b32.xlu0 %v560, 112
      %v1401 = vpop.permute.xlu0 %1400
      %1402 = vrot.lane.b32.xlu0 %v540, 80
      %v1403 = vpop.permute.xlu0 %1402
      %1404 = vrot.lane.b32.xlu0 %v545, 80
      %v1405 = vpop.permute.xlu0 %1404
      %1406 = vrot.lane.b32.xlu0 %v550, 80
      %v1407 = vpop.permute.xlu0 %1406
      %1408 = vrot.lane.b32.xlu0 %v555, 80
      %v1409 = vpop.permute.xlu0 %1408
      %1410 = vrot.lane.b32.xlu0 %v560, 80
      %v1411 = vpop.permute.xlu0 %1410
      %v1412 = vsel %vm578, %v1393, 0
      %v1414 = vsel %vm578, %v1395, 0
      %v1416 = vsel %vm578, %v1397, 0
      %v1418 = vsel %vm578, %v1399, 0
      %v1420 = vsel %vm578, %v1401, 0
      %v1422 = vsel %vm578, %v1403, 0
      %v1424 = vsel %vm578, %v1405, 0
      %v1426 = vsel %vm578, %v1407, 0
      %v1428 = vsel %vm578, %v1409, 0
      %v1430 = vsel %vm578, %v1411, 0
      %1432 = vmatprep.subr.mxu0 0.0
      %1433 = vmatpush1.xpose.msra.mxu0 0.0
      %1434 = vmatprep.subr.mxu0 0.0
      %1435 = vmatpush1.xpose.msra.mxu0 0.0
      %1436 = vmatprep.subr.mxu0 0.0
      %1437 = vmatpush1.xpose.msra.mxu0 0.0
      %1438 = vmatprep.subr.mxu0 0.0
      %1439 = vmatpush1.xpose.msra.mxu0 0.0
      %1440 = vmatprep.subr.mxu0 0.0
      %1441 = vmatpush1.xpose.msra.mxu0 0.0
      %1442 = vmatprep.subr.mxu0 0.0
      %1443 = vmatpush1.xpose.msra.mxu0 0.0
      %1444 = vmatprep.subr.mxu0 0.0
      %1445 = vmatpush1.xpose.msra.mxu0 0.0
      %1446 = vmatprep.subr.mxu0 0.0
      %1447 = vmatpush1.xpose.msra.mxu0 0.0
      %1448 = vmatprep.subr.mxu0 0.0
      %1449 = vmatpush1.xpose.msra.mxu0 0.0
      %1450 = vmatprep.subr.mxu0 0.0
      %1451 = vmatpush1.xpose.msra.mxu0 0.0
      %1452 = vmatprep.subr.mxu0 0.0
      %1453 = vmatpush1.xpose.msra.mxu0 0.0
      %1454 = vmatprep.subr.mxu0 0.0
      %1455 = vmatpush1.xpose.msra.mxu0 %v1430
      %1456 = vmatprep.subr.mxu0 0.0
      %1457 = vmatpush1.xpose.msra.mxu0 %v1428
      %1458 = vmatprep.subr.mxu0 0.0
      %1459 = vmatpush1.xpose.msra.mxu0 %v1426
      %1460 = vmatprep.subr.mxu0 0.0
      %1461 = vmatpush1.xpose.msra.mxu0 %v1424
      %1462 = vmatprep.subr.mxu0 0.0
      %1463 = vmatpush1.xpose.msra.mxu0 %v1422
      %1464 = vmatprep.subr.mxu0 0.0
      %1465 = vmatpush2.xpose.msra.mxu0 0.0
      %1466 = vmatprep.subr.mxu0 0.0
      %1467 = vmatpush2.xpose.msra.mxu0 0.0
      %1468 = vmatprep.subr.mxu0 0.0
      %1469 = vmatpush2.xpose.msra.mxu0 0.0
      %1470 = vmatprep.subr.mxu0 0.0
      %1471 = vmatpush2.xpose.msra.mxu0 0.0
      %1472 = vmatprep.subr.mxu0 0.0
      %1473 = vmatpush2.xpose.msra.mxu0 0.0
      %1474 = vmatprep.subr.mxu0 0.0
      %1475 = vmatpush2.xpose.msra.mxu0 0.0
      %1476 = vmatprep.subr.mxu0 0.0
      %1477 = vmatpush2.xpose.msra.mxu0 0.0
      %1478 = vmatprep.subr.mxu0 0.0
      %1479 = vmatpush2.xpose.msra.mxu0 0.0
      %1480 = vmatprep.subr.mxu0 0.0
      %1481 = vmatpush2.xpose.msra.mxu0 0.0
      %1482 = vmatprep.subr.mxu0 0.0
      %1483 = vmatpush2.xpose.msra.mxu0 0.0
      %1484 = vmatprep.subr.mxu0 0.0
      %1485 = vmatpush2.xpose.msra.mxu0 0.0
      %1486 = vmatprep.subr.mxu0 0.0
      %1487 = vmatpush2.xpose.msra.mxu0 0.0
      %1488 = vmatprep.subr.mxu0 0.0
      %1489 = vmatpush2.xpose.msra.mxu0 0.0
      %1490 = vmatprep.subr.mxu0 0.0
      %1491 = vmatpush2.xpose.msra.mxu0 0.0
      %1492 = vmatprep.subr.mxu0 0.0
      %1493 = vmatpush2.xpose.msra.mxu0 0.0
      %1494 = vmatprep.subr.mxu0 0.0
      %1495 = vmatpush2.xpose.msra.mxu0 0.0
      %1496 = vmatprep.mubr.f32.mxu0 0.0
      %1497 = vmatmul.mubr.f32.gmra.mxu0 %v1412
      %v1498 = vpop.f32.mrf.mxu0
      %v1499 = vadd.f32 0.0, %v1498
      %v1500 = vpop.f32.mrf.mxu0
      %1501 = vmatprep.mubr.f32.mxu0 0.0
      %1502 = vmatmul.mubr.f32.gmra.mxu0 %v1414
      %v1503 = vpop.f32.mrf.mxu0
      %v1504 = vadd.f32 0.0, %v1503
      %v1505 = vpop.f32.mrf.mxu0
      %1506 = vmatprep.mubr.f32.mxu0 0.0
      %1507 = vmatmul.mubr.f32.gmra.mxu0 %v1416
      %v1508 = vpop.f32.mrf.mxu0
      %v1509 = vadd.f32 0.0, %v1508
      %v1510 = vpop.f32.mrf.mxu0
      %1511 = vmatprep.mubr.f32.mxu0 0.0
      %1512 = vmatmul.mubr.f32.gmra.mxu0 %v1418
      %v1513 = vpop.f32.mrf.mxu0
      %v1514 = vadd.f32 0.0, %v1513
      %v1515 = vpop.f32.mrf.mxu0
      %1516 = vmatprep.mubr.f32.mxu0 0.0
      %1517 = vmatmul.mubr.f32.gmra.mxu0 %v1420
      %v1518 = vpop.f32.mrf.mxu0
      %v1519 = vadd.f32 0.0, %v1518
      %v1520 = vpop.f32.mrf.mxu0
      %1521 = vdwg.mxu0
      %v1522 = vmul.f32 %v1499, 0.35355338
      %v1523 = vmul.f32 %v1504, 0.35355338
      %v1524 = vmul.f32 %v1509, 0.35355338
      %v1525 = vmul.f32 %v1514, 0.35355338
      %v1526 = vmul.f32 %v1519, 0.35355338
      %v1527 = vsel %vm694, %v1522, -inf
      %1528 = vmax.xlane.f32.xlu0 %v1527
      %v1529 = vpop.xlane.xlu0 %1528
      %v1530 = vsel %vm694, %v1523, -inf
      %1531 = vmax.xlane.f32.xlu0 %v1530
      %v1532 = vpop.xlane.xlu0 %1531
      %v1533 = vsel %vm694, %v1524, -inf
      %1534 = vmax.xlane.f32.xlu0 %v1533
      %v1535 = vpop.xlane.xlu0 %1534
      %v1536 = vsel %vm694, %v1525, -inf
      %1537 = vmax.xlane.f32.xlu0 %v1536
      %v1538 = vpop.xlane.xlu0 %1537
      %v1539 = vsel %vm694, %v1526, -inf
      %1540 = vmax.xlane.f32.xlu0 %v1539
      %v1541 = vpop.xlane.xlu0 %1540
      %v1542 = vsub.f32 %v1522, %v1529
      %v1543 = vsub.f32 %v1523, %v1532
      %v1544 = vsub.f32 %v1524, %v1535
      %v1545 = vsub.f32 %v1525, %v1538
      %v1546 = vsub.f32 %v1526, %v1541
      %v1547 = vmul.f32 %v1542, 1.442695
      %v1548 = vpow.pop %v1547
      %v1549 = vmul.f32 %v1543, 1.442695
      %v1550 = vpow.pop %v1549
      %v1551 = vmul.f32 %v1544, 1.442695
      %v1552 = vpow.pop %v1551
      %v1553 = vmul.f32 %v1545, 1.442695
      %v1554 = vpow.pop %v1553
      %v1555 = vmul.f32 %v1546, 1.442695
      %v1556 = vpow.pop %v1555
      %v1557 = vsel %vm694, %v1548, 0.0
      %1558 = vadd.xlane.f32.xlu0 %v1557
      %v1559 = vpop.xlane.xlu0 %1558
      %v1560 = vsel %vm694, %v1550, 0.0
      %1561 = vadd.xlane.f32.xlu0 %v1560
      %v1562 = vpop.xlane.xlu0 %1561
      %v1563 = vsel %vm694, %v1552, 0.0
      %1564 = vadd.xlane.f32.xlu0 %v1563
      %v1565 = vpop.xlane.xlu0 %1564
      %v1566 = vsel %vm694, %v1554, 0.0
      %1567 = vadd.xlane.f32.xlu0 %v1566
      %v1568 = vpop.xlane.xlu0 %1567
      %v1569 = vsel %vm694, %v1556, 0.0
      %1570 = vadd.xlane.f32.xlu0 %v1569
      %v1571 = vpop.xlane.xlu0 %1570
      %v1572 = vrcp.pop %v1559
      %v1573 = vrcp.pop %v1562
      %v1574 = vrcp.pop %v1565
      %v1575 = vrcp.pop %v1568
      %v1576 = vrcp.pop %v1571
      %v1577 = vmul.f32 %v1548, %v1572
      %v1578 = vmul.f32 %v1550, %v1573
      %v1579 = vmul.f32 %v1552, %v1574
      %v1580 = vmul.f32 %v1554, %v1575
      %v1581 = vmul.f32 %v1556, %v1576
      %1582 = vrot.lane.b32.xlu0 %v540, 48
      %v1583 = vpop.permute.xlu0 %1582
      %1584 = vrot.lane.b32.xlu0 %v545, 48
      %v1585 = vpop.permute.xlu0 %1584
      %1586 = vrot.lane.b32.xlu0 %v550, 48
      %v1587 = vpop.permute.xlu0 %1586
      %1588 = vrot.lane.b32.xlu0 %v555, 48
      %v1589 = vpop.permute.xlu0 %1588
      %1590 = vrot.lane.b32.xlu0 %v560, 48
      %v1591 = vpop.permute.xlu0 %1590
      %v1598 = vsel %vm694, %v1577, 0
      %v1601 = vsel %vm694, %v1578, 0
      %v1604 = vsel %vm694, %v1579, 0
      %v1607 = vsel %vm694, %v1580, 0
      %v1610 = vsel %vm694, %v1581, 0
      %1612 = vmatprep.subr.mxu0 0.0
      %1613 = vmatpush1.msra.mxu0 0.0
      %1614 = vmatprep.subr.mxu0 0.0
      %1615 = vmatpush1.msra.mxu0 0.0
      %1616 = vmatprep.subr.mxu0 0.0
      %1617 = vmatpush1.msra.mxu0 0.0
      %1618 = vmatprep.subr.mxu0 0.0
      %1619 = vmatpush1.msra.mxu0 0.0
      %1620 = vmatprep.subr.mxu0 0.0
      %1621 = vmatpush1.msra.mxu0 0.0
      %1622 = vmatprep.subr.mxu0 0.0
      %1623 = vmatpush1.msra.mxu0 0.0
      %1624 = vmatprep.subr.mxu0 0.0
      %1625 = vmatpush1.msra.mxu0 0.0
      %1626 = vmatprep.subr.mxu0 0.0
      %1627 = vmatpush1.msra.mxu0 0.0
      %1628 = vmatprep.subr.mxu0 0.0
      %1629 = vmatpush1.msra.mxu0 0.0
      %1630 = vmatprep.subr.mxu0 0.0
      %1631 = vmatpush1.msra.mxu0 0.0
      %1632 = vmatprep.subr.mxu0 0.0
      %1633 = vmatpush1.msra.mxu0 0.0
      %1634 = vmatprep.subr.mxu0 0.0
      %1635 = vmatpush1.msra.mxu0 %v1591
      %1636 = vmatprep.subr.mxu0 0.0
      %1637 = vmatpush1.msra.mxu0 %v1589
      %1638 = vmatprep.subr.mxu0 0.0
      %1639 = vmatpush1.msra.mxu0 %v1587
      %1640 = vmatprep.subr.mxu0 0.0
      %1641 = vmatpush1.msra.mxu0 %v1585
      %1642 = vmatprep.subr.mxu0 0.0
      %1643 = vmatpush1.msra.mxu0 %v1583
      %1644 = vmatprep.subr.mxu0 0.0
      %1645 = vmatpush2.msra.mxu0 0.0
      %1646 = vmatprep.subr.mxu0 0.0
      %1647 = vmatpush2.msra.mxu0 0.0
      %1648 = vmatprep.subr.mxu0 0.0
      %1649 = vmatpush2.msra.mxu0 0.0
      %1650 = vmatprep.subr.mxu0 0.0
      %1651 = vmatpush2.msra.mxu0 0.0
      %1652 = vmatprep.subr.mxu0 0.0
      %1653 = vmatpush2.msra.mxu0 0.0
      %1654 = vmatprep.subr.mxu0 0.0
      %1655 = vmatpush2.msra.mxu0 0.0
      %1656 = vmatprep.subr.mxu0 0.0
      %1657 = vmatpush2.msra.mxu0 0.0
      %1658 = vmatprep.subr.mxu0 0.0
      %1659 = vmatpush2.msra.mxu0 0.0
      %1660 = vmatprep.subr.mxu0 0.0
      %1661 = vmatpush2.msra.mxu0 0.0
      %1662 = vmatprep.subr.mxu0 0.0
      %1663 = vmatpush2.msra.mxu0 0.0
      %1664 = vmatprep.subr.mxu0 0.0
      %1665 = vmatpush2.msra.mxu0 0.0
      %1666 = vmatprep.subr.mxu0 0.0
      %1667 = vmatpush2.msra.mxu0 0.0
      %1668 = vmatprep.subr.mxu0 0.0
      %1669 = vmatpush2.msra.mxu0 0.0
      %1670 = vmatprep.subr.mxu0 0.0
      %1671 = vmatpush2.msra.mxu0 0.0
      %1672 = vmatprep.subr.mxu0 0.0
      %1673 = vmatpush2.msra.mxu0 0.0
      %1674 = vmatprep.subr.mxu0 0.0
      %1675 = vmatpush2.msra.mxu0 0.0
      %1676 = vmatprep.mubr.f32.mxu0 0.0
      %1677 = vmatmul.mubr.f32.gmra.mxu0 %v1598
      %v1678 = vpop.f32.mrf.mxu0
      %v1679 = vadd.f32 0.0, %v1678
      %v1680 = vpop.f32.mrf.mxu0
      %1681 = vmatprep.mubr.f32.mxu0 0.0
      %1682 = vmatmul.mubr.f32.gmra.mxu0 %v1601
      %v1683 = vpop.f32.mrf.mxu0
      %v1684 = vadd.f32 0.0, %v1683
      %v1685 = vpop.f32.mrf.mxu0
      %1686 = vmatprep.mubr.f32.mxu0 0.0
      %1687 = vmatmul.mubr.f32.gmra.mxu0 %v1604
      %v1688 = vpop.f32.mrf.mxu0
      %v1689 = vadd.f32 0.0, %v1688
      %v1690 = vpop.f32.mrf.mxu0
      %1691 = vmatprep.mubr.f32.mxu0 0.0
      %1692 = vmatmul.mubr.f32.gmra.mxu0 %v1607
      %v1693 = vpop.f32.mrf.mxu0
      %v1694 = vadd.f32 0.0, %v1693
      %v1695 = vpop.f32.mrf.mxu0
      %1696 = vmatprep.mubr.f32.mxu0 0.0
      %1697 = vmatmul.mubr.f32.gmra.mxu0 %v1610
      %v1698 = vpop.f32.mrf.mxu0
      %v1699 = vadd.f32 0.0, %v1698
      %v1700 = vpop.f32.mrf.mxu0
      %1701 = vdwg.mxu0
      %v1702 = vld [vmem:[%s3 + $0x10] sm:$0xff]
      %v1704 = vsel %vm578, %v1679, 0
      %v1707 = vsel %vm578, %v1684, 0
      %v1710 = vsel %vm578, %v1689, 0
      %v1713 = vsel %vm578, %v1694, 0
      %v1716 = vsel %vm578, %v1699, 0
      %1718 = vmatprep.subr.mxu0 0.0
      %1719 = vmatpush1.msra.mxu0 0.0
      %1720 = vmatprep.subr.mxu0 0.0
      %1721 = vmatpush1.msra.mxu0 0.0
      %1722 = vmatprep.subr.mxu0 0.0
      %1723 = vmatpush1.msra.mxu0 0.0
      %1724 = vmatprep.subr.mxu0 0.0
      %1725 = vmatpush1.msra.mxu0 0.0
      %1726 = vmatprep.subr.mxu0 0.0
      %1727 = vmatpush1.msra.mxu0 0.0
      %1728 = vmatprep.subr.mxu0 0.0
      %1729 = vmatpush1.msra.mxu0 0.0
      %1730 = vmatprep.subr.mxu0 0.0
      %1731 = vmatpush1.msra.mxu0 0.0
      %1732 = vmatprep.subr.mxu0 0.0
      %1733 = vmatpush1.msra.mxu0 0.0
      %1734 = vmatprep.subr.mxu0 0.0
      %1735 = vmatpush1.msra.mxu0 0.0
      %1736 = vmatprep.subr.mxu0 0.0
      %1737 = vmatpush1.msra.mxu0 0.0
      %1738 = vmatprep.subr.mxu0 0.0
      %1739 = vmatpush1.msra.mxu0 0.0
      %1740 = vmatprep.subr.mxu0 0.0
      %1741 = vmatpush1.msra.mxu0 0.0
      %1742 = vmatprep.subr.mxu0 0.0
      %1743 = vmatpush1.msra.mxu0 0.0
      %1744 = vmatprep.subr.mxu0 0.0
      %1745 = vmatpush1.msra.mxu0 0.0
      %1746 = vmatprep.subr.mxu0 0.0
      %1747 = vmatpush1.msra.mxu0 0.0
      %1748 = vmatprep.subr.mxu0 0.0
      %1749 = vmatpush1.msra.mxu0 %v1702
      %1750 = vmatprep.subr.mxu0 0.0
      %1751 = vmatpush2.msra.mxu0 0.0
      %1752 = vmatprep.subr.mxu0 0.0
      %1753 = vmatpush2.msra.mxu0 0.0
      %1754 = vmatprep.subr.mxu0 0.0
      %1755 = vmatpush2.msra.mxu0 0.0
      %1756 = vmatprep.subr.mxu0 0.0
      %1757 = vmatpush2.msra.mxu0 0.0
      %1758 = vmatprep.subr.mxu0 0.0
      %1759 = vmatpush2.msra.mxu0 0.0
      %1760 = vmatprep.subr.mxu0 0.0
      %1761 = vmatpush2.msra.mxu0 0.0
      %1762 = vmatprep.subr.mxu0 0.0
      %1763 = vmatpush2.msra.mxu0 0.0
      %1764 = vmatprep.subr.mxu0 0.0
      %1765 = vmatpush2.msra.mxu0 0.0
      %1766 = vmatprep.subr.mxu0 0.0
      %1767 = vmatpush2.msra.mxu0 0.0
      %1768 = vmatprep.subr.mxu0 0.0
      %1769 = vmatpush2.msra.mxu0 0.0
      %1770 = vmatprep.subr.mxu0 0.0
      %1771 = vmatpush2.msra.mxu0 0.0
      %1772 = vmatprep.subr.mxu0 0.0
      %1773 = vmatpush2.msra.mxu0 0.0
      %1774 = vmatprep.subr.mxu0 0.0
      %1775 = vmatpush2.msra.mxu0 0.0
      %1776 = vmatprep.subr.mxu0 0.0
      %1777 = vmatpush2.msra.mxu0 0.0
      %1778 = vmatprep.subr.mxu0 0.0
      %1779 = vmatpush2.msra.mxu0 0.0
      %1780 = vmatprep.subr.mxu0 0.0
      %1781 = vmatpush2.msra.mxu0 0.0
      %1782 = vmatprep.mubr.f32.mxu0 0.0
      %1783 = vmatmul.mubr.f32.gmra.mxu0 %v1704
      %v1784 = vpop.f32.mrf.mxu0
      %v1785 = vadd.f32 0.0, %v1784
      %v1786 = vpop.f32.mrf.mxu0
      %1787 = vmatprep.mubr.f32.mxu0 0.0
      %1788 = vmatmul.mubr.f32.gmra.mxu0 %v1707
      %v1789 = vpop.f32.mrf.mxu0
      %v1790 = vadd.f32 0.0, %v1789
      %v1791 = vpop.f32.mrf.mxu0
      %1792 = vmatprep.mubr.f32.mxu0 0.0
      %1793 = vmatmul.mubr.f32.gmra.mxu0 %v1710
      %v1794 = vpop.f32.mrf.mxu0
      %v1795 = vadd.f32 0.0, %v1794
      %v1796 = vpop.f32.mrf.mxu0
      %1797 = vmatprep.mubr.f32.mxu0 0.0
      %1798 = vmatmul.mubr.f32.gmra.mxu0 %v1713
      %v1799 = vpop.f32.mrf.mxu0
      %v1800 = vadd.f32 0.0, %v1799
      %v1801 = vpop.f32.mrf.mxu0
      %1802 = vmatprep.mubr.f32.mxu0 0.0
      %1803 = vmatmul.mubr.f32.gmra.mxu0 %v1716
      %v1804 = vpop.f32.mrf.mxu0
      %v1805 = vadd.f32 0.0, %v1804
      %v1806 = vpop.f32.mrf.mxu0
      %1807 = vdwg.mxu0
      %v1808 = vadd.f32 %v1369, %v1785
      %v1809 = vadd.f32 %v1374, %v1790
      %v1810 = vadd.f32 %v1379, %v1795
      %v1811 = vadd.f32 %v1384, %v1800
      %v1812 = vadd.f32 %v1389, %v1805
      %1813 = vrot.lane.b32.xlu0 %v540, 104
      %v1814 = vpop.permute.xlu0 %1813
      %1815 = vrot.lane.b32.xlu0 %v545, 104
      %v1816 = vpop.permute.xlu0 %1815
      %1817 = vrot.lane.b32.xlu0 %v550, 104
      %v1818 = vpop.permute.xlu0 %1817
      %1819 = vrot.lane.b32.xlu0 %v555, 104
      %v1820 = vpop.permute.xlu0 %1819
      %1821 = vrot.lane.b32.xlu0 %v560, 104
      %v1822 = vpop.permute.xlu0 %1821
      %1823 = vrot.lane.b32.xlu0 %v540, 72
      %v1824 = vpop.permute.xlu0 %1823
      %1825 = vrot.lane.b32.xlu0 %v545, 72
      %v1826 = vpop.permute.xlu0 %1825
      %1827 = vrot.lane.b32.xlu0 %v550, 72
      %v1828 = vpop.permute.xlu0 %1827
      %1829 = vrot.lane.b32.xlu0 %v555, 72
      %v1830 = vpop.permute.xlu0 %1829
      %1831 = vrot.lane.b32.xlu0 %v560, 72
      %v1832 = vpop.permute.xlu0 %1831
      %v1833 = vsel %vm578, %v1814, 0
      %v1835 = vsel %vm578, %v1816, 0
      %v1837 = vsel %vm578, %v1818, 0
      %v1839 = vsel %vm578, %v1820, 0
      %v1841 = vsel %vm578, %v1822, 0
      %v1843 = vsel %vm578, %v1824, 0
      %v1845 = vsel %vm578, %v1826, 0
      %v1847 = vsel %vm578, %v1828, 0
      %v1849 = vsel %vm578, %v1830, 0
      %v1851 = vsel %vm578, %v1832, 0
      %1853 = vmatprep.subr.mxu0 0.0
      %1854 = vmatpush1.xpose.msra.mxu0 0.0
      %1855 = vmatprep.subr.mxu0 0.0
      %1856 = vmatpush1.xpose.msra.mxu0 0.0
      %1857 = vmatprep.subr.mxu0 0.0
      %1858 = vmatpush1.xpose.msra.mxu0 0.0
      %1859 = vmatprep.subr.mxu0 0.0
      %1860 = vmatpush1.xpose.msra.mxu0 0.0
      %1861 = vmatprep.subr.mxu0 0.0
      %1862 = vmatpush1.xpose.msra.mxu0 0.0
      %1863 = vmatprep.subr.mxu0 0.0
      %1864 = vmatpush1.xpose.msra.mxu0 0.0
      %1865 = vmatprep.subr.mxu0 0.0
      %1866 = vmatpush1.xpose.msra.mxu0 0.0
      %1867 = vmatprep.subr.mxu0 0.0
      %1868 = vmatpush1.xpose.msra.mxu0 0.0
      %1869 = vmatprep.subr.mxu0 0.0
      %1870 = vmatpush1.xpose.msra.mxu0 0.0
      %1871 = vmatprep.subr.mxu0 0.0
      %1872 = vmatpush1.xpose.msra.mxu0 0.0
      %1873 = vmatprep.subr.mxu0 0.0
      %1874 = vmatpush1.xpose.msra.mxu0 0.0
      %1875 = vmatprep.subr.mxu0 0.0
      %1876 = vmatpush1.xpose.msra.mxu0 %v1851
      %1877 = vmatprep.subr.mxu0 0.0
      %1878 = vmatpush1.xpose.msra.mxu0 %v1849
      %1879 = vmatprep.subr.mxu0 0.0
      %1880 = vmatpush1.xpose.msra.mxu0 %v1847
      %1881 = vmatprep.subr.mxu0 0.0
      %1882 = vmatpush1.xpose.msra.mxu0 %v1845
      %1883 = vmatprep.subr.mxu0 0.0
      %1884 = vmatpush1.xpose.msra.mxu0 %v1843
      %1885 = vmatprep.subr.mxu0 0.0
      %1886 = vmatpush2.xpose.msra.mxu0 0.0
      %1887 = vmatprep.subr.mxu0 0.0
      %1888 = vmatpush2.xpose.msra.mxu0 0.0
      %1889 = vmatprep.subr.mxu0 0.0
      %1890 = vmatpush2.xpose.msra.mxu0 0.0
      %1891 = vmatprep.subr.mxu0 0.0
      %1892 = vmatpush2.xpose.msra.mxu0 0.0
      %1893 = vmatprep.subr.mxu0 0.0
      %1894 = vmatpush2.xpose.msra.mxu0 0.0
      %1895 = vmatprep.subr.mxu0 0.0
      %1896 = vmatpush2.xpose.msra.mxu0 0.0
      %1897 = vmatprep.subr.mxu0 0.0
      %1898 = vmatpush2.xpose.msra.mxu0 0.0
      %1899 = vmatprep.subr.mxu0 0.0
      %1900 = vmatpush2.xpose.msra.mxu0 0.0
      %1901 = vmatprep.subr.mxu0 0.0
      %1902 = vmatpush2.xpose.msra.mxu0 0.0
      %1903 = vmatprep.subr.mxu0 0.0
      %1904 = vmatpush2.xpose.msra.mxu0 0.0
      %1905 = vmatprep.subr.mxu0 0.0
      %1906 = vmatpush2.xpose.msra.mxu0 0.0
      %1907 = vmatprep.subr.mxu0 0.0
      %1908 = vmatpush2.xpose.msra.mxu0 0.0
      %1909 = vmatprep.subr.mxu0 0.0
      %1910 = vmatpush2.xpose.msra.mxu0 0.0
      %1911 = vmatprep.subr.mxu0 0.0
      %1912 = vmatpush2.xpose.msra.mxu0 0.0
      %1913 = vmatprep.subr.mxu0 0.0
      %1914 = vmatpush2.xpose.msra.mxu0 0.0
      %1915 = vmatprep.subr.mxu0 0.0
      %1916 = vmatpush2.xpose.msra.mxu0 0.0
      %1917 = vmatprep.mubr.f32.mxu0 0.0
      %1918 = vmatmul.mubr.f32.gmra.mxu0 %v1833
      %v1919 = vpop.f32.mrf.mxu0
      %v1920 = vadd.f32 0.0, %v1919
      %v1921 = vpop.f32.mrf.mxu0
      %1922 = vmatprep.mubr.f32.mxu0 0.0
      %1923 = vmatmul.mubr.f32.gmra.mxu0 %v1835
      %v1924 = vpop.f32.mrf.mxu0
      %v1925 = vadd.f32 0.0, %v1924
      %v1926 = vpop.f32.mrf.mxu0
      %1927 = vmatprep.mubr.f32.mxu0 0.0
      %1928 = vmatmul.mubr.f32.gmra.mxu0 %v1837
      %v1929 = vpop.f32.mrf.mxu0
      %v1930 = vadd.f32 0.0, %v1929
      %v1931 = vpop.f32.mrf.mxu0
      %1932 = vmatprep.mubr.f32.mxu0 0.0
      %1933 = vmatmul.mubr.f32.gmra.mxu0 %v1839
      %v1934 = vpop.f32.mrf.mxu0
      %v1935 = vadd.f32 0.0, %v1934
      %v1936 = vpop.f32.mrf.mxu0
      %1937 = vmatprep.mubr.f32.mxu0 0.0
      %1938 = vmatmul.mubr.f32.gmra.mxu0 %v1841
      %v1939 = vpop.f32.mrf.mxu0
      %v1940 = vadd.f32 0.0, %v1939
      %v1941 = vpop.f32.mrf.mxu0
      %1942 = vdwg.mxu0
      %v1943 = vmul.f32 %v1920, 0.35355338
      %v1944 = vmul.f32 %v1925, 0.35355338
      %v1945 = vmul.f32 %v1930, 0.35355338
      %v1946 = vmul.f32 %v1935, 0.35355338
      %v1947 = vmul.f32 %v1940, 0.35355338
      %v1948 = vsel %vm694, %v1943, -inf
      %1949 = vmax.xlane.f32.xlu0 %v1948
      %v1950 = vpop.xlane.xlu0 %1949
      %v1951 = vsel %vm694, %v1944, -inf
      %1952 = vmax.xlane.f32.xlu0 %v1951
      %v1953 = vpop.xlane.xlu0 %1952
      %v1954 = vsel %vm694, %v1945, -inf
      %1955 = vmax.xlane.f32.xlu0 %v1954
      %v1956 = vpop.xlane.xlu0 %1955
      %v1957 = vsel %vm694, %v1946, -inf
      %1958 = vmax.xlane.f32.xlu0 %v1957
      %v1959 = vpop.xlane.xlu0 %1958
      %v1960 = vsel %vm694, %v1947, -inf
      %1961 = vmax.xlane.f32.xlu0 %v1960
      %v1962 = vpop.xlane.xlu0 %1961
      %v1963 = vsub.f32 %v1943, %v1950
      %v1964 = vsub.f32 %v1944, %v1953
      %v1965 = vsub.f32 %v1945, %v1956
      %v1966 = vsub.f32 %v1946, %v1959
      %v1967 = vsub.f32 %v1947, %v1962
      %v1968 = vmul.f32 %v1963, 1.442695
      %v1969 = vpow.pop %v1968
      %v1970 = vmul.f32 %v1964, 1.442695
      %v1971 = vpow.pop %v1970
      %v1972 = vmul.f32 %v1965, 1.442695
      %v1973 = vpow.pop %v1972
      %v1974 = vmul.f32 %v1966, 1.442695
      %v1975 = vpow.pop %v1974
      %v1976 = vmul.f32 %v1967, 1.442695
      %v1977 = vpow.pop %v1976
      %v1978 = vsel %vm694, %v1969, 0.0
      %1979 = vadd.xlane.f32.xlu0 %v1978
      %v1980 = vpop.xlane.xlu0 %1979
      %v1981 = vsel %vm694, %v1971, 0.0
      %1982 = vadd.xlane.f32.xlu0 %v1981
      %v1983 = vpop.xlane.xlu0 %1982
      %v1984 = vsel %vm694, %v1973, 0.0
      %1985 = vadd.xlane.f32.xlu0 %v1984
      %v1986 = vpop.xlane.xlu0 %1985
      %v1987 = vsel %vm694, %v1975, 0.0
      %1988 = vadd.xlane.f32.xlu0 %v1987
      %v1989 = vpop.xlane.xlu0 %1988
      %v1990 = vsel %vm694, %v1977, 0.0
      %1991 = vadd.xlane.f32.xlu0 %v1990
      %v1992 = vpop.xlane.xlu0 %1991
      %v1993 = vrcp.pop %v1980
      %v1994 = vrcp.pop %v1983
      %v1995 = vrcp.pop %v1986
      %v1996 = vrcp.pop %v1989
      %v1997 = vrcp.pop %v1992
      %v1998 = vmul.f32 %v1969, %v1993
      %v1999 = vmul.f32 %v1971, %v1994
      %v2000 = vmul.f32 %v1973, %v1995
      %v2001 = vmul.f32 %v1975, %v1996
      %v2002 = vmul.f32 %v1977, %v1997
      %2003 = vrot.lane.b32.xlu0 %v540, 40
      %v2004 = vpop.permute.xlu0 %2003
      %2005 = vrot.lane.b32.xlu0 %v545, 40
      %v2006 = vpop.permute.xlu0 %2005
      %2007 = vrot.lane.b32.xlu0 %v550, 40
      %v2008 = vpop.permute.xlu0 %2007
      %2009 = vrot.lane.b32.xlu0 %v555, 40
      %v2010 = vpop.permute.xlu0 %2009
      %2011 = vrot.lane.b32.xlu0 %v560, 40
      %v2012 = vpop.permute.xlu0 %2011
      %v2019 = vsel %vm694, %v1998, 0
      %v2022 = vsel %vm694, %v1999, 0
      %v2025 = vsel %vm694, %v2000, 0
      %v2028 = vsel %vm694, %v2001, 0
      %v2031 = vsel %vm694, %v2002, 0
      %2033 = vmatprep.subr.mxu0 0.0
      %2034 = vmatpush1.msra.mxu0 0.0
      %2035 = vmatprep.subr.mxu0 0.0
      %2036 = vmatpush1.msra.mxu0 0.0
      %2037 = vmatprep.subr.mxu0 0.0
      %2038 = vmatpush1.msra.mxu0 0.0
      %2039 = vmatprep.subr.mxu0 0.0
      %2040 = vmatpush1.msra.mxu0 0.0
      %2041 = vmatprep.subr.mxu0 0.0
      %2042 = vmatpush1.msra.mxu0 0.0
      %2043 = vmatprep.subr.mxu0 0.0
      %2044 = vmatpush1.msra.mxu0 0.0
      %2045 = vmatprep.subr.mxu0 0.0
      %2046 = vmatpush1.msra.mxu0 0.0
      %2047 = vmatprep.subr.mxu0 0.0
      %2048 = vmatpush1.msra.mxu0 0.0
      %2049 = vmatprep.subr.mxu0 0.0
      %2050 = vmatpush1.msra.mxu0 0.0
      %2051 = vmatprep.subr.mxu0 0.0
      %2052 = vmatpush1.msra.mxu0 0.0
      %2053 = vmatprep.subr.mxu0 0.0
      %2054 = vmatpush1.msra.mxu0 0.0
      %2055 = vmatprep.subr.mxu0 0.0
      %2056 = vmatpush1.msra.mxu0 %v2012
      %2057 = vmatprep.subr.mxu0 0.0
      %2058 = vmatpush1.msra.mxu0 %v2010
      %2059 = vmatprep.subr.mxu0 0.0
      %2060 = vmatpush1.msra.mxu0 %v2008
      %2061 = vmatprep.subr.mxu0 0.0
      %2062 = vmatpush1.msra.mxu0 %v2006
      %2063 = vmatprep.subr.mxu0 0.0
      %2064 = vmatpush1.msra.mxu0 %v2004
      %2065 = vmatprep.subr.mxu0 0.0
      %2066 = vmatpush2.msra.mxu0 0.0
      %2067 = vmatprep.subr.mxu0 0.0
      %2068 = vmatpush2.msra.mxu0 0.0
      %2069 = vmatprep.subr.mxu0 0.0
      %2070 = vmatpush2.msra.mxu0 0.0
      %2071 = vmatprep.subr.mxu0 0.0
      %2072 = vmatpush2.msra.mxu0 0.0
      %2073 = vmatprep.subr.mxu0 0.0
      %2074 = vmatpush2.msra.mxu0 0.0
      %2075 = vmatprep.subr.mxu0 0.0
      %2076 = vmatpush2.msra.mxu0 0.0
      %2077 = vmatprep.subr.mxu0 0.0
      %2078 = vmatpush2.msra.mxu0 0.0
      %2079 = vmatprep.subr.mxu0 0.0
      %2080 = vmatpush2.msra.mxu0 0.0
      %2081 = vmatprep.subr.mxu0 0.0
      %2082 = vmatpush2.msra.mxu0 0.0
      %2083 = vmatprep.subr.mxu0 0.0
      %2084 = vmatpush2.msra.mxu0 0.0
      %2085 = vmatprep.subr.mxu0 0.0
      %2086 = vmatpush2.msra.mxu0 0.0
      %2087 = vmatprep.subr.mxu0 0.0
      %2088 = vmatpush2.msra.mxu0 0.0
      %2089 = vmatprep.subr.mxu0 0.0
      %2090 = vmatpush2.msra.mxu0 0.0
      %2091 = vmatprep.subr.mxu0 0.0
      %2092 = vmatpush2.msra.mxu0 0.0
      %2093 = vmatprep.subr.mxu0 0.0
      %2094 = vmatpush2.msra.mxu0 0.0
      %2095 = vmatprep.subr.mxu0 0.0
      %2096 = vmatpush2.msra.mxu0 0.0
      %2097 = vmatprep.mubr.f32.mxu0 0.0
      %2098 = vmatmul.mubr.f32.gmra.mxu0 %v2019
      %v2099 = vpop.f32.mrf.mxu0
      %v2100 = vadd.f32 0.0, %v2099
      %v2101 = vpop.f32.mrf.mxu0
      %2102 = vmatprep.mubr.f32.mxu0 0.0
      %2103 = vmatmul.mubr.f32.gmra.mxu0 %v2022
      %v2104 = vpop.f32.mrf.mxu0
      %v2105 = vadd.f32 0.0, %v2104
      %v2106 = vpop.f32.mrf.mxu0
      %2107 = vmatprep.mubr.f32.mxu0 0.0
      %2108 = vmatmul.mubr.f32.gmra.mxu0 %v2025
      %v2109 = vpop.f32.mrf.mxu0
      %v2110 = vadd.f32 0.0, %v2109
      %v2111 = vpop.f32.mrf.mxu0
      %2112 = vmatprep.mubr.f32.mxu0 0.0
      %2113 = vmatmul.mubr.f32.gmra.mxu0 %v2028
      %v2114 = vpop.f32.mrf.mxu0
      %v2115 = vadd.f32 0.0, %v2114
      %v2116 = vpop.f32.mrf.mxu0
      %2117 = vmatprep.mubr.f32.mxu0 0.0
      %2118 = vmatmul.mubr.f32.gmra.mxu0 %v2031
      %v2119 = vpop.f32.mrf.mxu0
      %v2120 = vadd.f32 0.0, %v2119
      %v2121 = vpop.f32.mrf.mxu0
      %2122 = vdwg.mxu0
      %v2123 = vld [vmem:[%s3 + $0x18] sm:$0xff]
      %v2125 = vsel %vm578, %v2100, 0
      %v2128 = vsel %vm578, %v2105, 0
      %v2131 = vsel %vm578, %v2110, 0
      %v2134 = vsel %vm578, %v2115, 0
      %v2137 = vsel %vm578, %v2120, 0
      %2139 = vmatprep.subr.mxu0 0.0
      %2140 = vmatpush1.msra.mxu0 0.0
      %2141 = vmatprep.subr.mxu0 0.0
      %2142 = vmatpush1.msra.mxu0 0.0
      %2143 = vmatprep.subr.mxu0 0.0
      %2144 = vmatpush1.msra.mxu0 0.0
      %2145 = vmatprep.subr.mxu0 0.0
      %2146 = vmatpush1.msra.mxu0 0.0
      %2147 = vmatprep.subr.mxu0 0.0
      %2148 = vmatpush1.msra.mxu0 0.0
      %2149 = vmatprep.subr.mxu0 0.0
      %2150 = vmatpush1.msra.mxu0 0.0
      %2151 = vmatprep.subr.mxu0 0.0
      %2152 = vmatpush1.msra.mxu0 0.0
      %2153 = vmatprep.subr.mxu0 0.0
      %2154 = vmatpush1.msra.mxu0 0.0
      %2155 = vmatprep.subr.mxu0 0.0
      %2156 = vmatpush1.msra.mxu0 0.0
      %2157 = vmatprep.subr.mxu0 0.0
      %2158 = vmatpush1.msra.mxu0 0.0
      %2159 = vmatprep.subr.mxu0 0.0
      %2160 = vmatpush1.msra.mxu0 0.0
      %2161 = vmatprep.subr.mxu0 0.0
      %2162 = vmatpush1.msra.mxu0 0.0
      %2163 = vmatprep.subr.mxu0 0.0
      %2164 = vmatpush1.msra.mxu0 0.0
      %2165 = vmatprep.subr.mxu0 0.0
      %2166 = vmatpush1.msra.mxu0 0.0
      %2167 = vmatprep.subr.mxu0 0.0
      %2168 = vmatpush1.msra.mxu0 0.0
      %2169 = vmatprep.subr.mxu0 0.0
      %2170 = vmatpush1.msra.mxu0 %v2123
      %2171 = vmatprep.subr.mxu0 0.0
      %2172 = vmatpush2.msra.mxu0 0.0
      %2173 = vmatprep.subr.mxu0 0.0
      %2174 = vmatpush2.msra.mxu0 0.0
      %2175 = vmatprep.subr.mxu0 0.0
      %2176 = vmatpush2.msra.mxu0 0.0
      %2177 = vmatprep.subr.mxu0 0.0
      %2178 = vmatpush2.msra.mxu0 0.0
      %2179 = vmatprep.subr.mxu0 0.0
      %2180 = vmatpush2.msra.mxu0 0.0
      %2181 = vmatprep.subr.mxu0 0.0
      %2182 = vmatpush2.msra.mxu0 0.0
      %2183 = vmatprep.subr.mxu0 0.0
      %2184 = vmatpush2.msra.mxu0 0.0
      %2185 = vmatprep.subr.mxu0 0.0
      %2186 = vmatpush2.msra.mxu0 0.0
      %2187 = vmatprep.subr.mxu0 0.0
      %2188 = vmatpush2.msra.mxu0 0.0
      %2189 = vmatprep.subr.mxu0 0.0
      %2190 = vmatpush2.msra.mxu0 0.0
      %2191 = vmatprep.subr.mxu0 0.0
      %2192 = vmatpush2.msra.mxu0 0.0
      %2193 = vmatprep.subr.mxu0 0.0
      %2194 = vmatpush2.msra.mxu0 0.0
      %2195 = vmatprep.subr.mxu0 0.0
      %2196 = vmatpush2.msra.mxu0 0.0
      %2197 = vmatprep.subr.mxu0 0.0
      %2198 = vmatpush2.msra.mxu0 0.0
      %2199 = vmatprep.subr.mxu0 0.0
      %2200 = vmatpush2.msra.mxu0 0.0
      %2201 = vmatprep.subr.mxu0 0.0
      %2202 = vmatpush2.msra.mxu0 0.0
      %2203 = vmatprep.mubr.f32.mxu0 0.0
      %2204 = vmatmul.mubr.f32.gmra.mxu0 %v2125
      %v2205 = vpop.f32.mrf.mxu0
      %v2206 = vadd.f32 0.0, %v2205
      %v2207 = vpop.f32.mrf.mxu0
      %2208 = vmatprep.mubr.f32.mxu0 0.0
      %2209 = vmatmul.mubr.f32.gmra.mxu0 %v2128
      %v2210 = vpop.f32.mrf.mxu0
      %v2211 = vadd.f32 0.0, %v2210
      %v2212 = vpop.f32.mrf.mxu0
      %2213 = vmatprep.mubr.f32.mxu0 0.0
      %2214 = vmatmul.mubr.f32.gmra.mxu0 %v2131
      %v2215 = vpop.f32.mrf.mxu0
      %v2216 = vadd.f32 0.0, %v2215
      %v2217 = vpop.f32.mrf.mxu0
      %2218 = vmatprep.mubr.f32.mxu0 0.0
      %2219 = vmatmul.mubr.f32.gmra.mxu0 %v2134
      %v2220 = vpop.f32.mrf.mxu0
      %v2221 = vadd.f32 0.0, %v2220
      %v2222 = vpop.f32.mrf.mxu0
      %2223 = vmatprep.mubr.f32.mxu0 0.0
      %2224 = vmatmul.mubr.f32.gmra.mxu0 %v2137
      %v2225 = vpop.f32.mrf.mxu0
      %v2226 = vadd.f32 0.0, %v2225
      %v2227 = vpop.f32.mrf.mxu0
      %2228 = vdwg.mxu0
      %v2229 = vadd.f32 %v1808, %v2206
      %v2230 = vadd.f32 %v1809, %v2211
      %v2231 = vadd.f32 %v1810, %v2216
      %v2232 = vadd.f32 %v1811, %v2221
      %v2233 = vadd.f32 %v1812, %v2226
      %v2234 = vld [vmem:[%s4] sm:$0x1]
      %v2236 = vlaneseq
      %v2237 = vshrl.u32 %v2236, 7
      %v2238 = vsub.s32 0, %v2237
      %v2239 = vrot.slane %v2234, %v2238
      %v2241 = vadd.f32 %v2229, %v2239
      %v2242 = vadd.f32 %v2230, %v2239
      %v2243 = vadd.f32 %v2231, %v2239
      %v2244 = vadd.f32 %v2232, %v2239
      %v2245 = vadd.f32 %v2233, %v2239
      %v2246 = vadd.f32 %v441, %v2241
      %v2247 = vadd.f32 %v442, %v2242
      %v2248 = vadd.f32 %v443, %v2243
      %v2249 = vadd.f32 %v444, %v2244
      %v2250 = vadd.f32 %v445, %v2245
      %v2251 = vld [vmem:[%s5] sm:$0x1]
      %v2252 = vld [vmem:[%s6] sm:$0x1]
      %v2253 = vsel %vm457, %v2246, 0.0
      %2254 = vadd.xlane.f32.xlu0 %v2253
      %v2255 = vpop.xlane.xlu0 %2254
      %v2256 = vsel %vm457, %v2247, 0.0
      %2257 = vadd.xlane.f32.xlu0 %v2256
      %v2258 = vpop.xlane.xlu0 %2257
      %v2259 = vsel %vm457, %v2248, 0.0
      %2260 = vadd.xlane.f32.xlu0 %v2259
      %v2261 = vpop.xlane.xlu0 %2260
      %v2262 = vsel %vm457, %v2249, 0.0
      %2263 = vadd.xlane.f32.xlu0 %v2262
      %v2264 = vpop.xlane.xlu0 %2263
      %v2265 = vsel %vm457, %v2250, 0.0
      %2266 = vadd.xlane.f32.xlu0 %v2265
      %v2267 = vpop.xlane.xlu0 %2266
      %v2268 = vrcp.pop 32.0
      %v2269 = vmul.f32 %v2255, %v2268
      %v2270 = vmul.f32 %v2258, %v2268
      %v2271 = vmul.f32 %v2261, %v2268
      %v2272 = vmul.f32 %v2264, %v2268
      %v2273 = vmul.f32 %v2267, %v2268
      %v2274 = vsub.f32 %v2246, %v2269
      %v2275 = vsub.f32 %v2247, %v2270
      %v2276 = vsub.f32 %v2248, %v2271
      %v2277 = vsub.f32 %v2249, %v2272
      %v2278 = vsub.f32 %v2250, %v2273
      %v2279 = vmul.f32 %v2274, %v2274
      %v2280 = vmul.f32 %v2275, %v2275
      %v2281 = vmul.f32 %v2276, %v2276
      %v2282 = vmul.f32 %v2277, %v2277
      %v2283 = vmul.f32 %v2278, %v2278
      %v2284 = vsel %vm457, %v2279, 0.0
      %2285 = vadd.xlane.f32.xlu0 %v2284
      %v2286 = vpop.xlane.xlu0 %2285
      %v2287 = vsel %vm457, %v2280, 0.0
      %2288 = vadd.xlane.f32.xlu0 %v2287
      %v2289 = vpop.xlane.xlu0 %2288
      %v2290 = vsel %vm457, %v2281, 0.0
      %2291 = vadd.xlane.f32.xlu0 %v2290
      %v2292 = vpop.xlane.xlu0 %2291
      %v2293 = vsel %vm457, %v2282, 0.0
      %2294 = vadd.xlane.f32.xlu0 %v2293
      %v2295 = vpop.xlane.xlu0 %2294
      %v2296 = vsel %vm457, %v2283, 0.0
      %2297 = vadd.xlane.f32.xlu0 %v2296
      %v2298 = vpop.xlane.xlu0 %2297
      %v2299 = vmul.f32 %v2286, %v2268
      %v2300 = vmul.f32 %v2289, %v2268
      %v2301 = vmul.f32 %v2292, %v2268
      %v2302 = vmul.f32 %v2295, %v2268
      %v2303 = vmul.f32 %v2298, %v2268
      %v2304 = vadd.f32 %v2299, 1e-05
      %v2305 = vadd.f32 %v2300, 1e-05
      %v2306 = vadd.f32 %v2301, 1e-05
      %v2307 = vadd.f32 %v2302, 1e-05
      %v2308 = vadd.f32 %v2303, 1e-05
      %v2309 = vrsqrt.pop %v2304
      %v2310 = vrsqrt.pop %v2305
      %v2311 = vrsqrt.pop %v2306
      %v2312 = vrsqrt.pop %v2307
      %v2313 = vrsqrt.pop %v2308
      %v2314 = vmul.f32 %v2274, %v2309
      %v2315 = vmul.f32 %v2275, %v2310
      %v2316 = vmul.f32 %v2276, %v2311
      %v2317 = vmul.f32 %v2277, %v2312
      %v2318 = vmul.f32 %v2278, %v2313
      %v2320 = vlaneseq
      %v2321 = vshrl.u32 %v2320, 7
      %v2322 = vsub.s32 0, %v2321
      %v2323 = vrot.slane %v2251, %v2322
      %v2325 = vmul.f32 %v2314, %v2323
      %v2326 = vmul.f32 %v2315, %v2323
      %v2327 = vmul.f32 %v2316, %v2323
      %v2328 = vmul.f32 %v2317, %v2323
      %v2329 = vmul.f32 %v2318, %v2323
      %v2331 = vlaneseq
      %v2332 = vshrl.u32 %v2331, 7
      %v2333 = vsub.s32 0, %v2332
      %v2334 = vrot.slane %v2252, %v2333
      %v2336 = vadd.f32 %v2325, %v2334
      %v2337 = vadd.f32 %v2326, %v2334
      %v2338 = vadd.f32 %v2327, %v2334
      %v2339 = vadd.f32 %v2328, %v2334
      %v2340 = vadd.f32 %v2329, %v2334
      %v2341 = vld [vmem:[%s7] sm:$0xff]
      %v2342 = vld [vmem:[%s7 + $0x8] sm:$0xff]
      %v2343 = vld [vmem:[%s7 + $0x10] sm:$0xff]
      %v2344 = vld [vmem:[%s7 + $0x18] sm:$0xff]
      %v2345 = vld [vmem:[%s8] sm:$0x1]
      %v2347 = vlaneseq
      %v2348 = vshrl.u32 %v2347, 7
      %v2349 = vsub.s32 0, %v2348
      %v2350 = vrot.slane %v2345, %v2349
      %v2353 = vsel %vm457, %v2336, 0
      %v2356 = vsel %vm457, %v2337, 0
      %v2359 = vsel %vm457, %v2338, 0
      %v2362 = vsel %vm457, %v2339, 0
      %v2365 = vsel %vm457, %v2340, 0
      %2367 = vmatprep.subr.mxu0 0.0
      %2368 = vmatpush1.msra.mxu0 0.0
      %2369 = vmatprep.subr.mxu0 0.0
      %2370 = vmatpush1.msra.mxu0 0.0
      %2371 = vmatprep.subr.mxu0 0.0
      %2372 = vmatpush1.msra.mxu0 0.0
      %2373 = vmatprep.subr.mxu0 0.0
      %2374 = vmatpush1.msra.mxu0 0.0
      %2375 = vmatprep.subr.mxu0 0.0
      %2376 = vmatpush1.msra.mxu0 0.0
      %2377 = vmatprep.subr.mxu0 0.0
      %2378 = vmatpush1.msra.mxu0 0.0
      %2379 = vmatprep.subr.mxu0 0.0
      %2380 = vmatpush1.msra.mxu0 0.0
      %2381 = vmatprep.subr.mxu0 0.0
      %2382 = vmatpush1.msra.mxu0 0.0
      %2383 = vmatprep.subr.mxu0 0.0
      %2384 = vmatpush1.msra.mxu0 0.0
      %2385 = vmatprep.subr.mxu0 0.0
      %2386 = vmatpush1.msra.mxu0 0.0
      %2387 = vmatprep.subr.mxu0 0.0
      %2388 = vmatpush1.msra.mxu0 0.0
      %2389 = vmatprep.subr.mxu0 0.0
      %2390 = vmatpush1.msra.mxu0 0.0
      %2391 = vmatprep.subr.mxu0 0.0
      %2392 = vmatpush1.msra.mxu0 %v2344
      %2393 = vmatprep.subr.mxu0 0.0
      %2394 = vmatpush1.msra.mxu0 %v2343
      %2395 = vmatprep.subr.mxu0 0.0
      %2396 = vmatpush1.msra.mxu0 %v2342
      %2397 = vmatprep.subr.mxu0 0.0
      %2398 = vmatpush1.msra.mxu0 %v2341
      %2399 = vmatprep.subr.mxu0 0.0
      %2400 = vmatpush2.msra.mxu0 0.0
      %2401 = vmatprep.subr.mxu0 0.0
      %2402 = vmatpush2.msra.mxu0 0.0
      %2403 = vmatprep.subr.mxu0 0.0
      %2404 = vmatpush2.msra.mxu0 0.0
      %2405 = vmatprep.subr.mxu0 0.0
      %2406 = vmatpush2.msra.mxu0 0.0
      %2407 = vmatprep.subr.mxu0 0.0
      %2408 = vmatpush2.msra.mxu0 0.0
      %2409 = vmatprep.subr.mxu0 0.0
      %2410 = vmatpush2.msra.mxu0 0.0
      %2411 = vmatprep.subr.mxu0 0.0
      %2412 = vmatpush2.msra.mxu0 0.0
      %2413 = vmatprep.subr.mxu0 0.0
      %2414 = vmatpush2.msra.mxu0 0.0
      %2415 = vmatprep.subr.mxu0 0.0
      %2416 = vmatpush2.msra.mxu0 0.0
      %2417 = vmatprep.subr.mxu0 0.0
      %2418 = vmatpush2.msra.mxu0 0.0
      %2419 = vmatprep.subr.mxu0 0.0
      %2420 = vmatpush2.msra.mxu0 0.0
      %2421 = vmatprep.subr.mxu0 0.0
      %2422 = vmatpush2.msra.mxu0 0.0
      %2423 = vmatprep.subr.mxu0 0.0
      %2424 = vmatpush2.msra.mxu0 0.0
      %2425 = vmatprep.subr.mxu0 0.0
      %2426 = vmatpush2.msra.mxu0 0.0
      %2427 = vmatprep.subr.mxu0 0.0
      %2428 = vmatpush2.msra.mxu0 0.0
      %2429 = vmatprep.subr.mxu0 0.0
      %2430 = vmatpush2.msra.mxu0 0.0
      %2431 = vmatprep.mubr.f32.mxu0 0.0
      %2432 = vmatmul.mubr.f32.gmra.mxu0 %v2353
      %v2433 = vpop.f32.mrf.mxu0
      %v2434 = vadd.f32 %v2350, %v2433
      %v2435 = vpop.f32.mrf.mxu0
      %2436 = vmatprep.mubr.f32.mxu0 0.0
      %2437 = vmatmul.mubr.f32.gmra.mxu0 %v2356
      %v2438 = vpop.f32.mrf.mxu0
      %v2439 = vadd.f32 %v2350, %v2438
      %v2440 = vpop.f32.mrf.mxu0
      %2441 = vmatprep.mubr.f32.mxu0 0.0
      %2442 = vmatmul.mubr.f32.gmra.mxu0 %v2359
      %v2443 = vpop.f32.mrf.mxu0
      %v2444 = vadd.f32 %v2350, %v2443
      %v2445 = vpop.f32.mrf.mxu0
      %2446 = vmatprep.mubr.f32.mxu0 0.0
      %2447 = vmatmul.mubr.f32.gmra.mxu0 %v2362
      %v2448 = vpop.f32.mrf.mxu0
      %v2449 = vadd.f32 %v2350, %v2448
      %v2450 = vpop.f32.mrf.mxu0
      %2451 = vmatprep.mubr.f32.mxu0 0.0
      %2452 = vmatmul.mubr.f32.gmra.mxu0 %v2365
      %v2453 = vpop.f32.mrf.mxu0
      %v2454 = vadd.f32 %v2350, %v2453
      %v2455 = vpop.f32.mrf.mxu0
      %2456 = vdwg.mxu0
      %v2457 = vmul.f32 %v2434, %v2434
      %v2458 = vmul.f32 %v2439, %v2439
      %v2459 = vmul.f32 %v2444, %v2444
      %v2460 = vmul.f32 %v2449, %v2449
      %v2461 = vmul.f32 %v2454, %v2454
      %v2462 = vmul.f32 %v2434, %v2457
      %v2463 = vmul.f32 %v2439, %v2458
      %v2464 = vmul.f32 %v2444, %v2459
      %v2465 = vmul.f32 %v2449, %v2460
      %v2466 = vmul.f32 %v2454, %v2461
      %v2467 = vmul.f32 %v2462, 0.044715
      %v2468 = vmul.f32 %v2463, 0.044715
      %v2469 = vmul.f32 %v2464, 0.044715
      %v2470 = vmul.f32 %v2465, 0.044715
      %v2471 = vmul.f32 %v2466, 0.044715
      %v2472 = vadd.f32 %v2434, %v2467
      %v2473 = vadd.f32 %v2439, %v2468
      %v2474 = vadd.f32 %v2444, %v2469
      %v2475 = vadd.f32 %v2449, %v2470
      %v2476 = vadd.f32 %v2454, %v2471
      %v2477 = vmul.f32 %v2472, 0.7978846
      %v2478 = vmul.f32 %v2473, 0.7978846
      %v2479 = vmul.f32 %v2474, 0.7978846
      %v2480 = vmul.f32 %v2475, 0.7978846
      %v2481 = vmul.f32 %v2476, 0.7978846
      %v2482 = vtanh.pop %v2477
      %v2483 = vtanh.pop %v2478
      %v2484 = vtanh.pop %v2479
      %v2485 = vtanh.pop %v2480
      %v2486 = vtanh.pop %v2481
      %v2487 = vadd.f32 %v2482, 1.0
      %v2488 = vadd.f32 %v2483, 1.0
      %v2489 = vadd.f32 %v2484, 1.0
      %v2490 = vadd.f32 %v2485, 1.0
      %v2491 = vadd.f32 %v2486, 1.0
      %v2492 = vmul.f32 %v2487, 0.5
      %v2493 = vmul.f32 %v2488, 0.5
      %v2494 = vmul.f32 %v2489, 0.5
      %v2495 = vmul.f32 %v2490, 0.5
      %v2496 = vmul.f32 %v2491, 0.5
      %v2497 = vmul.f32 %v2434, %v2492
      %v2498 = vmul.f32 %v2439, %v2493
      %v2499 = vmul.f32 %v2444, %v2494
      %v2500 = vmul.f32 %v2449, %v2495
      %v2501 = vmul.f32 %v2454, %v2496
      %v2502 = vld [vmem:[%s9] sm:$0xff]
      %v2503 = vld [vmem:[%s9 + $0x8] sm:$0xff]
      %v2504 = vld [vmem:[%s9 + $0x10] sm:$0xff]
      %v2505 = vld [vmem:[%s9 + $0x18] sm:$0xff]
      %v2506 = vld [vmem:[%s9 + $0x20] sm:$0xff]
      %v2507 = vld [vmem:[%s9 + $0x28] sm:$0xff]
      %v2508 = vld [vmem:[%s9 + $0x30] sm:$0xff]
      %v2509 = vld [vmem:[%s9 + $0x38] sm:$0xff]
      %v2510 = vld [vmem:[%s10] sm:$0x1]
      %v2512 = vlaneseq
      %v2513 = vshrl.u32 %v2512, 7
      %v2514 = vsub.s32 0, %v2513
      %v2515 = vrot.slane %v2510, %v2514
      %vm2517 = vcmask 523264
      %v2519 = vsel %vm2517, %v2497, 0
      %v2522 = vsel %vm2517, %v2498, 0
      %v2525 = vsel %vm2517, %v2499, 0
      %v2528 = vsel %vm2517, %v2500, 0
      %v2531 = vsel %vm2517, %v2501, 0
      %2533 = vmatprep.subr.mxu0 0.0
      %2534 = vmatpush1.msra.mxu0 0.0
      %2535 = vmatprep.subr.mxu0 0.0
      %2536 = vmatpush1.msra.mxu0 0.0
      %2537 = vmatprep.subr.mxu0 0.0
      %2538 = vmatpush1.msra.mxu0 0.0
      %2539 = vmatprep.subr.mxu0 0.0
      %2540 = vmatpush1.msra.mxu0 0.0
      %2541 = vmatprep.subr.mxu0 0.0
      %2542 = vmatpush1.msra.mxu0 0.0
      %2543 = vmatprep.subr.mxu0 0.0
      %2544 = vmatpush1.msra.mxu0 0.0
      %2545 = vmatprep.subr.mxu0 0.0
      %2546 = vmatpush1.msra.mxu0 0.0
      %2547 = vmatprep.subr.mxu0 0.0
      %2548 = vmatpush1.msra.mxu0 0.0
      %2549 = vmatprep.subr.mxu0 0.0
      %2550 = vmatpush1.msra.mxu0 %v2509
      %2551 = vmatprep.subr.mxu0 0.0
      %2552 = vmatpush1.msra.mxu0 %v2508
      %2553 = vmatprep.subr.mxu0 0.0
      %2554 = vmatpush1.msra.mxu0 %v2507
      %2555 = vmatprep.subr.mxu0 0.0
      %2556 = vmatpush1.msra.mxu0 %v2506
      %2557 = vmatprep.subr.mxu0 0.0
      %2558 = vmatpush1.msra.mxu0 %v2505
      %2559 = vmatprep.subr.mxu0 0.0
      %2560 = vmatpush1.msra.mxu0 %v2504
      %2561 = vmatprep.subr.mxu0 0.0
      %2562 = vmatpush1.msra.mxu0 %v2503
      %2563 = vmatprep.subr.mxu0 0.0
      %2564 = vmatpush1.msra.mxu0 %v2502
      %2565 = vmatprep.subr.mxu0 0.0
      %2566 = vmatpush2.msra.mxu0 0.0
      %2567 = vmatprep.subr.mxu0 0.0
      %2568 = vmatpush2.msra.mxu0 0.0
      %2569 = vmatprep.subr.mxu0 0.0
      %2570 = vmatpush2.msra.mxu0 0.0
      %2571 = vmatprep.subr.mxu0 0.0
      %2572 = vmatpush2.msra.mxu0 0.0
      %2573 = vmatprep.subr.mxu0 0.0
      %2574 = vmatpush2.msra.mxu0 0.0
      %2575 = vmatprep.subr.mxu0 0.0
      %2576 = vmatpush2.msra.mxu0 0.0
      %2577 = vmatprep.subr.mxu0 0.0
      %2578 = vmatpush2.msra.mxu0 0.0
      %2579 = vmatprep.subr.mxu0 0.0
      %2580 = vmatpush2.msra.mxu0 0.0
      %2581 = vmatprep.subr.mxu0 0.0
      %2582 = vmatpush2.msra.mxu0 0.0
      %2583 = vmatprep.subr.mxu0 0.0
      %2584 = vmatpush2.msra.mxu0 0.0
      %2585 = vmatprep.subr.mxu0 0.0
      %2586 = vmatpush2.msra.mxu0 0.0
      %2587 = vmatprep.subr.mxu0 0.0
      %2588 = vmatpush2.msra.mxu0 0.0
      %2589 = vmatprep.subr.mxu0 0.0
      %2590 = vmatpush2.msra.mxu0 0.0
      %2591 = vmatprep.subr.mxu0 0.0
      %2592 = vmatpush2.msra.mxu0 0.0
      %2593 = vmatprep.subr.mxu0 0.0
      %2594 = vmatpush2.msra.mxu0 0.0
      %2595 = vmatprep.subr.mxu0 0.0
      %2596 = vmatpush2.msra.mxu0 0.0
      %2597 = vmatprep.mubr.f32.mxu0 0.0
      %2598 = vmatmul.mubr.f32.gmra.mxu0 %v2519
      %v2599 = vpop.f32.mrf.mxu0
      %v2600 = vadd.f32 %v2515, %v2599
      %v2601 = vpop.f32.mrf.mxu0
      %2602 = vmatprep.mubr.f32.mxu0 0.0
      %2603 = vmatmul.mubr.f32.gmra.mxu0 %v2522
      %v2604 = vpop.f32.mrf.mxu0
      %v2605 = vadd.f32 %v2515, %v2604
      %v2606 = vpop.f32.mrf.mxu0
      %2607 = vmatprep.mubr.f32.mxu0 0.0
      %2608 = vmatmul.mubr.f32.gmra.mxu0 %v2525
      %v2609 = vpop.f32.mrf.mxu0
      %v2610 = vadd.f32 %v2515, %v2609
      %v2611 = vpop.f32.mrf.mxu0
      %2612 = vmatprep.mubr.f32.mxu0 0.0
      %2613 = vmatmul.mubr.f32.gmra.mxu0 %v2528
      %v2614 = vpop.f32.mrf.mxu0
      %v2615 = vadd.f32 %v2515, %v2614
      %v2616 = vpop.f32.mrf.mxu0
      %2617 = vmatprep.mubr.f32.mxu0 0.0
      %2618 = vmatmul.mubr.f32.gmra.mxu0 %v2531
      %v2619 = vpop.f32.mrf.mxu0
      %v2620 = vadd.f32 %v2515, %v2619
      %v2621 = vpop.f32.mrf.mxu0
      %2622 = vdwg.mxu0
      %v2623 = vadd.f32 %v2336, %v2600
      %v2624 = vadd.f32 %v2337, %v2605
      %v2625 = vadd.f32 %v2338, %v2610
      %v2626 = vadd.f32 %v2339, %v2615
      %v2627 = vadd.f32 %v2340, %v2620
      %v2628 = vld [vmem:[%s11] sm:$0x1]
      %v2629 = vld [vmem:[%s12] sm:$0x1]
      %v2630 = vsel %vm457, %v2623, 0.0
      %2631 = vadd.xlane.f32.xlu0 %v2630
      %v2632 = vpop.xlane.xlu0 %2631
      %v2633 = vsel %vm457, %v2624, 0.0
      %2634 = vadd.xlane.f32.xlu0 %v2633
      %v2635 = vpop.xlane.xlu0 %2634
      %v2636 = vsel %vm457, %v2625, 0.0
      %2637 = vadd.xlane.f32.xlu0 %v2636
      %v2638 = vpop.xlane.xlu0 %2637
      %v2639 = vsel %vm457, %v2626, 0.0
      %2640 = vadd.xlane.f32.xlu0 %v2639
      %v2641 = vpop.xlane.xlu0 %2640
      %v2642 = vsel %vm457, %v2627, 0.0
      %2643 = vadd.xlane.f32.xlu0 %v2642
      %v2644 = vpop.xlane.xlu0 %2643
      %v2645 = vmul.f32 %v2632, %v2268
      %v2646 = vmul.f32 %v2635, %v2268
      %v2647 = vmul.f32 %v2638, %v2268
      %v2648 = vmul.f32 %v2641, %v2268
      %v2649 = vmul.f32 %v2644, %v2268
      %v2650 = vsub.f32 %v2623, %v2645
      %v2651 = vsub.f32 %v2624, %v2646
      %v2652 = vsub.f32 %v2625, %v2647
      %v2653 = vsub.f32 %v2626, %v2648
      %v2654 = vsub.f32 %v2627, %v2649
      %v2655 = vmul.f32 %v2650, %v2650
      %v2656 = vmul.f32 %v2651, %v2651
      %v2657 = vmul.f32 %v2652, %v2652
      %v2658 = vmul.f32 %v2653, %v2653
      %v2659 = vmul.f32 %v2654, %v2654
      %v2660 = vsel %vm457, %v2655, 0.0
      %2661 = vadd.xlane.f32.xlu0 %v2660
      %v2662 = vpop.xlane.xlu0 %2661
      %v2663 = vsel %vm457, %v2656, 0.0
      %2664 = vadd.xlane.f32.xlu0 %v2663
      %v2665 = vpop.xlane.xlu0 %2664
      %v2666 = vsel %vm457, %v2657, 0.0
      %2667 = vadd.xlane.f32.xlu0 %v2666
      %v2668 = vpop.xlane.xlu0 %2667
      %v2669 = vsel %vm457, %v2658, 0.0
      %2670 = vadd.xlane.f32.xlu0 %v2669
      %v2671 = vpop.xlane.xlu0 %2670
      %v2672 = vsel %vm457, %v2659, 0.0
      %2673 = vadd.xlane.f32.xlu0 %v2672
      %v2674 = vpop.xlane.xlu0 %2673
      %v2675 = vmul.f32 %v2662, %v2268
      %v2676 = vmul.f32 %v2665, %v2268
      %v2677 = vmul.f32 %v2668, %v2268
      %v2678 = vmul.f32 %v2671, %v2268
      %v2679 = vmul.f32 %v2674, %v2268
      %v2680 = vadd.f32 %v2675, 1e-05
      %v2681 = vadd.f32 %v2676, 1e-05
      %v2682 = vadd.f32 %v2677, 1e-05
      %v2683 = vadd.f32 %v2678, 1e-05
      %v2684 = vadd.f32 %v2679, 1e-05
      %v2685 = vrsqrt.pop %v2680
      %v2686 = vrsqrt.pop %v2681
      %v2687 = vrsqrt.pop %v2682
      %v2688 = vrsqrt.pop %v2683
      %v2689 = vrsqrt.pop %v2684
      %v2690 = vmul.f32 %v2650, %v2685
      %v2691 = vmul.f32 %v2651, %v2686
      %v2692 = vmul.f32 %v2652, %v2687
      %v2693 = vmul.f32 %v2653, %v2688
      %v2694 = vmul.f32 %v2654, %v2689
      %v2696 = vlaneseq
      %v2697 = vshrl.u32 %v2696, 7
      %v2698 = vsub.s32 0, %v2697
      %v2699 = vrot.slane %v2628, %v2698
      %v2701 = vmul.f32 %v2690, %v2699
      %v2702 = vmul.f32 %v2691, %v2699
      %v2703 = vmul.f32 %v2692, %v2699
      %v2704 = vmul.f32 %v2693, %v2699
      %v2705 = vmul.f32 %v2694, %v2699
      %v2707 = vlaneseq
      %v2708 = vshrl.u32 %v2707, 7
      %v2709 = vsub.s32 0, %v2708
      %v2710 = vrot.slane %v2629, %v2709
      %v2712 = vadd.f32 %v2701, %v2710
      %v2713 = vadd.f32 %v2702, %v2710
      %v2714 = vadd.f32 %v2703, %v2710
      %v2715 = vadd.f32 %v2704, %v2710
      %v2716 = vadd.f32 %v2705, %v2710
      %2717 = vst.msk [vmem:[%s440] sm:$0xff] %vm457, %v2712
      %2718 = vst.msk [vmem:[%s440 + $0x8] sm:$0xff] %vm457, %v2713
      %2719 = vst.msk [vmem:[%s440 + $0x10] sm:$0xff] %vm457, %v2714
      %2720 = vst.msk [vmem:[%s440 + $0x18] sm:$0xff] %vm457, %v2715
      %2721 = vst.msk [vmem:[%s440 + $0x20] sm:$0xff] %vm457, %v2716
      %p2722 = scmp.lt.s32.totalorder %s24, 1
      %s2723 = scalar_select %p2722, %s24, 1
      %s2724 = smul.addr %s2723, 5
      %s2725 = smul.addr %s2724, 8
      %s2726 = scalar_lea.vmem %s13, %s2725
      // Predicated region
      $region73: #{mert_l2p_forward.19} parent=71 // pred_check
        %p2727 = pneg %p320
      $region74: #{mert_l2p_forward.19} parent=71 // pred_check_branch
        %2729 = sbr.rel (%p2727) target = $region76
      $region75: #{mert_l2p_forward.19} parent=71 // pred_region
        _
      $region76: #{mert_l2p_forward.19} parent=71 // pred_fallthru
        _
    $region72: #{mert_l2p_forward.19} parent=5 // pred_fallthru
      _
    %p2730 = scmp.le.s32.totalorder 2, %s19
    // Predicated region
    $region77: #{mert_l2p_forward.19} parent=5 // pred_check
      %p2731 = pneg %p2730
    $region78: #{mert_l2p_forward.19} parent=5 // pred_check_branch
      %2733 = sbr.rel (%p2731) target = $region80
    $region79: #{mert_l2p_forward.19} parent=5 // pred_region
      %s2734 = ssub.s32 %s19, 2
      // Predicated region
      $region81: #{mert_l2p_forward.19} parent=79 // pred_check
        %p2735 = pneg %p326
      $region82: #{mert_l2p_forward.19} parent=79 // pred_check_branch
        %2737 = sbr.rel (%p2735) target = $region84
      $region83: #{mert_l2p_forward.19} parent=79 // pred_region
        %p2738 = scmp.lt.s32.totalorder %s25, 1
        %s2739 = scalar_select %p2738, %s25, 1
        %s2740 = smul.addr %s2739, 5
        %s2741 = smul.addr %s2740, 8
        %s2742 = scalar_lea.vmem %s13, %s2741
      $region84: #{mert_l2p_forward.19} parent=79 // pred_fallthru
        _
    $region80: #{mert_l2p_forward.19} parent=5 // pred_fallthru
      _
  $region6: #{mert_l2p_forward.19} parent=0 // loop_footer
    %s23 = sadd.s32 1, %s19
  $region7: #{mert_l2p_forward.19} parent=0 // loop_footer_branch
    %18 = sbr.rel target = $region3
  $region8: #{mert_l2p_forward.19} parent=0 // loop_exit
    _

</llo_original>
